<compile_context>
chip_gen: v5e
topology: v5e:2x2
jax: 0.10.0
libtpu: 0.0.40
codegen_flags: <defaults>
</compile_context>

<pallas_src>
import numpy as np
import jax
import jax.numpy as jnp
from jax import lax
from jax.experimental import pallas as pl
from jax.experimental.pallas import tpu as pltpu


# ----------------------------- model constants ----------------------------- #
C_DEC = 4                     # `c` argument of Decoder_M
H0 = W0 = 8                   # spatial grid after reshape(-1, c, 8, 8)
N_POS = C_DEC * H0 * W0       # 256 : Conv1d output length that reshapes to (c, 8, 8)
L_IN = N_POS + 2              # 258 : Conv1d(k=3, pad=0) input length
H_OUT = 4 * H0                # 32  : two stride-2 transposed convs
OUT_LANES = 128               # lane-padded output width (3*32 data lanes + 32 pad)
BN_EPS = 1e-5


# ----------------------- synthetic weights (PyTorch layout) ----------------- #
def _round_bf16(a):
    """Round to bf16-representable values so bf16 operator storage is exact."""
    return np.asarray(jnp.asarray(a, jnp.bfloat16).astype(jnp.float32))


def init_params(key):
    ks = iter(jax.random.split(key, 32))
    rnd = lambda shape, s: _round_bf16(s * jax.random.normal(next(ks), shape, jnp.float32))
    uni = lambda shape, lo, hi: _round_bf16(jax.random.uniform(next(ks), shape,
                                                               jnp.float32, lo, hi))
    p = {}
    # Con_for_chl: Conv1d(4, 1, 3) + PReLU
    p["w1d"] = rnd((1, 4, 3), 0.3)
    p["b1d"] = float(rnd((), 0.1))
    # Dcovs: ConvTranspose2d weights, PyTorch layout (Cin, Cout, kh, kw)
    spec = [(C_DEC, 32, 3), (32, 32, 3), (32, 32, 3), (32, 16, 4), (16, 3, 4)]
    for idx, (ci, co, k) in enumerate(spec, start=1):
        p[f"tw{idx}"] = rnd((ci, co, k, k), 0.15)
        p[f"tb{idx}"] = rnd((co,), 0.15)
    # BatchNorm2d running statistics (eval mode) after layers 2, 3, 4
    for idx, co in [(2, 32), (3, 32), (4, 16)]:
        p[f"bn{idx}_g"] = uni((co,), 0.8, 1.2)
        p[f"bn{idx}_b"] = rnd((co,), 0.15)
        p[f"bn{idx}_m"] = rnd((co,), 0.15)
        p[f"bn{idx}_v"] = uni((co,), 0.5, 1.5)
    # PReLU alphas (nn.PReLU() default init 0.25), passed as data not constants
    p["alphas"] = np.full((5,), 0.25, np.float32)
    return p


# -------------------- expanded conv-transpose operators --------------------- #
def _build_col_op(wt, win, stride, pad, cmajor_out=False, lane_pad=None):
    """(Win*Ci, KK*Npad): horizontal taps / column interleave / channel mix,
    with all kernel rows kh concatenated along lanes."""
    ci_n, co_n, kk, _ = wt.shape
    wout = (win - 1) * stride - 2 * pad + kk
    n = wout * co_n
    npad = lane_pad if lane_pad is not None else n
    m = np.zeros((win * ci_n, kk * npad), np.float32)
    for kh in range(kk):
        for iw in range(win):
            for ow in range(wout):
                kw = ow + pad - stride * iw
                if 0 <= kw < kk:
                    blk = wt[:, :, kh, kw]              # (ci, co)
                    for co in range(co_n):
                        col = co * wout + ow if cmajor_out else ow * co_n + co
                        m[iw * ci_n:(iw + 1) * ci_n, kh * npad + col] = blk[:, co]
    return m


def _build_s_blockdiag(kk, hin, stride, pad, tb, in_row_pad):
    """(KK, TB*Hout, TB*Rin): per-image vertical-tap / stride-2 row interleave,
    block-diagonal over the TB images stacked along sublanes."""
    hout = (hin - 1) * stride - 2 * pad + kk
    rin = hin + 2 * in_row_pad
    s = np.zeros((kk, tb * hout, tb * rin), np.float32)
    for kh in range(kk):
        for b in range(tb):
            for ih in range(hin):
                oh = stride * ih - pad + kh
                if 0 <= oh < hout:
                    s[kh, b * hout + oh, b * rin + in_row_pad + ih] = 1.0
    return s


def _build_rearrange():
    """(8, 256, 32): Conv1d-output index -> NHWC lanes (j*C + ci), one matrix per row i."""
    t = np.zeros((H0, N_POS, W0 * C_DEC), np.float32)
    for i in range(H0):
        for ci in range(C_DEC):
            for j in range(W0):
                t[i, ci * H0 * W0 + i * W0 + j, j * C_DEC + ci] = 1.0
    return t


def _build_scatter(tb):
    """(TB*(8+2), 8*TB): scatter the stacked per-row results into the row-padded
    batched layout; pad rows are all-zero rows."""
    s = np.zeros((tb * (H0 + 2), H0 * tb), np.float32)
    for b in range(tb):
        for i in range(H0):
            s[b * (H0 + 2) + 1 + i, i * tb + b] = 1.0
    return s


def _build_rowmask(tb):
    """(TB*(8+2), 1): 1 on image rows, 0 on the inter-image zero-pad rows."""
    m = np.zeros((tb * (H0 + 2), 1), np.float32)
    for b in range(tb):
        m[b * (H0 + 2) + 1: b * (H0 + 2) + 1 + H0, 0] = 1.0
    return m


def _affine_rows(bias, bn, wout, co_n, cmajor=False, lane_pad=None):
    """(2, N[pad]): row0 = scale, row1 = shift (conv bias + folded eval-mode BN)."""
    bias = np.asarray(bias, np.float32)
    if bn is None:
        scale = np.ones((co_n,), np.float32)
        shift = bias
    else:
        g, b, m, v = (np.asarray(a, np.float32) for a in bn)
        scale = g / np.sqrt(v + BN_EPS)
        shift = (bias - m) * scale + b
    if cmajor:
        srow, trow = np.repeat(scale, wout), np.repeat(shift, wout)
    else:
        srow, trow = np.tile(scale, wout), np.tile(shift, wout)
    arr = np.stack([srow, trow]).astype(np.float32)
    if lane_pad is not None and lane_pad > arr.shape[1]:
        arr = np.pad(arr, ((0, 0), (0, lane_pad - arr.shape[1])))
    return arr


def build_operators(p, tb):
    ops = {
        "tre": jnp.asarray(_build_rearrange(), jnp.bfloat16),          # (8, 256, 32)
        "scat": jnp.asarray(_build_scatter(tb), jnp.float32),          # (TB*10, 8*TB)
        "msk": jnp.asarray(_build_rowmask(tb), jnp.float32),           # (TB*10, 1)
    }
    # layer 1-3: ConvTranspose2d k=3, stride=1, pad=1 (8x8 -> 8x8)
    bn_keys = {2: ("bn2_g", "bn2_b", "bn2_m", "bn2_v"),
               3: ("bn3_g", "bn3_b", "bn3_m", "bn3_v")}
    for li in (1, 2, 3):
        wt = p[f"tw{li}"]
        ops[f"m{li}"] = jnp.asarray(_build_col_op(wt, H0, 1, 1), jnp.bfloat16)
        bn = None if li == 1 else tuple(p[k] for k in bn_keys[li])
        ops[f"a{li}"] = jnp.asarray(
            _affine_rows(p[f"tb{li}"], bn, H0, wt.shape[1]), jnp.float32)
    # layer 4: ConvTranspose2d k=4, stride=2, pad=1 (8x8x32 -> 16x16x16), BN folded
    ops["m4"] = jnp.asarray(_build_col_op(p["tw4"], H0, 2, 1), jnp.bfloat16)
    ops["s4"] = jnp.asarray(_build_s_blockdiag(4, H0, 2, 1, tb, in_row_pad=1), jnp.float32)
    ops["a4"] = jnp.asarray(
        _affine_rows(p["tb4"], tuple(p[k] for k in
                                     ("bn4_g", "bn4_b", "bn4_m", "bn4_v")),
                     2 * H0, 16), jnp.float32)
    # layer 5: ConvTranspose2d k=4, stride=2, pad=1 (16x16x16 -> 32x32x3), c-major lanes
    ops["m5"] = jnp.asarray(
        _build_col_op(p["tw5"], 2 * H0, 2, 1, cmajor_out=True, lane_pad=OUT_LANES),
        jnp.bfloat16)
    ops["s5"] = jnp.asarray(_build_s_blockdiag(4, 2 * H0, 2, 1, tb, in_row_pad=0),
                            jnp.float32)
    ops["a5"] = jnp.asarray(
        _affine_rows(p["tb5"], None, H_OUT, 3, cmajor=True, lane_pad=OUT_LANES),
        jnp.float32)
    return ops


# --------------------------------- kernel ----------------------------------- #
def _shift_rows_up(t):       # result[r] = t[r + 1], last row -> 0
    return jnp.concatenate([t[1:, :], jnp.zeros((1, t.shape[1]), t.dtype)], axis=0)


def _shift_rows_down(t):     # result[r] = t[r - 1], first row -> 0
    return jnp.concatenate([jnp.zeros((1, t.shape[1]), t.dtype), t[:-1, :]], axis=0)


def _decoder_kernel(x_ref, w1_ref, sc_ref, tre_ref, scat_ref, msk_ref,
                    m1, a1, m2, a2, m3, a3, m4, s4, a4, m5, s5, a5,
                    out_ref):
    f32, bf16 = jnp.float32, jnp.bfloat16
    tb = x_ref.shape[0]

    # ---- Con_for_chl: Conv1d(4 -> 1, k=3, pad=0) + PReLU, batched over TB images ----
    xs = x_ref[...]                                        # (TB, 4, L_IN) f32
    y = jnp.zeros((tb, N_POS), f32)
    for ci in range(C_DEC):
        for k in range(3):
            y = y + xs[:, ci, k:k + N_POS] * w1_ref[ci, k]
    y = y + sc_ref[0]
    y = jnp.where(y >= 0.0, y, sc_ref[1] * y)              # (TB, 256)

    # ---- squeeze + reshape(-1, c, 8, 8) -> batched row-padded NHWC stack -------------
    yb = y.astype(bf16)
    rows = [jnp.dot(yb, tre_ref[i], preferred_element_type=f32) for i in range(H0)]
    rstack = jnp.concatenate(rows, axis=0)                 # (8*TB, 32) f32
    x0 = jnp.dot(scat_ref[...], rstack, preferred_element_type=f32)   # (TB*10, 32)

    mask10 = msk_ref[...]                                  # (TB*10, 1), zeroes pad rows

    def prelu(v, alpha):
        return jnp.where(v >= 0.0, v, alpha * v)

    def dconv_s1(v, m_ref, a_ref):
        # stride-1 ConvTranspose2d(k=3, pad=1): one wide bf16 column matmul on the MXU,
        # vertical taps as +-1 row shifts of the kh slices, pad rows re-zeroed by mask.
        n = a_ref.shape[1]
        t = jnp.dot(v.astype(bf16), m_ref[...], preferred_element_type=f32)  # (rows, 3n)
        acc = (_shift_rows_up(t[:, 0:n])          # kh=0 reads input row r+1
               + t[:, n:2 * n]                    # kh=1 reads input row r
               + _shift_rows_down(t[:, 2 * n:3 * n]))   # kh=2 reads input row r-1
        aff = a_ref[...]
        return (acc * aff[0:1, :] + aff[1:2, :]) * mask10

    def dconv_s2(v, m_ref, s_ref, a_ref):
        # stride-2 ConvTranspose2d(k=4, pad=1): wide bf16 column matmul on the MXU,
        # row interleave via small block-diagonal 0/1 matmuls (exact, f32).
        kk = s_ref.shape[0]
        n = a_ref.shape[1]
        t = jnp.dot(v.astype(bf16), m_ref[...], preferred_element_type=f32)  # (rin, kk*n)
        acc = jnp.dot(s_ref[0], t[:, 0:n], preferred_element_type=f32)
        for kh in range(1, kk):
            acc = acc + jnp.dot(s_ref[kh], t[:, kh * n:(kh + 1) * n],
                                preferred_element_type=f32)
        aff = a_ref[...]
        return acc * aff[0:1, :] + aff[1:2, :]

    h = prelu(dconv_s1(x0, m1, a1), sc_ref[2])     # (TB*10, 256)   8x8x32
    h = prelu(dconv_s1(h, m2, a2), sc_ref[3])      # (TB*10, 256)   BN folded
    h = prelu(dconv_s1(h, m3, a3), sc_ref[4])      # (TB*10, 256)   BN folded
    h = prelu(dconv_s2(h, m4, s4, a4), sc_ref[5])  # (TB*16, 256)   16x16x16, BN folded
    h = dconv_s2(h, m5, s5, a5)                    # (TB*32, 128)   32x32x3, c-major lanes

    # Sigmoid * 255: exp on the EUP + approximate reciprocal instead of a VALU divide.
    h = 255.0 * pl.reciprocal(1.0 + jnp.exp(-h), approx=True)
    out_ref[...] = h                               # single lane-dense (TB*32, 128) store


def decoder_m_forward(x, params, ops, tb=8):
    assert x.shape[1:] == (C_DEC, L_IN)
    batch = x.shape[0]
    assert batch % tb == 0, "demo wrapper requires batch % tb == 0"
    grid = (batch // tb,)

    w1 = jnp.asarray(params["w1d"][0], jnp.float32)                    # (4, 3)
    scal = jnp.concatenate([jnp.asarray([params["b1d"]], jnp.float32),
                            jnp.asarray(params["alphas"], jnp.float32)])   # (6,)

    big_names = ["tre", "scat", "msk", "m1", "a1", "m2", "a2", "m3", "a3",
                 "m4", "s4", "a4", "m5", "s5", "a5"]
    big = [ops[n] for n in big_names]
    operands = [x, w1, scal] + big

    def const_map(nd):
        return lambda g, nd=nd: (0,) * nd

    smem_spec = pl.BlockSpec(memory_space=pltpu.MemorySpace.SMEM)
    in_specs = [pl.BlockSpec((tb, C_DEC, L_IN), lambda g: (g, 0, 0)),
                smem_spec, smem_spec]
    in_specs += [pl.BlockSpec(op.shape, const_map(op.ndim)) for op in big]
    out_specs = pl.BlockSpec((tb * H_OUT, OUT_LANES), lambda g: (g, 0))

    raw = pl.pallas_call(
        _decoder_kernel,
        out_shape=jax.ShapeDtypeStruct((batch * H_OUT, OUT_LANES), jnp.float32),
        grid=grid,
        in_specs=in_specs,
        out_specs=out_specs,
        compiler_params=pltpu.CompilerParams(dimension_semantics=("parallel",)),
    )(*operands)

    # Lane-dense kernel output -> NCHW in the wrapper (cheap XLA reshape/transpose).
    img = raw.reshape(batch, H_OUT, OUT_LANES)[:, :, :3 * H_OUT]
    img = img.reshape(batch, H_OUT, 3, H_OUT).transpose(0, 2, 1, 3)
    return img


# --------------------------- pure-JAX reference ------------------------------ #
def _conv_transpose2d_ref(x, wt, bias, stride, pad):
    kk = wt.shape[2]
    wf = jnp.transpose(jnp.asarray(wt)[:, :, ::-1, ::-1], (1, 0, 2, 3))  # (Co,Ci,K,K)
    y = lax.conv_general_dilated(
        x, wf, window_strides=(1, 1),
        padding=[(kk - 1 - pad, kk - 1 - pad)] * 2,
        lhs_dilation=(stride, stride), rhs_dilation=(1, 1),
        dimension_numbers=("NCHW", "OIHW", "NCHW"),
        precision=lax.Precision.HIGHEST)
    return y + jnp.asarray(bias).reshape(1, -1, 1, 1)


def _bn_ref(x, g, b, m, v):
    g, b, m, v = (jnp.asarray(a).reshape(1, -1, 1, 1) for a in (g, b, m, v))
    return (x - m) / jnp.sqrt(v + BN_EPS) * g + b


def _prelu_ref(x, a):
    return jnp.where(x >= 0, x, a * x)


def decoder_m_reference(x, p):
    al = p["alphas"]
    y = lax.conv_general_dilated(
        x, jnp.asarray(p["w1d"]), window_strides=(1,), padding=[(0, 0)],
        dimension_numbers=("NCH", "OIH", "NCH"),
        precision=lax.Precision.HIGHEST) + p["b1d"]
    y = _prelu_ref(y, al[0])                         # (B, 1, 256)  then squeeze+reshape
    y = y.reshape(-1, C_DEC, H0, W0)
    y = _prelu_ref(_conv_transpose2d_ref(y, p["tw1"], p["tb1"], 1, 1), al[1])
    y = _conv_transpose2d_ref(y, p["tw2"], p["tb2"], 1, 1)
    y = _prelu_ref(_bn_ref(y, p["bn2_g"], p["bn2_b"], p["bn2_m"], p["bn2_v"]), al[2])
    y = _conv_transpose2d_ref(y, p["tw3"], p["tb3"], 1, 1)
    y = _prelu_ref(_bn_ref(y, p["bn3_g"], p["bn3_b"], p["bn3_m"], p["bn3_v"]), al[3])
    y = _conv_transpose2d_ref(y, p["tw4"], p["tb4"], 2, 1)
    y = _prelu_ref(_bn_ref(y, p["bn4_g"], p["bn4_b"], p["bn4_m"], p["bn4_v"]), al[4])
    y = _conv_transpose2d_ref(y, p["tw5"], p["tb5"], 2, 1)
    return jax.nn.sigmoid(y) * 255.0


# ----------------------------------- main ------------------------------------ #
if __name__ == "__main__":
    key = jax.random.PRNGKey(0)
    k_x, k_p = jax.random.split(key)

    B, TB = 16, 8                                   # grid = (2,) -> both v7x TCs get work
    x = jax.random.uniform(k_x, (B, C_DEC, L_IN), jnp.float32, -1.0, 1.0)

    params = init_params(k_p)
    ops = build_operators(params, TB)

    out = decoder_m_forward(x, params, ops, tb=TB)
    out = jax.block_until_ready(out)

    assert out.shape == (B, 3, H_OUT, H_OUT)

    ref = decoder_m_reference(x, params)
    np.testing.assert_allclose(np.asarray(out), np.asarray(ref), rtol=0.05, atol=2.0)

    print("KERNEL_OK")
</pallas_src>

<mosaic_0001>
module attributes {stable_mosaic.version = 11 : i64} {
  func.func @_decoder_kernel(%arg0: i32, %arg1: memref<8x4x258xf32, #tpu.memory_space<vmem>>, %arg2: memref<4x3xf32, #tpu.memory_space<smem>>, %arg3: memref<6xf32, #tpu.memory_space<smem>>, %arg4: memref<8x256x32xbf16, #tpu.memory_space<vmem>>, %arg5: memref<80x64xf32, #tpu.memory_space<vmem>>, %arg6: memref<80x1xf32, #tpu.memory_space<vmem>>, %arg7: memref<32x768xbf16, #tpu.memory_space<vmem>>, %arg8: memref<2x256xf32, #tpu.memory_space<vmem>>, %arg9: memref<256x768xbf16, #tpu.memory_space<vmem>>, %arg10: memref<2x256xf32, #tpu.memory_space<vmem>>, %arg11: memref<256x768xbf16, #tpu.memory_space<vmem>>, %arg12: memref<2x256xf32, #tpu.memory_space<vmem>>, %arg13: memref<256x1024xbf16, #tpu.memory_space<vmem>>, %arg14: memref<4x128x80xf32, #tpu.memory_space<vmem>>, %arg15: memref<2x256xf32, #tpu.memory_space<vmem>>, %arg16: memref<256x512xbf16, #tpu.memory_space<vmem>>, %arg17: memref<4x256x128xf32, #tpu.memory_space<vmem>>, %arg18: memref<2x128xf32, #tpu.memory_space<vmem>>, %arg19: memref<256x128xf32, #tpu.memory_space<vmem>>) attributes {dimension_semantics = [#tpu.dimension_semantics<parallel>], iteration_bounds = array<i64: 2>, scalar_prefetch = 0 : i64, scratch_operands = 0 : i64, tpu.core_type = #tpu.core_type<tc>, window_params = [{transform_indices = @transform_0, window_bounds = array<i64: 8, 4, 258>}, {transform_indices = @transform_1, window_bounds = array<i64: 4, 3>}, {transform_indices = @transform_2, window_bounds = array<i64: 6>}, {pipeline_mode = #tpu.pipeline_mode<synchronous>, transform_indices = @transform_3, window_bounds = array<i64: 8, 256, 32>}, {pipeline_mode = #tpu.pipeline_mode<synchronous>, transform_indices = @transform_4, window_bounds = array<i64: 80, 64>}, {pipeline_mode = #tpu.pipeline_mode<synchronous>, transform_indices = @transform_5, window_bounds = array<i64: 80, 1>}, {pipeline_mode = #tpu.pipeline_mode<synchronous>, transform_indices = @transform_6, window_bounds = array<i64: 32, 768>}, {pipeline_mode = #tpu.pipeline_mode<synchronous>, transform_indices = @transform_7, window_bounds = array<i64: 2, 256>}, {pipeline_mode = #tpu.pipeline_mode<synchronous>, transform_indices = @transform_8, window_bounds = array<i64: 256, 768>}, {pipeline_mode = #tpu.pipeline_mode<synchronous>, transform_indices = @transform_9, window_bounds = array<i64: 2, 256>}, {pipeline_mode = #tpu.pipeline_mode<synchronous>, transform_indices = @transform_10, window_bounds = array<i64: 256, 768>}, {pipeline_mode = #tpu.pipeline_mode<synchronous>, transform_indices = @transform_11, window_bounds = array<i64: 2, 256>}, {pipeline_mode = #tpu.pipeline_mode<synchronous>, transform_indices = @transform_12, window_bounds = array<i64: 256, 1024>}, {pipeline_mode = #tpu.pipeline_mode<synchronous>, transform_indices = @transform_13, window_bounds = array<i64: 4, 128, 80>}, {pipeline_mode = #tpu.pipeline_mode<synchronous>, transform_indices = @transform_14, window_bounds = array<i64: 2, 256>}, {pipeline_mode = #tpu.pipeline_mode<synchronous>, transform_indices = @transform_15, window_bounds = array<i64: 256, 512>}, {pipeline_mode = #tpu.pipeline_mode<synchronous>, transform_indices = @transform_16, window_bounds = array<i64: 4, 256, 128>}, {pipeline_mode = #tpu.pipeline_mode<synchronous>, transform_indices = @transform_17, window_bounds = array<i64: 2, 128>}, {transform_indices = @transform_18, window_bounds = array<i64: 256, 128>}]} {
    %c0 = arith.constant 0 : index
    %c0_0 = arith.constant 0 : index
    %c0_1 = arith.constant 0 : index
    %0 = vector.load %arg1[%c0, %c0_0, %c0_1] : memref<8x4x258xf32, #tpu.memory_space<vmem>>, vector<8x4x258xf32>
    %cst = arith.constant 0.000000e+00 : f32
    %1 = vector.broadcast %cst : f32 to vector<8x256xf32>
    %2 = vector.extract_strided_slice %0 {offsets = [0, 0, 0], sizes = [8, 1, 256], strides = [1, 1, 1]} : vector<8x4x258xf32> to vector<8x1x256xf32>
    %3 = vector.shape_cast %2 : vector<8x1x256xf32> to vector<8x256xf32>
    %c0_2 = arith.constant 0 : index
    %c0_3 = arith.constant 0 : index
    %4 = memref.load %arg2[%c0_2, %c0_3] : memref<4x3xf32, #tpu.memory_space<smem>>
    %5 = vector.broadcast %4 : f32 to vector<8x256xf32>
    %6 = arith.mulf %3, %5 : vector<8x256xf32>
    %7 = arith.addf %1, %6 : vector<8x256xf32>
    %8 = vector.extract_strided_slice %0 {offsets = [0, 0, 1], sizes = [8, 1, 256], strides = [1, 1, 1]} : vector<8x4x258xf32> to vector<8x1x256xf32>
    %9 = vector.shape_cast %8 : vector<8x1x256xf32> to vector<8x256xf32>
    %c0_4 = arith.constant 0 : index
    %c1 = arith.constant 1 : index
    %10 = memref.load %arg2[%c0_4, %c1] : memref<4x3xf32, #tpu.memory_space<smem>>
    %11 = vector.broadcast %10 : f32 to vector<8x256xf32>
    %12 = arith.mulf %9, %11 : vector<8x256xf32>
    %13 = arith.addf %7, %12 : vector<8x256xf32>
    %14 = vector.extract_strided_slice %0 {offsets = [0, 0, 2], sizes = [8, 1, 256], strides = [1, 1, 1]} : vector<8x4x258xf32> to vector<8x1x256xf32>
    %15 = vector.shape_cast %14 : vector<8x1x256xf32> to vector<8x256xf32>
    %c0_5 = arith.constant 0 : index
    %c2 = arith.constant 2 : index
    %16 = memref.load %arg2[%c0_5, %c2] : memref<4x3xf32, #tpu.memory_space<smem>>
    %17 = vector.broadcast %16 : f32 to vector<8x256xf32>
    %18 = arith.mulf %15, %17 : vector<8x256xf32>
    %19 = arith.addf %13, %18 : vector<8x256xf32>
    %20 = vector.extract_strided_slice %0 {offsets = [0, 1, 0], sizes = [8, 1, 256], strides = [1, 1, 1]} : vector<8x4x258xf32> to vector<8x1x256xf32>
    %21 = vector.shape_cast %20 : vector<8x1x256xf32> to vector<8x256xf32>
    %c1_6 = arith.constant 1 : index
    %c0_7 = arith.constant 0 : index
    %22 = memref.load %arg2[%c1_6, %c0_7] : memref<4x3xf32, #tpu.memory_space<smem>>
    %23 = vector.broadcast %22 : f32 to vector<8x256xf32>
    %24 = arith.mulf %21, %23 : vector<8x256xf32>
    %25 = arith.addf %19, %24 : vector<8x256xf32>
    %26 = vector.extract_strided_slice %0 {offsets = [0, 1, 1], sizes = [8, 1, 256], strides = [1, 1, 1]} : vector<8x4x258xf32> to vector<8x1x256xf32>
    %27 = vector.shape_cast %26 : vector<8x1x256xf32> to vector<8x256xf32>
    %c1_8 = arith.constant 1 : index
    %c1_9 = arith.constant 1 : index
    %28 = memref.load %arg2[%c1_8, %c1_9] : memref<4x3xf32, #tpu.memory_space<smem>>
    %29 = vector.broadcast %28 : f32 to vector<8x256xf32>
    %30 = arith.mulf %27, %29 : vector<8x256xf32>
    %31 = arith.addf %25, %30 : vector<8x256xf32>
    %32 = vector.extract_strided_slice %0 {offsets = [0, 1, 2], sizes = [8, 1, 256], strides = [1, 1, 1]} : vector<8x4x258xf32> to vector<8x1x256xf32>
    %33 = vector.shape_cast %32 : vector<8x1x256xf32> to vector<8x256xf32>
    %c1_10 = arith.constant 1 : index
    %c2_11 = arith.constant 2 : index
    %34 = memref.load %arg2[%c1_10, %c2_11] : memref<4x3xf32, #tpu.memory_space<smem>>
    %35 = vector.broadcast %34 : f32 to vector<8x256xf32>
    %36 = arith.mulf %33, %35 : vector<8x256xf32>
    %37 = arith.addf %31, %36 : vector<8x256xf32>
    %38 = vector.extract_strided_slice %0 {offsets = [0, 2, 0], sizes = [8, 1, 256], strides = [1, 1, 1]} : vector<8x4x258xf32> to vector<8x1x256xf32>
    %39 = vector.shape_cast %38 : vector<8x1x256xf32> to vector<8x256xf32>
    %c2_12 = arith.constant 2 : index
    %c0_13 = arith.constant 0 : index
    %40 = memref.load %arg2[%c2_12, %c0_13] : memref<4x3xf32, #tpu.memory_space<smem>>
    %41 = vector.broadcast %40 : f32 to vector<8x256xf32>
    %42 = arith.mulf %39, %41 : vector<8x256xf32>
    %43 = arith.addf %37, %42 : vector<8x256xf32>
    %44 = vector.extract_strided_slice %0 {offsets = [0, 2, 1], sizes = [8, 1, 256], strides = [1, 1, 1]} : vector<8x4x258xf32> to vector<8x1x256xf32>
    %45 = vector.shape_cast %44 : vector<8x1x256xf32> to vector<8x256xf32>
    %c2_14 = arith.constant 2 : index
    %c1_15 = arith.constant 1 : index
    %46 = memref.load %arg2[%c2_14, %c1_15] : memref<4x3xf32, #tpu.memory_space<smem>>
    %47 = vector.broadcast %46 : f32 to vector<8x256xf32>
    %48 = arith.mulf %45, %47 : vector<8x256xf32>
    %49 = arith.addf %43, %48 : vector<8x256xf32>
    %50 = vector.extract_strided_slice %0 {offsets = [0, 2, 2], sizes = [8, 1, 256], strides = [1, 1, 1]} : vector<8x4x258xf32> to vector<8x1x256xf32>
    %51 = vector.shape_cast %50 : vector<8x1x256xf32> to vector<8x256xf32>
    %c2_16 = arith.constant 2 : index
    %c2_17 = arith.constant 2 : index
    %52 = memref.load %arg2[%c2_16, %c2_17] : memref<4x3xf32, #tpu.memory_space<smem>>
    %53 = vector.broadcast %52 : f32 to vector<8x256xf32>
    %54 = arith.mulf %51, %53 : vector<8x256xf32>
    %55 = arith.addf %49, %54 : vector<8x256xf32>
    %56 = vector.extract_strided_slice %0 {offsets = [0, 3, 0], sizes = [8, 1, 256], strides = [1, 1, 1]} : vector<8x4x258xf32> to vector<8x1x256xf32>
    %57 = vector.shape_cast %56 : vector<8x1x256xf32> to vector<8x256xf32>
    %c3 = arith.constant 3 : index
    %c0_18 = arith.constant 0 : index
    %58 = memref.load %arg2[%c3, %c0_18] : memref<4x3xf32, #tpu.memory_space<smem>>
    %59 = vector.broadcast %58 : f32 to vector<8x256xf32>
    %60 = arith.mulf %57, %59 : vector<8x256xf32>
    %61 = arith.addf %55, %60 : vector<8x256xf32>
    %62 = vector.extract_strided_slice %0 {offsets = [0, 3, 1], sizes = [8, 1, 256], strides = [1, 1, 1]} : vector<8x4x258xf32> to vector<8x1x256xf32>
    %63 = vector.shape_cast %62 : vector<8x1x256xf32> to vector<8x256xf32>
    %c3_19 = arith.constant 3 : index
    %c1_20 = arith.constant 1 : index
    %64 = memref.load %arg2[%c3_19, %c1_20] : memref<4x3xf32, #tpu.memory_space<smem>>
    %65 = vector.broadcast %64 : f32 to vector<8x256xf32>
    %66 = arith.mulf %63, %65 : vector<8x256xf32>
    %67 = arith.addf %61, %66 : vector<8x256xf32>
    %68 = vector.extract_strided_slice %0 {offsets = [0, 3, 2], sizes = [8, 1, 256], strides = [1, 1, 1]} : vector<8x4x258xf32> to vector<8x1x256xf32>
    %69 = vector.shape_cast %68 : vector<8x1x256xf32> to vector<8x256xf32>
    %c3_21 = arith.constant 3 : index
    %c2_22 = arith.constant 2 : index
    %70 = memref.load %arg2[%c3_21, %c2_22] : memref<4x3xf32, #tpu.memory_space<smem>>
    %71 = vector.broadcast %70 : f32 to vector<8x256xf32>
    %72 = arith.mulf %69, %71 : vector<8x256xf32>
    %73 = arith.addf %67, %72 : vector<8x256xf32>
    %c0_23 = arith.constant 0 : index
    %74 = memref.load %arg3[%c0_23] : memref<6xf32, #tpu.memory_space<smem>>
    %75 = vector.broadcast %74 : f32 to vector<8x256xf32>
    %76 = arith.addf %73, %75 : vector<8x256xf32>
    %cst_24 = arith.constant 0.000000e+00 : f32
    %77 = vector.broadcast %cst_24 : f32 to vector<8x256xf32>
    %78 = arith.cmpf oge, %76, %77 : vector<8x256xf32>
    %c1_25 = arith.constant 1 : index
    %79 = memref.load %arg3[%c1_25] : memref<6xf32, #tpu.memory_space<smem>>
    %80 = vector.broadcast %79 : f32 to vector<8x256xf32>
    %81 = arith.mulf %80, %76 : vector<8x256xf32>
    %82 = arith.select %78, %76, %81 : vector<8x256xi1>, vector<8x256xf32>
    %83 = arith.truncf %82 : vector<8x256xf32> to vector<8x256xbf16>
    %c0_26 = arith.constant 0 : index
    %c0_27 = arith.constant 0 : index
    %c0_28 = arith.constant 0 : index
    %84 = vector.load %arg4[%c0_26, %c0_27, %c0_28] : memref<8x256x32xbf16, #tpu.memory_space<vmem>>, vector<1x256x32xbf16>
    %85 = vector.shape_cast %84 : vector<1x256x32xbf16> to vector<256x32xbf16>
    %cst_29 = arith.constant dense<0.000000e+00> : vector<8x32xf32>
    %86 = tpu.matmul %83, %85, %cst_29 {dimension_numbers = #tpu.dot_dimension_numbers<[1], [0], [0], [1], [0, 0, 1, 1], [], []>} : vector<8x256xbf16>, vector<256x32xbf16>, vector<8x32xf32> -> vector<8x32xf32>
    %c1_30 = arith.constant 1 : index
    %c0_31 = arith.constant 0 : index
    %c0_32 = arith.constant 0 : index
    %87 = vector.load %arg4[%c1_30, %c0_31, %c0_32] : memref<8x256x32xbf16, #tpu.memory_space<vmem>>, vector<1x256x32xbf16>
    %88 = vector.shape_cast %87 : vector<1x256x32xbf16> to vector<256x32xbf16>
    %cst_33 = arith.constant dense<0.000000e+00> : vector<8x32xf32>
    %89 = tpu.matmul %83, %88, %cst_33 {dimension_numbers = #tpu.dot_dimension_numbers<[1], [0], [0], [1], [0, 0, 1, 1], [], []>} : vector<8x256xbf16>, vector<256x32xbf16>, vector<8x32xf32> -> vector<8x32xf32>
    %c2_34 = arith.constant 2 : index
    %c0_35 = arith.constant 0 : index
    %c0_36 = arith.constant 0 : index
    %90 = vector.load %arg4[%c2_34, %c0_35, %c0_36] : memref<8x256x32xbf16, #tpu.memory_space<vmem>>, vector<1x256x32xbf16>
    %91 = vector.shape_cast %90 : vector<1x256x32xbf16> to vector<256x32xbf16>
    %cst_37 = arith.constant dense<0.000000e+00> : vector<8x32xf32>
    %92 = tpu.matmul %83, %91, %cst_37 {dimension_numbers = #tpu.dot_dimension_numbers<[1], [0], [0], [1], [0, 0, 1, 1], [], []>} : vector<8x256xbf16>, vector<256x32xbf16>, vector<8x32xf32> -> vector<8x32xf32>
    %c3_38 = arith.constant 3 : index
    %c0_39 = arith.constant 0 : index
    %c0_40 = arith.constant 0 : index
    %93 = vector.load %arg4[%c3_38, %c0_39, %c0_40] : memref<8x256x32xbf16, #tpu.memory_space<vmem>>, vector<1x256x32xbf16>
    %94 = vector.shape_cast %93 : vector<1x256x32xbf16> to vector<256x32xbf16>
    %cst_41 = arith.constant dense<0.000000e+00> : vector<8x32xf32>
    %95 = tpu.matmul %83, %94, %cst_41 {dimension_numbers = #tpu.dot_dimension_numbers<[1], [0], [0], [1], [0, 0, 1, 1], [], []>} : vector<8x256xbf16>, vector<256x32xbf16>, vector<8x32xf32> -> vector<8x32xf32>
    %c4 = arith.constant 4 : index
    %c0_42 = arith.constant 0 : index
    %c0_43 = arith.constant 0 : index
    %96 = vector.load %arg4[%c4, %c0_42, %c0_43] : memref<8x256x32xbf16, #tpu.memory_space<vmem>>, vector<1x256x32xbf16>
    %97 = vector.shape_cast %96 : vector<1x256x32xbf16> to vector<256x32xbf16>
    %cst_44 = arith.constant dense<0.000000e+00> : vector<8x32xf32>
    %98 = tpu.matmul %83, %97, %cst_44 {dimension_numbers = #tpu.dot_dimension_numbers<[1], [0], [0], [1], [0, 0, 1, 1], [], []>} : vector<8x256xbf16>, vector<256x32xbf16>, vector<8x32xf32> -> vector<8x32xf32>
    %c5 = arith.constant 5 : index
    %c0_45 = arith.constant 0 : index
    %c0_46 = arith.constant 0 : index
    %99 = vector.load %arg4[%c5, %c0_45, %c0_46] : memref<8x256x32xbf16, #tpu.memory_space<vmem>>, vector<1x256x32xbf16>
    %100 = vector.shape_cast %99 : vector<1x256x32xbf16> to vector<256x32xbf16>
    %cst_47 = arith.constant dense<0.000000e+00> : vector<8x32xf32>
    %101 = tpu.matmul %83, %100, %cst_47 {dimension_numbers = #tpu.dot_dimension_numbers<[1], [0], [0], [1], [0, 0, 1, 1], [], []>} : vector<8x256xbf16>, vector<256x32xbf16>, vector<8x32xf32> -> vector<8x32xf32>
    %c6 = arith.constant 6 : index
    %c0_48 = arith.constant 0 : index
    %c0_49 = arith.constant 0 : index
    %102 = vector.load %arg4[%c6, %c0_48, %c0_49] : memref<8x256x32xbf16, #tpu.memory_space<vmem>>, vector<1x256x32xbf16>
    %103 = vector.shape_cast %102 : vector<1x256x32xbf16> to vector<256x32xbf16>
    %cst_50 = arith.constant dense<0.000000e+00> : vector<8x32xf32>
    %104 = tpu.matmul %83, %103, %cst_50 {dimension_numbers = #tpu.dot_dimension_numbers<[1], [0], [0], [1], [0, 0, 1, 1], [], []>} : vector<8x256xbf16>, vector<256x32xbf16>, vector<8x32xf32> -> vector<8x32xf32>
    %c7 = arith.constant 7 : index
    %c0_51 = arith.constant 0 : index
    %c0_52 = arith.constant 0 : index
    %105 = vector.load %arg4[%c7, %c0_51, %c0_52] : memref<8x256x32xbf16, #tpu.memory_space<vmem>>, vector<1x256x32xbf16>
    %106 = vector.shape_cast %105 : vector<1x256x32xbf16> to vector<256x32xbf16>
    %cst_53 = arith.constant dense<0.000000e+00> : vector<8x32xf32>
    %107 = tpu.matmul %83, %106, %cst_53 {dimension_numbers = #tpu.dot_dimension_numbers<[1], [0], [0], [1], [0, 0, 1, 1], [], []>} : vector<8x256xbf16>, vector<256x32xbf16>, vector<8x32xf32> -> vector<8x32xf32>
    %108 = tpu.concatenate %86, %89, %92, %95, %98, %101, %104, %107 in 0 : vector<8x32xf32>, vector<8x32xf32>, vector<8x32xf32>, vector<8x32xf32>, vector<8x32xf32>, vector<8x32xf32>, vector<8x32xf32>, vector<8x32xf32> -> vector<64x32xf32>
    %c0_54 = arith.constant 0 : index
    %c0_55 = arith.constant 0 : index
    %109 = vector.load %arg5[%c0_54, %c0_55] : memref<80x64xf32, #tpu.memory_space<vmem>>, vector<80x64xf32>
    %cst_56 = arith.constant dense<0.000000e+00> : vector<80x32xf32>
    %110 = tpu.matmul %109, %108, %cst_56 {dimension_numbers = #tpu.dot_dimension_numbers<[1], [0], [0], [1], [0, 0, 1, 1], [], []>} : vector<80x64xf32>, vector<64x32xf32>, vector<80x32xf32> -> vector<80x32xf32>
    %c0_57 = arith.constant 0 : index
    %c0_58 = arith.constant 0 : index
    %111 = vector.load %arg6[%c0_57, %c0_58] : memref<80x1xf32, #tpu.memory_space<vmem>>, vector<80x1xf32>
    %112 = arith.truncf %110 : vector<80x32xf32> to vector<80x32xbf16>
    %c0_59 = arith.constant 0 : index
    %c0_60 = arith.constant 0 : index
    %113 = vector.load %arg7[%c0_59, %c0_60] : memref<32x768xbf16, #tpu.memory_space<vmem>>, vector<32x768xbf16>
    %cst_61 = arith.constant dense<0.000000e+00> : vector<80x768xf32>
    %114 = tpu.matmul %112, %113, %cst_61 {dimension_numbers = #tpu.dot_dimension_numbers<[1], [0], [0], [1], [0, 0, 1, 1], [], []>} : vector<80x32xbf16>, vector<32x768xbf16>, vector<80x768xf32> -> vector<80x768xf32>
    %115 = vector.extract_strided_slice %114 {offsets = [0, 0], sizes = [80, 256], strides = [1, 1]} : vector<80x768xf32> to vector<80x256xf32>
    %116 = vector.extract_strided_slice %115 {offsets = [1, 0], sizes = [79, 256], strides = [1, 1]} : vector<80x256xf32> to vector<79x256xf32>
    %cst_62 = arith.constant 0.000000e+00 : f32
    %117 = vector.broadcast %cst_62 : f32 to vector<1x256xf32>
    %118 = tpu.concatenate %116, %117 in 0 : vector<79x256xf32>, vector<1x256xf32> -> vector<80x256xf32>
    %119 = vector.extract_strided_slice %114 {offsets = [0, 256], sizes = [80, 256], strides = [1, 1]} : vector<80x768xf32> to vector<80x256xf32>
    %120 = arith.addf %118, %119 : vector<80x256xf32>
    %121 = vector.extract_strided_slice %114 {offsets = [0, 512], sizes = [80, 256], strides = [1, 1]} : vector<80x768xf32> to vector<80x256xf32>
    %cst_63 = arith.constant 0.000000e+00 : f32
    %122 = vector.broadcast %cst_63 : f32 to vector<1x256xf32>
    %123 = vector.extract_strided_slice %121 {offsets = [0, 0], sizes = [79, 256], strides = [1, 1]} : vector<80x256xf32> to vector<79x256xf32>
    %124 = tpu.concatenate %122, %123 in 0 : vector<1x256xf32>, vector<79x256xf32> -> vector<80x256xf32>
    %125 = arith.addf %120, %124 : vector<80x256xf32>
    %c0_64 = arith.constant 0 : index
    %c0_65 = arith.constant 0 : index
    %126 = vector.load %arg8[%c0_64, %c0_65] : memref<2x256xf32, #tpu.memory_space<vmem>>, vector<2x256xf32>
    %127 = vector.extract_strided_slice %126 {offsets = [0, 0], sizes = [1, 256], strides = [1, 1]} : vector<2x256xf32> to vector<1x256xf32>
    %128 = vector.broadcast %127 : vector<1x256xf32> to vector<80x256xf32>
    %129 = arith.mulf %125, %128 : vector<80x256xf32>
    %130 = vector.extract_strided_slice %126 {offsets = [1, 0], sizes = [1, 256], strides = [1, 1]} : vector<2x256xf32> to vector<1x256xf32>
    %131 = vector.broadcast %130 : vector<1x256xf32> to vector<80x256xf32>
    %132 = arith.addf %129, %131 : vector<80x256xf32>
    %133 = vector.broadcast %111 : vector<80x1xf32> to vector<80x256xf32>
    %134 = arith.mulf %132, %133 : vector<80x256xf32>
    %c2_66 = arith.constant 2 : index
    %135 = memref.load %arg3[%c2_66] : memref<6xf32, #tpu.memory_space<smem>>
    %cst_67 = arith.constant 0.000000e+00 : f32
    %136 = vector.broadcast %cst_67 : f32 to vector<80x256xf32>
    %137 = arith.cmpf oge, %134, %136 : vector<80x256xf32>
    %138 = vector.broadcast %135 : f32 to vector<80x256xf32>
    %139 = arith.mulf %138, %134 : vector<80x256xf32>
    %140 = arith.select %137, %134, %139 : vector<80x256xi1>, vector<80x256xf32>
    %141 = arith.truncf %140 : vector<80x256xf32> to vector<80x256xbf16>
    %c0_68 = arith.constant 0 : index
    %c0_69 = arith.constant 0 : index
    %142 = vector.load %arg9[%c0_68, %c0_69] : memref<256x768xbf16, #tpu.memory_space<vmem>>, vector<256x768xbf16>
    %cst_70 = arith.constant dense<0.000000e+00> : vector<80x768xf32>
    %143 = tpu.matmul %141, %142, %cst_70 {dimension_numbers = #tpu.dot_dimension_numbers<[1], [0], [0], [1], [0, 0, 1, 1], [], []>} : vector<80x256xbf16>, vector<256x768xbf16>, vector<80x768xf32> -> vector<80x768xf32>
    %144 = vector.extract_strided_slice %143 {offsets = [0, 0], sizes = [80, 256], strides = [1, 1]} : vector<80x768xf32> to vector<80x256xf32>
    %145 = vector.extract_strided_slice %144 {offsets = [1, 0], sizes = [79, 256], strides = [1, 1]} : vector<80x256xf32> to vector<79x256xf32>
    %cst_71 = arith.constant 0.000000e+00 : f32
    %146 = vector.broadcast %cst_71 : f32 to vector<1x256xf32>
    %147 = tpu.concatenate %145, %146 in 0 : vector<79x256xf32>, vector<1x256xf32> -> vector<80x256xf32>
    %148 = vector.extract_strided_slice %143 {offsets = [0, 256], sizes = [80, 256], strides = [1, 1]} : vector<80x768xf32> to vector<80x256xf32>
    %149 = arith.addf %147, %148 : vector<80x256xf32>
    %150 = vector.extract_strided_slice %143 {offsets = [0, 512], sizes = [80, 256], strides = [1, 1]} : vector<80x768xf32> to vector<80x256xf32>
    %cst_72 = arith.constant 0.000000e+00 : f32
    %151 = vector.broadcast %cst_72 : f32 to vector<1x256xf32>
    %152 = vector.extract_strided_slice %150 {offsets = [0, 0], sizes = [79, 256], strides = [1, 1]} : vector<80x256xf32> to vector<79x256xf32>
    %153 = tpu.concatenate %151, %152 in 0 : vector<1x256xf32>, vector<79x256xf32> -> vector<80x256xf32>
    %154 = arith.addf %149, %153 : vector<80x256xf32>
    %c0_73 = arith.constant 0 : index
    %c0_74 = arith.constant 0 : index
    %155 = vector.load %arg10[%c0_73, %c0_74] : memref<2x256xf32, #tpu.memory_space<vmem>>, vector<2x256xf32>
    %156 = vector.extract_strided_slice %155 {offsets = [0, 0], sizes = [1, 256], strides = [1, 1]} : vector<2x256xf32> to vector<1x256xf32>
    %157 = vector.broadcast %156 : vector<1x256xf32> to vector<80x256xf32>
    %158 = arith.mulf %154, %157 : vector<80x256xf32>
    %159 = vector.extract_strided_slice %155 {offsets = [1, 0], sizes = [1, 256], strides = [1, 1]} : vector<2x256xf32> to vector<1x256xf32>
    %160 = vector.broadcast %159 : vector<1x256xf32> to vector<80x256xf32>
    %161 = arith.addf %158, %160 : vector<80x256xf32>
    %162 = vector.broadcast %111 : vector<80x1xf32> to vector<80x256xf32>
    %163 = arith.mulf %161, %162 : vector<80x256xf32>
    %c3_75 = arith.constant 3 : index
    %164 = memref.load %arg3[%c3_75] : memref<6xf32, #tpu.memory_space<smem>>
    %cst_76 = arith.constant 0.000000e+00 : f32
    %165 = vector.broadcast %cst_76 : f32 to vector<80x256xf32>
    %166 = arith.cmpf oge, %163, %165 : vector<80x256xf32>
    %167 = vector.broadcast %164 : f32 to vector<80x256xf32>
    %168 = arith.mulf %167, %163 : vector<80x256xf32>
    %169 = arith.select %166, %163, %168 : vector<80x256xi1>, vector<80x256xf32>
    %170 = arith.truncf %169 : vector<80x256xf32> to vector<80x256xbf16>
    %c0_77 = arith.constant 0 : index
    %c0_78 = arith.constant 0 : index
    %171 = vector.load %arg11[%c0_77, %c0_78] : memref<256x768xbf16, #tpu.memory_space<vmem>>, vector<256x768xbf16>
    %cst_79 = arith.constant dense<0.000000e+00> : vector<80x768xf32>
    %172 = tpu.matmul %170, %171, %cst_79 {dimension_numbers = #tpu.dot_dimension_numbers<[1], [0], [0], [1], [0, 0, 1, 1], [], []>} : vector<80x256xbf16>, vector<256x768xbf16>, vector<80x768xf32> -> vector<80x768xf32>
    %173 = vector.extract_strided_slice %172 {offsets = [0, 0], sizes = [80, 256], strides = [1, 1]} : vector<80x768xf32> to vector<80x256xf32>
    %174 = vector.extract_strided_slice %173 {offsets = [1, 0], sizes = [79, 256], strides = [1, 1]} : vector<80x256xf32> to vector<79x256xf32>
    %cst_80 = arith.constant 0.000000e+00 : f32
    %175 = vector.broadcast %cst_80 : f32 to vector<1x256xf32>
    %176 = tpu.concatenate %174, %175 in 0 : vector<79x256xf32>, vector<1x256xf32> -> vector<80x256xf32>
    %177 = vector.extract_strided_slice %172 {offsets = [0, 256], sizes = [80, 256], strides = [1, 1]} : vector<80x768xf32> to vector<80x256xf32>
    %178 = arith.addf %176, %177 : vector<80x256xf32>
    %179 = vector.extract_strided_slice %172 {offsets = [0, 512], sizes = [80, 256], strides = [1, 1]} : vector<80x768xf32> to vector<80x256xf32>
    %cst_81 = arith.constant 0.000000e+00 : f32
    %180 = vector.broadcast %cst_81 : f32 to vector<1x256xf32>
    %181 = vector.extract_strided_slice %179 {offsets = [0, 0], sizes = [79, 256], strides = [1, 1]} : vector<80x256xf32> to vector<79x256xf32>
    %182 = tpu.concatenate %180, %181 in 0 : vector<1x256xf32>, vector<79x256xf32> -> vector<80x256xf32>
    %183 = arith.addf %178, %182 : vector<80x256xf32>
    %c0_82 = arith.constant 0 : index
    %c0_83 = arith.constant 0 : index
    %184 = vector.load %arg12[%c0_82, %c0_83] : memref<2x256xf32, #tpu.memory_space<vmem>>, vector<2x256xf32>
    %185 = vector.extract_strided_slice %184 {offsets = [0, 0], sizes = [1, 256], strides = [1, 1]} : vector<2x256xf32> to vector<1x256xf32>
    %186 = vector.broadcast %185 : vector<1x256xf32> to vector<80x256xf32>
    %187 = arith.mulf %183, %186 : vector<80x256xf32>
    %188 = vector.extract_strided_slice %184 {offsets = [1, 0], sizes = [1, 256], strides = [1, 1]} : vector<2x256xf32> to vector<1x256xf32>
    %189 = vector.broadcast %188 : vector<1x256xf32> to vector<80x256xf32>
    %190 = arith.addf %187, %189 : vector<80x256xf32>
    %191 = vector.broadcast %111 : vector<80x1xf32> to vector<80x256xf32>
    %192 = arith.mulf %190, %191 : vector<80x256xf32>
    %c4_84 = arith.constant 4 : index
    %193 = memref.load %arg3[%c4_84] : memref<6xf32, #tpu.memory_space<smem>>
    %cst_85 = arith.constant 0.000000e+00 : f32
    %194 = vector.broadcast %cst_85 : f32 to vector<80x256xf32>
    %195 = arith.cmpf oge, %192, %194 : vector<80x256xf32>
    %196 = vector.broadcast %193 : f32 to vector<80x256xf32>
    %197 = arith.mulf %196, %192 : vector<80x256xf32>
    %198 = arith.select %195, %192, %197 : vector<80x256xi1>, vector<80x256xf32>
    %199 = arith.truncf %198 : vector<80x256xf32> to vector<80x256xbf16>
    %c0_86 = arith.constant 0 : index
    %c0_87 = arith.constant 0 : index
    %200 = vector.load %arg13[%c0_86, %c0_87] : memref<256x1024xbf16, #tpu.memory_space<vmem>>, vector<256x1024xbf16>
    %cst_88 = arith.constant dense<0.000000e+00> : vector<80x1024xf32>
    %201 = tpu.matmul %199, %200, %cst_88 {dimension_numbers = #tpu.dot_dimension_numbers<[1], [0], [0], [1], [0, 0, 1, 1], [], []>} : vector<80x256xbf16>, vector<256x1024xbf16>, vector<80x1024xf32> -> vector<80x1024xf32>
    %c0_89 = arith.constant 0 : index
    %c0_90 = arith.constant 0 : index
    %c0_91 = arith.constant 0 : index
    %202 = vector.load %arg14[%c0_89, %c0_90, %c0_91] : memref<4x128x80xf32, #tpu.memory_space<vmem>>, vector<1x128x80xf32>
    %203 = vector.shape_cast %202 : vector<1x128x80xf32> to vector<128x80xf32>
    %204 = vector.extract_strided_slice %201 {offsets = [0, 0], sizes = [80, 256], strides = [1, 1]} : vector<80x1024xf32> to vector<80x256xf32>
    %cst_92 = arith.constant dense<0.000000e+00> : vector<128x256xf32>
    %205 = tpu.matmul %203, %204, %cst_92 {dimension_numbers = #tpu.dot_dimension_numbers<[1], [0], [0], [1], [0, 0, 1, 1], [], []>} : vector<128x80xf32>, vector<80x256xf32>, vector<128x256xf32> -> vector<128x256xf32>
    %c1_93 = arith.constant 1 : index
    %c0_94 = arith.constant 0 : index
    %c0_95 = arith.constant 0 : index
    %206 = vector.load %arg14[%c1_93, %c0_94, %c0_95] : memref<4x128x80xf32, #tpu.memory_space<vmem>>, vector<1x128x80xf32>
    %207 = vector.shape_cast %206 : vector<1x128x80xf32> to vector<128x80xf32>
    %208 = vector.extract_strided_slice %201 {offsets = [0, 256], sizes = [80, 256], strides = [1, 1]} : vector<80x1024xf32> to vector<80x256xf32>
    %cst_96 = arith.constant dense<0.000000e+00> : vector<128x256xf32>
    %209 = tpu.matmul %207, %208, %cst_96 {dimension_numbers = #tpu.dot_dimension_numbers<[1], [0], [0], [1], [0, 0, 1, 1], [], []>} : vector<128x80xf32>, vector<80x256xf32>, vector<128x256xf32> -> vector<128x256xf32>
    %210 = arith.addf %205, %209 : vector<128x256xf32>
    %c2_97 = arith.constant 2 : index
    %c0_98 = arith.constant 0 : index
    %c0_99 = arith.constant 0 : index
    %211 = vector.load %arg14[%c2_97, %c0_98, %c0_99] : memref<4x128x80xf32, #tpu.memory_space<vmem>>, vector<1x128x80xf32>
    %212 = vector.shape_cast %211 : vector<1x128x80xf32> to vector<128x80xf32>
    %213 = vector.extract_strided_slice %201 {offsets = [0, 512], sizes = [80, 256], strides = [1, 1]} : vector<80x1024xf32> to vector<80x256xf32>
    %cst_100 = arith.constant dense<0.000000e+00> : vector<128x256xf32>
    %214 = tpu.matmul %212, %213, %cst_100 {dimension_numbers = #tpu.dot_dimension_numbers<[1], [0], [0], [1], [0, 0, 1, 1], [], []>} : vector<128x80xf32>, vector<80x256xf32>, vector<128x256xf32> -> vector<128x256xf32>
    %215 = arith.addf %210, %214 : vector<128x256xf32>
    %c3_101 = arith.constant 3 : index
    %c0_102 = arith.constant 0 : index
    %c0_103 = arith.constant 0 : index
    %216 = vector.load %arg14[%c3_101, %c0_102, %c0_103] : memref<4x128x80xf32, #tpu.memory_space<vmem>>, vector<1x128x80xf32>
    %217 = vector.shape_cast %216 : vector<1x128x80xf32> to vector<128x80xf32>
    %218 = vector.extract_strided_slice %201 {offsets = [0, 768], sizes = [80, 256], strides = [1, 1]} : vector<80x1024xf32> to vector<80x256xf32>
    %cst_104 = arith.constant dense<0.000000e+00> : vector<128x256xf32>
    %219 = tpu.matmul %217, %218, %cst_104 {dimension_numbers = #tpu.dot_dimension_numbers<[1], [0], [0], [1], [0, 0, 1, 1], [], []>} : vector<128x80xf32>, vector<80x256xf32>, vector<128x256xf32> -> vector<128x256xf32>
    %220 = arith.addf %215, %219 : vector<128x256xf32>
    %c0_105 = arith.constant 0 : index
    %c0_106 = arith.constant 0 : index
    %221 = vector.load %arg15[%c0_105, %c0_106] : memref<2x256xf32, #tpu.memory_space<vmem>>, vector<2x256xf32>
    %222 = vector.extract_strided_slice %221 {offsets = [0, 0], sizes = [1, 256], strides = [1, 1]} : vector<2x256xf32> to vector<1x256xf32>
    %223 = vector.broadcast %222 : vector<1x256xf32> to vector<128x256xf32>
    %224 = arith.mulf %220, %223 : vector<128x256xf32>
    %225 = vector.extract_strided_slice %221 {offsets = [1, 0], sizes = [1, 256], strides = [1, 1]} : vector<2x256xf32> to vector<1x256xf32>
    %226 = vector.broadcast %225 : vector<1x256xf32> to vector<128x256xf32>
    %227 = arith.addf %224, %226 : vector<128x256xf32>
    %c5_107 = arith.constant 5 : index
    %228 = memref.load %arg3[%c5_107] : memref<6xf32, #tpu.memory_space<smem>>
    %cst_108 = arith.constant 0.000000e+00 : f32
    %229 = vector.broadcast %cst_108 : f32 to vector<128x256xf32>
    %230 = arith.cmpf oge, %227, %229 : vector<128x256xf32>
    %231 = vector.broadcast %228 : f32 to vector<128x256xf32>
    %232 = arith.mulf %231, %227 : vector<128x256xf32>
    %233 = arith.select %230, %227, %232 : vector<128x256xi1>, vector<128x256xf32>
    %234 = arith.truncf %233 : vector<128x256xf32> to vector<128x256xbf16>
    %c0_109 = arith.constant 0 : index
    %c0_110 = arith.constant 0 : index
    %235 = vector.load %arg16[%c0_109, %c0_110] : memref<256x512xbf16, #tpu.memory_space<vmem>>, vector<256x512xbf16>
    %cst_111 = arith.constant dense<0.000000e+00> : vector<128x512xf32>
    %236 = tpu.matmul %234, %235, %cst_111 {dimension_numbers = #tpu.dot_dimension_numbers<[1], [0], [0], [1], [0, 0, 1, 1], [], []>} : vector<128x256xbf16>, vector<256x512xbf16>, vector<128x512xf32> -> vector<128x512xf32>
    %c0_112 = arith.constant 0 : index
    %c0_113 = arith.constant 0 : index
    %c0_114 = arith.constant 0 : index
    %237 = vector.load %arg17[%c0_112, %c0_113, %c0_114] : memref<4x256x128xf32, #tpu.memory_space<vmem>>, vector<1x256x128xf32>
    %238 = vector.shape_cast %237 : vector<1x256x128xf32> to vector<256x128xf32>
    %239 = vector.extract_strided_slice %236 {offsets = [0, 0], sizes = [128, 128], strides = [1, 1]} : vector<128x512xf32> to vector<128x128xf32>
    %cst_115 = arith.constant dense<0.000000e+00> : vector<256x128xf32>
    %240 = tpu.matmul %238, %239, %cst_115 {dimension_numbers = #tpu.dot_dimension_numbers<[1], [0], [0], [1], [0, 0, 1, 1], [], []>} : vector<256x128xf32>, vector<128x128xf32>, vector<256x128xf32> -> vector<256x128xf32>
    %c1_116 = arith.constant 1 : index
    %c0_117 = arith.constant 0 : index
    %c0_118 = arith.constant 0 : index
    %241 = vector.load %arg17[%c1_116, %c0_117, %c0_118] : memref<4x256x128xf32, #tpu.memory_space<vmem>>, vector<1x256x128xf32>
    %242 = vector.shape_cast %241 : vector<1x256x128xf32> to vector<256x128xf32>
    %243 = vector.extract_strided_slice %236 {offsets = [0, 128], sizes = [128, 128], strides = [1, 1]} : vector<128x512xf32> to vector<128x128xf32>
    %cst_119 = arith.constant dense<0.000000e+00> : vector<256x128xf32>
    %244 = tpu.matmul %242, %243, %cst_119 {dimension_numbers = #tpu.dot_dimension_numbers<[1], [0], [0], [1], [0, 0, 1, 1], [], []>} : vector<256x128xf32>, vector<128x128xf32>, vector<256x128xf32> -> vector<256x128xf32>
    %245 = arith.addf %240, %244 : vector<256x128xf32>
    %c2_120 = arith.constant 2 : index
    %c0_121 = arith.constant 0 : index
    %c0_122 = arith.constant 0 : index
    %246 = vector.load %arg17[%c2_120, %c0_121, %c0_122] : memref<4x256x128xf32, #tpu.memory_space<vmem>>, vector<1x256x128xf32>
    %247 = vector.shape_cast %246 : vector<1x256x128xf32> to vector<256x128xf32>
    %248 = vector.extract_strided_slice %236 {offsets = [0, 256], sizes = [128, 128], strides = [1, 1]} : vector<128x512xf32> to vector<128x128xf32>
    %cst_123 = arith.constant dense<0.000000e+00> : vector<256x128xf32>
    %249 = tpu.matmul %247, %248, %cst_123 {dimension_numbers = #tpu.dot_dimension_numbers<[1], [0], [0], [1], [0, 0, 1, 1], [], []>} : vector<256x128xf32>, vector<128x128xf32>, vector<256x128xf32> -> vector<256x128xf32>
    %250 = arith.addf %245, %249 : vector<256x128xf32>
    %c3_124 = arith.constant 3 : index
    %c0_125 = arith.constant 0 : index
    %c0_126 = arith.constant 0 : index
    %251 = vector.load %arg17[%c3_124, %c0_125, %c0_126] : memref<4x256x128xf32, #tpu.memory_space<vmem>>, vector<1x256x128xf32>
    %252 = vector.shape_cast %251 : vector<1x256x128xf32> to vector<256x128xf32>
    %253 = vector.extract_strided_slice %236 {offsets = [0, 384], sizes = [128, 128], strides = [1, 1]} : vector<128x512xf32> to vector<128x128xf32>
    %cst_127 = arith.constant dense<0.000000e+00> : vector<256x128xf32>
    %254 = tpu.matmul %252, %253, %cst_127 {dimension_numbers = #tpu.dot_dimension_numbers<[1], [0], [0], [1], [0, 0, 1, 1], [], []>} : vector<256x128xf32>, vector<128x128xf32>, vector<256x128xf32> -> vector<256x128xf32>
    %255 = arith.addf %250, %254 : vector<256x128xf32>
    %c0_128 = arith.constant 0 : index
    %c0_129 = arith.constant 0 : index
    %256 = vector.load %arg18[%c0_128, %c0_129] : memref<2x128xf32, #tpu.memory_space<vmem>>, vector<2x128xf32>
    %257 = vector.extract_strided_slice %256 {offsets = [0, 0], sizes = [1, 128], strides = [1, 1]} : vector<2x128xf32> to vector<1x128xf32>
    %258 = vector.broadcast %257 : vector<1x128xf32> to vector<256x128xf32>
    %259 = arith.mulf %255, %258 : vector<256x128xf32>
    %260 = vector.extract_strided_slice %256 {offsets = [1, 0], sizes = [1, 128], strides = [1, 1]} : vector<2x128xf32> to vector<1x128xf32>
    %261 = vector.broadcast %260 : vector<1x128xf32> to vector<256x128xf32>
    %262 = arith.addf %259, %261 : vector<256x128xf32>
    %cst_130 = arith.constant 0.000000e+00 : f32
    %263 = vector.broadcast %cst_130 : f32 to vector<256x128xf32>
    %264 = arith.subf %263, %262 : vector<256x128xf32>
    %265 = math.exp %264 : vector<256x128xf32>
    %cst_131 = arith.constant 1.000000e+00 : f32
    %266 = vector.broadcast %cst_131 : f32 to vector<256x128xf32>
    %267 = arith.addf %266, %265 : vector<256x128xf32>
    %268 = tpu.reciprocal %267 {approx = true} : vector<256x128xf32> -> vector<256x128xf32>
    %cst_132 = arith.constant 2.550000e+02 : f32
    %269 = vector.broadcast %cst_132 : f32 to vector<256x128xf32>
    %270 = arith.mulf %269, %268 : vector<256x128xf32>
    %c0_133 = arith.constant 0 : index
    %c0_134 = arith.constant 0 : index
    %271 = vector.load %arg19[%c0_133, %c0_134] : memref<256x128xf32, #tpu.memory_space<vmem>>, vector<256x128xf32>
    tpu.vector_store %arg19[%c0_133, %c0_134], %270 {strides = array<i32>} : memref<256x128xf32, #tpu.memory_space<vmem>>, vector<256x128xf32>,
    return
  }
  func.func @transform_0(%arg0: i32) -> (i32, i32, i32) {
    %c0_i32 = arith.constant 0 : i32
    %c0_i32_0 = arith.constant 0 : i32
    %c0_i32_1 = arith.constant 0 : i32
    return %arg0, %c0_i32, %c0_i32_0 : i32, i32, i32
  }
  func.func @transform_1(%arg0: i32) -> (i32, i32) {
    %c0_i32 = arith.constant 0 : i32
    %c0_i32_0 = arith.constant 0 : i32
    %c0_i32_1 = arith.constant 0 : i32
    return %c0_i32, %c0_i32_0 : i32, i32
  }
  func.func @transform_2(%arg0: i32) -> i32 {
    %c0_i32 = arith.constant 0 : i32
    %c0_i32_0 = arith.constant 0 : i32
    return %c0_i32 : i32
  }
  func.func @transform_3(%arg0: i32) -> (i32, i32, i32) {
    %c0_i32 = arith.constant 0 : i32
    %c0_i32_0 = arith.constant 0 : i32
    %c0_i32_1 = arith.constant 0 : i32
    %c0_i32_2 = arith.constant 0 : i32
    return %c0_i32, %c0_i32_0, %c0_i32_1 : i32, i32, i32
  }
  func.func @transform_4(%arg0: i32) -> (i32, i32) {
    %c0_i32 = arith.constant 0 : i32
    %c0_i32_0 = arith.constant 0 : i32
    %c0_i32_1 = arith.constant 0 : i32
    return %c0_i32, %c0_i32_0 : i32, i32
  }
  func.func @transform_5(%arg0: i32) -> (i32, i32) {
    %c0_i32 = arith.constant 0 : i32
    %c0_i32_0 = arith.constant 0 : i32
    %c0_i32_1 = arith.constant 0 : i32
    return %c0_i32, %c0_i32_0 : i32, i32
  }
  func.func @transform_6(%arg0: i32) -> (i32, i32) {
    %c0_i32 = arith.constant 0 : i32
    %c0_i32_0 = arith.constant 0 : i32
    %c0_i32_1 = arith.constant 0 : i32
    return %c0_i32, %c0_i32_0 : i32, i32
  }
  func.func @transform_7(%arg0: i32) -> (i32, i32) {
    %c0_i32 = arith.constant 0 : i32
    %c0_i32_0 = arith.constant 0 : i32
    %c0_i32_1 = arith.constant 0 : i32
    return %c0_i32, %c0_i32_0 : i32, i32
  }
  func.func @transform_8(%arg0: i32) -> (i32, i32) {
    %c0_i32 = arith.constant 0 : i32
    %c0_i32_0 = arith.constant 0 : i32
    %c0_i32_1 = arith.constant 0 : i32
    return %c0_i32, %c0_i32_0 : i32, i32
  }
  func.func @transform_9(%arg0: i32) -> (i32, i32) {
    %c0_i32 = arith.constant 0 : i32
    %c0_i32_0 = arith.constant 0 : i32
    %c0_i32_1 = arith.constant 0 : i32
    return %c0_i32, %c0_i32_0 : i32, i32
  }
  func.func @transform_10(%arg0: i32) -> (i32, i32) {
    %c0_i32 = arith.constant 0 : i32
    %c0_i32_0 = arith.constant 0 : i32
    %c0_i32_1 = arith.constant 0 : i32
    return %c0_i32, %c0_i32_0 : i32, i32
  }
  func.func @transform_11(%arg0: i32) -> (i32, i32) {
    %c0_i32 = arith.constant 0 : i32
    %c0_i32_0 = arith.constant 0 : i32
    %c0_i32_1 = arith.constant 0 : i32
    return %c0_i32, %c0_i32_0 : i32, i32
  }
  func.func @transform_12(%arg0: i32) -> (i32, i32) {
    %c0_i32 = arith.constant 0 : i32
    %c0_i32_0 = arith.constant 0 : i32
    %c0_i32_1 = arith.constant 0 : i32
    return %c0_i32, %c0_i32_0 : i32, i32
  }
  func.func @transform_13(%arg0: i32) -> (i32, i32, i32) {
    %c0_i32 = arith.constant 0 : i32
    %c0_i32_0 = arith.constant 0 : i32
    %c0_i32_1 = arith.constant 0 : i32
    %c0_i32_2 = arith.constant 0 : i32
    return %c0_i32, %c0_i32_0, %c0_i32_1 : i32, i32, i32
  }
  func.func @transform_14(%arg0: i32) -> (i32, i32) {
    %c0_i32 = arith.constant 0 : i32
    %c0_i32_0 = arith.constant 0 : i32
    %c0_i32_1 = arith.constant 0 : i32
    return %c0_i32, %c0_i32_0 : i32, i32
  }
  func.func @transform_15(%arg0: i32) -> (i32, i32) {
    %c0_i32 = arith.constant 0 : i32
    %c0_i32_0 = arith.constant 0 : i32
    %c0_i32_1 = arith.constant 0 : i32
    return %c0_i32, %c0_i32_0 : i32, i32
  }
  func.func @transform_16(%arg0: i32) -> (i32, i32, i32) {
    %c0_i32 = arith.constant 0 : i32
    %c0_i32_0 = arith.constant 0 : i32
    %c0_i32_1 = arith.constant 0 : i32
    %c0_i32_2 = arith.constant 0 : i32
    return %c0_i32, %c0_i32_0, %c0_i32_1 : i32, i32, i32
  }
  func.func @transform_17(%arg0: i32) -> (i32, i32) {
    %c0_i32 = arith.constant 0 : i32
    %c0_i32_0 = arith.constant 0 : i32
    %c0_i32_1 = arith.constant 0 : i32
    return %c0_i32, %c0_i32_0 : i32, i32
  }
  func.func @transform_18(%arg0: i32) -> (i32, i32) {
    %c0_i32 = arith.constant 0 : i32
    %c0_i32_0 = arith.constant 0 : i32
    return %arg0, %c0_i32 : i32, i32
  }
}

</mosaic_0001>

<llo_original>
// kernel: tpu_custom_call.1
$region0: #{tpu_custom_call.1}
  #allocation0 [shape = 'u32[]', space=smem, size = 0x4, offset = 0x4, fixed_abs, tag = 'smem constant byte address 0x4 - core index']
  #allocation1 [shape = 'u32[72,128]{1,0:T(1,128)}', space=vmem, size = 0x9000, scoped, tag = 'internal scratch']
  %s0 = inlined_call_operand.vmem [shape: f32[16,4,258], index: 0, kind: input, shape index: {}]
  %s1 = inlined_call_operand.hbm [shape: f32[4,3], index: 1, kind: input, shape index: {}]
  %s2 = inlined_call_operand.hbm [shape: f32[6], index: 2, kind: input, shape index: {}]
  %s3 = inlined_call_operand.vmem [shape: bf16[8,256,32], index: 3, kind: input, shape index: {}]
  %s4 = inlined_call_operand.vmem [shape: f32[80,64], index: 4, kind: input, shape index: {}]
  %s5 = inlined_call_operand.vmem [shape: f32[80,1], index: 5, kind: input, shape index: {}]
  %s6 = inlined_call_operand.vmem [shape: bf16[32,768], index: 6, kind: input, shape index: {}]
  %s7 = inlined_call_operand.hbm [shape: f32[2,256], index: 7, kind: input, shape index: {}]
  %s8 = inlined_call_operand.vmem [shape: bf16[256,768], index: 8, kind: input, shape index: {}]
  %s9 = inlined_call_operand.hbm [shape: f32[2,256], index: 9, kind: input, shape index: {}]
  %s10 = inlined_call_operand.hbm [shape: bf16[256,768], index: 10, kind: input, shape index: {}]
  %s11 = inlined_call_operand.hbm [shape: f32[2,256], index: 11, kind: input, shape index: {}]
  %s12 = inlined_call_operand.vmem [shape: bf16[256,1024], index: 12, kind: input, shape index: {}]
  %s13 = inlined_call_operand.vmem [shape: f32[4,128,80], index: 13, kind: input, shape index: {}]
  %s14 = inlined_call_operand.hbm [shape: f32[2,256], index: 14, kind: input, shape index: {}]
  %s15 = inlined_call_operand.hbm [shape: bf16[256,512], index: 15, kind: input, shape index: {}]
  %s16 = inlined_call_operand.hbm [shape: f32[4,256,128], index: 16, kind: input, shape index: {}]
  %s17 = inlined_call_operand.hbm [shape: f32[2,128], index: 17, kind: input, shape index: {}]
  %s18 = inlined_call_operand.hbm [shape: f32[512,128], index: 18, kind: output, shape index: {}]
  %s19 = sld [smem:[#allocation0]]
  $region145: #{tpu_custom_call.1} parent=0
    _
  %s21 = ssub.s32 1, %s19
  %s22 = scalar_select 0, %s21, %s19
  $region1: #{tpu_custom_call.1} parent=0
    #allocation2 [shape = 'u8[2048]{0}', space=smem, size = 0x800, scoped, tag = 'input window, operand 1, single buffered']
    #allocation3 [shape = 's32[2]{0}', space=sflag, size = 0x8, scoped, tag = 'scoped memory for tpu_custom_call.1']
    #allocation4 [shape = 's32[2]{0}', space=sflag, size = 0x8, scoped, tag = 'scoped memory for tpu_custom_call.1']
    #allocation5 [shape = 's32[2]{0}', space=sflag, size = 0x8, scoped, tag = 'scoped memory for tpu_custom_call.1']
    #allocation6 [shape = 'u8[512]{0}', space=smem, size = 0x200, scoped, tag = 'input window, operand 2, single buffered']
    #allocation7 [shape = 's32[1]{0}', space=sflag, size = 0x4, scoped, tag = 'scoped memory for tpu_custom_call.1']
    #allocation8 [shape = 'u8[2048]{0}', space=vmem, size = 0x800, scoped, tag = 'input window, operand 7, single buffered']
    #allocation9 [shape = 'u8[2048]{0}', space=vmem, size = 0x800, scoped, tag = 'input window, operand 9, single buffered']
    #allocation10 [shape = 's32[1]{0}', space=sflag, size = 0x4, scoped, tag = 'scoped memory for tpu_custom_call.1']
    #allocation11 [shape = 'u8[393216]{0}', space=vmem, size = 0x60000, scoped, tag = 'input window, operand 10, single buffered']
    #allocation12 [shape = 'u8[2048]{0}', space=vmem, size = 0x800, scoped, tag = 'input window, operand 11, single buffered']
    #allocation13 [shape = 's32[1]{0}', space=sflag, size = 0x4, scoped, tag = 'scoped memory for tpu_custom_call.1']
    #allocation14 [shape = 'u8[2048]{0}', space=vmem, size = 0x800, scoped, tag = 'input window, operand 14, single buffered']
    #allocation15 [shape = 'u8[262144]{0}', space=vmem, size = 0x40000, scoped, tag = 'input window, operand 15, single buffered']
    #allocation16 [shape = 's32[1]{0}', space=sflag, size = 0x4, scoped, tag = 'scoped memory for tpu_custom_call.1']
    #allocation17 [shape = 'u8[524288]{0}', space=vmem, size = 0x80000, scoped, tag = 'input window, operand 16, single buffered']
    #allocation18 [shape = 'u8[1024]{0}', space=vmem, size = 0x400, scoped, tag = 'input window, operand 17, single buffered']
    #allocation19 [shape = 's32[1]{0}', space=sflag, size = 0x4, scoped, tag = 'scoped memory for tpu_custom_call.1']
    #allocation20 [shape = 'u8[262144]{0}', space=vmem, size = 0x40000, scoped, tag = 'output window, operand 0']
    %23 = vsyncpa [#allocation5], 0
    %24 = vsyncpa [#allocation7], 0
    %25 = vsyncpa [#allocation3], 0
    %26 = vsyncpa [#allocation10], 0
    %27 = vsyncpa [#allocation13], 0
    %28 = vsyncpa [#allocation16], 0
    %29 = vsyncpa [#allocation19], 0
    %30 = vsyncpa [#allocation4], 0
    %s31 = scalar_lea.sflag [#allocation4], 1
    %32 = vsyncpa %s31, 0
    loop: start=0, step=1, limit=4
    $region2: #{tpu_custom_call.1} parent=1 // loop_pre_header
      _
    $region3: #{tpu_custom_call.1} parent=1 // loop_header
      %s34 = sphi 0, %s38
      %p35 = scmp.ge.s32.totalorder %s34, 4
      %s44 = sphi 0, %s46
      %s47 = sphi 0, %s44
      %s48 = sphi 0, %s47
      %s64 = sphi 0, %s48
      %s68 = sphi 0, %s68
      %s70 = sphi 0, %s68
      %s71 = sphi 0, %s70
      %s85 = sphi 0, %s71
      %s89 = sphi 0, %s89
      %s91 = sphi 0, %s89
      %s92 = sphi 0, %s91
      %s106 = sphi 0, %s92
      %s110 = sphi 0, %s110
      %s112 = sphi 0, %s110
      %s113 = sphi 0, %s112
      %s127 = sphi 0, %s113
      %s131 = sphi 0, %s131
      %s133 = sphi 0, %s131
      %s134 = sphi 0, %s133
      %s148 = sphi 0, %s134
      %s152 = sphi 0, %s152
      %s154 = sphi 0, %s152
      %s155 = sphi 0, %s154
      %s169 = sphi 0, %s155
      %s173 = sphi 0, %s173
      %s175 = sphi 0, %s173
      %s176 = sphi 0, %s175
      %s190 = sphi 0, %s176
      %s194 = sphi 0, %s194
      %s196 = sphi 0, %s194
      %s197 = sphi 0, %s196
      %s211 = sphi 0, %s197
      %s215 = sphi 0, %s215
      %s217 = sphi 0, %s215
      %s218 = sphi 0, %s217
      %s232 = sphi 0, %s218
      %s236 = sphi 0, %s236
      %s238 = sphi 0, %s236
      %s239 = sphi 0, %s238
      %s253 = sphi 0, %s239
      %s257 = sphi 0, %s257
      %s259 = sphi 0, %s257
      %s260 = sphi 0, %s259
      %s274 = sphi 0, %s260
      %s278 = sphi 0, %s278
      %s280 = sphi 0, %s278
      %s281 = sphi 0, %s280
      %s295 = sphi 0, %s281
      %s299 = sphi 0, %s299
      %s301 = sphi 0, %s299
      %s302 = sphi 0, %s301
      %s316 = sphi 0, %s302
      %s320 = sphi 0, %s320
      %s322 = sphi 0, %s320
      %s323 = sphi 0, %s322
      %s337 = sphi 0, %s323
      %s341 = sphi 0, %s341
      %s343 = sphi 0, %s341
      %s344 = sphi 0, %s343
      %s358 = sphi 0, %s344
      %s362 = sphi 0, %s362
      %s364 = sphi 0, %s362
      %s365 = sphi 0, %s364
      %s379 = sphi 0, %s365
      %s383 = sphi 0, %s383
      %s385 = sphi 0, %s383
      %s386 = sphi 0, %s385
      %s400 = sphi 0, %s386
      %s404 = sphi 0, %s404
      %s406 = sphi 0, %s404
      %s407 = sphi 0, %s406
      %s421 = sphi 0, %s407
      %s427 = sphi 0, %s429
      %s430 = sphi 0, %s427
      %s431 = sphi 0, %s430
      %s447 = sphi 0, %s431
    $region4: #{tpu_custom_call.1} parent=1 // loop_header_branch
      %37 = sbr.rel (%p35) target = $region8
    $region5: #{tpu_custom_call.1} parent=1 // loop_body
      %s39 = ssub.s32 %s34, 1
      %s40 = ssub.s32 %s34, 2
      %s41 = sadd.s32 %s34, 1
      %s42 = ssub.s32 %s34, %s41
      %p43 = scmp.eq.s32.totalorder %s42, 0
      %s45 = sadd.s32 %s44, 1
      %s46 = scalar_select %p43, %s44, %s45
      %p49 = pneg %p43
      %p50 = scmp.eq.s32.totalorder %s34, 1
      %p51 = por %p49, %p50
      %p52 = scmp.ne.s32.totalorder %s44, %s47
      %p53 = scmp.eq.s32.totalorder %s34, 0
      %p54 = por %p52, %p53
      %p55 = scmp.ne.s32.totalorder %s44, %s47
      %p56 = scmp.eq.s32.totalorder %s39, 1
      %p57 = por %p55, %p56
      %p58 = scmp.ne.s32.totalorder %s47, %s48
      %p59 = scmp.eq.s32.totalorder %s39, 0
      %p60 = por %p58, %p59
      %p61 = scmp.ne.s32.totalorder %s47, %s48
      %p62 = scmp.eq.s32.totalorder %s40, 1
      %p63 = por %p61, %p62
      %p65 = scmp.ne.s32.totalorder %s48, %s64
      %p66 = scmp.eq.s32.totalorder %s40, 0
      %p67 = por %p65, %p66
      %s69 = sadd.s32 %s68, 1
      %p72 = scmp.eq.s32.totalorder %s34, 1
      %p73 = scmp.ne.s32.totalorder %s68, %s70
      %p74 = scmp.eq.s32.totalorder %s34, 0
      %p75 = por %p73, %p74
      %p76 = scmp.ne.s32.totalorder %s68, %s70
      %p77 = scmp.eq.s32.totalorder %s39, 1
      %p78 = por %p76, %p77
      %p79 = scmp.ne.s32.totalorder %s70, %s71
      %p80 = scmp.eq.s32.totalorder %s39, 0
      %p81 = por %p79, %p80
      %p82 = scmp.ne.s32.totalorder %s70, %s71
      %p83 = scmp.eq.s32.totalorder %s40, 1
      %p84 = por %p82, %p83
      %p86 = scmp.ne.s32.totalorder %s71, %s85
      %p87 = scmp.eq.s32.totalorder %s40, 0
      %p88 = por %p86, %p87
      %s90 = sadd.s32 %s89, 1
      %p93 = scmp.eq.s32.totalorder %s34, 1
      %p94 = scmp.ne.s32.totalorder %s89, %s91
      %p95 = scmp.eq.s32.totalorder %s34, 0
      %p96 = por %p94, %p95
      %p97 = scmp.ne.s32.totalorder %s89, %s91
      %p98 = scmp.eq.s32.totalorder %s39, 1
      %p99 = por %p97, %p98
      %p100 = scmp.ne.s32.totalorder %s91, %s92
      %p101 = scmp.eq.s32.totalorder %s39, 0
      %p102 = por %p100, %p101
      %p103 = scmp.ne.s32.totalorder %s91, %s92
      %p104 = scmp.eq.s32.totalorder %s40, 1
      %p105 = por %p103, %p104
      %p107 = scmp.ne.s32.totalorder %s92, %s106
      %p108 = scmp.eq.s32.totalorder %s40, 0
      %p109 = por %p107, %p108
      %s111 = sadd.s32 %s110, 1
      %p114 = scmp.eq.s32.totalorder %s34, 1
      %p115 = scmp.ne.s32.totalorder %s110, %s112
      %p116 = scmp.eq.s32.totalorder %s34, 0
      %p117 = por %p115, %p116
      %p118 = scmp.ne.s32.totalorder %s110, %s112
      %p119 = scmp.eq.s32.totalorder %s39, 1
      %p120 = por %p118, %p119
      %p121 = scmp.ne.s32.totalorder %s112, %s113
      %p122 = scmp.eq.s32.totalorder %s39, 0
      %p123 = por %p121, %p122
      %p124 = scmp.ne.s32.totalorder %s112, %s113
      %p125 = scmp.eq.s32.totalorder %s40, 1
      %p126 = por %p124, %p125
      %p128 = scmp.ne.s32.totalorder %s113, %s127
      %p129 = scmp.eq.s32.totalorder %s40, 0
      %p130 = por %p128, %p129
      %s132 = sadd.s32 %s131, 1
      %p135 = scmp.eq.s32.totalorder %s34, 1
      %p136 = scmp.ne.s32.totalorder %s131, %s133
      %p137 = scmp.eq.s32.totalorder %s34, 0
      %p138 = por %p136, %p137
      %p139 = scmp.ne.s32.totalorder %s131, %s133
      %p140 = scmp.eq.s32.totalorder %s39, 1
      %p141 = por %p139, %p140
      %p142 = scmp.ne.s32.totalorder %s133, %s134
      %p143 = scmp.eq.s32.totalorder %s39, 0
      %p144 = por %p142, %p143
      %p145 = scmp.ne.s32.totalorder %s133, %s134
      %p146 = scmp.eq.s32.totalorder %s40, 1
      %p147 = por %p145, %p146
      %p149 = scmp.ne.s32.totalorder %s134, %s148
      %p150 = scmp.eq.s32.totalorder %s40, 0
      %p151 = por %p149, %p150
      %s153 = sadd.s32 %s152, 1
      %p156 = scmp.eq.s32.totalorder %s34, 1
      %p157 = scmp.ne.s32.totalorder %s152, %s154
      %p158 = scmp.eq.s32.totalorder %s34, 0
      %p159 = por %p157, %p158
      %p160 = scmp.ne.s32.totalorder %s152, %s154
      %p161 = scmp.eq.s32.totalorder %s39, 1
      %p162 = por %p160, %p161
      %p163 = scmp.ne.s32.totalorder %s154, %s155
      %p164 = scmp.eq.s32.totalorder %s39, 0
      %p165 = por %p163, %p164
      %p166 = scmp.ne.s32.totalorder %s154, %s155
      %p167 = scmp.eq.s32.totalorder %s40, 1
      %p168 = por %p166, %p167
      %p170 = scmp.ne.s32.totalorder %s155, %s169
      %p171 = scmp.eq.s32.totalorder %s40, 0
      %p172 = por %p170, %p171
      %s174 = sadd.s32 %s173, 1
      %p177 = scmp.eq.s32.totalorder %s34, 1
      %p178 = scmp.ne.s32.totalorder %s173, %s175
      %p179 = scmp.eq.s32.totalorder %s34, 0
      %p180 = por %p178, %p179
      %p181 = scmp.ne.s32.totalorder %s173, %s175
      %p182 = scmp.eq.s32.totalorder %s39, 1
      %p183 = por %p181, %p182
      %p184 = scmp.ne.s32.totalorder %s175, %s176
      %p185 = scmp.eq.s32.totalorder %s39, 0
      %p186 = por %p184, %p185
      %p187 = scmp.ne.s32.totalorder %s175, %s176
      %p188 = scmp.eq.s32.totalorder %s40, 1
      %p189 = por %p187, %p188
      %p191 = scmp.ne.s32.totalorder %s176, %s190
      %p192 = scmp.eq.s32.totalorder %s40, 0
      %p193 = por %p191, %p192
      %s195 = sadd.s32 %s194, 1
      %p198 = scmp.eq.s32.totalorder %s34, 1
      %p199 = scmp.ne.s32.totalorder %s194, %s196
      %p200 = scmp.eq.s32.totalorder %s34, 0
      %p201 = por %p199, %p200
      %p202 = scmp.ne.s32.totalorder %s194, %s196
      %p203 = scmp.eq.s32.totalorder %s39, 1
      %p204 = por %p202, %p203
      %p205 = scmp.ne.s32.totalorder %s196, %s197
      %p206 = scmp.eq.s32.totalorder %s39, 0
      %p207 = por %p205, %p206
      %p208 = scmp.ne.s32.totalorder %s196, %s197
      %p209 = scmp.eq.s32.totalorder %s40, 1
      %p210 = por %p208, %p209
      %p212 = scmp.ne.s32.totalorder %s197, %s211
      %p213 = scmp.eq.s32.totalorder %s40, 0
      %p214 = por %p212, %p213
      %s216 = sadd.s32 %s215, 1
      %p219 = scmp.eq.s32.totalorder %s34, 1
      %p220 = scmp.ne.s32.totalorder %s215, %s217
      %p221 = scmp.eq.s32.totalorder %s34, 0
      %p222 = por %p220, %p221
      %p223 = scmp.ne.s32.totalorder %s215, %s217
      %p224 = scmp.eq.s32.totalorder %s39, 1
      %p225 = por %p223, %p224
      %p226 = scmp.ne.s32.totalorder %s217, %s218
      %p227 = scmp.eq.s32.totalorder %s39, 0
      %p228 = por %p226, %p227
      %p229 = scmp.ne.s32.totalorder %s217, %s218
      %p230 = scmp.eq.s32.totalorder %s40, 1
      %p231 = por %p229, %p230
      %p233 = scmp.ne.s32.totalorder %s218, %s232
      %p234 = scmp.eq.s32.totalorder %s40, 0
      %p235 = por %p233, %p234
      %s237 = sadd.s32 %s236, 1
      %p240 = scmp.eq.s32.totalorder %s34, 1
      %p241 = scmp.ne.s32.totalorder %s236, %s238
      %p242 = scmp.eq.s32.totalorder %s34, 0
      %p243 = por %p241, %p242
      %p244 = scmp.ne.s32.totalorder %s236, %s238
      %p245 = scmp.eq.s32.totalorder %s39, 1
      %p246 = por %p244, %p245
      %p247 = scmp.ne.s32.totalorder %s238, %s239
      %p248 = scmp.eq.s32.totalorder %s39, 0
      %p249 = por %p247, %p248
      %p250 = scmp.ne.s32.totalorder %s238, %s239
      %p251 = scmp.eq.s32.totalorder %s40, 1
      %p252 = por %p250, %p251
      %p254 = scmp.ne.s32.totalorder %s239, %s253
      %p255 = scmp.eq.s32.totalorder %s40, 0
      %p256 = por %p254, %p255
      %s258 = sadd.s32 %s257, 1
      %p261 = scmp.eq.s32.totalorder %s34, 1
      %p262 = scmp.ne.s32.totalorder %s257, %s259
      %p263 = scmp.eq.s32.totalorder %s34, 0
      %p264 = por %p262, %p263
      %p265 = scmp.ne.s32.totalorder %s257, %s259
      %p266 = scmp.eq.s32.totalorder %s39, 1
      %p267 = por %p265, %p266
      %p268 = scmp.ne.s32.totalorder %s259, %s260
      %p269 = scmp.eq.s32.totalorder %s39, 0
      %p270 = por %p268, %p269
      %p271 = scmp.ne.s32.totalorder %s259, %s260
      %p272 = scmp.eq.s32.totalorder %s40, 1
      %p273 = por %p271, %p272
      %p275 = scmp.ne.s32.totalorder %s260, %s274
      %p276 = scmp.eq.s32.totalorder %s40, 0
      %p277 = por %p275, %p276
      %s279 = sadd.s32 %s278, 1
      %p282 = scmp.eq.s32.totalorder %s34, 1
      %p283 = scmp.ne.s32.totalorder %s278, %s280
      %p284 = scmp.eq.s32.totalorder %s34, 0
      %p285 = por %p283, %p284
      %p286 = scmp.ne.s32.totalorder %s278, %s280
      %p287 = scmp.eq.s32.totalorder %s39, 1
      %p288 = por %p286, %p287
      %p289 = scmp.ne.s32.totalorder %s280, %s281
      %p290 = scmp.eq.s32.totalorder %s39, 0
      %p291 = por %p289, %p290
      %p292 = scmp.ne.s32.totalorder %s280, %s281
      %p293 = scmp.eq.s32.totalorder %s40, 1
      %p294 = por %p292, %p293
      %p296 = scmp.ne.s32.totalorder %s281, %s295
      %p297 = scmp.eq.s32.totalorder %s40, 0
      %p298 = por %p296, %p297
      %s300 = sadd.s32 %s299, 1
      %p303 = scmp.eq.s32.totalorder %s34, 1
      %p304 = scmp.ne.s32.totalorder %s299, %s301
      %p305 = scmp.eq.s32.totalorder %s34, 0
      %p306 = por %p304, %p305
      %p307 = scmp.ne.s32.totalorder %s299, %s301
      %p308 = scmp.eq.s32.totalorder %s39, 1
      %p309 = por %p307, %p308
      %p310 = scmp.ne.s32.totalorder %s301, %s302
      %p311 = scmp.eq.s32.totalorder %s39, 0
      %p312 = por %p310, %p311
      %p313 = scmp.ne.s32.totalorder %s301, %s302
      %p314 = scmp.eq.s32.totalorder %s40, 1
      %p315 = por %p313, %p314
      %p317 = scmp.ne.s32.totalorder %s302, %s316
      %p318 = scmp.eq.s32.totalorder %s40, 0
      %p319 = por %p317, %p318
      %s321 = sadd.s32 %s320, 1
      %p324 = scmp.eq.s32.totalorder %s34, 1
      %p325 = scmp.ne.s32.totalorder %s320, %s322
      %p326 = scmp.eq.s32.totalorder %s34, 0
      %p327 = por %p325, %p326
      %p328 = scmp.ne.s32.totalorder %s320, %s322
      %p329 = scmp.eq.s32.totalorder %s39, 1
      %p330 = por %p328, %p329
      %p331 = scmp.ne.s32.totalorder %s322, %s323
      %p332 = scmp.eq.s32.totalorder %s39, 0
      %p333 = por %p331, %p332
      %p334 = scmp.ne.s32.totalorder %s322, %s323
      %p335 = scmp.eq.s32.totalorder %s40, 1
      %p336 = por %p334, %p335
      %p338 = scmp.ne.s32.totalorder %s323, %s337
      %p339 = scmp.eq.s32.totalorder %s40, 0
      %p340 = por %p338, %p339
      %s342 = sadd.s32 %s341, 1
      %p345 = scmp.eq.s32.totalorder %s34, 1
      %p346 = scmp.ne.s32.totalorder %s341, %s343
      %p347 = scmp.eq.s32.totalorder %s34, 0
      %p348 = por %p346, %p347
      %p349 = scmp.ne.s32.totalorder %s341, %s343
      %p350 = scmp.eq.s32.totalorder %s39, 1
      %p351 = por %p349, %p350
      %p352 = scmp.ne.s32.totalorder %s343, %s344
      %p353 = scmp.eq.s32.totalorder %s39, 0
      %p354 = por %p352, %p353
      %p355 = scmp.ne.s32.totalorder %s343, %s344
      %p356 = scmp.eq.s32.totalorder %s40, 1
      %p357 = por %p355, %p356
      %p359 = scmp.ne.s32.totalorder %s344, %s358
      %p360 = scmp.eq.s32.totalorder %s40, 0
      %p361 = por %p359, %p360
      %s363 = sadd.s32 %s362, 1
      %p366 = scmp.eq.s32.totalorder %s34, 1
      %p367 = scmp.ne.s32.totalorder %s362, %s364
      %p368 = scmp.eq.s32.totalorder %s34, 0
      %p369 = por %p367, %p368
      %p370 = scmp.ne.s32.totalorder %s362, %s364
      %p371 = scmp.eq.s32.totalorder %s39, 1
      %p372 = por %p370, %p371
      %p373 = scmp.ne.s32.totalorder %s364, %s365
      %p374 = scmp.eq.s32.totalorder %s39, 0
      %p375 = por %p373, %p374
      %p376 = scmp.ne.s32.totalorder %s364, %s365
      %p377 = scmp.eq.s32.totalorder %s40, 1
      %p378 = por %p376, %p377
      %p380 = scmp.ne.s32.totalorder %s365, %s379
      %p381 = scmp.eq.s32.totalorder %s40, 0
      %p382 = por %p380, %p381
      %s384 = sadd.s32 %s383, 1
      %p387 = scmp.eq.s32.totalorder %s34, 1
      %p388 = scmp.ne.s32.totalorder %s383, %s385
      %p389 = scmp.eq.s32.totalorder %s34, 0
      %p390 = por %p388, %p389
      %p391 = scmp.ne.s32.totalorder %s383, %s385
      %p392 = scmp.eq.s32.totalorder %s39, 1
      %p393 = por %p391, %p392
      %p394 = scmp.ne.s32.totalorder %s385, %s386
      %p395 = scmp.eq.s32.totalorder %s39, 0
      %p396 = por %p394, %p395
      %p397 = scmp.ne.s32.totalorder %s385, %s386
      %p398 = scmp.eq.s32.totalorder %s40, 1
      %p399 = por %p397, %p398
      %p401 = scmp.ne.s32.totalorder %s386, %s400
      %p402 = scmp.eq.s32.totalorder %s40, 0
      %p403 = por %p401, %p402
      %s405 = sadd.s32 %s404, 1
      %p408 = scmp.eq.s32.totalorder %s34, 1
      %p409 = scmp.ne.s32.totalorder %s404, %s406
      %p410 = scmp.eq.s32.totalorder %s34, 0
      %p411 = por %p409, %p410
      %p412 = scmp.ne.s32.totalorder %s404, %s406
      %p413 = scmp.eq.s32.totalorder %s39, 1
      %p414 = por %p412, %p413
      %p415 = scmp.ne.s32.totalorder %s406, %s407
      %p416 = scmp.eq.s32.totalorder %s39, 0
      %p417 = por %p415, %p416
      %p418 = scmp.ne.s32.totalorder %s406, %s407
      %p419 = scmp.eq.s32.totalorder %s40, 1
      %p420 = por %p418, %p419
      %p422 = scmp.ne.s32.totalorder %s407, %s421
      %p423 = scmp.eq.s32.totalorder %s40, 0
      %p424 = por %p422, %p423
      %s425 = ssub.s32 %s34, %s41
      %p426 = scmp.eq.s32.totalorder %s425, 0
      %s428 = sadd.s32 %s427, 1
      %s429 = scalar_select %p426, %s427, %s428
      %p432 = pneg %p426
      %p433 = scmp.eq.s32.totalorder %s34, 1
      %p434 = por %p432, %p433
      %p435 = scmp.ne.s32.totalorder %s427, %s430
      %p436 = scmp.eq.s32.totalorder %s34, 0
      %p437 = por %p435, %p436
      %p438 = scmp.ne.s32.totalorder %s427, %s430
      %p439 = scmp.eq.s32.totalorder %s39, 1
      %p440 = por %p438, %p439
      %p441 = scmp.ne.s32.totalorder %s430, %s431
      %p442 = scmp.eq.s32.totalorder %s39, 0
      %p443 = por %p441, %p442
      %p444 = scmp.ne.s32.totalorder %s430, %s431
      %p445 = scmp.eq.s32.totalorder %s40, 1
      %p446 = por %p444, %p445
      %p448 = scmp.ne.s32.totalorder %s431, %s447
      %p449 = scmp.eq.s32.totalorder %s40, 0
      %p450 = por %p448, %p449
      %p451 = scmp.le.s32.totalorder 1, %s34
      %p452 = scmp.lt.s32.totalorder %s34, 3
      %p453 = pnand %p451, %p452
      %p454 = pneg %p453
      // Predicated region
      $region9: #{tpu_custom_call.1} parent=5 // pred_check
        _
      $region10: #{tpu_custom_call.1} parent=5 // pred_check_branch
        %456 = sbr.rel (%p453) target = $region12
      $region11: #{tpu_custom_call.1} parent=5 // pred_region
        %s457 = ssub.s32 %s34, 1
        // Predicated region
        $region13: #{tpu_custom_call.1} parent=11 // pred_check
          %p458 = pneg %p81
        $region14: #{tpu_custom_call.1} parent=11 // pred_check_branch
          %460 = sbr.rel (%p458) target = $region16
        $region15: #{tpu_custom_call.1} parent=11 // pred_region
          %462 = vsyncadd [#allocation5], 0
          %s464 = sshll.u32 %s1, 4
          %s465 = int_to_ptr.hbm [resolvable:$true] %s464
          %467 = dma.hbm_to_smem %s465, 64, [#allocation2], [#allocation5]
        $region16: #{tpu_custom_call.1} parent=11 // pred_fallthru
          _
        // Predicated region
        $region17: #{tpu_custom_call.1} parent=11 // pred_check
          %p468 = pneg %p102
        $region18: #{tpu_custom_call.1} parent=11 // pred_check_branch
          %470 = sbr.rel (%p468) target = $region20
        $region19: #{tpu_custom_call.1} parent=11 // pred_region
          %472 = vsyncadd [#allocation7], 0
          %s474 = sshll.u32 %s2, 4
          %s475 = int_to_ptr.hbm [resolvable:$true] %s474
          %477 = dma.hbm_to_smem %s475, 16, [#allocation6], [#allocation7]
        $region20: #{tpu_custom_call.1} parent=11 // pred_fallthru
          _
        // Predicated region
        $region21: #{tpu_custom_call.1} parent=11 // pred_check
          %p478 = pneg %p123
        $region22: #{tpu_custom_call.1} parent=11 // pred_check_branch
          %480 = sbr.rel (%p478) target = $region24
        $region23: #{tpu_custom_call.1} parent=11 // pred_region
          _
        $region24: #{tpu_custom_call.1} parent=11 // pred_fallthru
          _
        // Predicated region
        $region25: #{tpu_custom_call.1} parent=11 // pred_check
          %p481 = pneg %p144
        $region26: #{tpu_custom_call.1} parent=11 // pred_check_branch
          %483 = sbr.rel (%p481) target = $region28
        $region27: #{tpu_custom_call.1} parent=11 // pred_region
          _
        $region28: #{tpu_custom_call.1} parent=11 // pred_fallthru
          _
        // Predicated region
        $region29: #{tpu_custom_call.1} parent=11 // pred_check
          %p484 = pneg %p165
        $region30: #{tpu_custom_call.1} parent=11 // pred_check_branch
          %486 = sbr.rel (%p484) target = $region32
        $region31: #{tpu_custom_call.1} parent=11 // pred_region
          _
        $region32: #{tpu_custom_call.1} parent=11 // pred_fallthru
          _
        // Predicated region
        $region33: #{tpu_custom_call.1} parent=11 // pred_check
          %p487 = pneg %p186
        $region34: #{tpu_custom_call.1} parent=11 // pred_check_branch
          %489 = sbr.rel (%p487) target = $region36
        $region35: #{tpu_custom_call.1} parent=11 // pred_region
          _
        $region36: #{tpu_custom_call.1} parent=11 // pred_fallthru
          _
        // Predicated region
        $region37: #{tpu_custom_call.1} parent=11 // pred_check
          %p490 = pneg %p207
        $region38: #{tpu_custom_call.1} parent=11 // pred_check_branch
          %492 = sbr.rel (%p490) target = $region40
        $region39: #{tpu_custom_call.1} parent=11 // pred_region
          %494 = vsyncadd [#allocation3], 0
          %s496 = sshll.u32 %s7, 4
          %s497 = int_to_ptr.hbm [resolvable:$true] %s496
          %s498 = sshll.u32 [#allocation8], 4
          %s499 = int_to_ptr.vmem [resolvable:$true] %s498
          %501 = dma.hbm_to_vmem [thread:$0]  %s497, 64, %s499, [#allocation3]
        $region40: #{tpu_custom_call.1} parent=11 // pred_fallthru
          _
        // Predicated region
        $region41: #{tpu_custom_call.1} parent=11 // pred_check
          %p502 = pneg %p228
        $region42: #{tpu_custom_call.1} parent=11 // pred_check_branch
          %504 = sbr.rel (%p502) target = $region44
        $region43: #{tpu_custom_call.1} parent=11 // pred_region
          _
        $region44: #{tpu_custom_call.1} parent=11 // pred_fallthru
          _
        // Predicated region
        $region45: #{tpu_custom_call.1} parent=11 // pred_check
          %p505 = pneg %p249
        $region46: #{tpu_custom_call.1} parent=11 // pred_check_branch
          %507 = sbr.rel (%p505) target = $region48
        $region47: #{tpu_custom_call.1} parent=11 // pred_region
          %509 = vsyncadd [#allocation10], 0
          %s511 = sshll.u32 %s9, 4
          %s512 = int_to_ptr.hbm [resolvable:$true] %s511
          %s513 = sshll.u32 [#allocation9], 4
          %s514 = int_to_ptr.vmem [resolvable:$true] %s513
          %516 = dma.hbm_to_vmem [thread:$0]  %s512, 64, %s514, [#allocation10]
        $region48: #{tpu_custom_call.1} parent=11 // pred_fallthru
          _
        // Predicated region
        $region49: #{tpu_custom_call.1} parent=11 // pred_check
          %p517 = pneg %p270
        $region50: #{tpu_custom_call.1} parent=11 // pred_check_branch
          %519 = sbr.rel (%p517) target = $region52
        $region51: #{tpu_custom_call.1} parent=11 // pred_region
          %521 = vsyncadd [#allocation10], 0
          %s522 = sshll.u32 %s10, 4
          %s523 = int_to_ptr.hbm [resolvable:$true] %s522
          %s524 = sshll.u32 [#allocation11], 4
          %s525 = int_to_ptr.vmem [resolvable:$true] %s524
          %530 = dma.hbm_to_vmem [thread:$0]  %s523, 12288, %s525, [#allocation10], 384, 384, 24
        $region52: #{tpu_custom_call.1} parent=11 // pred_fallthru
          _
        // Predicated region
        $region53: #{tpu_custom_call.1} parent=11 // pred_check
          %p531 = pneg %p291
        $region54: #{tpu_custom_call.1} parent=11 // pred_check_branch
          %533 = sbr.rel (%p531) target = $region56
        $region55: #{tpu_custom_call.1} parent=11 // pred_region
          %535 = vsyncadd [#allocation13], 0
          %s537 = sshll.u32 %s11, 4
          %s538 = int_to_ptr.hbm [resolvable:$true] %s537
          %s539 = sshll.u32 [#allocation12], 4
          %s540 = int_to_ptr.vmem [resolvable:$true] %s539
          %542 = dma.hbm_to_vmem [thread:$0]  %s538, 64, %s540, [#allocation13]
        $region56: #{tpu_custom_call.1} parent=11 // pred_fallthru
          _
        // Predicated region
        $region57: #{tpu_custom_call.1} parent=11 // pred_check
          %p543 = pneg %p312
        $region58: #{tpu_custom_call.1} parent=11 // pred_check_branch
          %545 = sbr.rel (%p543) target = $region60
        $region59: #{tpu_custom_call.1} parent=11 // pred_region
          _
        $region60: #{tpu_custom_call.1} parent=11 // pred_fallthru
          _
        // Predicated region
        $region61: #{tpu_custom_call.1} parent=11 // pred_check
          %p546 = pneg %p333
        $region62: #{tpu_custom_call.1} parent=11 // pred_check_branch
          %548 = sbr.rel (%p546) target = $region64
        $region63: #{tpu_custom_call.1} parent=11 // pred_region
          _
        $region64: #{tpu_custom_call.1} parent=11 // pred_fallthru
          _
        // Predicated region
        $region65: #{tpu_custom_call.1} parent=11 // pred_check
          %p549 = pneg %p354
        $region66: #{tpu_custom_call.1} parent=11 // pred_check_branch
          %551 = sbr.rel (%p549) target = $region68
        $region67: #{tpu_custom_call.1} parent=11 // pred_region
          %553 = vsyncadd [#allocation13], 0
          %s555 = sshll.u32 %s14, 4
          %s556 = int_to_ptr.hbm [resolvable:$true] %s555
          %s557 = sshll.u32 [#allocation14], 4
          %s558 = int_to_ptr.vmem [resolvable:$true] %s557
          %560 = dma.hbm_to_vmem [thread:$0]  %s556, 64, %s558, [#allocation13]
        $region68: #{tpu_custom_call.1} parent=11 // pred_fallthru
          _
        // Predicated region
        $region69: #{tpu_custom_call.1} parent=11 // pred_check
          %p561 = pneg %p375
        $region70: #{tpu_custom_call.1} parent=11 // pred_check_branch
          %563 = sbr.rel (%p561) target = $region72
        $region71: #{tpu_custom_call.1} parent=11 // pred_region
          %565 = vsyncadd [#allocation16], 0
          %s566 = sshll.u32 %s15, 4
          %s567 = int_to_ptr.hbm [resolvable:$true] %s566
          %s568 = sshll.u32 [#allocation15], 4
          %s569 = int_to_ptr.vmem [resolvable:$true] %s568
          %574 = dma.hbm_to_vmem [thread:$0]  %s567, 8192, %s569, [#allocation16], 256, 256, 16
        $region72: #{tpu_custom_call.1} parent=11 // pred_fallthru
          _
        // Predicated region
        $region73: #{tpu_custom_call.1} parent=11 // pred_check
          %p575 = pneg %p396
        $region74: #{tpu_custom_call.1} parent=11 // pred_check_branch
          %577 = sbr.rel (%p575) target = $region76
        $region75: #{tpu_custom_call.1} parent=11 // pred_region
          %579 = vsyncadd [#allocation16], 0
          %s580 = sshll.u32 %s16, 4
          %s581 = int_to_ptr.hbm [resolvable:$true] %s580
          %s582 = sshll.u32 [#allocation17], 4
          %s583 = int_to_ptr.vmem [resolvable:$true] %s582
          %588 = dma.hbm_to_vmem [thread:$0]  %s581, 16384, %s583, [#allocation16], 128, 128, 8
        $region76: #{tpu_custom_call.1} parent=11 // pred_fallthru
          _
        // Predicated region
        $region77: #{tpu_custom_call.1} parent=11 // pred_check
          %p589 = pneg %p417
        $region78: #{tpu_custom_call.1} parent=11 // pred_check_branch
          %591 = sbr.rel (%p589) target = $region80
        $region79: #{tpu_custom_call.1} parent=11 // pred_region
          %593 = vsyncadd [#allocation19], 0
          %s595 = sshll.u32 %s17, 4
          %s596 = int_to_ptr.hbm [resolvable:$true] %s595
          %s597 = sshll.u32 [#allocation18], 4
          %s598 = int_to_ptr.vmem [resolvable:$true] %s597
          %600 = dma.hbm_to_vmem [thread:$0]  %s596, 32, %s598, [#allocation19]
        $region80: #{tpu_custom_call.1} parent=11 // pred_fallthru
          _
      $region12: #{tpu_custom_call.1} parent=5 // pred_fallthru
        _
      %p601 = scmp.lt.s32.totalorder %s34, 2
      // Predicated region
      $region81: #{tpu_custom_call.1} parent=5 // pred_check
        %p602 = pneg %p601
      $region82: #{tpu_custom_call.1} parent=5 // pred_check_branch
        %604 = sbr.rel (%p602) target = $region84
      $region83: #{tpu_custom_call.1} parent=5 // pred_region
        // Predicated region
        $region85: #{tpu_custom_call.1} parent=83 // pred_check
          %p605 = pneg %p54
        $region86: #{tpu_custom_call.1} parent=83 // pred_check_branch
          %607 = sbr.rel (%p605) target = $region88
        $region87: #{tpu_custom_call.1} parent=83 // pred_region
          %s608 = smul.u32 8, %s34
          %p609 = scmp.lt.s32.totalorder %s608, 15
          %s610 = scalar_select %p609, %s608, 15
          %s611 = smul.addr %s610, 3
          %s612 = smul.addr %s611, 4
          %s613 = scalar_lea.vmem %s0, %s612
          %s614 = smul.u32 8, %s34
        $region88: #{tpu_custom_call.1} parent=83 // pred_fallthru
          _
      $region84: #{tpu_custom_call.1} parent=5 // pred_fallthru
        _
      %p615 = scmp.le.s32.totalorder 1, %s34
      %p616 = scmp.lt.s32.totalorder %s34, 3
      %p617 = pnand %p615, %p616
      %p618 = pneg %p617
      // Predicated region
      $region89: #{tpu_custom_call.1} parent=5 // pred_check
        _
      $region90: #{tpu_custom_call.1} parent=5 // pred_check_branch
        %620 = sbr.rel (%p617) target = $region92
      $region91: #{tpu_custom_call.1} parent=5 // pred_region
        %s621 = ssub.s32 %s34, 1
        // Predicated region
        $region93: #{tpu_custom_call.1} parent=91 // pred_check
          %p622 = pneg %p81
        $region94: #{tpu_custom_call.1} parent=91 // pred_check_branch
          %624 = sbr.rel (%p622) target = $region96
        $region95: #{tpu_custom_call.1} parent=91 // pred_region
          %626 = dma.done [#allocation5], 64
        $region96: #{tpu_custom_call.1} parent=91 // pred_fallthru
          _
        // Predicated region
        $region97: #{tpu_custom_call.1} parent=91 // pred_check
          %p627 = pneg %p102
        $region98: #{tpu_custom_call.1} parent=91 // pred_check_branch
          %629 = sbr.rel (%p627) target = $region100
        $region99: #{tpu_custom_call.1} parent=91 // pred_region
          %631 = dma.done [#allocation7], 16
        $region100: #{tpu_custom_call.1} parent=91 // pred_fallthru
          _
        // Predicated region
        $region101: #{tpu_custom_call.1} parent=91 // pred_check
          %p632 = pneg %p207
        $region102: #{tpu_custom_call.1} parent=91 // pred_check_branch
          %634 = sbr.rel (%p632) target = $region104
        $region103: #{tpu_custom_call.1} parent=91 // pred_region
          %636 = dma.done [#allocation3], 64
        $region104: #{tpu_custom_call.1} parent=91 // pred_fallthru
          _
        // Predicated region
        $region105: #{tpu_custom_call.1} parent=91 // pred_check
          %p637 = pneg %p249
        $region106: #{tpu_custom_call.1} parent=91 // pred_check_branch
          %639 = sbr.rel (%p637) target = $region108
        $region107: #{tpu_custom_call.1} parent=91 // pred_region
          %641 = dma.done [#allocation10], 64
        $region108: #{tpu_custom_call.1} parent=91 // pred_fallthru
          _
        // Predicated region
        $region109: #{tpu_custom_call.1} parent=91 // pred_check
          %p642 = pneg %p270
        $region110: #{tpu_custom_call.1} parent=91 // pred_check_branch
          %644 = sbr.rel (%p642) target = $region112
        $region111: #{tpu_custom_call.1} parent=91 // pred_region
          %646 = dma.done [#allocation10], 12288
        $region112: #{tpu_custom_call.1} parent=91 // pred_fallthru
          _
        // Predicated region
        $region113: #{tpu_custom_call.1} parent=91 // pred_check
          %p647 = pneg %p291
        $region114: #{tpu_custom_call.1} parent=91 // pred_check_branch
          %649 = sbr.rel (%p647) target = $region116
        $region115: #{tpu_custom_call.1} parent=91 // pred_region
          %651 = dma.done [#allocation13], 64
        $region116: #{tpu_custom_call.1} parent=91 // pred_fallthru
          _
        // Predicated region
        $region117: #{tpu_custom_call.1} parent=91 // pred_check
          %p652 = pneg %p354
        $region118: #{tpu_custom_call.1} parent=91 // pred_check_branch
          %654 = sbr.rel (%p652) target = $region120
        $region119: #{tpu_custom_call.1} parent=91 // pred_region
          %656 = dma.done [#allocation13], 64
        $region120: #{tpu_custom_call.1} parent=91 // pred_fallthru
          _
        // Predicated region
        $region121: #{tpu_custom_call.1} parent=91 // pred_check
          %p657 = pneg %p375
        $region122: #{tpu_custom_call.1} parent=91 // pred_check_branch
          %659 = sbr.rel (%p657) target = $region124
        $region123: #{tpu_custom_call.1} parent=91 // pred_region
          %661 = dma.done [#allocation16], 8192
        $region124: #{tpu_custom_call.1} parent=91 // pred_fallthru
          _
        // Predicated region
        $region125: #{tpu_custom_call.1} parent=91 // pred_check
          %p662 = pneg %p396
        $region126: #{tpu_custom_call.1} parent=91 // pred_check_branch
          %664 = sbr.rel (%p662) target = $region128
        $region127: #{tpu_custom_call.1} parent=91 // pred_region
          %666 = dma.done [#allocation16], 16384
        $region128: #{tpu_custom_call.1} parent=91 // pred_fallthru
          _
        // Predicated region
        $region129: #{tpu_custom_call.1} parent=91 // pred_check
          %p667 = pneg %p417
        $region130: #{tpu_custom_call.1} parent=91 // pred_check_branch
          %669 = sbr.rel (%p667) target = $region132
        $region131: #{tpu_custom_call.1} parent=91 // pred_region
          %671 = dma.done [#allocation19], 32
        $region132: #{tpu_custom_call.1} parent=91 // pred_fallthru
          _
        %672 = sfence
        %s673 = smul.u32 8, %s39
        %p674 = scmp.lt.s32.totalorder %s673, 15
        %s675 = scalar_select %p674, %s673, 15
        %s676 = smul.addr %s675, 3
        %s677 = smul.addr %s676, 4
        %s678 = scalar_lea.vmem %s0, %s677
        %p679 = pneg %p60
        %p680 = pneg %p57
        %p681 = pneg %p81
        %p682 = pneg %p78
        %p683 = pneg %p102
        %p684 = pneg %p99
        %p685 = pneg %p123
        %p686 = pneg %p120
        %p687 = pneg %p144
        %p688 = pneg %p141
        %p689 = pneg %p165
        %p690 = pneg %p162
        %p691 = pneg %p186
        %p692 = pneg %p183
        %p693 = pneg %p207
        %p694 = pneg %p204
        %p695 = pneg %p228
        %p696 = pneg %p225
        %p697 = pneg %p249
        %p698 = pneg %p246
        %p699 = pneg %p270
        %p700 = pneg %p267
        %p701 = pneg %p291
        %p702 = pneg %p288
        %p703 = pneg %p312
        %p704 = pneg %p309
        %p705 = pneg %p333
        %p706 = pneg %p330
        %p707 = pneg %p354
        %p708 = pneg %p351
        %p709 = pneg %p375
        %p710 = pneg %p372
        %p711 = pneg %p396
        %p712 = pneg %p393
        %p713 = pneg %p417
        %p714 = pneg %p414
        %p715 = pneg %p443
        %p716 = pneg %p440
        %s717 = sand.u32 %s430, 1
        %s718 = scalar_lea.sflag [#allocation4], %s717
        %s719 = sand.u32 %s430, 1
        %s720 = smul.addr %s719, 256
        %s721 = scalar_lea.vmem [#allocation20], %s720
        %s722 = smul.u32 8, %s39
        %p723 = scmp.lt.s32.totalorder %s722, 15
        %s724 = scalar_select %p723, %s722, 15
        %s725 = smul.addr %s724, 3
        %s726 = smul.addr %s725, 4
        %s727 = scalar_lea.vmem %s0, %s726
        %s728 = smul.u32 8, %s39
        %s729 = smul.u32 32, %s39
        %v731 = vld [vmem:[%s727] sm:$0xff]
        %v732 = vld [vmem:[%s727 + $0x8] sm:$0xf]
        %v733 = vld [vmem:[%s727 + $0xc] sm:$0xff]
        %v734 = vld [vmem:[%s727 + $0x14] sm:$0xf]
        %v735 = vld [vmem:[%s727 + $0x18] sm:$0xff]
        %v736 = vld [vmem:[%s727 + $0x20] sm:$0xf]
        %v737 = vld [vmem:[%s727 + $0x24] sm:$0xff]
        %v738 = vld [vmem:[%s727 + $0x2c] sm:$0xf]
        %v739 = vld [vmem:[%s727 + $0x30] sm:$0xff]
        %v740 = vld [vmem:[%s727 + $0x38] sm:$0xf]
        %v741 = vld [vmem:[%s727 + $0x3c] sm:$0xff]
        %v742 = vld [vmem:[%s727 + $0x44] sm:$0xf]
        %v743 = vld [vmem:[%s727 + $0x48] sm:$0xff]
        %v744 = vld [vmem:[%s727 + $0x50] sm:$0xf]
        %v745 = vld [vmem:[%s727 + $0x54] sm:$0xff]
        %v746 = vld [vmem:[%s727 + $0x5c] sm:$0xf]
        %s747 = sld [smem:[#allocation2]]
        %v748 = vstv %s747
        %v749 = vmul.f32 %v731, %v748
        %v750 = vmul.f32 %v733, %v748
        %v751 = vmul.f32 %v735, %v748
        %v752 = vmul.f32 %v737, %v748
        %v753 = vmul.f32 %v739, %v748
        %v754 = vmul.f32 %v741, %v748
        %v755 = vmul.f32 %v743, %v748
        %v756 = vmul.f32 %v745, %v748
        %v757 = vadd.f32 %v749, 0.0
        %v758 = vadd.f32 %v750, 0.0
        %v759 = vadd.f32 %v751, 0.0
        %v760 = vadd.f32 %v752, 0.0
        %v761 = vadd.f32 %v753, 0.0
        %v762 = vadd.f32 %v754, 0.0
        %v763 = vadd.f32 %v755, 0.0
        %v764 = vadd.f32 %v756, 0.0
        %s765 = sld [smem:[#allocation2 + $0x1]]
        %v766 = vstv %s765
        %v767 = vmul.f32 %v731, %v766
        %v768 = vmul.f32 %v732, %v766
        %v769 = vmul.f32 %v733, %v766
        %v770 = vmul.f32 %v734, %v766
        %v771 = vmul.f32 %v735, %v766
        %v772 = vmul.f32 %v736, %v766
        %v773 = vmul.f32 %v737, %v766
        %v774 = vmul.f32 %v738, %v766
        %v775 = vmul.f32 %v739, %v766
        %v776 = vmul.f32 %v740, %v766
        %v777 = vmul.f32 %v741, %v766
        %v778 = vmul.f32 %v742, %v766
        %v779 = vmul.f32 %v743, %v766
        %v780 = vmul.f32 %v744, %v766
        %v781 = vmul.f32 %v745, %v766
        %v782 = vmul.f32 %v746, %v766
        %799 = vrot.lane.b32.xlu0 %v767, 127
        %v800 = vpop.permute.xlu0 %799
        %801 = vrot.lane.b32.xlu0 %v768, 127
        %v802 = vpop.permute.xlu0 %801
        %803 = vrot.lane.b32.xlu0 %v769, 127
        %v804 = vpop.permute.xlu0 %803
        %805 = vrot.lane.b32.xlu0 %v770, 127
        %v806 = vpop.permute.xlu0 %805
        %807 = vrot.lane.b32.xlu0 %v771, 127
        %v808 = vpop.permute.xlu0 %807
        %809 = vrot.lane.b32.xlu0 %v772, 127
        %v810 = vpop.permute.xlu0 %809
        %811 = vrot.lane.b32.xlu0 %v773, 127
        %v812 = vpop.permute.xlu0 %811
        %813 = vrot.lane.b32.xlu0 %v774, 127
        %v814 = vpop.permute.xlu0 %813
        %815 = vrot.lane.b32.xlu0 %v775, 127
        %v816 = vpop.permute.xlu0 %815
        %817 = vrot.lane.b32.xlu0 %v776, 127
        %v818 = vpop.permute.xlu0 %817
        %819 = vrot.lane.b32.xlu0 %v777, 127
        %v820 = vpop.permute.xlu0 %819
        %821 = vrot.lane.b32.xlu0 %v778, 127
        %v822 = vpop.permute.xlu0 %821
        %823 = vrot.lane.b32.xlu0 %v779, 127
        %v824 = vpop.permute.xlu0 %823
        %825 = vrot.lane.b32.xlu0 %v780, 127
        %v826 = vpop.permute.xlu0 %825
        %827 = vrot.lane.b32.xlu0 %v781, 127
        %v828 = vpop.permute.xlu0 %827
        %829 = vrot.lane.b32.xlu0 %v782, 127
        %v830 = vpop.permute.xlu0 %829
        %v831 = vrot.slane %v800, 4
        %v832 = vrot.slane %v802, 4
        %v833 = vrot.slane %v804, 4
        %v834 = vrot.slane %v806, 4
        %v835 = vrot.slane %v808, 4
        %v836 = vrot.slane %v810, 4
        %v837 = vrot.slane %v812, 4
        %v838 = vrot.slane %v814, 4
        %v839 = vrot.slane %v816, 4
        %v840 = vrot.slane %v818, 4
        %v841 = vrot.slane %v820, 4
        %v842 = vrot.slane %v822, 4
        %v843 = vrot.slane %v824, 4
        %v844 = vrot.slane %v826, 4
        %v845 = vrot.slane %v828, 4
        %v846 = vrot.slane %v830, 4
        %vm847 = vcmask 1043456
        %v848 = vsel %vm847, %v831, %v832
        %vm849 = vcmask 1039360
        %v850 = vsel %vm849, %v800, %v848
        %v851 = vsel %vm847, %v833, %v834
        %v852 = vsel %vm849, %v804, %v851
        %v853 = vsel %vm847, %v835, %v836
        %v854 = vsel %vm849, %v808, %v853
        %v855 = vsel %vm847, %v837, %v838
        %v856 = vsel %vm849, %v812, %v855
        %v857 = vsel %vm847, %v839, %v840
        %v858 = vsel %vm849, %v816, %v857
        %v859 = vsel %vm847, %v841, %v842
        %v860 = vsel %vm849, %v820, %v859
        %v861 = vsel %vm847, %v843, %v844
        %v862 = vsel %vm849, %v824, %v861
        %v863 = vsel %vm847, %v845, %v846
        %v864 = vsel %vm849, %v828, %v863
        %v873 = vadd.f32 %v757, %v850
        %v874 = vadd.f32 %v758, %v852
        %v875 = vadd.f32 %v759, %v854
        %v876 = vadd.f32 %v760, %v856
        %v877 = vadd.f32 %v761, %v858
        %v878 = vadd.f32 %v762, %v860
        %v879 = vadd.f32 %v763, %v862
        %v880 = vadd.f32 %v764, %v864
        %s881 = sld [smem:[#allocation2 + $0x2]]
        %v882 = vstv %s881
        %v883 = vmul.f32 %v731, %v882
        %v884 = vmul.f32 %v732, %v882
        %v885 = vmul.f32 %v733, %v882
        %v886 = vmul.f32 %v734, %v882
        %v887 = vmul.f32 %v735, %v882
        %v888 = vmul.f32 %v736, %v882
        %v889 = vmul.f32 %v737, %v882
        %v890 = vmul.f32 %v738, %v882
        %v891 = vmul.f32 %v739, %v882
        %v892 = vmul.f32 %v740, %v882
        %v893 = vmul.f32 %v741, %v882
        %v894 = vmul.f32 %v742, %v882
        %v895 = vmul.f32 %v743, %v882
        %v896 = vmul.f32 %v744, %v882
        %v897 = vmul.f32 %v745, %v882
        %v898 = vmul.f32 %v746, %v882
        %915 = vrot.lane.b32.xlu0 %v883, 126
        %v916 = vpop.permute.xlu0 %915
        %917 = vrot.lane.b32.xlu0 %v884, 126
        %v918 = vpop.permute.xlu0 %917
        %919 = vrot.lane.b32.xlu0 %v885, 126
        %v920 = vpop.permute.xlu0 %919
        %921 = vrot.lane.b32.xlu0 %v886, 126
        %v922 = vpop.permute.xlu0 %921
        %923 = vrot.lane.b32.xlu0 %v887, 126
        %v924 = vpop.permute.xlu0 %923
        %925 = vrot.lane.b32.xlu0 %v888, 126
        %v926 = vpop.permute.xlu0 %925
        %927 = vrot.lane.b32.xlu0 %v889, 126
        %v928 = vpop.permute.xlu0 %927
        %929 = vrot.lane.b32.xlu0 %v890, 126
        %v930 = vpop.permute.xlu0 %929
        %931 = vrot.lane.b32.xlu0 %v891, 126
        %v932 = vpop.permute.xlu0 %931
        %933 = vrot.lane.b32.xlu0 %v892, 126
        %v934 = vpop.permute.xlu0 %933
        %935 = vrot.lane.b32.xlu0 %v893, 126
        %v936 = vpop.permute.xlu0 %935
        %937 = vrot.lane.b32.xlu0 %v894, 126
        %v938 = vpop.permute.xlu0 %937
        %939 = vrot.lane.b32.xlu0 %v895, 126
        %v940 = vpop.permute.xlu0 %939
        %941 = vrot.lane.b32.xlu0 %v896, 126
        %v942 = vpop.permute.xlu0 %941
        %943 = vrot.lane.b32.xlu0 %v897, 126
        %v944 = vpop.permute.xlu0 %943
        %945 = vrot.lane.b32.xlu0 %v898, 126
        %v946 = vpop.permute.xlu0 %945
        %v947 = vrot.slane %v916, 4
        %v948 = vrot.slane %v918, 4
        %v949 = vrot.slane %v920, 4
        %v950 = vrot.slane %v922, 4
        %v951 = vrot.slane %v924, 4
        %v952 = vrot.slane %v926, 4
        %v953 = vrot.slane %v928, 4
        %v954 = vrot.slane %v930, 4
        %v955 = vrot.slane %v932, 4
        %v956 = vrot.slane %v934, 4
        %v957 = vrot.slane %v936, 4
        %v958 = vrot.slane %v938, 4
        %v959 = vrot.slane %v940, 4
        %v960 = vrot.slane %v942, 4
        %v961 = vrot.slane %v944, 4
        %v962 = vrot.slane %v946, 4
        %v963 = vsel %vm847, %v947, %v948
        %vm964 = vcmask 1031168
        %v965 = vsel %vm964, %v916, %v963
        %v966 = vsel %vm847, %v949, %v950
        %v967 = vsel %vm964, %v920, %v966
        %v968 = vsel %vm847, %v951, %v952
        %v969 = vsel %vm964, %v924, %v968
        %v970 = vsel %vm847, %v953, %v954
        %v971 = vsel %vm964, %v928, %v970
        %v972 = vsel %vm847, %v955, %v956
        %v973 = vsel %vm964, %v932, %v972
        %v974 = vsel %vm847, %v957, %v958
        %v975 = vsel %vm964, %v936, %v974
        %v976 = vsel %vm847, %v959, %v960
        %v977 = vsel %vm964, %v940, %v976
        %v978 = vsel %vm847, %v961, %v962
        %v979 = vsel %vm964, %v944, %v978
        %v988 = vadd.f32 %v873, %v965
        %v989 = vadd.f32 %v874, %v967
        %v990 = vadd.f32 %v875, %v969
        %v991 = vadd.f32 %v876, %v971
        %v992 = vadd.f32 %v877, %v973
        %v993 = vadd.f32 %v878, %v975
        %v994 = vadd.f32 %v879, %v977
        %v995 = vadd.f32 %v880, %v979
        %s996 = sld [smem:[#allocation2 + $0x80]]
        %v997 = vstv %s996
        %v998 = vmul.f32 %v731, %v997
        %v999 = vmul.f32 %v733, %v997
        %v1000 = vmul.f32 %v735, %v997
        %v1001 = vmul.f32 %v737, %v997
        %v1002 = vmul.f32 %v739, %v997
        %v1003 = vmul.f32 %v741, %v997
        %v1004 = vmul.f32 %v743, %v997
        %v1005 = vmul.f32 %v745, %v997
        %v1014 = vrot.slane %v998, 5
        %v1015 = vrot.slane %v1014, 4
        %v1016 = vrot.slane %v999, 5
        %v1017 = vrot.slane %v1016, 4
        %v1018 = vrot.slane %v1000, 5
        %v1019 = vrot.slane %v1018, 4
        %v1020 = vrot.slane %v1001, 5
        %v1021 = vrot.slane %v1020, 4
        %v1022 = vrot.slane %v1002, 5
        %v1023 = vrot.slane %v1022, 4
        %v1024 = vrot.slane %v1003, 5
        %v1025 = vrot.slane %v1024, 4
        %v1026 = vrot.slane %v1004, 5
        %v1027 = vrot.slane %v1026, 4
        %v1028 = vrot.slane %v1005, 5
        %v1029 = vrot.slane %v1028, 4
        %v1038 = vadd.f32 %v988, %v1015
        %v1039 = vadd.f32 %v989, %v1017
        %v1040 = vadd.f32 %v990, %v1019
        %v1041 = vadd.f32 %v991, %v1021
        %v1042 = vadd.f32 %v992, %v1023
        %v1043 = vadd.f32 %v993, %v1025
        %v1044 = vadd.f32 %v994, %v1027
        %v1045 = vadd.f32 %v995, %v1029
        %s1046 = sld [smem:[#allocation2 + $0x81]]
        %v1047 = vstv %s1046
        %v1048 = vmul.f32 %v731, %v1047
        %v1049 = vmul.f32 %v732, %v1047
        %v1050 = vmul.f32 %v733, %v1047
        %v1051 = vmul.f32 %v734, %v1047
        %v1052 = vmul.f32 %v735, %v1047
        %v1053 = vmul.f32 %v736, %v1047
        %v1054 = vmul.f32 %v737, %v1047
        %v1055 = vmul.f32 %v738, %v1047
        %v1056 = vmul.f32 %v739, %v1047
        %v1057 = vmul.f32 %v740, %v1047
        %v1058 = vmul.f32 %v741, %v1047
        %v1059 = vmul.f32 %v742, %v1047
        %v1060 = vmul.f32 %v743, %v1047
        %v1061 = vmul.f32 %v744, %v1047
        %v1062 = vmul.f32 %v745, %v1047
        %v1063 = vmul.f32 %v746, %v1047
        %v1080 = vrot.slane %v1048, 5
        %v1081 = vrot.slane %v1080, 4
        %v1082 = vrot.slane %v1049, 5
        %v1083 = vrot.slane %v1082, 4
        %v1084 = vrot.slane %v1050, 5
        %v1085 = vrot.slane %v1084, 4
        %v1086 = vrot.slane %v1051, 5
        %v1087 = vrot.slane %v1086, 4
        %v1088 = vrot.slane %v1052, 5
        %v1089 = vrot.slane %v1088, 4
        %v1090 = vrot.slane %v1053, 5
        %v1091 = vrot.slane %v1090, 4
        %v1092 = vrot.slane %v1054, 5
        %v1093 = vrot.slane %v1092, 4
        %v1094 = vrot.slane %v1055, 5
        %v1095 = vrot.slane %v1094, 4
        %v1096 = vrot.slane %v1056, 5
        %v1097 = vrot.slane %v1096, 4
        %v1098 = vrot.slane %v1057, 5
        %v1099 = vrot.slane %v1098, 4
        %v1100 = vrot.slane %v1058, 5
        %v1101 = vrot.slane %v1100, 4
        %v1102 = vrot.slane %v1059, 5
        %v1103 = vrot.slane %v1102, 4
        %v1104 = vrot.slane %v1060, 5
        %v1105 = vrot.slane %v1104, 4
        %v1106 = vrot.slane %v1061, 5
        %v1107 = vrot.slane %v1106, 4
        %v1108 = vrot.slane %v1062, 5
        %v1109 = vrot.slane %v1108, 4
        %v1110 = vrot.slane %v1063, 5
        %v1111 = vrot.slane %v1110, 4
        %1112 = vrot.lane.b32.xlu0 %v1081, 127
        %v1113 = vpop.permute.xlu0 %1112
        %1114 = vrot.lane.b32.xlu0 %v1083, 127
        %v1115 = vpop.permute.xlu0 %1114
        %1116 = vrot.lane.b32.xlu0 %v1085, 127
        %v1117 = vpop.permute.xlu0 %1116
        %1118 = vrot.lane.b32.xlu0 %v1087, 127
        %v1119 = vpop.permute.xlu0 %1118
        %1120 = vrot.lane.b32.xlu0 %v1089, 127
        %v1121 = vpop.permute.xlu0 %1120
        %1122 = vrot.lane.b32.xlu0 %v1091, 127
        %v1123 = vpop.permute.xlu0 %1122
        %1124 = vrot.lane.b32.xlu0 %v1093, 127
        %v1125 = vpop.permute.xlu0 %1124
        %1126 = vrot.lane.b32.xlu0 %v1095, 127
        %v1127 = vpop.permute.xlu0 %1126
        %1128 = vrot.lane.b32.xlu0 %v1097, 127
        %v1129 = vpop.permute.xlu0 %1128
        %1130 = vrot.lane.b32.xlu0 %v1099, 127
        %v1131 = vpop.permute.xlu0 %1130
        %1132 = vrot.lane.b32.xlu0 %v1101, 127
        %v1133 = vpop.permute.xlu0 %1132
        %1134 = vrot.lane.b32.xlu0 %v1103, 127
        %v1135 = vpop.permute.xlu0 %1134
        %1136 = vrot.lane.b32.xlu0 %v1105, 127
        %v1137 = vpop.permute.xlu0 %1136
        %1138 = vrot.lane.b32.xlu0 %v1107, 127
        %v1139 = vpop.permute.xlu0 %1138
        %1140 = vrot.lane.b32.xlu0 %v1109, 127
        %v1141 = vpop.permute.xlu0 %1140
        %1142 = vrot.lane.b32.xlu0 %v1111, 127
        %v1143 = vpop.permute.xlu0 %1142
        %v1144 = vrot.slane %v1113, 4
        %v1145 = vrot.slane %v1115, 4
        %v1146 = vrot.slane %v1117, 4
        %v1147 = vrot.slane %v1119, 4
        %v1148 = vrot.slane %v1121, 4
        %v1149 = vrot.slane %v1123, 4
        %v1150 = vrot.slane %v1125, 4
        %v1151 = vrot.slane %v1127, 4
        %v1152 = vrot.slane %v1129, 4
        %v1153 = vrot.slane %v1131, 4
        %v1154 = vrot.slane %v1133, 4
        %v1155 = vrot.slane %v1135, 4
        %v1156 = vrot.slane %v1137, 4
        %v1157 = vrot.slane %v1139, 4
        %v1158 = vrot.slane %v1141, 4
        %v1159 = vrot.slane %v1143, 4
        %v1160 = vsel %vm847, %v1144, %v1145
        %v1161 = vsel %vm849, %v1113, %v1160
        %v1162 = vsel %vm847, %v1146, %v1147
        %v1163 = vsel %vm849, %v1117, %v1162
        %v1164 = vsel %vm847, %v1148, %v1149
        %v1165 = vsel %vm849, %v1121, %v1164
        %v1166 = vsel %vm847, %v1150, %v1151
        %v1167 = vsel %vm849, %v1125, %v1166
        %v1168 = vsel %vm847, %v1152, %v1153
        %v1169 = vsel %vm849, %v1129, %v1168
        %v1170 = vsel %vm847, %v1154, %v1155
        %v1171 = vsel %vm849, %v1133, %v1170
        %v1172 = vsel %vm847, %v1156, %v1157
        %v1173 = vsel %vm849, %v1137, %v1172
        %v1174 = vsel %vm847, %v1158, %v1159
        %v1175 = vsel %vm849, %v1141, %v1174
        %v1184 = vadd.f32 %v1038, %v1161
        %v1185 = vadd.f32 %v1039, %v1163
        %v1186 = vadd.f32 %v1040, %v1165
        %v1187 = vadd.f32 %v1041, %v1167
        %v1188 = vadd.f32 %v1042, %v1169
        %v1189 = vadd.f32 %v1043, %v1171
        %v1190 = vadd.f32 %v1044, %v1173
        %v1191 = vadd.f32 %v1045, %v1175
        %s1192 = sld [smem:[#allocation2 + $0x82]]
        %v1193 = vstv %s1192
        %v1194 = vmul.f32 %v731, %v1193
        %v1195 = vmul.f32 %v732, %v1193
        %v1196 = vmul.f32 %v733, %v1193
        %v1197 = vmul.f32 %v734, %v1193
        %v1198 = vmul.f32 %v735, %v1193
        %v1199 = vmul.f32 %v736, %v1193
        %v1200 = vmul.f32 %v737, %v1193
        %v1201 = vmul.f32 %v738, %v1193
        %v1202 = vmul.f32 %v739, %v1193
        %v1203 = vmul.f32 %v740, %v1193
        %v1204 = vmul.f32 %v741, %v1193
        %v1205 = vmul.f32 %v742, %v1193
        %v1206 = vmul.f32 %v743, %v1193
        %v1207 = vmul.f32 %v744, %v1193
        %v1208 = vmul.f32 %v745, %v1193
        %v1209 = vmul.f32 %v746, %v1193
        %v1226 = vrot.slane %v1194, 5
        %v1227 = vrot.slane %v1226, 4
        %v1228 = vrot.slane %v1195, 5
        %v1229 = vrot.slane %v1228, 4
        %v1230 = vrot.slane %v1196, 5
        %v1231 = vrot.slane %v1230, 4
        %v1232 = vrot.slane %v1197, 5
        %v1233 = vrot.slane %v1232, 4
        %v1234 = vrot.slane %v1198, 5
        %v1235 = vrot.slane %v1234, 4
        %v1236 = vrot.slane %v1199, 5
        %v1237 = vrot.slane %v1236, 4
        %v1238 = vrot.slane %v1200, 5
        %v1239 = vrot.slane %v1238, 4
        %v1240 = vrot.slane %v1201, 5
        %v1241 = vrot.slane %v1240, 4
        %v1242 = vrot.slane %v1202, 5
        %v1243 = vrot.slane %v1242, 4
        %v1244 = vrot.slane %v1203, 5
        %v1245 = vrot.slane %v1244, 4
        %v1246 = vrot.slane %v1204, 5
        %v1247 = vrot.slane %v1246, 4
        %v1248 = vrot.slane %v1205, 5
        %v1249 = vrot.slane %v1248, 4
        %v1250 = vrot.slane %v1206, 5
        %v1251 = vrot.slane %v1250, 4
        %v1252 = vrot.slane %v1207, 5
        %v1253 = vrot.slane %v1252, 4
        %v1254 = vrot.slane %v1208, 5
        %v1255 = vrot.slane %v1254, 4
        %v1256 = vrot.slane %v1209, 5
        %v1257 = vrot.slane %v1256, 4
        %1258 = vrot.lane.b32.xlu0 %v1227, 126
        %v1259 = vpop.permute.xlu0 %1258
        %1260 = vrot.lane.b32.xlu0 %v1229, 126
        %v1261 = vpop.permute.xlu0 %1260
        %1262 = vrot.lane.b32.xlu0 %v1231, 126
        %v1263 = vpop.permute.xlu0 %1262
        %1264 = vrot.lane.b32.xlu0 %v1233, 126
        %v1265 = vpop.permute.xlu0 %1264
        %1266 = vrot.lane.b32.xlu0 %v1235, 126
        %v1267 = vpop.permute.xlu0 %1266
        %1268 = vrot.lane.b32.xlu0 %v1237, 126
        %v1269 = vpop.permute.xlu0 %1268
        %1270 = vrot.lane.b32.xlu0 %v1239, 126
        %v1271 = vpop.permute.xlu0 %1270
        %1272 = vrot.lane.b32.xlu0 %v1241, 126
        %v1273 = vpop.permute.xlu0 %1272
        %1274 = vrot.lane.b32.xlu0 %v1243, 126
        %v1275 = vpop.permute.xlu0 %1274
        %1276 = vrot.lane.b32.xlu0 %v1245, 126
        %v1277 = vpop.permute.xlu0 %1276
        %1278 = vrot.lane.b32.xlu0 %v1247, 126
        %v1279 = vpop.permute.xlu0 %1278
        %1280 = vrot.lane.b32.xlu0 %v1249, 126
        %v1281 = vpop.permute.xlu0 %1280
        %1282 = vrot.lane.b32.xlu0 %v1251, 126
        %v1283 = vpop.permute.xlu0 %1282
        %1284 = vrot.lane.b32.xlu0 %v1253, 126
        %v1285 = vpop.permute.xlu0 %1284
        %1286 = vrot.lane.b32.xlu0 %v1255, 126
        %v1287 = vpop.permute.xlu0 %1286
        %1288 = vrot.lane.b32.xlu0 %v1257, 126
        %v1289 = vpop.permute.xlu0 %1288
        %v1290 = vrot.slane %v1259, 4
        %v1291 = vrot.slane %v1261, 4
        %v1292 = vrot.slane %v1263, 4
        %v1293 = vrot.slane %v1265, 4
        %v1294 = vrot.slane %v1267, 4
        %v1295 = vrot.slane %v1269, 4
        %v1296 = vrot.slane %v1271, 4
        %v1297 = vrot.slane %v1273, 4
        %v1298 = vrot.slane %v1275, 4
        %v1299 = vrot.slane %v1277, 4
        %v1300 = vrot.slane %v1279, 4
        %v1301 = vrot.slane %v1281, 4
        %v1302 = vrot.slane %v1283, 4
        %v1303 = vrot.slane %v1285, 4
        %v1304 = vrot.slane %v1287, 4
        %v1305 = vrot.slane %v1289, 4
        %v1306 = vsel %vm847, %v1290, %v1291
        %v1307 = vsel %vm964, %v1259, %v1306
        %v1308 = vsel %vm847, %v1292, %v1293
        %v1309 = vsel %vm964, %v1263, %v1308
        %v1310 = vsel %vm847, %v1294, %v1295
        %v1311 = vsel %vm964, %v1267, %v1310
        %v1312 = vsel %vm847, %v1296, %v1297
        %v1313 = vsel %vm964, %v1271, %v1312
        %v1314 = vsel %vm847, %v1298, %v1299
        %v1315 = vsel %vm964, %v1275, %v1314
        %v1316 = vsel %vm847, %v1300, %v1301
        %v1317 = vsel %vm964, %v1279, %v1316
        %v1318 = vsel %vm847, %v1302, %v1303
        %v1319 = vsel %vm964, %v1283, %v1318
        %v1320 = vsel %vm847, %v1304, %v1305
        %v1321 = vsel %vm964, %v1287, %v1320
        %v1330 = vadd.f32 %v1184, %v1307
        %v1331 = vadd.f32 %v1185, %v1309
        %v1332 = vadd.f32 %v1186, %v1311
        %v1333 = vadd.f32 %v1187, %v1313
        %v1334 = vadd.f32 %v1188, %v1315
        %v1335 = vadd.f32 %v1189, %v1317
        %v1336 = vadd.f32 %v1190, %v1319
        %v1337 = vadd.f32 %v1191, %v1321
        %s1338 = sld [smem:[#allocation2 + $0x100]]
        %v1339 = vstv %s1338
        %v1340 = vmul.f32 %v731, %v1339
        %v1341 = vmul.f32 %v733, %v1339
        %v1342 = vmul.f32 %v735, %v1339
        %v1343 = vmul.f32 %v737, %v1339
        %v1344 = vmul.f32 %v739, %v1339
        %v1345 = vmul.f32 %v741, %v1339
        %v1346 = vmul.f32 %v743, %v1339
        %v1347 = vmul.f32 %v745, %v1339
        %v1356 = vrot.slane %v1340, 6
        %v1357 = vrot.slane %v1356, 4
        %v1358 = vrot.slane %v1341, 6
        %v1359 = vrot.slane %v1358, 4
        %v1360 = vrot.slane %v1342, 6
        %v1361 = vrot.slane %v1360, 4
        %v1362 = vrot.slane %v1343, 6
        %v1363 = vrot.slane %v1362, 4
        %v1364 = vrot.slane %v1344, 6
        %v1365 = vrot.slane %v1364, 4
        %v1366 = vrot.slane %v1345, 6
        %v1367 = vrot.slane %v1366, 4
        %v1368 = vrot.slane %v1346, 6
        %v1369 = vrot.slane %v1368, 4
        %v1370 = vrot.slane %v1347, 6
        %v1371 = vrot.slane %v1370, 4
        %v1380 = vadd.f32 %v1330, %v1357
        %v1381 = vadd.f32 %v1331, %v1359
        %v1382 = vadd.f32 %v1332, %v1361
        %v1383 = vadd.f32 %v1333, %v1363
        %v1384 = vadd.f32 %v1334, %v1365
        %v1385 = vadd.f32 %v1335, %v1367
        %v1386 = vadd.f32 %v1336, %v1369
        %v1387 = vadd.f32 %v1337, %v1371
        %s1388 = sld [smem:[#allocation2 + $0x101]]
        %v1389 = vstv %s1388
        %v1390 = vmul.f32 %v731, %v1389
        %v1391 = vmul.f32 %v732, %v1389
        %v1392 = vmul.f32 %v733, %v1389
        %v1393 = vmul.f32 %v734, %v1389
        %v1394 = vmul.f32 %v735, %v1389
        %v1395 = vmul.f32 %v736, %v1389
        %v1396 = vmul.f32 %v737, %v1389
        %v1397 = vmul.f32 %v738, %v1389
        %v1398 = vmul.f32 %v739, %v1389
        %v1399 = vmul.f32 %v740, %v1389
        %v1400 = vmul.f32 %v741, %v1389
        %v1401 = vmul.f32 %v742, %v1389
        %v1402 = vmul.f32 %v743, %v1389
        %v1403 = vmul.f32 %v744, %v1389
        %v1404 = vmul.f32 %v745, %v1389
        %v1405 = vmul.f32 %v746, %v1389
        %v1422 = vrot.slane %v1390, 6
        %v1423 = vrot.slane %v1422, 4
        %v1424 = vrot.slane %v1391, 6
        %v1425 = vrot.slane %v1424, 4
        %v1426 = vrot.slane %v1392, 6
        %v1427 = vrot.slane %v1426, 4
        %v1428 = vrot.slane %v1393, 6
        %v1429 = vrot.slane %v1428, 4
        %v1430 = vrot.slane %v1394, 6
        %v1431 = vrot.slane %v1430, 4
        %v1432 = vrot.slane %v1395, 6
        %v1433 = vrot.slane %v1432, 4
        %v1434 = vrot.slane %v1396, 6
        %v1435 = vrot.slane %v1434, 4
        %v1436 = vrot.slane %v1397, 6
        %v1437 = vrot.slane %v1436, 4
        %v1438 = vrot.slane %v1398, 6
        %v1439 = vrot.slane %v1438, 4
        %v1440 = vrot.slane %v1399, 6
        %v1441 = vrot.slane %v1440, 4
        %v1442 = vrot.slane %v1400, 6
        %v1443 = vrot.slane %v1442, 4
        %v1444 = vrot.slane %v1401, 6
        %v1445 = vrot.slane %v1444, 4
        %v1446 = vrot.slane %v1402, 6
        %v1447 = vrot.slane %v1446, 4
        %v1448 = vrot.slane %v1403, 6
        %v1449 = vrot.slane %v1448, 4
        %v1450 = vrot.slane %v1404, 6
        %v1451 = vrot.slane %v1450, 4
        %v1452 = vrot.slane %v1405, 6
        %v1453 = vrot.slane %v1452, 4
        %1454 = vrot.lane.b32.xlu0 %v1423, 127
        %v1455 = vpop.permute.xlu0 %1454
        %1456 = vrot.lane.b32.xlu0 %v1425, 127
        %v1457 = vpop.permute.xlu0 %1456
        %1458 = vrot.lane.b32.xlu0 %v1427, 127
        %v1459 = vpop.permute.xlu0 %1458
        %1460 = vrot.lane.b32.xlu0 %v1429, 127
        %v1461 = vpop.permute.xlu0 %1460
        %1462 = vrot.lane.b32.xlu0 %v1431, 127
        %v1463 = vpop.permute.xlu0 %1462
        %1464 = vrot.lane.b32.xlu0 %v1433, 127
        %v1465 = vpop.permute.xlu0 %1464
        %1466 = vrot.lane.b32.xlu0 %v1435, 127
        %v1467 = vpop.permute.xlu0 %1466
        %1468 = vrot.lane.b32.xlu0 %v1437, 127
        %v1469 = vpop.permute.xlu0 %1468
        %1470 = vrot.lane.b32.xlu0 %v1439, 127
        %v1471 = vpop.permute.xlu0 %1470
        %1472 = vrot.lane.b32.xlu0 %v1441, 127
        %v1473 = vpop.permute.xlu0 %1472
        %1474 = vrot.lane.b32.xlu0 %v1443, 127
        %v1475 = vpop.permute.xlu0 %1474
        %1476 = vrot.lane.b32.xlu0 %v1445, 127
        %v1477 = vpop.permute.xlu0 %1476
        %1478 = vrot.lane.b32.xlu0 %v1447, 127
        %v1479 = vpop.permute.xlu0 %1478
        %1480 = vrot.lane.b32.xlu0 %v1449, 127
        %v1481 = vpop.permute.xlu0 %1480
        %1482 = vrot.lane.b32.xlu0 %v1451, 127
        %v1483 = vpop.permute.xlu0 %1482
        %1484 = vrot.lane.b32.xlu0 %v1453, 127
        %v1485 = vpop.permute.xlu0 %1484
        %v1486 = vrot.slane %v1455, 4
        %v1487 = vrot.slane %v1457, 4
        %v1488 = vrot.slane %v1459, 4
        %v1489 = vrot.slane %v1461, 4
        %v1490 = vrot.slane %v1463, 4
        %v1491 = vrot.slane %v1465, 4
        %v1492 = vrot.slane %v1467, 4
        %v1493 = vrot.slane %v1469, 4
        %v1494 = vrot.slane %v1471, 4
        %v1495 = vrot.slane %v1473, 4
        %v1496 = vrot.slane %v1475, 4
        %v1497 = vrot.slane %v1477, 4
        %v1498 = vrot.slane %v1479, 4
        %v1499 = vrot.slane %v1481, 4
        %v1500 = vrot.slane %v1483, 4
        %v1501 = vrot.slane %v1485, 4
        %v1502 = vsel %vm847, %v1486, %v1487
        %v1503 = vsel %vm849, %v1455, %v1502
        %v1504 = vsel %vm847, %v1488, %v1489
        %v1505 = vsel %vm849, %v1459, %v1504
        %v1506 = vsel %vm847, %v1490, %v1491
        %v1507 = vsel %vm849, %v1463, %v1506
        %v1508 = vsel %vm847, %v1492, %v1493
        %v1509 = vsel %vm849, %v1467, %v1508
        %v1510 = vsel %vm847, %v1494, %v1495
        %v1511 = vsel %vm849, %v1471, %v1510
        %v1512 = vsel %vm847, %v1496, %v1497
        %v1513 = vsel %vm849, %v1475, %v1512
        %v1514 = vsel %vm847, %v1498, %v1499
        %v1515 = vsel %vm849, %v1479, %v1514
        %v1516 = vsel %vm847, %v1500, %v1501
        %v1517 = vsel %vm849, %v1483, %v1516
        %v1526 = vadd.f32 %v1380, %v1503
        %v1527 = vadd.f32 %v1381, %v1505
        %v1528 = vadd.f32 %v1382, %v1507
        %v1529 = vadd.f32 %v1383, %v1509
        %v1530 = vadd.f32 %v1384, %v1511
        %v1531 = vadd.f32 %v1385, %v1513
        %v1532 = vadd.f32 %v1386, %v1515
        %v1533 = vadd.f32 %v1387, %v1517
        %s1534 = sld [smem:[#allocation2 + $0x102]]
        %v1535 = vstv %s1534
        %v1536 = vmul.f32 %v731, %v1535
        %v1537 = vmul.f32 %v732, %v1535
        %v1538 = vmul.f32 %v733, %v1535
        %v1539 = vmul.f32 %v734, %v1535
        %v1540 = vmul.f32 %v735, %v1535
        %v1541 = vmul.f32 %v736, %v1535
        %v1542 = vmul.f32 %v737, %v1535
        %v1543 = vmul.f32 %v738, %v1535
        %v1544 = vmul.f32 %v739, %v1535
        %v1545 = vmul.f32 %v740, %v1535
        %v1546 = vmul.f32 %v741, %v1535
        %v1547 = vmul.f32 %v742, %v1535
        %v1548 = vmul.f32 %v743, %v1535
        %v1549 = vmul.f32 %v744, %v1535
        %v1550 = vmul.f32 %v745, %v1535
        %v1551 = vmul.f32 %v746, %v1535
        %v1568 = vrot.slane %v1536, 6
        %v1569 = vrot.slane %v1568, 4
        %v1570 = vrot.slane %v1537, 6
        %v1571 = vrot.slane %v1570, 4
        %v1572 = vrot.slane %v1538, 6
        %v1573 = vrot.slane %v1572, 4
        %v1574 = vrot.slane %v1539, 6
        %v1575 = vrot.slane %v1574, 4
        %v1576 = vrot.slane %v1540, 6
        %v1577 = vrot.slane %v1576, 4
        %v1578 = vrot.slane %v1541, 6
        %v1579 = vrot.slane %v1578, 4
        %v1580 = vrot.slane %v1542, 6
        %v1581 = vrot.slane %v1580, 4
        %v1582 = vrot.slane %v1543, 6
        %v1583 = vrot.slane %v1582, 4
        %v1584 = vrot.slane %v1544, 6
        %v1585 = vrot.slane %v1584, 4
        %v1586 = vrot.slane %v1545, 6
        %v1587 = vrot.slane %v1586, 4
        %v1588 = vrot.slane %v1546, 6
        %v1589 = vrot.slane %v1588, 4
        %v1590 = vrot.slane %v1547, 6
        %v1591 = vrot.slane %v1590, 4
        %v1592 = vrot.slane %v1548, 6
        %v1593 = vrot.slane %v1592, 4
        %v1594 = vrot.slane %v1549, 6
        %v1595 = vrot.slane %v1594, 4
        %v1596 = vrot.slane %v1550, 6
        %v1597 = vrot.slane %v1596, 4
        %v1598 = vrot.slane %v1551, 6
        %v1599 = vrot.slane %v1598, 4
        %1600 = vrot.lane.b32.xlu0 %v1569, 126
        %v1601 = vpop.permute.xlu0 %1600
        %1602 = vrot.lane.b32.xlu0 %v1571, 126
        %v1603 = vpop.permute.xlu0 %1602
        %1604 = vrot.lane.b32.xlu0 %v1573, 126
        %v1605 = vpop.permute.xlu0 %1604
        %1606 = vrot.lane.b32.xlu0 %v1575, 126
        %v1607 = vpop.permute.xlu0 %1606
        %1608 = vrot.lane.b32.xlu0 %v1577, 126
        %v1609 = vpop.permute.xlu0 %1608
        %1610 = vrot.lane.b32.xlu0 %v1579, 126
        %v1611 = vpop.permute.xlu0 %1610
        %1612 = vrot.lane.b32.xlu0 %v1581, 126
        %v1613 = vpop.permute.xlu0 %1612
        %1614 = vrot.lane.b32.xlu0 %v1583, 126
        %v1615 = vpop.permute.xlu0 %1614
        %1616 = vrot.lane.b32.xlu0 %v1585, 126
        %v1617 = vpop.permute.xlu0 %1616
        %1618 = vrot.lane.b32.xlu0 %v1587, 126
        %v1619 = vpop.permute.xlu0 %1618
        %1620 = vrot.lane.b32.xlu0 %v1589, 126
        %v1621 = vpop.permute.xlu0 %1620
        %1622 = vrot.lane.b32.xlu0 %v1591, 126
        %v1623 = vpop.permute.xlu0 %1622
        %1624 = vrot.lane.b32.xlu0 %v1593, 126
        %v1625 = vpop.permute.xlu0 %1624
        %1626 = vrot.lane.b32.xlu0 %v1595, 126
        %v1627 = vpop.permute.xlu0 %1626
        %1628 = vrot.lane.b32.xlu0 %v1597, 126
        %v1629 = vpop.permute.xlu0 %1628
        %1630 = vrot.lane.b32.xlu0 %v1599, 126
        %v1631 = vpop.permute.xlu0 %1630
        %v1632 = vrot.slane %v1601, 4
        %v1633 = vrot.slane %v1603, 4
        %v1634 = vrot.slane %v1605, 4
        %v1635 = vrot.slane %v1607, 4
        %v1636 = vrot.slane %v1609, 4
        %v1637 = vrot.slane %v1611, 4
        %v1638 = vrot.slane %v1613, 4
        %v1639 = vrot.slane %v1615, 4
        %v1640 = vrot.slane %v1617, 4
        %v1641 = vrot.slane %v1619, 4
        %v1642 = vrot.slane %v1621, 4
        %v1643 = vrot.slane %v1623, 4
        %v1644 = vrot.slane %v1625, 4
        %v1645 = vrot.slane %v1627, 4
        %v1646 = vrot.slane %v1629, 4
        %v1647 = vrot.slane %v1631, 4
        %v1648 = vsel %vm847, %v1632, %v1633
        %v1649 = vsel %vm964, %v1601, %v1648
        %v1650 = vsel %vm847, %v1634, %v1635
        %v1651 = vsel %vm964, %v1605, %v1650
        %v1652 = vsel %vm847, %v1636, %v1637
        %v1653 = vsel %vm964, %v1609, %v1652
        %v1654 = vsel %vm847, %v1638, %v1639
        %v1655 = vsel %vm964, %v1613, %v1654
        %v1656 = vsel %vm847, %v1640, %v1641
        %v1657 = vsel %vm964, %v1617, %v1656
        %v1658 = vsel %vm847, %v1642, %v1643
        %v1659 = vsel %vm964, %v1621, %v1658
        %v1660 = vsel %vm847, %v1644, %v1645
        %v1661 = vsel %vm964, %v1625, %v1660
        %v1662 = vsel %vm847, %v1646, %v1647
        %v1663 = vsel %vm964, %v1629, %v1662
        %v1672 = vadd.f32 %v1526, %v1649
        %v1673 = vadd.f32 %v1527, %v1651
        %v1674 = vadd.f32 %v1528, %v1653
        %v1675 = vadd.f32 %v1529, %v1655
        %v1676 = vadd.f32 %v1530, %v1657
        %v1677 = vadd.f32 %v1531, %v1659
        %v1678 = vadd.f32 %v1532, %v1661
        %v1679 = vadd.f32 %v1533, %v1663
        %s1680 = sld [smem:[#allocation2 + $0x180]]
        %v1681 = vstv %s1680
        %v1682 = vmul.f32 %v731, %v1681
        %v1683 = vmul.f32 %v733, %v1681
        %v1684 = vmul.f32 %v735, %v1681
        %v1685 = vmul.f32 %v737, %v1681
        %v1686 = vmul.f32 %v739, %v1681
        %v1687 = vmul.f32 %v741, %v1681
        %v1688 = vmul.f32 %v743, %v1681
        %v1689 = vmul.f32 %v745, %v1681
        %v1698 = vrot.slane %v1682, 7
        %v1699 = vrot.slane %v1698, 4
        %v1700 = vrot.slane %v1683, 7
        %v1701 = vrot.slane %v1700, 4
        %v1702 = vrot.slane %v1684, 7
        %v1703 = vrot.slane %v1702, 4
        %v1704 = vrot.slane %v1685, 7
        %v1705 = vrot.slane %v1704, 4
        %v1706 = vrot.slane %v1686, 7
        %v1707 = vrot.slane %v1706, 4
        %v1708 = vrot.slane %v1687, 7
        %v1709 = vrot.slane %v1708, 4
        %v1710 = vrot.slane %v1688, 7
        %v1711 = vrot.slane %v1710, 4
        %v1712 = vrot.slane %v1689, 7
        %v1713 = vrot.slane %v1712, 4
        %v1722 = vadd.f32 %v1672, %v1699
        %v1723 = vadd.f32 %v1673, %v1701
        %v1724 = vadd.f32 %v1674, %v1703
        %v1725 = vadd.f32 %v1675, %v1705
        %v1726 = vadd.f32 %v1676, %v1707
        %v1727 = vadd.f32 %v1677, %v1709
        %v1728 = vadd.f32 %v1678, %v1711
        %v1729 = vadd.f32 %v1679, %v1713
        %s1730 = sld [smem:[#allocation2 + $0x181]]
        %v1731 = vstv %s1730
        %v1732 = vmul.f32 %v731, %v1731
        %v1733 = vmul.f32 %v732, %v1731
        %v1734 = vmul.f32 %v733, %v1731
        %v1735 = vmul.f32 %v734, %v1731
        %v1736 = vmul.f32 %v735, %v1731
        %v1737 = vmul.f32 %v736, %v1731
        %v1738 = vmul.f32 %v737, %v1731
        %v1739 = vmul.f32 %v738, %v1731
        %v1740 = vmul.f32 %v739, %v1731
        %v1741 = vmul.f32 %v740, %v1731
        %v1742 = vmul.f32 %v741, %v1731
        %v1743 = vmul.f32 %v742, %v1731
        %v1744 = vmul.f32 %v743, %v1731
        %v1745 = vmul.f32 %v744, %v1731
        %v1746 = vmul.f32 %v745, %v1731
        %v1747 = vmul.f32 %v746, %v1731
        %v1764 = vrot.slane %v1732, 7
        %v1765 = vrot.slane %v1764, 4
        %v1766 = vrot.slane %v1733, 7
        %v1767 = vrot.slane %v1766, 4
        %v1768 = vrot.slane %v1734, 7
        %v1769 = vrot.slane %v1768, 4
        %v1770 = vrot.slane %v1735, 7
        %v1771 = vrot.slane %v1770, 4
        %v1772 = vrot.slane %v1736, 7
        %v1773 = vrot.slane %v1772, 4
        %v1774 = vrot.slane %v1737, 7
        %v1775 = vrot.slane %v1774, 4
        %v1776 = vrot.slane %v1738, 7
        %v1777 = vrot.slane %v1776, 4
        %v1778 = vrot.slane %v1739, 7
        %v1779 = vrot.slane %v1778, 4
        %v1780 = vrot.slane %v1740, 7
        %v1781 = vrot.slane %v1780, 4
        %v1782 = vrot.slane %v1741, 7
        %v1783 = vrot.slane %v1782, 4
        %v1784 = vrot.slane %v1742, 7
        %v1785 = vrot.slane %v1784, 4
        %v1786 = vrot.slane %v1743, 7
        %v1787 = vrot.slane %v1786, 4
        %v1788 = vrot.slane %v1744, 7
        %v1789 = vrot.slane %v1788, 4
        %v1790 = vrot.slane %v1745, 7
        %v1791 = vrot.slane %v1790, 4
        %v1792 = vrot.slane %v1746, 7
        %v1793 = vrot.slane %v1792, 4
        %v1794 = vrot.slane %v1747, 7
        %v1795 = vrot.slane %v1794, 4
        %1796 = vrot.lane.b32.xlu0 %v1765, 127
        %v1797 = vpop.permute.xlu0 %1796
        %1798 = vrot.lane.b32.xlu0 %v1767, 127
        %v1799 = vpop.permute.xlu0 %1798
        %1800 = vrot.lane.b32.xlu0 %v1769, 127
        %v1801 = vpop.permute.xlu0 %1800
        %1802 = vrot.lane.b32.xlu0 %v1771, 127
        %v1803 = vpop.permute.xlu0 %1802
        %1804 = vrot.lane.b32.xlu0 %v1773, 127
        %v1805 = vpop.permute.xlu0 %1804
        %1806 = vrot.lane.b32.xlu0 %v1775, 127
        %v1807 = vpop.permute.xlu0 %1806
        %1808 = vrot.lane.b32.xlu0 %v1777, 127
        %v1809 = vpop.permute.xlu0 %1808
        %1810 = vrot.lane.b32.xlu0 %v1779, 127
        %v1811 = vpop.permute.xlu0 %1810
        %1812 = vrot.lane.b32.xlu0 %v1781, 127
        %v1813 = vpop.permute.xlu0 %1812
        %1814 = vrot.lane.b32.xlu0 %v1783, 127
        %v1815 = vpop.permute.xlu0 %1814
        %1816 = vrot.lane.b32.xlu0 %v1785, 127
        %v1817 = vpop.permute.xlu0 %1816
        %1818 = vrot.lane.b32.xlu0 %v1787, 127
        %v1819 = vpop.permute.xlu0 %1818
        %1820 = vrot.lane.b32.xlu0 %v1789, 127
        %v1821 = vpop.permute.xlu0 %1820
        %1822 = vrot.lane.b32.xlu0 %v1791, 127
        %v1823 = vpop.permute.xlu0 %1822
        %1824 = vrot.lane.b32.xlu0 %v1793, 127
        %v1825 = vpop.permute.xlu0 %1824
        %1826 = vrot.lane.b32.xlu0 %v1795, 127
        %v1827 = vpop.permute.xlu0 %1826
        %v1828 = vrot.slane %v1797, 4
        %v1829 = vrot.slane %v1799, 4
        %v1830 = vrot.slane %v1801, 4
        %v1831 = vrot.slane %v1803, 4
        %v1832 = vrot.slane %v1805, 4
        %v1833 = vrot.slane %v1807, 4
        %v1834 = vrot.slane %v1809, 4
        %v1835 = vrot.slane %v1811, 4
        %v1836 = vrot.slane %v1813, 4
        %v1837 = vrot.slane %v1815, 4
        %v1838 = vrot.slane %v1817, 4
        %v1839 = vrot.slane %v1819, 4
        %v1840 = vrot.slane %v1821, 4
        %v1841 = vrot.slane %v1823, 4
        %v1842 = vrot.slane %v1825, 4
        %v1843 = vrot.slane %v1827, 4
        %v1844 = vsel %vm847, %v1828, %v1829
        %v1845 = vsel %vm849, %v1797, %v1844
        %v1846 = vsel %vm847, %v1830, %v1831
        %v1847 = vsel %vm849, %v1801, %v1846
        %v1848 = vsel %vm847, %v1832, %v1833
        %v1849 = vsel %vm849, %v1805, %v1848
        %v1850 = vsel %vm847, %v1834, %v1835
        %v1851 = vsel %vm849, %v1809, %v1850
        %v1852 = vsel %vm847, %v1836, %v1837
        %v1853 = vsel %vm849, %v1813, %v1852
        %v1854 = vsel %vm847, %v1838, %v1839
        %v1855 = vsel %vm849, %v1817, %v1854
        %v1856 = vsel %vm847, %v1840, %v1841
        %v1857 = vsel %vm849, %v1821, %v1856
        %v1858 = vsel %vm847, %v1842, %v1843
        %v1859 = vsel %vm849, %v1825, %v1858
        %v1868 = vadd.f32 %v1722, %v1845
        %v1869 = vadd.f32 %v1723, %v1847
        %v1870 = vadd.f32 %v1724, %v1849
        %v1871 = vadd.f32 %v1725, %v1851
        %v1872 = vadd.f32 %v1726, %v1853
        %v1873 = vadd.f32 %v1727, %v1855
        %v1874 = vadd.f32 %v1728, %v1857
        %v1875 = vadd.f32 %v1729, %v1859
        %s1876 = sld [smem:[#allocation2 + $0x182]]
        %v1877 = vstv %s1876
        %v1878 = vmul.f32 %v731, %v1877
        %v1879 = vmul.f32 %v732, %v1877
        %v1880 = vmul.f32 %v733, %v1877
        %v1881 = vmul.f32 %v734, %v1877
        %v1882 = vmul.f32 %v735, %v1877
        %v1883 = vmul.f32 %v736, %v1877
        %v1884 = vmul.f32 %v737, %v1877
        %v1885 = vmul.f32 %v738, %v1877
        %v1886 = vmul.f32 %v739, %v1877
        %v1887 = vmul.f32 %v740, %v1877
        %v1888 = vmul.f32 %v741, %v1877
        %v1889 = vmul.f32 %v742, %v1877
        %v1890 = vmul.f32 %v743, %v1877
        %v1891 = vmul.f32 %v744, %v1877
        %v1892 = vmul.f32 %v745, %v1877
        %v1893 = vmul.f32 %v746, %v1877
        %v1910 = vrot.slane %v1878, 7
        %v1911 = vrot.slane %v1910, 4
        %v1912 = vrot.slane %v1879, 7
        %v1913 = vrot.slane %v1912, 4
        %v1914 = vrot.slane %v1880, 7
        %v1915 = vrot.slane %v1914, 4
        %v1916 = vrot.slane %v1881, 7
        %v1917 = vrot.slane %v1916, 4
        %v1918 = vrot.slane %v1882, 7
        %v1919 = vrot.slane %v1918, 4
        %v1920 = vrot.slane %v1883, 7
        %v1921 = vrot.slane %v1920, 4
        %v1922 = vrot.slane %v1884, 7
        %v1923 = vrot.slane %v1922, 4
        %v1924 = vrot.slane %v1885, 7
        %v1925 = vrot.slane %v1924, 4
        %v1926 = vrot.slane %v1886, 7
        %v1927 = vrot.slane %v1926, 4
        %v1928 = vrot.slane %v1887, 7
        %v1929 = vrot.slane %v1928, 4
        %v1930 = vrot.slane %v1888, 7
        %v1931 = vrot.slane %v1930, 4
        %v1932 = vrot.slane %v1889, 7
        %v1933 = vrot.slane %v1932, 4
        %v1934 = vrot.slane %v1890, 7
        %v1935 = vrot.slane %v1934, 4
        %v1936 = vrot.slane %v1891, 7
        %v1937 = vrot.slane %v1936, 4
        %v1938 = vrot.slane %v1892, 7
        %v1939 = vrot.slane %v1938, 4
        %v1940 = vrot.slane %v1893, 7
        %v1941 = vrot.slane %v1940, 4
        %1942 = vrot.lane.b32.xlu0 %v1911, 126
        %v1943 = vpop.permute.xlu0 %1942
        %1944 = vrot.lane.b32.xlu0 %v1913, 126
        %v1945 = vpop.permute.xlu0 %1944
        %1946 = vrot.lane.b32.xlu0 %v1915, 126
        %v1947 = vpop.permute.xlu0 %1946
        %1948 = vrot.lane.b32.xlu0 %v1917, 126
        %v1949 = vpop.permute.xlu0 %1948
        %1950 = vrot.lane.b32.xlu0 %v1919, 126
        %v1951 = vpop.permute.xlu0 %1950
        %1952 = vrot.lane.b32.xlu0 %v1921, 126
        %v1953 = vpop.permute.xlu0 %1952
        %1954 = vrot.lane.b32.xlu0 %v1923, 126
        %v1955 = vpop.permute.xlu0 %1954
        %1956 = vrot.lane.b32.xlu0 %v1925, 126
        %v1957 = vpop.permute.xlu0 %1956
        %1958 = vrot.lane.b32.xlu0 %v1927, 126
        %v1959 = vpop.permute.xlu0 %1958
        %1960 = vrot.lane.b32.xlu0 %v1929, 126
        %v1961 = vpop.permute.xlu0 %1960
        %1962 = vrot.lane.b32.xlu0 %v1931, 126
        %v1963 = vpop.permute.xlu0 %1962
        %1964 = vrot.lane.b32.xlu0 %v1933, 126
        %v1965 = vpop.permute.xlu0 %1964
        %1966 = vrot.lane.b32.xlu0 %v1935, 126
        %v1967 = vpop.permute.xlu0 %1966
        %1968 = vrot.lane.b32.xlu0 %v1937, 126
        %v1969 = vpop.permute.xlu0 %1968
        %1970 = vrot.lane.b32.xlu0 %v1939, 126
        %v1971 = vpop.permute.xlu0 %1970
        %1972 = vrot.lane.b32.xlu0 %v1941, 126
        %v1973 = vpop.permute.xlu0 %1972
        %v1974 = vrot.slane %v1943, 4
        %v1975 = vrot.slane %v1945, 4
        %v1976 = vrot.slane %v1947, 4
        %v1977 = vrot.slane %v1949, 4
        %v1978 = vrot.slane %v1951, 4
        %v1979 = vrot.slane %v1953, 4
        %v1980 = vrot.slane %v1955, 4
        %v1981 = vrot.slane %v1957, 4
        %v1982 = vrot.slane %v1959, 4
        %v1983 = vrot.slane %v1961, 4
        %v1984 = vrot.slane %v1963, 4
        %v1985 = vrot.slane %v1965, 4
        %v1986 = vrot.slane %v1967, 4
        %v1987 = vrot.slane %v1969, 4
        %v1988 = vrot.slane %v1971, 4
        %v1989 = vrot.slane %v1973, 4
        %v1990 = vsel %vm847, %v1974, %v1975
        %v1991 = vsel %vm964, %v1943, %v1990
        %v1992 = vsel %vm847, %v1976, %v1977
        %v1993 = vsel %vm964, %v1947, %v1992
        %v1994 = vsel %vm847, %v1978, %v1979
        %v1995 = vsel %vm964, %v1951, %v1994
        %v1996 = vsel %vm847, %v1980, %v1981
        %v1997 = vsel %vm964, %v1955, %v1996
        %v1998 = vsel %vm847, %v1982, %v1983
        %v1999 = vsel %vm964, %v1959, %v1998
        %v2000 = vsel %vm847, %v1984, %v1985
        %v2001 = vsel %vm964, %v1963, %v2000
        %v2002 = vsel %vm847, %v1986, %v1987
        %v2003 = vsel %vm964, %v1967, %v2002
        %v2004 = vsel %vm847, %v1988, %v1989
        %v2005 = vsel %vm964, %v1971, %v2004
        %v2014 = vadd.f32 %v1868, %v1991
        %v2015 = vadd.f32 %v1869, %v1993
        %v2016 = vadd.f32 %v1870, %v1995
        %v2017 = vadd.f32 %v1871, %v1997
        %v2018 = vadd.f32 %v1872, %v1999
        %v2019 = vadd.f32 %v1873, %v2001
        %v2020 = vadd.f32 %v1874, %v2003
        %v2021 = vadd.f32 %v1875, %v2005
        %s2022 = sld [smem:[#allocation6]]
        %v2023 = vstv %s2022
        %v2024 = vadd.f32 %v2014, %v2023
        %v2025 = vadd.f32 %v2015, %v2023
        %v2026 = vadd.f32 %v2016, %v2023
        %v2027 = vadd.f32 %v2017, %v2023
        %v2028 = vadd.f32 %v2018, %v2023
        %v2029 = vadd.f32 %v2019, %v2023
        %v2030 = vadd.f32 %v2020, %v2023
        %v2031 = vadd.f32 %v2021, %v2023
        %vm2032 = vcmp.ge.f32.partialorder %v2024, 0.0
        %vm2033 = vcmp.ge.f32.partialorder %v2025, 0.0
        %vm2034 = vcmp.ge.f32.partialorder %v2026, 0.0
        %vm2035 = vcmp.ge.f32.partialorder %v2027, 0.0
        %vm2036 = vcmp.ge.f32.partialorder %v2028, 0.0
        %vm2037 = vcmp.ge.f32.partialorder %v2029, 0.0
        %vm2038 = vcmp.ge.f32.partialorder %v2030, 0.0
        %vm2039 = vcmp.ge.f32.partialorder %v2031, 0.0
        %s2040 = sld [smem:[#allocation6 + $0x1]]
        %v2041 = vstv %s2040
        %v2042 = vmul.f32 %v2041, %v2024
        %v2043 = vmul.f32 %v2041, %v2025
        %v2044 = vmul.f32 %v2041, %v2026
        %v2045 = vmul.f32 %v2041, %v2027
        %v2046 = vmul.f32 %v2041, %v2028
        %v2047 = vmul.f32 %v2041, %v2029
        %v2048 = vmul.f32 %v2041, %v2030
        %v2049 = vmul.f32 %v2041, %v2031
        %v2050 = vsel %vm2032, %v2024, %v2042
        %v2051 = vsel %vm2033, %v2025, %v2043
        %v2052 = vsel %vm2034, %v2026, %v2044
        %v2053 = vsel %vm2035, %v2027, %v2045
        %v2054 = vsel %vm2036, %v2028, %v2046
        %v2055 = vsel %vm2037, %v2029, %v2047
        %v2056 = vsel %vm2038, %v2030, %v2048
        %v2057 = vsel %vm2039, %v2031, %v2049
        %v2066 = vperm.slane %v2050, 0
        %v2067 = vperm.slane %v2050, 4
        %v2068 = vperm.slane %v2051, 0
        %v2069 = vperm.slane %v2051, 4
        %v2070 = vperm.slane %v2052, 0
        %v2071 = vperm.slane %v2052, 4
        %v2072 = vperm.slane %v2053, 0
        %v2073 = vperm.slane %v2053, 4
        %v2074 = vperm.slane %v2054, 0
        %v2075 = vperm.slane %v2054, 4
        %v2076 = vperm.slane %v2055, 0
        %v2077 = vperm.slane %v2055, 4
        %v2078 = vperm.slane %v2056, 0
        %v2079 = vperm.slane %v2056, 4
        %v2080 = vperm.slane %v2057, 0
        %v2081 = vperm.slane %v2057, 4
        %v2098 = vpack.c.bf16 %v2066, %v2066
        %v2099 = vpack.c.bf16 %v2067, %v2067
        %v2100 = vpack.c.bf16 %v2068, %v2068
        %v2101 = vpack.c.bf16 %v2069, %v2069
        %v2102 = vpack.c.bf16 %v2070, %v2070
        %v2103 = vpack.c.bf16 %v2071, %v2071
        %v2104 = vpack.c.bf16 %v2072, %v2072
        %v2105 = vpack.c.bf16 %v2073, %v2073
        %v2106 = vpack.c.bf16 %v2074, %v2074
        %v2107 = vpack.c.bf16 %v2075, %v2075
        %v2108 = vpack.c.bf16 %v2076, %v2076
        %v2109 = vpack.c.bf16 %v2077, %v2077
        %v2110 = vpack.c.bf16 %v2078, %v2078
        %v2111 = vpack.c.bf16 %v2079, %v2079
        %v2112 = vpack.c.bf16 %v2080, %v2080
        %v2113 = vpack.c.bf16 %v2081, %v2081
        %v2114 = vld [vmem:[%s3] sm:$0xf]
        %v2115 = vld [vmem:[%s3 + $0x4] sm:$0xf]
        %v2116 = vld [vmem:[%s3 + $0x8] sm:$0xf]
        %v2117 = vld [vmem:[%s3 + $0xc] sm:$0xf]
        %v2118 = vld [vmem:[%s3 + $0x10] sm:$0xf]
        %v2119 = vld [vmem:[%s3 + $0x14] sm:$0xf]
        %v2120 = vld [vmem:[%s3 + $0x18] sm:$0xf]
        %v2121 = vld [vmem:[%s3 + $0x1c] sm:$0xf]
        %v2122 = vld [vmem:[%s3 + $0x20] sm:$0xf]
        %v2123 = vld [vmem:[%s3 + $0x24] sm:$0xf]
        %v2124 = vld [vmem:[%s3 + $0x28] sm:$0xf]
        %v2125 = vld [vmem:[%s3 + $0x2c] sm:$0xf]
        %v2126 = vld [vmem:[%s3 + $0x30] sm:$0xf]
        %v2127 = vld [vmem:[%s3 + $0x34] sm:$0xf]
        %v2128 = vld [vmem:[%s3 + $0x38] sm:$0xf]
        %v2129 = vld [vmem:[%s3 + $0x3c] sm:$0xf]
        %v2130 = vld [vmem:[%s3 + $0x40] sm:$0xf]
        %v2131 = vld [vmem:[%s3 + $0x44] sm:$0xf]
        %v2132 = vld [vmem:[%s3 + $0x48] sm:$0xf]
        %v2133 = vld [vmem:[%s3 + $0x4c] sm:$0xf]
        %v2134 = vld [vmem:[%s3 + $0x50] sm:$0xf]
        %v2135 = vld [vmem:[%s3 + $0x54] sm:$0xf]
        %v2136 = vld [vmem:[%s3 + $0x58] sm:$0xf]
        %v2137 = vld [vmem:[%s3 + $0x5c] sm:$0xf]
        %v2138 = vld [vmem:[%s3 + $0x60] sm:$0xf]
        %v2139 = vld [vmem:[%s3 + $0x64] sm:$0xf]
        %v2140 = vld [vmem:[%s3 + $0x68] sm:$0xf]
        %v2141 = vld [vmem:[%s3 + $0x6c] sm:$0xf]
        %v2142 = vld [vmem:[%s3 + $0x70] sm:$0xf]
        %v2143 = vld [vmem:[%s3 + $0x74] sm:$0xf]
        %v2144 = vld [vmem:[%s3 + $0x78] sm:$0xf]
        %v2145 = vld [vmem:[%s3 + $0x7c] sm:$0xf]
        %v2162 = vunpack.c.l.b16 %v2098
        %v2163 = vunpack.c.l.b16 %v2099
        %v2164 = vunpack.c.l.b16 %v2100
        %v2165 = vunpack.c.l.b16 %v2101
        %v2166 = vunpack.c.l.b16 %v2102
        %v2167 = vunpack.c.l.b16 %v2103
        %v2168 = vunpack.c.l.b16 %v2104
        %v2169 = vunpack.c.l.b16 %v2105
        %v2170 = vunpack.c.l.b16 %v2106
        %v2171 = vunpack.c.l.b16 %v2107
        %v2172 = vunpack.c.l.b16 %v2108
        %v2173 = vunpack.c.l.b16 %v2109
        %v2174 = vunpack.c.l.b16 %v2110
        %v2175 = vunpack.c.l.b16 %v2111
        %v2176 = vunpack.c.l.b16 %v2112
        %v2177 = vunpack.c.l.b16 %v2113
        %v2178 = vrot.slane %v2164, 7
        %vm2179 = vcmask 1041409
        %v2180 = vsel %vm2179, %v2178, %v2162
        %v2181 = vrot.slane %v2166, 6
        %vm2182 = vcmask 1042434
        %v2183 = vsel %vm2182, %v2181, %v2180
        %v2184 = vrot.slane %v2168, 5
        %vm2185 = vcmask 1043459
        %v2186 = vsel %vm2185, %v2184, %v2183
        %v2187 = vrot.slane %v2170, 4
        %vm2188 = vcmask 1044484
        %v2189 = vsel %vm2188, %v2187, %v2186
        %v2190 = vrot.slane %v2172, 3
        %vm2191 = vcmask 1045509
        %v2192 = vsel %vm2191, %v2190, %v2189
        %v2193 = vrot.slane %v2174, 2
        %vm2194 = vcmask 1046534
        %v2195 = vsel %vm2194, %v2193, %v2192
        %v2196 = vrot.slane %v2176, 1
        %vm2197 = vcmask 1047559
        %v2198 = vsel %vm2197, %v2196, %v2195
        %v2199 = vrot.slane %v2165, 7
        %v2200 = vsel %vm2179, %v2199, %v2163
        %v2201 = vrot.slane %v2167, 6
        %v2202 = vsel %vm2182, %v2201, %v2200
        %v2203 = vrot.slane %v2169, 5
        %v2204 = vsel %vm2185, %v2203, %v2202
        %v2205 = vrot.slane %v2171, 4
        %v2206 = vsel %vm2188, %v2205, %v2204
        %v2207 = vrot.slane %v2173, 3
        %v2208 = vsel %vm2191, %v2207, %v2206
        %v2209 = vrot.slane %v2175, 2
        %v2210 = vsel %vm2194, %v2209, %v2208
        %v2211 = vrot.slane %v2177, 1
        %v2212 = vsel %vm2197, %v2211, %v2210
        %v2213 = vpack.c.b16 %v2198, %v2198
        %v2214 = vpack.c.b16 %v2212, %v2212
        %v2249 = vunpack.c.l.b16 %v2114
        %v2250 = vunpack.c.l.b16 %v2115
        %v2251 = vunpack.c.l.b16 %v2116
        %v2252 = vunpack.c.l.b16 %v2117
        %v2253 = vunpack.c.l.b16 %v2118
        %v2254 = vunpack.c.l.b16 %v2119
        %v2255 = vunpack.c.l.b16 %v2120
        %v2256 = vunpack.c.l.b16 %v2121
        %v2257 = vunpack.c.l.b16 %v2122
        %v2258 = vunpack.c.l.b16 %v2123
        %v2259 = vunpack.c.l.b16 %v2124
        %v2260 = vunpack.c.l.b16 %v2125
        %v2261 = vunpack.c.l.b16 %v2126
        %v2262 = vunpack.c.l.b16 %v2127
        %v2263 = vunpack.c.l.b16 %v2128
        %v2264 = vunpack.c.l.b16 %v2129
        %v2265 = vunpack.c.l.b16 %v2130
        %v2266 = vunpack.c.l.b16 %v2131
        %v2267 = vunpack.c.l.b16 %v2132
        %v2268 = vunpack.c.l.b16 %v2133
        %v2269 = vunpack.c.l.b16 %v2134
        %v2270 = vunpack.c.l.b16 %v2135
        %v2271 = vunpack.c.l.b16 %v2136
        %v2272 = vunpack.c.l.b16 %v2137
        %v2273 = vunpack.c.l.b16 %v2138
        %v2274 = vunpack.c.l.b16 %v2139
        %v2275 = vunpack.c.l.b16 %v2140
        %v2276 = vunpack.c.l.b16 %v2141
        %v2277 = vunpack.c.l.b16 %v2142
        %v2278 = vunpack.c.l.b16 %v2143
        %v2279 = vunpack.c.l.b16 %v2144
        %v2280 = vunpack.c.l.b16 %v2145
        %v2281 = vpack.c.b16 %v2250, %v2249
        %v2282 = vpack.c.b16 %v2252, %v2251
        %v2283 = vpack.c.b16 %v2254, %v2253
        %v2284 = vpack.c.b16 %v2256, %v2255
        %v2285 = vpack.c.b16 %v2258, %v2257
        %v2286 = vpack.c.b16 %v2260, %v2259
        %v2287 = vpack.c.b16 %v2262, %v2261
        %v2288 = vpack.c.b16 %v2264, %v2263
        %v2289 = vpack.c.b16 %v2266, %v2265
        %v2290 = vpack.c.b16 %v2268, %v2267
        %v2291 = vpack.c.b16 %v2270, %v2269
        %v2292 = vpack.c.b16 %v2272, %v2271
        %v2293 = vpack.c.b16 %v2274, %v2273
        %v2294 = vpack.c.b16 %v2276, %v2275
        %v2295 = vpack.c.b16 %v2278, %v2277
        %v2296 = vpack.c.b16 %v2280, %v2279
        %2313 = vmatpush.bf16.msra.mxu0 %v2288
        %2314 = vmatpush.bf16.msra.mxu0 %v2287
        %2315 = vmatpush.bf16.msra.mxu0 %v2286
        %2316 = vmatpush.bf16.msra.mxu0 %v2285
        %2317 = vmatpush.bf16.msra.mxu0 %v2284
        %2318 = vmatpush.bf16.msra.mxu0 %v2283
        %2319 = vmatpush.bf16.msra.mxu0 %v2282
        %2320 = vmatpush.bf16.msra.mxu0 %v2281
        %2321 = vmatmul.bf16.gmra.mxu0 %v2213
        %v2322 = vpop.f32.mrf.mxu0
        %v2323 = vadd.f32 0.0, %v2322
        %v2324 = vpop.f32.mrf.mxu0
        %2325 = vdwg.mxu0
        %2326 = vmatpush.bf16.msra.mxu0 %v2296
        %2327 = vmatpush.bf16.msra.mxu0 %v2295
        %2328 = vmatpush.bf16.msra.mxu0 %v2294
        %2329 = vmatpush.bf16.msra.mxu0 %v2293
        %2330 = vmatpush.bf16.msra.mxu0 %v2292
        %2331 = vmatpush.bf16.msra.mxu0 %v2291
        %2332 = vmatpush.bf16.msra.mxu0 %v2290
        %2333 = vmatpush.bf16.msra.mxu0 %v2289
        %2334 = vmatmul.bf16.gmra.mxu0 %v2214
        %v2335 = vpop.f32.mrf.mxu0
        %v2336 = vadd.f32 %v2323, %v2335
        %v2337 = vpop.f32.mrf.mxu0
        %2338 = vdwg.mxu0
        %s2339 = scalar_lea.vmem %s3, 128
        %v2340 = vld [vmem:[%s2339] sm:$0xf]
        %v2341 = vld [vmem:[%s2339 + $0x4] sm:$0xf]
        %v2342 = vld [vmem:[%s2339 + $0x8] sm:$0xf]
        %v2343 = vld [vmem:[%s2339 + $0xc] sm:$0xf]
        %v2344 = vld [vmem:[%s2339 + $0x10] sm:$0xf]
        %v2345 = vld [vmem:[%s2339 + $0x14] sm:$0xf]
        %v2346 = vld [vmem:[%s2339 + $0x18] sm:$0xf]
        %v2347 = vld [vmem:[%s2339 + $0x1c] sm:$0xf]
        %v2348 = vld [vmem:[%s2339 + $0x20] sm:$0xf]
        %v2349 = vld [vmem:[%s2339 + $0x24] sm:$0xf]
        %v2350 = vld [vmem:[%s2339 + $0x28] sm:$0xf]
        %v2351 = vld [vmem:[%s2339 + $0x2c] sm:$0xf]
        %v2352 = vld [vmem:[%s2339 + $0x30] sm:$0xf]
        %v2353 = vld [vmem:[%s2339 + $0x34] sm:$0xf]
        %v2354 = vld [vmem:[%s2339 + $0x38] sm:$0xf]
        %v2355 = vld [vmem:[%s2339 + $0x3c] sm:$0xf]
        %v2356 = vld [vmem:[%s2339 + $0x40] sm:$0xf]
        %v2357 = vld [vmem:[%s2339 + $0x44] sm:$0xf]
        %v2358 = vld [vmem:[%s2339 + $0x48] sm:$0xf]
        %v2359 = vld [vmem:[%s2339 + $0x4c] sm:$0xf]
        %v2360 = vld [vmem:[%s2339 + $0x50] sm:$0xf]
        %v2361 = vld [vmem:[%s2339 + $0x54] sm:$0xf]
        %v2362 = vld [vmem:[%s2339 + $0x58] sm:$0xf]
        %v2363 = vld [vmem:[%s2339 + $0x5c] sm:$0xf]
        %v2364 = vld [vmem:[%s2339 + $0x60] sm:$0xf]
        %v2365 = vld [vmem:[%s2339 + $0x64] sm:$0xf]
        %v2366 = vld [vmem:[%s2339 + $0x68] sm:$0xf]
        %v2367 = vld [vmem:[%s2339 + $0x6c] sm:$0xf]
        %v2368 = vld [vmem:[%s2339 + $0x70] sm:$0xf]
        %v2369 = vld [vmem:[%s2339 + $0x74] sm:$0xf]
        %v2370 = vld [vmem:[%s2339 + $0x78] sm:$0xf]
        %v2371 = vld [vmem:[%s2339 + $0x7c] sm:$0xf]
        %v2404 = vunpack.c.l.b16 %v2340
        %v2405 = vunpack.c.l.b16 %v2341
        %v2406 = vunpack.c.l.b16 %v2342
        %v2407 = vunpack.c.l.b16 %v2343
        %v2408 = vunpack.c.l.b16 %v2344
        %v2409 = vunpack.c.l.b16 %v2345
        %v2410 = vunpack.c.l.b16 %v2346
        %v2411 = vunpack.c.l.b16 %v2347
        %v2412 = vunpack.c.l.b16 %v2348
        %v2413 = vunpack.c.l.b16 %v2349
        %v2414 = vunpack.c.l.b16 %v2350
        %v2415 = vunpack.c.l.b16 %v2351
        %v2416 = vunpack.c.l.b16 %v2352
        %v2417 = vunpack.c.l.b16 %v2353
        %v2418 = vunpack.c.l.b16 %v2354
        %v2419 = vunpack.c.l.b16 %v2355
        %v2420 = vunpack.c.l.b16 %v2356
        %v2421 = vunpack.c.l.b16 %v2357
        %v2422 = vunpack.c.l.b16 %v2358
        %v2423 = vunpack.c.l.b16 %v2359
        %v2424 = vunpack.c.l.b16 %v2360
        %v2425 = vunpack.c.l.b16 %v2361
        %v2426 = vunpack.c.l.b16 %v2362
        %v2427 = vunpack.c.l.b16 %v2363
        %v2428 = vunpack.c.l.b16 %v2364
        %v2429 = vunpack.c.l.b16 %v2365
        %v2430 = vunpack.c.l.b16 %v2366
        %v2431 = vunpack.c.l.b16 %v2367
        %v2432 = vunpack.c.l.b16 %v2368
        %v2433 = vunpack.c.l.b16 %v2369
        %v2434 = vunpack.c.l.b16 %v2370
        %v2435 = vunpack.c.l.b16 %v2371
        %v2436 = vpack.c.b16 %v2405, %v2404
        %v2437 = vpack.c.b16 %v2407, %v2406
        %v2438 = vpack.c.b16 %v2409, %v2408
        %v2439 = vpack.c.b16 %v2411, %v2410
        %v2440 = vpack.c.b16 %v2413, %v2412
        %v2441 = vpack.c.b16 %v2415, %v2414
        %v2442 = vpack.c.b16 %v2417, %v2416
        %v2443 = vpack.c.b16 %v2419, %v2418
        %v2444 = vpack.c.b16 %v2421, %v2420
        %v2445 = vpack.c.b16 %v2423, %v2422
        %v2446 = vpack.c.b16 %v2425, %v2424
        %v2447 = vpack.c.b16 %v2427, %v2426
        %v2448 = vpack.c.b16 %v2429, %v2428
        %v2449 = vpack.c.b16 %v2431, %v2430
        %v2450 = vpack.c.b16 %v2433, %v2432
        %v2451 = vpack.c.b16 %v2435, %v2434
        %2468 = vmatpush.bf16.msra.mxu0 %v2443
        %2469 = vmatpush.bf16.msra.mxu0 %v2442
        %2470 = vmatpush.bf16.msra.mxu0 %v2441
        %2471 = vmatpush.bf16.msra.mxu0 %v2440
        %2472 = vmatpush.bf16.msra.mxu0 %v2439
        %2473 = vmatpush.bf16.msra.mxu0 %v2438
        %2474 = vmatpush.bf16.msra.mxu0 %v2437
        %2475 = vmatpush.bf16.msra.mxu0 %v2436
        %2476 = vmatmul.bf16.gmra.mxu0 %v2213
        %v2477 = vpop.f32.mrf.mxu0
        %v2478 = vadd.f32 0.0, %v2477
        %v2479 = vpop.f32.mrf.mxu0
        %2480 = vdwg.mxu0
        %2481 = vmatpush.bf16.msra.mxu0 %v2451
        %2482 = vmatpush.bf16.msra.mxu0 %v2450
        %2483 = vmatpush.bf16.msra.mxu0 %v2449
        %2484 = vmatpush.bf16.msra.mxu0 %v2448
        %2485 = vmatpush.bf16.msra.mxu0 %v2447
        %2486 = vmatpush.bf16.msra.mxu0 %v2446
        %2487 = vmatpush.bf16.msra.mxu0 %v2445
        %2488 = vmatpush.bf16.msra.mxu0 %v2444
        %2489 = vmatmul.bf16.gmra.mxu0 %v2214
        %v2490 = vpop.f32.mrf.mxu0
        %v2491 = vadd.f32 %v2478, %v2490
        %v2492 = vpop.f32.mrf.mxu0
        %2493 = vdwg.mxu0
        %s2494 = scalar_lea.vmem %s3, 256
        %v2495 = vld [vmem:[%s2494] sm:$0xf]
        %v2496 = vld [vmem:[%s2494 + $0x4] sm:$0xf]
        %v2497 = vld [vmem:[%s2494 + $0x8] sm:$0xf]
        %v2498 = vld [vmem:[%s2494 + $0xc] sm:$0xf]
        %v2499 = vld [vmem:[%s2494 + $0x10] sm:$0xf]
        %v2500 = vld [vmem:[%s2494 + $0x14] sm:$0xf]
        %v2501 = vld [vmem:[%s2494 + $0x18] sm:$0xf]
        %v2502 = vld [vmem:[%s2494 + $0x1c] sm:$0xf]
        %v2503 = vld [vmem:[%s2494 + $0x20] sm:$0xf]
        %v2504 = vld [vmem:[%s2494 + $0x24] sm:$0xf]
        %v2505 = vld [vmem:[%s2494 + $0x28] sm:$0xf]
        %v2506 = vld [vmem:[%s2494 + $0x2c] sm:$0xf]
        %v2507 = vld [vmem:[%s2494 + $0x30] sm:$0xf]
        %v2508 = vld [vmem:[%s2494 + $0x34] sm:$0xf]
        %v2509 = vld [vmem:[%s2494 + $0x38] sm:$0xf]
        %v2510 = vld [vmem:[%s2494 + $0x3c] sm:$0xf]
        %v2511 = vld [vmem:[%s2494 + $0x40] sm:$0xf]
        %v2512 = vld [vmem:[%s2494 + $0x44] sm:$0xf]
        %v2513 = vld [vmem:[%s2494 + $0x48] sm:$0xf]
        %v2514 = vld [vmem:[%s2494 + $0x4c] sm:$0xf]
        %v2515 = vld [vmem:[%s2494 + $0x50] sm:$0xf]
        %v2516 = vld [vmem:[%s2494 + $0x54] sm:$0xf]
        %v2517 = vld [vmem:[%s2494 + $0x58] sm:$0xf]
        %v2518 = vld [vmem:[%s2494 + $0x5c] sm:$0xf]
        %v2519 = vld [vmem:[%s2494 + $0x60] sm:$0xf]
        %v2520 = vld [vmem:[%s2494 + $0x64] sm:$0xf]
        %v2521 = vld [vmem:[%s2494 + $0x68] sm:$0xf]
        %v2522 = vld [vmem:[%s2494 + $0x6c] sm:$0xf]
        %v2523 = vld [vmem:[%s2494 + $0x70] sm:$0xf]
        %v2524 = vld [vmem:[%s2494 + $0x74] sm:$0xf]
        %v2525 = vld [vmem:[%s2494 + $0x78] sm:$0xf]
        %v2526 = vld [vmem:[%s2494 + $0x7c] sm:$0xf]
        %v2559 = vunpack.c.l.b16 %v2495
        %v2560 = vunpack.c.l.b16 %v2496
        %v2561 = vunpack.c.l.b16 %v2497
        %v2562 = vunpack.c.l.b16 %v2498
        %v2563 = vunpack.c.l.b16 %v2499
        %v2564 = vunpack.c.l.b16 %v2500
        %v2565 = vunpack.c.l.b16 %v2501
        %v2566 = vunpack.c.l.b16 %v2502
        %v2567 = vunpack.c.l.b16 %v2503
        %v2568 = vunpack.c.l.b16 %v2504
        %v2569 = vunpack.c.l.b16 %v2505
        %v2570 = vunpack.c.l.b16 %v2506
        %v2571 = vunpack.c.l.b16 %v2507
        %v2572 = vunpack.c.l.b16 %v2508
        %v2573 = vunpack.c.l.b16 %v2509
        %v2574 = vunpack.c.l.b16 %v2510
        %v2575 = vunpack.c.l.b16 %v2511
        %v2576 = vunpack.c.l.b16 %v2512
        %v2577 = vunpack.c.l.b16 %v2513
        %v2578 = vunpack.c.l.b16 %v2514
        %v2579 = vunpack.c.l.b16 %v2515
        %v2580 = vunpack.c.l.b16 %v2516
        %v2581 = vunpack.c.l.b16 %v2517
        %v2582 = vunpack.c.l.b16 %v2518
        %v2583 = vunpack.c.l.b16 %v2519
        %v2584 = vunpack.c.l.b16 %v2520
        %v2585 = vunpack.c.l.b16 %v2521
        %v2586 = vunpack.c.l.b16 %v2522
        %v2587 = vunpack.c.l.b16 %v2523
        %v2588 = vunpack.c.l.b16 %v2524
        %v2589 = vunpack.c.l.b16 %v2525
        %v2590 = vunpack.c.l.b16 %v2526
        %v2591 = vpack.c.b16 %v2560, %v2559
        %v2592 = vpack.c.b16 %v2562, %v2561
        %v2593 = vpack.c.b16 %v2564, %v2563
        %v2594 = vpack.c.b16 %v2566, %v2565
        %v2595 = vpack.c.b16 %v2568, %v2567
        %v2596 = vpack.c.b16 %v2570, %v2569
        %v2597 = vpack.c.b16 %v2572, %v2571
        %v2598 = vpack.c.b16 %v2574, %v2573
        %v2599 = vpack.c.b16 %v2576, %v2575
        %v2600 = vpack.c.b16 %v2578, %v2577
        %v2601 = vpack.c.b16 %v2580, %v2579
        %v2602 = vpack.c.b16 %v2582, %v2581
        %v2603 = vpack.c.b16 %v2584, %v2583
        %v2604 = vpack.c.b16 %v2586, %v2585
        %v2605 = vpack.c.b16 %v2588, %v2587
        %v2606 = vpack.c.b16 %v2590, %v2589
        %2623 = vmatpush.bf16.msra.mxu0 %v2598
        %2624 = vmatpush.bf16.msra.mxu0 %v2597
        %2625 = vmatpush.bf16.msra.mxu0 %v2596
        %2626 = vmatpush.bf16.msra.mxu0 %v2595
        %2627 = vmatpush.bf16.msra.mxu0 %v2594
        %2628 = vmatpush.bf16.msra.mxu0 %v2593
        %2629 = vmatpush.bf16.msra.mxu0 %v2592
        %2630 = vmatpush.bf16.msra.mxu0 %v2591
        %2631 = vmatmul.bf16.gmra.mxu0 %v2213
        %v2632 = vpop.f32.mrf.mxu0
        %v2633 = vadd.f32 0.0, %v2632
        %v2634 = vpop.f32.mrf.mxu0
        %2635 = vdwg.mxu0
        %2636 = vmatpush.bf16.msra.mxu0 %v2606
        %2637 = vmatpush.bf16.msra.mxu0 %v2605
        %2638 = vmatpush.bf16.msra.mxu0 %v2604
        %2639 = vmatpush.bf16.msra.mxu0 %v2603
        %2640 = vmatpush.bf16.msra.mxu0 %v2602
        %2641 = vmatpush.bf16.msra.mxu0 %v2601
        %2642 = vmatpush.bf16.msra.mxu0 %v2600
        %2643 = vmatpush.bf16.msra.mxu0 %v2599
        %2644 = vmatmul.bf16.gmra.mxu0 %v2214
        %v2645 = vpop.f32.mrf.mxu0
        %v2646 = vadd.f32 %v2633, %v2645
        %v2647 = vpop.f32.mrf.mxu0
        %2648 = vdwg.mxu0
        %s2649 = scalar_lea.vmem %s3, 384
        %v2650 = vld [vmem:[%s2649] sm:$0xf]
        %v2651 = vld [vmem:[%s2649 + $0x4] sm:$0xf]
        %v2652 = vld [vmem:[%s2649 + $0x8] sm:$0xf]
        %v2653 = vld [vmem:[%s2649 + $0xc] sm:$0xf]
        %v2654 = vld [vmem:[%s2649 + $0x10] sm:$0xf]
        %v2655 = vld [vmem:[%s2649 + $0x14] sm:$0xf]
        %v2656 = vld [vmem:[%s2649 + $0x18] sm:$0xf]
        %v2657 = vld [vmem:[%s2649 + $0x1c] sm:$0xf]
        %v2658 = vld [vmem:[%s2649 + $0x20] sm:$0xf]
        %v2659 = vld [vmem:[%s2649 + $0x24] sm:$0xf]
        %v2660 = vld [vmem:[%s2649 + $0x28] sm:$0xf]
        %v2661 = vld [vmem:[%s2649 + $0x2c] sm:$0xf]
        %v2662 = vld [vmem:[%s2649 + $0x30] sm:$0xf]
        %v2663 = vld [vmem:[%s2649 + $0x34] sm:$0xf]
        %v2664 = vld [vmem:[%s2649 + $0x38] sm:$0xf]
        %v2665 = vld [vmem:[%s2649 + $0x3c] sm:$0xf]
        %v2666 = vld [vmem:[%s2649 + $0x40] sm:$0xf]
        %v2667 = vld [vmem:[%s2649 + $0x44] sm:$0xf]
        %v2668 = vld [vmem:[%s2649 + $0x48] sm:$0xf]
        %v2669 = vld [vmem:[%s2649 + $0x4c] sm:$0xf]
        %v2670 = vld [vmem:[%s2649 + $0x50] sm:$0xf]
        %v2671 = vld [vmem:[%s2649 + $0x54] sm:$0xf]
        %v2672 = vld [vmem:[%s2649 + $0x58] sm:$0xf]
        %v2673 = vld [vmem:[%s2649 + $0x5c] sm:$0xf]
        %v2674 = vld [vmem:[%s2649 + $0x60] sm:$0xf]
        %v2675 = vld [vmem:[%s2649 + $0x64] sm:$0xf]
        %v2676 = vld [vmem:[%s2649 + $0x68] sm:$0xf]
        %v2677 = vld [vmem:[%s2649 + $0x6c] sm:$0xf]
        %v2678 = vld [vmem:[%s2649 + $0x70] sm:$0xf]
        %v2679 = vld [vmem:[%s2649 + $0x74] sm:$0xf]
        %v2680 = vld [vmem:[%s2649 + $0x78] sm:$0xf]
        %v2681 = vld [vmem:[%s2649 + $0x7c] sm:$0xf]
        %v2714 = vunpack.c.l.b16 %v2650
        %v2715 = vunpack.c.l.b16 %v2651
        %v2716 = vunpack.c.l.b16 %v2652
        %v2717 = vunpack.c.l.b16 %v2653
        %v2718 = vunpack.c.l.b16 %v2654
        %v2719 = vunpack.c.l.b16 %v2655
        %v2720 = vunpack.c.l.b16 %v2656
        %v2721 = vunpack.c.l.b16 %v2657
        %v2722 = vunpack.c.l.b16 %v2658
        %v2723 = vunpack.c.l.b16 %v2659
        %v2724 = vunpack.c.l.b16 %v2660
        %v2725 = vunpack.c.l.b16 %v2661
        %v2726 = vunpack.c.l.b16 %v2662
        %v2727 = vunpack.c.l.b16 %v2663
        %v2728 = vunpack.c.l.b16 %v2664
        %v2729 = vunpack.c.l.b16 %v2665
        %v2730 = vunpack.c.l.b16 %v2666
        %v2731 = vunpack.c.l.b16 %v2667
        %v2732 = vunpack.c.l.b16 %v2668
        %v2733 = vunpack.c.l.b16 %v2669
        %v2734 = vunpack.c.l.b16 %v2670
        %v2735 = vunpack.c.l.b16 %v2671
        %v2736 = vunpack.c.l.b16 %v2672
        %v2737 = vunpack.c.l.b16 %v2673
        %v2738 = vunpack.c.l.b16 %v2674
        %v2739 = vunpack.c.l.b16 %v2675
        %v2740 = vunpack.c.l.b16 %v2676
        %v2741 = vunpack.c.l.b16 %v2677
        %v2742 = vunpack.c.l.b16 %v2678
        %v2743 = vunpack.c.l.b16 %v2679
        %v2744 = vunpack.c.l.b16 %v2680
        %v2745 = vunpack.c.l.b16 %v2681
        %v2746 = vpack.c.b16 %v2715, %v2714
        %v2747 = vpack.c.b16 %v2717, %v2716
        %v2748 = vpack.c.b16 %v2719, %v2718
        %v2749 = vpack.c.b16 %v2721, %v2720
        %v2750 = vpack.c.b16 %v2723, %v2722
        %v2751 = vpack.c.b16 %v2725, %v2724
        %v2752 = vpack.c.b16 %v2727, %v2726
        %v2753 = vpack.c.b16 %v2729, %v2728
        %v2754 = vpack.c.b16 %v2731, %v2730
        %v2755 = vpack.c.b16 %v2733, %v2732
        %v2756 = vpack.c.b16 %v2735, %v2734
        %v2757 = vpack.c.b16 %v2737, %v2736
        %v2758 = vpack.c.b16 %v2739, %v2738
        %v2759 = vpack.c.b16 %v2741, %v2740
        %v2760 = vpack.c.b16 %v2743, %v2742
        %v2761 = vpack.c.b16 %v2745, %v2744
        %2778 = vmatpush.bf16.msra.mxu0 %v2753
        %2779 = vmatpush.bf16.msra.mxu0 %v2752
        %2780 = vmatpush.bf16.msra.mxu0 %v2751
        %2781 = vmatpush.bf16.msra.mxu0 %v2750
        %2782 = vmatpush.bf16.msra.mxu0 %v2749
        %2783 = vmatpush.bf16.msra.mxu0 %v2748
        %2784 = vmatpush.bf16.msra.mxu0 %v2747
        %2785 = vmatpush.bf16.msra.mxu0 %v2746
        %2786 = vmatmul.bf16.gmra.mxu0 %v2213
        %v2787 = vpop.f32.mrf.mxu0
        %v2788 = vadd.f32 0.0, %v2787
        %v2789 = vpop.f32.mrf.mxu0
        %2790 = vdwg.mxu0
        %2791 = vmatpush.bf16.msra.mxu0 %v2761
        %2792 = vmatpush.bf16.msra.mxu0 %v2760
        %2793 = vmatpush.bf16.msra.mxu0 %v2759
        %2794 = vmatpush.bf16.msra.mxu0 %v2758
        %2795 = vmatpush.bf16.msra.mxu0 %v2757
        %2796 = vmatpush.bf16.msra.mxu0 %v2756
        %2797 = vmatpush.bf16.msra.mxu0 %v2755
        %2798 = vmatpush.bf16.msra.mxu0 %v2754
        %2799 = vmatmul.bf16.gmra.mxu0 %v2214
        %v2800 = vpop.f32.mrf.mxu0
        %v2801 = vadd.f32 %v2788, %v2800
        %v2802 = vpop.f32.mrf.mxu0
        %2803 = vdwg.mxu0
        %s2804 = scalar_lea.vmem %s3, 512
        %v2805 = vld [vmem:[%s2804] sm:$0xf]
        %v2806 = vld [vmem:[%s2804 + $0x4] sm:$0xf]
        %v2807 = vld [vmem:[%s2804 + $0x8] sm:$0xf]
        %v2808 = vld [vmem:[%s2804 + $0xc] sm:$0xf]
        %v2809 = vld [vmem:[%s2804 + $0x10] sm:$0xf]
        %v2810 = vld [vmem:[%s2804 + $0x14] sm:$0xf]
        %v2811 = vld [vmem:[%s2804 + $0x18] sm:$0xf]
        %v2812 = vld [vmem:[%s2804 + $0x1c] sm:$0xf]
        %v2813 = vld [vmem:[%s2804 + $0x20] sm:$0xf]
        %v2814 = vld [vmem:[%s2804 + $0x24] sm:$0xf]
        %v2815 = vld [vmem:[%s2804 + $0x28] sm:$0xf]
        %v2816 = vld [vmem:[%s2804 + $0x2c] sm:$0xf]
        %v2817 = vld [vmem:[%s2804 + $0x30] sm:$0xf]
        %v2818 = vld [vmem:[%s2804 + $0x34] sm:$0xf]
        %v2819 = vld [vmem:[%s2804 + $0x38] sm:$0xf]
        %v2820 = vld [vmem:[%s2804 + $0x3c] sm:$0xf]
        %v2821 = vld [vmem:[%s2804 + $0x40] sm:$0xf]
        %v2822 = vld [vmem:[%s2804 + $0x44] sm:$0xf]
        %v2823 = vld [vmem:[%s2804 + $0x48] sm:$0xf]
        %v2824 = vld [vmem:[%s2804 + $0x4c] sm:$0xf]
        %v2825 = vld [vmem:[%s2804 + $0x50] sm:$0xf]
        %v2826 = vld [vmem:[%s2804 + $0x54] sm:$0xf]
        %v2827 = vld [vmem:[%s2804 + $0x58] sm:$0xf]
        %v2828 = vld [vmem:[%s2804 + $0x5c] sm:$0xf]
        %v2829 = vld [vmem:[%s2804 + $0x60] sm:$0xf]
        %v2830 = vld [vmem:[%s2804 + $0x64] sm:$0xf]
        %v2831 = vld [vmem:[%s2804 + $0x68] sm:$0xf]
        %v2832 = vld [vmem:[%s2804 + $0x6c] sm:$0xf]
        %v2833 = vld [vmem:[%s2804 + $0x70] sm:$0xf]
        %v2834 = vld [vmem:[%s2804 + $0x74] sm:$0xf]
        %v2835 = vld [vmem:[%s2804 + $0x78] sm:$0xf]
        %v2836 = vld [vmem:[%s2804 + $0x7c] sm:$0xf]
        %v2869 = vunpack.c.l.b16 %v2805
        %v2870 = vunpack.c.l.b16 %v2806
        %v2871 = vunpack.c.l.b16 %v2807
        %v2872 = vunpack.c.l.b16 %v2808
        %v2873 = vunpack.c.l.b16 %v2809
        %v2874 = vunpack.c.l.b16 %v2810
        %v2875 = vunpack.c.l.b16 %v2811
        %v2876 = vunpack.c.l.b16 %v2812
        %v2877 = vunpack.c.l.b16 %v2813
        %v2878 = vunpack.c.l.b16 %v2814
        %v2879 = vunpack.c.l.b16 %v2815
        %v2880 = vunpack.c.l.b16 %v2816
        %v2881 = vunpack.c.l.b16 %v2817
        %v2882 = vunpack.c.l.b16 %v2818
        %v2883 = vunpack.c.l.b16 %v2819
        %v2884 = vunpack.c.l.b16 %v2820
        %v2885 = vunpack.c.l.b16 %v2821
        %v2886 = vunpack.c.l.b16 %v2822
        %v2887 = vunpack.c.l.b16 %v2823
        %v2888 = vunpack.c.l.b16 %v2824
        %v2889 = vunpack.c.l.b16 %v2825
        %v2890 = vunpack.c.l.b16 %v2826
        %v2891 = vunpack.c.l.b16 %v2827
        %v2892 = vunpack.c.l.b16 %v2828
        %v2893 = vunpack.c.l.b16 %v2829
        %v2894 = vunpack.c.l.b16 %v2830
        %v2895 = vunpack.c.l.b16 %v2831
        %v2896 = vunpack.c.l.b16 %v2832
        %v2897 = vunpack.c.l.b16 %v2833
        %v2898 = vunpack.c.l.b16 %v2834
        %v2899 = vunpack.c.l.b16 %v2835
        %v2900 = vunpack.c.l.b16 %v2836
        %v2901 = vpack.c.b16 %v2870, %v2869
        %v2902 = vpack.c.b16 %v2872, %v2871
        %v2903 = vpack.c.b16 %v2874, %v2873
        %v2904 = vpack.c.b16 %v2876, %v2875
        %v2905 = vpack.c.b16 %v2878, %v2877
        %v2906 = vpack.c.b16 %v2880, %v2879
        %v2907 = vpack.c.b16 %v2882, %v2881
        %v2908 = vpack.c.b16 %v2884, %v2883
        %v2909 = vpack.c.b16 %v2886, %v2885
        %v2910 = vpack.c.b16 %v2888, %v2887
        %v2911 = vpack.c.b16 %v2890, %v2889
        %v2912 = vpack.c.b16 %v2892, %v2891
        %v2913 = vpack.c.b16 %v2894, %v2893
        %v2914 = vpack.c.b16 %v2896, %v2895
        %v2915 = vpack.c.b16 %v2898, %v2897
        %v2916 = vpack.c.b16 %v2900, %v2899
        %2933 = vmatpush.bf16.msra.mxu0 %v2908
        %2934 = vmatpush.bf16.msra.mxu0 %v2907
        %2935 = vmatpush.bf16.msra.mxu0 %v2906
        %2936 = vmatpush.bf16.msra.mxu0 %v2905
        %2937 = vmatpush.bf16.msra.mxu0 %v2904
        %2938 = vmatpush.bf16.msra.mxu0 %v2903
        %2939 = vmatpush.bf16.msra.mxu0 %v2902
        %2940 = vmatpush.bf16.msra.mxu0 %v2901
        %2941 = vmatmul.bf16.gmra.mxu0 %v2213
        %v2942 = vpop.f32.mrf.mxu0
        %v2943 = vadd.f32 0.0, %v2942
        %v2944 = vpop.f32.mrf.mxu0
        %2945 = vdwg.mxu0
        %2946 = vmatpush.bf16.msra.mxu0 %v2916
        %2947 = vmatpush.bf16.msra.mxu0 %v2915
        %2948 = vmatpush.bf16.msra.mxu0 %v2914
        %2949 = vmatpush.bf16.msra.mxu0 %v2913
        %2950 = vmatpush.bf16.msra.mxu0 %v2912
        %2951 = vmatpush.bf16.msra.mxu0 %v2911
        %2952 = vmatpush.bf16.msra.mxu0 %v2910
        %2953 = vmatpush.bf16.msra.mxu0 %v2909
        %2954 = vmatmul.bf16.gmra.mxu0 %v2214
        %v2955 = vpop.f32.mrf.mxu0
        %v2956 = vadd.f32 %v2943, %v2955
        %v2957 = vpop.f32.mrf.mxu0
        %2958 = vdwg.mxu0
        %s2959 = scalar_lea.vmem %s3, 640
        %v2960 = vld [vmem:[%s2959] sm:$0xf]
        %v2961 = vld [vmem:[%s2959 + $0x4] sm:$0xf]
        %v2962 = vld [vmem:[%s2959 + $0x8] sm:$0xf]
        %v2963 = vld [vmem:[%s2959 + $0xc] sm:$0xf]
        %v2964 = vld [vmem:[%s2959 + $0x10] sm:$0xf]
        %v2965 = vld [vmem:[%s2959 + $0x14] sm:$0xf]
        %v2966 = vld [vmem:[%s2959 + $0x18] sm:$0xf]
        %v2967 = vld [vmem:[%s2959 + $0x1c] sm:$0xf]
        %v2968 = vld [vmem:[%s2959 + $0x20] sm:$0xf]
        %v2969 = vld [vmem:[%s2959 + $0x24] sm:$0xf]
        %v2970 = vld [vmem:[%s2959 + $0x28] sm:$0xf]
        %v2971 = vld [vmem:[%s2959 + $0x2c] sm:$0xf]
        %v2972 = vld [vmem:[%s2959 + $0x30] sm:$0xf]
        %v2973 = vld [vmem:[%s2959 + $0x34] sm:$0xf]
        %v2974 = vld [vmem:[%s2959 + $0x38] sm:$0xf]
        %v2975 = vld [vmem:[%s2959 + $0x3c] sm:$0xf]
        %v2976 = vld [vmem:[%s2959 + $0x40] sm:$0xf]
        %v2977 = vld [vmem:[%s2959 + $0x44] sm:$0xf]
        %v2978 = vld [vmem:[%s2959 + $0x48] sm:$0xf]
        %v2979 = vld [vmem:[%s2959 + $0x4c] sm:$0xf]
        %v2980 = vld [vmem:[%s2959 + $0x50] sm:$0xf]
        %v2981 = vld [vmem:[%s2959 + $0x54] sm:$0xf]
        %v2982 = vld [vmem:[%s2959 + $0x58] sm:$0xf]
        %v2983 = vld [vmem:[%s2959 + $0x5c] sm:$0xf]
        %v2984 = vld [vmem:[%s2959 + $0x60] sm:$0xf]
        %v2985 = vld [vmem:[%s2959 + $0x64] sm:$0xf]
        %v2986 = vld [vmem:[%s2959 + $0x68] sm:$0xf]
        %v2987 = vld [vmem:[%s2959 + $0x6c] sm:$0xf]
        %v2988 = vld [vmem:[%s2959 + $0x70] sm:$0xf]
        %v2989 = vld [vmem:[%s2959 + $0x74] sm:$0xf]
        %v2990 = vld [vmem:[%s2959 + $0x78] sm:$0xf]
        %v2991 = vld [vmem:[%s2959 + $0x7c] sm:$0xf]
        %v3024 = vunpack.c.l.b16 %v2960
        %v3025 = vunpack.c.l.b16 %v2961
        %v3026 = vunpack.c.l.b16 %v2962
        %v3027 = vunpack.c.l.b16 %v2963
        %v3028 = vunpack.c.l.b16 %v2964
        %v3029 = vunpack.c.l.b16 %v2965
        %v3030 = vunpack.c.l.b16 %v2966
        %v3031 = vunpack.c.l.b16 %v2967
        %v3032 = vunpack.c.l.b16 %v2968
        %v3033 = vunpack.c.l.b16 %v2969
        %v3034 = vunpack.c.l.b16 %v2970
        %v3035 = vunpack.c.l.b16 %v2971
        %v3036 = vunpack.c.l.b16 %v2972
        %v3037 = vunpack.c.l.b16 %v2973
        %v3038 = vunpack.c.l.b16 %v2974
        %v3039 = vunpack.c.l.b16 %v2975
        %v3040 = vunpack.c.l.b16 %v2976
        %v3041 = vunpack.c.l.b16 %v2977
        %v3042 = vunpack.c.l.b16 %v2978
        %v3043 = vunpack.c.l.b16 %v2979
        %v3044 = vunpack.c.l.b16 %v2980
        %v3045 = vunpack.c.l.b16 %v2981
        %v3046 = vunpack.c.l.b16 %v2982
        %v3047 = vunpack.c.l.b16 %v2983
        %v3048 = vunpack.c.l.b16 %v2984
        %v3049 = vunpack.c.l.b16 %v2985
        %v3050 = vunpack.c.l.b16 %v2986
        %v3051 = vunpack.c.l.b16 %v2987
        %v3052 = vunpack.c.l.b16 %v2988
        %v3053 = vunpack.c.l.b16 %v2989
        %v3054 = vunpack.c.l.b16 %v2990
        %v3055 = vunpack.c.l.b16 %v2991
        %v3056 = vpack.c.b16 %v3025, %v3024
        %v3057 = vpack.c.b16 %v3027, %v3026
        %v3058 = vpack.c.b16 %v3029, %v3028
        %v3059 = vpack.c.b16 %v3031, %v3030
        %v3060 = vpack.c.b16 %v3033, %v3032
        %v3061 = vpack.c.b16 %v3035, %v3034
        %v3062 = vpack.c.b16 %v3037, %v3036
        %v3063 = vpack.c.b16 %v3039, %v3038
        %v3064 = vpack.c.b16 %v3041, %v3040
        %v3065 = vpack.c.b16 %v3043, %v3042
        %v3066 = vpack.c.b16 %v3045, %v3044
        %v3067 = vpack.c.b16 %v3047, %v3046
        %v3068 = vpack.c.b16 %v3049, %v3048
        %v3069 = vpack.c.b16 %v3051, %v3050
        %v3070 = vpack.c.b16 %v3053, %v3052
        %v3071 = vpack.c.b16 %v3055, %v3054
        %3088 = vmatpush.bf16.msra.mxu0 %v3063
        %3089 = vmatpush.bf16.msra.mxu0 %v3062
        %3090 = vmatpush.bf16.msra.mxu0 %v3061
        %3091 = vmatpush.bf16.msra.mxu0 %v3060
        %3092 = vmatpush.bf16.msra.mxu0 %v3059
        %3093 = vmatpush.bf16.msra.mxu0 %v3058
        %3094 = vmatpush.bf16.msra.mxu0 %v3057
        %3095 = vmatpush.bf16.msra.mxu0 %v3056
        %3096 = vmatmul.bf16.gmra.mxu0 %v2213
        %v3097 = vpop.f32.mrf.mxu0
        %v3098 = vadd.f32 0.0, %v3097
        %v3099 = vpop.f32.mrf.mxu0
        %3100 = vdwg.mxu0
        %3101 = vmatpush.bf16.msra.mxu0 %v3071
        %3102 = vmatpush.bf16.msra.mxu0 %v3070
        %3103 = vmatpush.bf16.msra.mxu0 %v3069
        %3104 = vmatpush.bf16.msra.mxu0 %v3068
        %3105 = vmatpush.bf16.msra.mxu0 %v3067
        %3106 = vmatpush.bf16.msra.mxu0 %v3066
        %3107 = vmatpush.bf16.msra.mxu0 %v3065
        %3108 = vmatpush.bf16.msra.mxu0 %v3064
        %3109 = vmatmul.bf16.gmra.mxu0 %v2214
        %v3110 = vpop.f32.mrf.mxu0
        %v3111 = vadd.f32 %v3098, %v3110
        %v3112 = vpop.f32.mrf.mxu0
        %3113 = vdwg.mxu0
        %s3114 = scalar_lea.vmem %s3, 768
        %v3115 = vld [vmem:[%s3114] sm:$0xf]
        %v3116 = vld [vmem:[%s3114 + $0x4] sm:$0xf]
        %v3117 = vld [vmem:[%s3114 + $0x8] sm:$0xf]
        %v3118 = vld [vmem:[%s3114 + $0xc] sm:$0xf]
        %v3119 = vld [vmem:[%s3114 + $0x10] sm:$0xf]
        %v3120 = vld [vmem:[%s3114 + $0x14] sm:$0xf]
        %v3121 = vld [vmem:[%s3114 + $0x18] sm:$0xf]
        %v3122 = vld [vmem:[%s3114 + $0x1c] sm:$0xf]
        %v3123 = vld [vmem:[%s3114 + $0x20] sm:$0xf]
        %v3124 = vld [vmem:[%s3114 + $0x24] sm:$0xf]
        %v3125 = vld [vmem:[%s3114 + $0x28] sm:$0xf]
        %v3126 = vld [vmem:[%s3114 + $0x2c] sm:$0xf]
        %v3127 = vld [vmem:[%s3114 + $0x30] sm:$0xf]
        %v3128 = vld [vmem:[%s3114 + $0x34] sm:$0xf]
        %v3129 = vld [vmem:[%s3114 + $0x38] sm:$0xf]
        %v3130 = vld [vmem:[%s3114 + $0x3c] sm:$0xf]
        %v3131 = vld [vmem:[%s3114 + $0x40] sm:$0xf]
        %v3132 = vld [vmem:[%s3114 + $0x44] sm:$0xf]
        %v3133 = vld [vmem:[%s3114 + $0x48] sm:$0xf]
        %v3134 = vld [vmem:[%s3114 + $0x4c] sm:$0xf]
        %v3135 = vld [vmem:[%s3114 + $0x50] sm:$0xf]
        %v3136 = vld [vmem:[%s3114 + $0x54] sm:$0xf]
        %v3137 = vld [vmem:[%s3114 + $0x58] sm:$0xf]
        %v3138 = vld [vmem:[%s3114 + $0x5c] sm:$0xf]
        %v3139 = vld [vmem:[%s3114 + $0x60] sm:$0xf]
        %v3140 = vld [vmem:[%s3114 + $0x64] sm:$0xf]
        %v3141 = vld [vmem:[%s3114 + $0x68] sm:$0xf]
        %v3142 = vld [vmem:[%s3114 + $0x6c] sm:$0xf]
        %v3143 = vld [vmem:[%s3114 + $0x70] sm:$0xf]
        %v3144 = vld [vmem:[%s3114 + $0x74] sm:$0xf]
        %v3145 = vld [vmem:[%s3114 + $0x78] sm:$0xf]
        %v3146 = vld [vmem:[%s3114 + $0x7c] sm:$0xf]
        %v3179 = vunpack.c.l.b16 %v3115
        %v3180 = vunpack.c.l.b16 %v3116
        %v3181 = vunpack.c.l.b16 %v3117
        %v3182 = vunpack.c.l.b16 %v3118
        %v3183 = vunpack.c.l.b16 %v3119
        %v3184 = vunpack.c.l.b16 %v3120
        %v3185 = vunpack.c.l.b16 %v3121
        %v3186 = vunpack.c.l.b16 %v3122
        %v3187 = vunpack.c.l.b16 %v3123
        %v3188 = vunpack.c.l.b16 %v3124
        %v3189 = vunpack.c.l.b16 %v3125
        %v3190 = vunpack.c.l.b16 %v3126
        %v3191 = vunpack.c.l.b16 %v3127
        %v3192 = vunpack.c.l.b16 %v3128
        %v3193 = vunpack.c.l.b16 %v3129
        %v3194 = vunpack.c.l.b16 %v3130
        %v3195 = vunpack.c.l.b16 %v3131
        %v3196 = vunpack.c.l.b16 %v3132
        %v3197 = vunpack.c.l.b16 %v3133
        %v3198 = vunpack.c.l.b16 %v3134
        %v3199 = vunpack.c.l.b16 %v3135
        %v3200 = vunpack.c.l.b16 %v3136
        %v3201 = vunpack.c.l.b16 %v3137
        %v3202 = vunpack.c.l.b16 %v3138
        %v3203 = vunpack.c.l.b16 %v3139
        %v3204 = vunpack.c.l.b16 %v3140
        %v3205 = vunpack.c.l.b16 %v3141
        %v3206 = vunpack.c.l.b16 %v3142
        %v3207 = vunpack.c.l.b16 %v3143
        %v3208 = vunpack.c.l.b16 %v3144
        %v3209 = vunpack.c.l.b16 %v3145
        %v3210 = vunpack.c.l.b16 %v3146
        %v3211 = vpack.c.b16 %v3180, %v3179
        %v3212 = vpack.c.b16 %v3182, %v3181
        %v3213 = vpack.c.b16 %v3184, %v3183
        %v3214 = vpack.c.b16 %v3186, %v3185
        %v3215 = vpack.c.b16 %v3188, %v3187
        %v3216 = vpack.c.b16 %v3190, %v3189
        %v3217 = vpack.c.b16 %v3192, %v3191
        %v3218 = vpack.c.b16 %v3194, %v3193
        %v3219 = vpack.c.b16 %v3196, %v3195
        %v3220 = vpack.c.b16 %v3198, %v3197
        %v3221 = vpack.c.b16 %v3200, %v3199
        %v3222 = vpack.c.b16 %v3202, %v3201
        %v3223 = vpack.c.b16 %v3204, %v3203
        %v3224 = vpack.c.b16 %v3206, %v3205
        %v3225 = vpack.c.b16 %v3208, %v3207
        %v3226 = vpack.c.b16 %v3210, %v3209
        %3243 = vmatpush.bf16.msra.mxu0 %v3218
        %3244 = vmatpush.bf16.msra.mxu0 %v3217
        %3245 = vmatpush.bf16.msra.mxu0 %v3216
        %3246 = vmatpush.bf16.msra.mxu0 %v3215
        %3247 = vmatpush.bf16.msra.mxu0 %v3214
        %3248 = vmatpush.bf16.msra.mxu0 %v3213
        %3249 = vmatpush.bf16.msra.mxu0 %v3212
        %3250 = vmatpush.bf16.msra.mxu0 %v3211
        %3251 = vmatmul.bf16.gmra.mxu0 %v2213
        %v3252 = vpop.f32.mrf.mxu0
        %v3253 = vadd.f32 0.0, %v3252
        %v3254 = vpop.f32.mrf.mxu0
        %3255 = vdwg.mxu0
        %3256 = vmatpush.bf16.msra.mxu0 %v3226
        %3257 = vmatpush.bf16.msra.mxu0 %v3225
        %3258 = vmatpush.bf16.msra.mxu0 %v3224
        %3259 = vmatpush.bf16.msra.mxu0 %v3223
        %3260 = vmatpush.bf16.msra.mxu0 %v3222
        %3261 = vmatpush.bf16.msra.mxu0 %v3221
        %3262 = vmatpush.bf16.msra.mxu0 %v3220
        %3263 = vmatpush.bf16.msra.mxu0 %v3219
        %3264 = vmatmul.bf16.gmra.mxu0 %v2214
        %v3265 = vpop.f32.mrf.mxu0
        %v3266 = vadd.f32 %v3253, %v3265
        %v3267 = vpop.f32.mrf.mxu0
        %3268 = vdwg.mxu0
        %s3269 = scalar_lea.vmem %s3, 896
        %v3270 = vld [vmem:[%s3269] sm:$0xf]
        %v3271 = vld [vmem:[%s3269 + $0x4] sm:$0xf]
        %v3272 = vld [vmem:[%s3269 + $0x8] sm:$0xf]
        %v3273 = vld [vmem:[%s3269 + $0xc] sm:$0xf]
        %v3274 = vld [vmem:[%s3269 + $0x10] sm:$0xf]
        %v3275 = vld [vmem:[%s3269 + $0x14] sm:$0xf]
        %v3276 = vld [vmem:[%s3269 + $0x18] sm:$0xf]
        %v3277 = vld [vmem:[%s3269 + $0x1c] sm:$0xf]
        %v3278 = vld [vmem:[%s3269 + $0x20] sm:$0xf]
        %v3279 = vld [vmem:[%s3269 + $0x24] sm:$0xf]
        %v3280 = vld [vmem:[%s3269 + $0x28] sm:$0xf]
        %v3281 = vld [vmem:[%s3269 + $0x2c] sm:$0xf]
        %v3282 = vld [vmem:[%s3269 + $0x30] sm:$0xf]
        %v3283 = vld [vmem:[%s3269 + $0x34] sm:$0xf]
        %v3284 = vld [vmem:[%s3269 + $0x38] sm:$0xf]
        %v3285 = vld [vmem:[%s3269 + $0x3c] sm:$0xf]
        %v3286 = vld [vmem:[%s3269 + $0x40] sm:$0xf]
        %v3287 = vld [vmem:[%s3269 + $0x44] sm:$0xf]
        %v3288 = vld [vmem:[%s3269 + $0x48] sm:$0xf]
        %v3289 = vld [vmem:[%s3269 + $0x4c] sm:$0xf]
        %v3290 = vld [vmem:[%s3269 + $0x50] sm:$0xf]
        %v3291 = vld [vmem:[%s3269 + $0x54] sm:$0xf]
        %v3292 = vld [vmem:[%s3269 + $0x58] sm:$0xf]
        %v3293 = vld [vmem:[%s3269 + $0x5c] sm:$0xf]
        %v3294 = vld [vmem:[%s3269 + $0x60] sm:$0xf]
        %v3295 = vld [vmem:[%s3269 + $0x64] sm:$0xf]
        %v3296 = vld [vmem:[%s3269 + $0x68] sm:$0xf]
        %v3297 = vld [vmem:[%s3269 + $0x6c] sm:$0xf]
        %v3298 = vld [vmem:[%s3269 + $0x70] sm:$0xf]
        %v3299 = vld [vmem:[%s3269 + $0x74] sm:$0xf]
        %v3300 = vld [vmem:[%s3269 + $0x78] sm:$0xf]
        %v3301 = vld [vmem:[%s3269 + $0x7c] sm:$0xf]
        %v3334 = vunpack.c.l.b16 %v3270
        %v3335 = vunpack.c.l.b16 %v3271
        %v3336 = vunpack.c.l.b16 %v3272
        %v3337 = vunpack.c.l.b16 %v3273
        %v3338 = vunpack.c.l.b16 %v3274
        %v3339 = vunpack.c.l.b16 %v3275
        %v3340 = vunpack.c.l.b16 %v3276
        %v3341 = vunpack.c.l.b16 %v3277
        %v3342 = vunpack.c.l.b16 %v3278
        %v3343 = vunpack.c.l.b16 %v3279
        %v3344 = vunpack.c.l.b16 %v3280
        %v3345 = vunpack.c.l.b16 %v3281
        %v3346 = vunpack.c.l.b16 %v3282
        %v3347 = vunpack.c.l.b16 %v3283
        %v3348 = vunpack.c.l.b16 %v3284
        %v3349 = vunpack.c.l.b16 %v3285
        %v3350 = vunpack.c.l.b16 %v3286
        %v3351 = vunpack.c.l.b16 %v3287
        %v3352 = vunpack.c.l.b16 %v3288
        %v3353 = vunpack.c.l.b16 %v3289
        %v3354 = vunpack.c.l.b16 %v3290
        %v3355 = vunpack.c.l.b16 %v3291
        %v3356 = vunpack.c.l.b16 %v3292
        %v3357 = vunpack.c.l.b16 %v3293
        %v3358 = vunpack.c.l.b16 %v3294
        %v3359 = vunpack.c.l.b16 %v3295
        %v3360 = vunpack.c.l.b16 %v3296
        %v3361 = vunpack.c.l.b16 %v3297
        %v3362 = vunpack.c.l.b16 %v3298
        %v3363 = vunpack.c.l.b16 %v3299
        %v3364 = vunpack.c.l.b16 %v3300
        %v3365 = vunpack.c.l.b16 %v3301
        %v3366 = vpack.c.b16 %v3335, %v3334
        %v3367 = vpack.c.b16 %v3337, %v3336
        %v3368 = vpack.c.b16 %v3339, %v3338
        %v3369 = vpack.c.b16 %v3341, %v3340
        %v3370 = vpack.c.b16 %v3343, %v3342
        %v3371 = vpack.c.b16 %v3345, %v3344
        %v3372 = vpack.c.b16 %v3347, %v3346
        %v3373 = vpack.c.b16 %v3349, %v3348
        %v3374 = vpack.c.b16 %v3351, %v3350
        %v3375 = vpack.c.b16 %v3353, %v3352
        %v3376 = vpack.c.b16 %v3355, %v3354
        %v3377 = vpack.c.b16 %v3357, %v3356
        %v3378 = vpack.c.b16 %v3359, %v3358
        %v3379 = vpack.c.b16 %v3361, %v3360
        %v3380 = vpack.c.b16 %v3363, %v3362
        %v3381 = vpack.c.b16 %v3365, %v3364
        %3398 = vmatpush.bf16.msra.mxu0 %v3373
        %3399 = vmatpush.bf16.msra.mxu0 %v3372
        %3400 = vmatpush.bf16.msra.mxu0 %v3371
        %3401 = vmatpush.bf16.msra.mxu0 %v3370
        %3402 = vmatpush.bf16.msra.mxu0 %v3369
        %3403 = vmatpush.bf16.msra.mxu0 %v3368
        %3404 = vmatpush.bf16.msra.mxu0 %v3367
        %3405 = vmatpush.bf16.msra.mxu0 %v3366
        %3406 = vmatmul.bf16.gmra.mxu0 %v2213
        %v3407 = vpop.f32.mrf.mxu0
        %v3408 = vadd.f32 0.0, %v3407
        %v3409 = vpop.f32.mrf.mxu0
        %3410 = vdwg.mxu0
        %3411 = vmatpush.bf16.msra.mxu0 %v3381
        %3412 = vmatpush.bf16.msra.mxu0 %v3380
        %3413 = vmatpush.bf16.msra.mxu0 %v3379
        %3414 = vmatpush.bf16.msra.mxu0 %v3378
        %3415 = vmatpush.bf16.msra.mxu0 %v3377
        %3416 = vmatpush.bf16.msra.mxu0 %v3376
        %3417 = vmatpush.bf16.msra.mxu0 %v3375
        %3418 = vmatpush.bf16.msra.mxu0 %v3374
        %3419 = vmatmul.bf16.gmra.mxu0 %v2214
        %v3420 = vpop.f32.mrf.mxu0
        %v3421 = vadd.f32 %v3408, %v3420
        %v3422 = vpop.f32.mrf.mxu0
        %3423 = vdwg.mxu0
        %v3424 = vld [vmem:[%s4] sm:$0xff]
        %v3425 = vld [vmem:[%s4 + $0x8] sm:$0xff]
        %v3426 = vld [vmem:[%s4 + $0x10] sm:$0xff]
        %v3427 = vld [vmem:[%s4 + $0x18] sm:$0xff]
        %v3428 = vld [vmem:[%s4 + $0x20] sm:$0xff]
        %v3429 = vld [vmem:[%s4 + $0x28] sm:$0xff]
        %v3430 = vld [vmem:[%s4 + $0x30] sm:$0xff]
        %v3431 = vld [vmem:[%s4 + $0x38] sm:$0xff]
        %v3432 = vld [vmem:[%s4 + $0x40] sm:$0xff]
        %v3433 = vld [vmem:[%s4 + $0x48] sm:$0xff]
        %vm3434 = vcmask 523264
        %v3436 = vsel %vm3434, %v3424, 0
        %v3439 = vsel %vm3434, %v3425, 0
        %v3442 = vsel %vm3434, %v3426, 0
        %v3445 = vsel %vm3434, %v3427, 0
        %v3448 = vsel %vm3434, %v3428, 0
        %v3451 = vsel %vm3434, %v3429, 0
        %v3454 = vsel %vm3434, %v3430, 0
        %v3457 = vsel %vm3434, %v3431, 0
        %v3460 = vsel %vm3434, %v3432, 0
        %v3463 = vsel %vm3434, %v3433, 0
        %3465 = vmatpush.msra.mxu0 0.0
        %3466 = vmatpush.msra.mxu0 0.0
        %3467 = vmatpush.msra.mxu0 0.0
        %3468 = vmatpush.msra.mxu0 0.0
        %3469 = vmatpush.msra.mxu0 0.0
        %3470 = vmatpush.msra.mxu0 0.0
        %3471 = vmatpush.msra.mxu0 0.0
        %3472 = vmatpush.msra.mxu0 0.0
        %3473 = vmatpush.msra.mxu0 %v3421
        %3474 = vmatpush.msra.mxu0 %v3266
        %3475 = vmatpush.msra.mxu0 %v3111
        %3476 = vmatpush.msra.mxu0 %v2956
        %3477 = vmatpush.msra.mxu0 %v2801
        %3478 = vmatpush.msra.mxu0 %v2646
        %3479 = vmatpush.msra.mxu0 %v2491
        %3480 = vmatpush.msra.mxu0 %v2336
        %3481 = vmatmul.f32.gmra.mxu0 %v3436
        %v3482 = vpop.f32.mrf.mxu0
        %v3483 = vadd.f32 0.0, %v3482
        %3484 = vmatmul.f32.gmra.mxu0 %v3439
        %v3485 = vpop.f32.mrf.mxu0
        %v3486 = vadd.f32 0.0, %v3485
        %3487 = vmatmul.f32.gmra.mxu0 %v3442
        %v3488 = vpop.f32.mrf.mxu0
        %v3489 = vadd.f32 0.0, %v3488
        %3490 = vmatmul.f32.gmra.mxu0 %v3445
        %v3491 = vpop.f32.mrf.mxu0
        %v3492 = vadd.f32 0.0, %v3491
        %3493 = vmatmul.f32.gmra.mxu0 %v3448
        %v3494 = vpop.f32.mrf.mxu0
        %v3495 = vadd.f32 0.0, %v3494
        %3496 = vmatmul.f32.gmra.mxu0 %v3451
        %v3497 = vpop.f32.mrf.mxu0
        %v3498 = vadd.f32 0.0, %v3497
        %3499 = vmatmul.f32.gmra.mxu0 %v3454
        %v3500 = vpop.f32.mrf.mxu0
        %v3501 = vadd.f32 0.0, %v3500
        %3502 = vmatmul.f32.gmra.mxu0 %v3457
        %v3503 = vpop.f32.mrf.mxu0
        %v3504 = vadd.f32 0.0, %v3503
        %3505 = vmatmul.f32.gmra.mxu0 %v3460
        %v3506 = vpop.f32.mrf.mxu0
        %v3507 = vadd.f32 0.0, %v3506
        %3508 = vmatmul.f32.gmra.mxu0 %v3463
        %v3509 = vpop.f32.mrf.mxu0
        %v3510 = vadd.f32 0.0, %v3509
        %3511 = vdwg.mxu0
        %v3512 = vld [vmem:[%s5] sm:$0xff]
        %v3513 = vld [vmem:[%s5 + $0x8] sm:$0xff]
        %v3514 = vld [vmem:[%s5 + $0x10] sm:$0xff]
        %v3515 = vld [vmem:[%s5 + $0x18] sm:$0xff]
        %v3516 = vld [vmem:[%s5 + $0x20] sm:$0xff]
        %v3517 = vld [vmem:[%s5 + $0x28] sm:$0xff]
        %v3518 = vld [vmem:[%s5 + $0x30] sm:$0xff]
        %v3519 = vld [vmem:[%s5 + $0x38] sm:$0xff]
        %v3520 = vld [vmem:[%s5 + $0x40] sm:$0xff]
        %v3521 = vld [vmem:[%s5 + $0x48] sm:$0xff]
        %v3522 = vpack.c.bf16 %v3486, %v3483
        %v3523 = vpack.c.bf16 %v3492, %v3489
        %v3524 = vpack.c.bf16 %v3498, %v3495
        %v3525 = vpack.c.bf16 %v3504, %v3501
        %v3526 = vpack.c.bf16 %v3510, %v3507
        %v3527 = vld [vmem:[%s6] sm:$0xff]
        %v3528 = vld [vmem:[%s6 + $0x8] sm:$0xff]
        %v3529 = vld [vmem:[%s6 + $0x10] sm:$0xff]
        %v3530 = vld [vmem:[%s6 + $0x18] sm:$0xff]
        %v3531 = vld [vmem:[%s6 + $0x20] sm:$0xff]
        %v3532 = vld [vmem:[%s6 + $0x28] sm:$0xff]
        %v3533 = vld [vmem:[%s6 + $0x30] sm:$0xff]
        %v3534 = vld [vmem:[%s6 + $0x38] sm:$0xff]
        %v3535 = vld [vmem:[%s6 + $0x40] sm:$0xff]
        %v3536 = vld [vmem:[%s6 + $0x48] sm:$0xff]
        %v3537 = vld [vmem:[%s6 + $0x50] sm:$0xff]
        %v3538 = vld [vmem:[%s6 + $0x58] sm:$0xff]
        %v3551 = vunpack.c.l.b16 %v3527
        %v3552 = vunpack.c.h.b16 %v3527
        %v3553 = vunpack.c.l.b16 %v3528
        %v3554 = vunpack.c.h.b16 %v3528
        %v3555 = vunpack.c.l.b16 %v3529
        %v3556 = vunpack.c.h.b16 %v3529
        %v3557 = vunpack.c.l.b16 %v3530
        %v3558 = vunpack.c.h.b16 %v3530
        %v3559 = vunpack.c.l.b16 %v3531
        %v3560 = vunpack.c.h.b16 %v3531
        %v3561 = vunpack.c.l.b16 %v3532
        %v3562 = vunpack.c.h.b16 %v3532
        %v3563 = vunpack.c.l.b16 %v3533
        %v3564 = vunpack.c.h.b16 %v3533
        %v3565 = vunpack.c.l.b16 %v3534
        %v3566 = vunpack.c.h.b16 %v3534
        %v3567 = vunpack.c.l.b16 %v3535
        %v3568 = vunpack.c.h.b16 %v3535
        %v3569 = vunpack.c.l.b16 %v3536
        %v3570 = vunpack.c.h.b16 %v3536
        %v3571 = vunpack.c.l.b16 %v3537
        %v3572 = vunpack.c.h.b16 %v3537
        %v3573 = vunpack.c.l.b16 %v3538
        %v3574 = vunpack.c.h.b16 %v3538
        %v3575 = vpack.c.b16 %v3557, %v3551
        %v3576 = vpack.c.b16 %v3558, %v3552
        %v3577 = vpack.c.b16 %v3559, %v3553
        %v3578 = vpack.c.b16 %v3560, %v3554
        %v3579 = vpack.c.b16 %v3561, %v3555
        %v3580 = vpack.c.b16 %v3562, %v3556
        %v3581 = vpack.c.b16 %v3569, %v3563
        %v3582 = vpack.c.b16 %v3570, %v3564
        %v3583 = vpack.c.b16 %v3571, %v3565
        %v3584 = vpack.c.b16 %v3572, %v3566
        %v3585 = vpack.c.b16 %v3573, %v3567
        %v3586 = vpack.c.b16 %v3574, %v3568
        %vm3599 = vcmask 261120
        %v3601 = vsel %vm3599, %v3522, 0
        %v3604 = vsel %vm3599, %v3523, 0
        %v3607 = vsel %vm3599, %v3524, 0
        %v3610 = vsel %vm3599, %v3525, 0
        %v3613 = vsel %vm3599, %v3526, 0
        %3615 = vmatpush.bf16.msra.mxu0 0
        %3616 = vmatpush.bf16.msra.mxu0 0
        %3617 = vmatpush.bf16.msra.mxu0 0
        %3618 = vmatpush.bf16.msra.mxu0 0
        %3619 = vmatpush.bf16.msra.mxu0 0
        %3620 = vmatpush.bf16.msra.mxu0 0
        %3621 = vmatpush.bf16.msra.mxu0 %v3581
        %3622 = vmatpush.bf16.msra.mxu0 %v3575
        %3623 = vmatmul.bf16.gmra.mxu0 %v3601
        %v3624 = vpop.f32.mrf.mxu0
        %v3625 = vadd.f32 0.0, %v3624
        %v3626 = vpop.f32.mrf.mxu0
        %v3627 = vadd.f32 0.0, %v3626
        %3628 = vmatmul.bf16.gmra.mxu0 %v3604
        %v3629 = vpop.f32.mrf.mxu0
        %v3630 = vadd.f32 0.0, %v3629
        %v3631 = vpop.f32.mrf.mxu0
        %v3632 = vadd.f32 0.0, %v3631
        %3633 = vmatmul.bf16.gmra.mxu0 %v3607
        %v3634 = vpop.f32.mrf.mxu0
        %v3635 = vadd.f32 0.0, %v3634
        %v3636 = vpop.f32.mrf.mxu0
        %v3637 = vadd.f32 0.0, %v3636
        %3638 = vmatmul.bf16.gmra.mxu0 %v3610
        %v3639 = vpop.f32.mrf.mxu0
        %v3640 = vadd.f32 0.0, %v3639
        %v3641 = vpop.f32.mrf.mxu0
        %v3642 = vadd.f32 0.0, %v3641
        %3643 = vmatmul.bf16.gmra.mxu0 %v3613
        %v3644 = vpop.f32.mrf.mxu0
        %v3645 = vadd.f32 0.0, %v3644
        %v3646 = vpop.f32.mrf.mxu0
        %v3647 = vadd.f32 0.0, %v3646
        %3648 = vdwg.mxu0
        %3649 = vmatpush.bf16.msra.mxu0 0
        %3650 = vmatpush.bf16.msra.mxu0 0
        %3651 = vmatpush.bf16.msra.mxu0 0
        %3652 = vmatpush.bf16.msra.mxu0 0
        %3653 = vmatpush.bf16.msra.mxu0 0
        %3654 = vmatpush.bf16.msra.mxu0 0
        %3655 = vmatpush.bf16.msra.mxu0 %v3582
        %3656 = vmatpush.bf16.msra.mxu0 %v3576
        %3657 = vmatmul.bf16.gmra.mxu0 %v3601
        %v3658 = vpop.f32.mrf.mxu0
        %v3659 = vadd.f32 0.0, %v3658
        %v3660 = vpop.f32.mrf.mxu0
        %v3661 = vadd.f32 0.0, %v3660
        %3662 = vmatmul.bf16.gmra.mxu0 %v3604
        %v3663 = vpop.f32.mrf.mxu0
        %v3664 = vadd.f32 0.0, %v3663
        %v3665 = vpop.f32.mrf.mxu0
        %v3666 = vadd.f32 0.0, %v3665
        %3667 = vmatmul.bf16.gmra.mxu0 %v3607
        %v3668 = vpop.f32.mrf.mxu0
        %v3669 = vadd.f32 0.0, %v3668
        %v3670 = vpop.f32.mrf.mxu0
        %v3671 = vadd.f32 0.0, %v3670
        %3672 = vmatmul.bf16.gmra.mxu0 %v3610
        %v3673 = vpop.f32.mrf.mxu0
        %v3674 = vadd.f32 0.0, %v3673
        %v3675 = vpop.f32.mrf.mxu0
        %v3676 = vadd.f32 0.0, %v3675
        %3677 = vmatmul.bf16.gmra.mxu0 %v3613
        %v3678 = vpop.f32.mrf.mxu0
        %v3679 = vadd.f32 0.0, %v3678
        %v3680 = vpop.f32.mrf.mxu0
        %v3681 = vadd.f32 0.0, %v3680
        %3682 = vdwg.mxu0
        %3683 = vmatpush.bf16.msra.mxu0 0
        %3684 = vmatpush.bf16.msra.mxu0 0
        %3685 = vmatpush.bf16.msra.mxu0 0
        %3686 = vmatpush.bf16.msra.mxu0 0
        %3687 = vmatpush.bf16.msra.mxu0 0
        %3688 = vmatpush.bf16.msra.mxu0 0
        %3689 = vmatpush.bf16.msra.mxu0 %v3583
        %3690 = vmatpush.bf16.msra.mxu0 %v3577
        %3691 = vmatmul.bf16.gmra.mxu0 %v3601
        %v3692 = vpop.f32.mrf.mxu0
        %v3693 = vadd.f32 0.0, %v3692
        %v3694 = vpop.f32.mrf.mxu0
        %v3695 = vadd.f32 0.0, %v3694
        %3696 = vmatmul.bf16.gmra.mxu0 %v3604
        %v3697 = vpop.f32.mrf.mxu0
        %v3698 = vadd.f32 0.0, %v3697
        %v3699 = vpop.f32.mrf.mxu0
        %v3700 = vadd.f32 0.0, %v3699
        %3701 = vmatmul.bf16.gmra.mxu0 %v3607
        %v3702 = vpop.f32.mrf.mxu0
        %v3703 = vadd.f32 0.0, %v3702
        %v3704 = vpop.f32.mrf.mxu0
        %v3705 = vadd.f32 0.0, %v3704
        %3706 = vmatmul.bf16.gmra.mxu0 %v3610
        %v3707 = vpop.f32.mrf.mxu0
        %v3708 = vadd.f32 0.0, %v3707
        %v3709 = vpop.f32.mrf.mxu0
        %v3710 = vadd.f32 0.0, %v3709
        %3711 = vmatmul.bf16.gmra.mxu0 %v3613
        %v3712 = vpop.f32.mrf.mxu0
        %v3713 = vadd.f32 0.0, %v3712
        %v3714 = vpop.f32.mrf.mxu0
        %v3715 = vadd.f32 0.0, %v3714
        %3716 = vdwg.mxu0
        %3717 = vmatpush.bf16.msra.mxu0 0
        %3718 = vmatpush.bf16.msra.mxu0 0
        %3719 = vmatpush.bf16.msra.mxu0 0
        %3720 = vmatpush.bf16.msra.mxu0 0
        %3721 = vmatpush.bf16.msra.mxu0 0
        %3722 = vmatpush.bf16.msra.mxu0 0
        %3723 = vmatpush.bf16.msra.mxu0 %v3584
        %3724 = vmatpush.bf16.msra.mxu0 %v3578
        %3725 = vmatmul.bf16.gmra.mxu0 %v3601
        %v3726 = vpop.f32.mrf.mxu0
        %v3727 = vadd.f32 0.0, %v3726
        %v3728 = vpop.f32.mrf.mxu0
        %v3729 = vadd.f32 0.0, %v3728
        %3730 = vmatmul.bf16.gmra.mxu0 %v3604
        %v3731 = vpop.f32.mrf.mxu0
        %v3732 = vadd.f32 0.0, %v3731
        %v3733 = vpop.f32.mrf.mxu0
        %v3734 = vadd.f32 0.0, %v3733
        %3735 = vmatmul.bf16.gmra.mxu0 %v3607
        %v3736 = vpop.f32.mrf.mxu0
        %v3737 = vadd.f32 0.0, %v3736
        %v3738 = vpop.f32.mrf.mxu0
        %v3739 = vadd.f32 0.0, %v3738
        %3740 = vmatmul.bf16.gmra.mxu0 %v3610
        %v3741 = vpop.f32.mrf.mxu0
        %v3742 = vadd.f32 0.0, %v3741
        %v3743 = vpop.f32.mrf.mxu0
        %v3744 = vadd.f32 0.0, %v3743
        %3745 = vmatmul.bf16.gmra.mxu0 %v3613
        %v3746 = vpop.f32.mrf.mxu0
        %v3747 = vadd.f32 0.0, %v3746
        %v3748 = vpop.f32.mrf.mxu0
        %v3749 = vadd.f32 0.0, %v3748
        %3750 = vdwg.mxu0
        %3751 = vmatpush.bf16.msra.mxu0 0
        %3752 = vmatpush.bf16.msra.mxu0 0
        %3753 = vmatpush.bf16.msra.mxu0 0
        %3754 = vmatpush.bf16.msra.mxu0 0
        %3755 = vmatpush.bf16.msra.mxu0 0
        %3756 = vmatpush.bf16.msra.mxu0 0
        %3757 = vmatpush.bf16.msra.mxu0 %v3585
        %3758 = vmatpush.bf16.msra.mxu0 %v3579
        %3759 = vmatmul.bf16.gmra.mxu0 %v3601
        %v3760 = vpop.f32.mrf.mxu0
        %v3761 = vadd.f32 0.0, %v3760
        %v3762 = vpop.f32.mrf.mxu0
        %v3763 = vadd.f32 0.0, %v3762
        %3764 = vmatmul.bf16.gmra.mxu0 %v3604
        %v3765 = vpop.f32.mrf.mxu0
        %v3766 = vadd.f32 0.0, %v3765
        %v3767 = vpop.f32.mrf.mxu0
        %v3768 = vadd.f32 0.0, %v3767
        %3769 = vmatmul.bf16.gmra.mxu0 %v3607
        %v3770 = vpop.f32.mrf.mxu0
        %v3771 = vadd.f32 0.0, %v3770
        %v3772 = vpop.f32.mrf.mxu0
        %v3773 = vadd.f32 0.0, %v3772
        %3774 = vmatmul.bf16.gmra.mxu0 %v3610
        %v3775 = vpop.f32.mrf.mxu0
        %v3776 = vadd.f32 0.0, %v3775
        %v3777 = vpop.f32.mrf.mxu0
        %v3778 = vadd.f32 0.0, %v3777
        %3779 = vmatmul.bf16.gmra.mxu0 %v3613
        %v3780 = vpop.f32.mrf.mxu0
        %v3781 = vadd.f32 0.0, %v3780
        %v3782 = vpop.f32.mrf.mxu0
        %v3783 = vadd.f32 0.0, %v3782
        %3784 = vdwg.mxu0
        %3785 = vmatpush.bf16.msra.mxu0 0
        %3786 = vmatpush.bf16.msra.mxu0 0
        %3787 = vmatpush.bf16.msra.mxu0 0
        %3788 = vmatpush.bf16.msra.mxu0 0
        %3789 = vmatpush.bf16.msra.mxu0 0
        %3790 = vmatpush.bf16.msra.mxu0 0
        %3791 = vmatpush.bf16.msra.mxu0 %v3586
        %3792 = vmatpush.bf16.msra.mxu0 %v3580
        %3793 = vmatmul.bf16.gmra.mxu0 %v3601
        %v3794 = vpop.f32.mrf.mxu0
        %v3795 = vadd.f32 0.0, %v3794
        %v3796 = vpop.f32.mrf.mxu0
        %v3797 = vadd.f32 0.0, %v3796
        %3798 = vmatmul.bf16.gmra.mxu0 %v3604
        %v3799 = vpop.f32.mrf.mxu0
        %v3800 = vadd.f32 0.0, %v3799
        %v3801 = vpop.f32.mrf.mxu0
        %v3802 = vadd.f32 0.0, %v3801
        %3803 = vmatmul.bf16.gmra.mxu0 %v3607
        %v3804 = vpop.f32.mrf.mxu0
        %v3805 = vadd.f32 0.0, %v3804
        %v3806 = vpop.f32.mrf.mxu0
        %v3807 = vadd.f32 0.0, %v3806
        %3808 = vmatmul.bf16.gmra.mxu0 %v3610
        %v3809 = vpop.f32.mrf.mxu0
        %v3810 = vadd.f32 0.0, %v3809
        %v3811 = vpop.f32.mrf.mxu0
        %v3812 = vadd.f32 0.0, %v3811
        %3813 = vmatmul.bf16.gmra.mxu0 %v3613
        %v3814 = vpop.f32.mrf.mxu0
        %v3815 = vadd.f32 0.0, %v3814
        %v3816 = vpop.f32.mrf.mxu0
        %v3817 = vadd.f32 0.0, %v3816
        %3818 = vdwg.mxu0
        %vm3839 = vcmask 1046528
        %v3840 = vrot.slane %v3625, 1
        %v3841 = vrot.slane %v3627, 1
        %v3842 = vsel %vm3839, %v3840, %v3841
        %v3843 = vrot.slane %v3659, 1
        %v3844 = vrot.slane %v3661, 1
        %v3845 = vsel %vm3839, %v3843, %v3844
        %v3846 = vrot.slane %v3630, 1
        %v3847 = vsel %vm3839, %v3841, %v3846
        %v3848 = vrot.slane %v3664, 1
        %v3849 = vsel %vm3839, %v3844, %v3848
        %v3850 = vrot.slane %v3632, 1
        %v3851 = vsel %vm3839, %v3846, %v3850
        %v3852 = vrot.slane %v3666, 1
        %v3853 = vsel %vm3839, %v3848, %v3852
        %v3854 = vrot.slane %v3635, 1
        %v3855 = vsel %vm3839, %v3850, %v3854
        %v3856 = vrot.slane %v3669, 1
        %v3857 = vsel %vm3839, %v3852, %v3856
        %v3858 = vrot.slane %v3637, 1
        %v3859 = vsel %vm3839, %v3854, %v3858
        %v3860 = vrot.slane %v3671, 1
        %v3861 = vsel %vm3839, %v3856, %v3860
        %v3862 = vrot.slane %v3640, 1
        %v3863 = vsel %vm3839, %v3858, %v3862
        %v3864 = vrot.slane %v3674, 1
        %v3865 = vsel %vm3839, %v3860, %v3864
        %v3866 = vrot.slane %v3642, 1
        %v3867 = vsel %vm3839, %v3862, %v3866
        %v3868 = vrot.slane %v3676, 1
        %v3869 = vsel %vm3839, %v3864, %v3868
        %v3870 = vrot.slane %v3645, 1
        %v3871 = vsel %vm3839, %v3866, %v3870
        %v3872 = vrot.slane %v3679, 1
        %v3873 = vsel %vm3839, %v3868, %v3872
        %v3874 = vrot.slane %v3647, 1
        %v3875 = vsel %vm3839, %v3870, %v3874
        %v3876 = vrot.slane %v3681, 1
        %v3877 = vsel %vm3839, %v3872, %v3876
        %v3898 = vsel %vm3839, %v3874, 0.0
        %v3899 = vsel %vm3839, %v3876, 0.0
        %v3900 = vadd.f32 %v3842, %v3693
        %v3901 = vadd.f32 %v3845, %v3727
        %v3902 = vadd.f32 %v3847, %v3695
        %v3903 = vadd.f32 %v3849, %v3729
        %v3904 = vadd.f32 %v3851, %v3698
        %v3905 = vadd.f32 %v3853, %v3732
        %v3906 = vadd.f32 %v3855, %v3700
        %v3907 = vadd.f32 %v3857, %v3734
        %v3908 = vadd.f32 %v3859, %v3703
        %v3909 = vadd.f32 %v3861, %v3737
        %v3910 = vadd.f32 %v3863, %v3705
        %v3911 = vadd.f32 %v3865, %v3739
        %v3912 = vadd.f32 %v3867, %v3708
        %v3913 = vadd.f32 %v3869, %v3742
        %v3914 = vadd.f32 %v3871, %v3710
        %v3915 = vadd.f32 %v3873, %v3744
        %v3916 = vadd.f32 %v3875, %v3713
        %v3917 = vadd.f32 %v3877, %v3747
        %v3918 = vadd.f32 %v3898, %v3715
        %v3919 = vadd.f32 %v3899, %v3749
        %vm3940 = vcmask 1040384
        %v3941 = vrot.slane %v3761, 7
        %v3942 = vrot.slane %v3795, 7
        %v3943 = vrot.slane %v3763, 7
        %v3944 = vsel %vm3940, %v3941, %v3943
        %v3945 = vrot.slane %v3797, 7
        %v3946 = vsel %vm3940, %v3942, %v3945
        %v3947 = vrot.slane %v3766, 7
        %v3948 = vsel %vm3940, %v3943, %v3947
        %v3949 = vrot.slane %v3800, 7
        %v3950 = vsel %vm3940, %v3945, %v3949
        %v3951 = vrot.slane %v3768, 7
        %v3952 = vsel %vm3940, %v3947, %v3951
        %v3953 = vrot.slane %v3802, 7
        %v3954 = vsel %vm3940, %v3949, %v3953
        %v3955 = vrot.slane %v3771, 7
        %v3956 = vsel %vm3940, %v3951, %v3955
        %v3957 = vrot.slane %v3805, 7
        %v3958 = vsel %vm3940, %v3953, %v3957
        %v3959 = vrot.slane %v3773, 7
        %v3960 = vsel %vm3940, %v3955, %v3959
        %v3961 = vrot.slane %v3807, 7
        %v3962 = vsel %vm3940, %v3957, %v3961
        %v3963 = vrot.slane %v3776, 7
        %v3964 = vsel %vm3940, %v3959, %v3963
        %v3965 = vrot.slane %v3810, 7
        %v3966 = vsel %vm3940, %v3961, %v3965
        %v3967 = vrot.slane %v3778, 7
        %v3968 = vsel %vm3940, %v3963, %v3967
        %v3969 = vrot.slane %v3812, 7
        %v3970 = vsel %vm3940, %v3965, %v3969
        %v3971 = vrot.slane %v3781, 7
        %v3972 = vsel %vm3940, %v3967, %v3971
        %v3973 = vrot.slane %v3815, 7
        %v3974 = vsel %vm3940, %v3969, %v3973
        %v3975 = vrot.slane %v3783, 7
        %v3976 = vsel %vm3940, %v3971, %v3975
        %v3977 = vrot.slane %v3817, 7
        %v3978 = vsel %vm3940, %v3973, %v3977
        %v3999 = vsel %vm3940, 0.0, %v3941
        %v4000 = vsel %vm3940, 0.0, %v3942
        %v4001 = vadd.f32 %v3900, %v3999
        %v4002 = vadd.f32 %v3901, %v4000
        %v4003 = vadd.f32 %v3902, %v3944
        %v4004 = vadd.f32 %v3903, %v3946
        %v4005 = vadd.f32 %v3904, %v3948
        %v4006 = vadd.f32 %v3905, %v3950
        %v4007 = vadd.f32 %v3906, %v3952
        %v4008 = vadd.f32 %v3907, %v3954
        %v4009 = vadd.f32 %v3908, %v3956
        %v4010 = vadd.f32 %v3909, %v3958
        %v4011 = vadd.f32 %v3910, %v3960
        %v4012 = vadd.f32 %v3911, %v3962
        %v4013 = vadd.f32 %v3912, %v3964
        %v4014 = vadd.f32 %v3913, %v3966
        %v4015 = vadd.f32 %v3914, %v3968
        %v4016 = vadd.f32 %v3915, %v3970
        %v4017 = vadd.f32 %v3916, %v3972
        %v4018 = vadd.f32 %v3917, %v3974
        %v4019 = vadd.f32 %v3918, %v3976
        %v4020 = vadd.f32 %v3919, %v3978
        %v4021 = vld [vmem:[#allocation8] sm:$0xf]
        %v4023 = vperm.slane %v4021, 0
        %v4024 = vperm.slane %v4021, 2
        %v4027 = vperm.slane %v4023, 0
        %v4028 = vperm.slane %v4024, 0
        %v4029 = vmul.f32 %v4001, %v4027
        %v4030 = vmul.f32 %v4002, %v4028
        %v4031 = vmul.f32 %v4003, %v4027
        %v4032 = vmul.f32 %v4004, %v4028
        %v4033 = vmul.f32 %v4005, %v4027
        %v4034 = vmul.f32 %v4006, %v4028
        %v4035 = vmul.f32 %v4007, %v4027
        %v4036 = vmul.f32 %v4008, %v4028
        %v4037 = vmul.f32 %v4009, %v4027
        %v4038 = vmul.f32 %v4010, %v4028
        %v4039 = vmul.f32 %v4011, %v4027
        %v4040 = vmul.f32 %v4012, %v4028
        %v4041 = vmul.f32 %v4013, %v4027
        %v4042 = vmul.f32 %v4014, %v4028
        %v4043 = vmul.f32 %v4015, %v4027
        %v4044 = vmul.f32 %v4016, %v4028
        %v4045 = vmul.f32 %v4017, %v4027
        %v4046 = vmul.f32 %v4018, %v4028
        %v4047 = vmul.f32 %v4019, %v4027
        %v4048 = vmul.f32 %v4020, %v4028
        %v4049 = vperm.slane %v4021, 1
        %v4050 = vperm.slane %v4021, 3
        %v4053 = vperm.slane %v4049, 1
        %v4054 = vperm.slane %v4050, 1
        %v4055 = vadd.f32 %v4029, %v4053
        %v4056 = vadd.f32 %v4030, %v4054
        %v4057 = vadd.f32 %v4031, %v4053
        %v4058 = vadd.f32 %v4032, %v4054
        %v4059 = vadd.f32 %v4033, %v4053
        %v4060 = vadd.f32 %v4034, %v4054
        %v4061 = vadd.f32 %v4035, %v4053
        %v4062 = vadd.f32 %v4036, %v4054
        %v4063 = vadd.f32 %v4037, %v4053
        %v4064 = vadd.f32 %v4038, %v4054
        %v4065 = vadd.f32 %v4039, %v4053
        %v4066 = vadd.f32 %v4040, %v4054
        %v4067 = vadd.f32 %v4041, %v4053
        %v4068 = vadd.f32 %v4042, %v4054
        %v4069 = vadd.f32 %v4043, %v4053
        %v4070 = vadd.f32 %v4044, %v4054
        %v4071 = vadd.f32 %v4045, %v4053
        %v4072 = vadd.f32 %v4046, %v4054
        %v4073 = vadd.f32 %v4047, %v4053
        %v4074 = vadd.f32 %v4048, %v4054
        %4076 = vset.pattern.permute.xlu0 0
        %4077 = vperm.xlu0 %4076, %v3512
        %v4078 = vpop.permute.xlu0 %4077
        %4081 = vset.pattern.permute.xlu0 0
        %4082 = vperm.xlu0 %4081, %v3513
        %v4083 = vpop.permute.xlu0 %4082
        %4086 = vset.pattern.permute.xlu0 0
        %4087 = vperm.xlu0 %4086, %v3514
        %v4088 = vpop.permute.xlu0 %4087
        %4091 = vset.pattern.permute.xlu0 0
        %4092 = vperm.xlu0 %4091, %v3515
        %v4093 = vpop.permute.xlu0 %4092
        %4096 = vset.pattern.permute.xlu0 0
        %4097 = vperm.xlu0 %4096, %v3516
        %v4098 = vpop.permute.xlu0 %4097
        %4101 = vset.pattern.permute.xlu0 0
        %4102 = vperm.xlu0 %4101, %v3517
        %v4103 = vpop.permute.xlu0 %4102
        %4106 = vset.pattern.permute.xlu0 0
        %4107 = vperm.xlu0 %4106, %v3518
        %v4108 = vpop.permute.xlu0 %4107
        %4111 = vset.pattern.permute.xlu0 0
        %4112 = vperm.xlu0 %4111, %v3519
        %v4113 = vpop.permute.xlu0 %4112
        %4116 = vset.pattern.permute.xlu0 0
        %4117 = vperm.xlu0 %4116, %v3520
        %v4118 = vpop.permute.xlu0 %4117
        %4121 = vset.pattern.permute.xlu0 0
        %4122 = vperm.xlu0 %4121, %v3521
        %v4123 = vpop.permute.xlu0 %4122
        %v4125 = vmul.f32 %v4055, %v4078
        %v4126 = vmul.f32 %v4056, %v4078
        %v4127 = vmul.f32 %v4057, %v4083
        %v4128 = vmul.f32 %v4058, %v4083
        %v4129 = vmul.f32 %v4059, %v4088
        %v4130 = vmul.f32 %v4060, %v4088
        %v4131 = vmul.f32 %v4061, %v4093
        %v4132 = vmul.f32 %v4062, %v4093
        %v4133 = vmul.f32 %v4063, %v4098
        %v4134 = vmul.f32 %v4064, %v4098
        %v4135 = vmul.f32 %v4065, %v4103
        %v4136 = vmul.f32 %v4066, %v4103
        %v4137 = vmul.f32 %v4067, %v4108
        %v4138 = vmul.f32 %v4068, %v4108
        %v4139 = vmul.f32 %v4069, %v4113
        %v4140 = vmul.f32 %v4070, %v4113
        %v4141 = vmul.f32 %v4071, %v4118
        %v4142 = vmul.f32 %v4072, %v4118
        %v4143 = vmul.f32 %v4073, %v4123
        %v4144 = vmul.f32 %v4074, %v4123
        %s4145 = sld [smem:[#allocation6 + $0x2]]
        %vm4146 = vcmp.ge.f32.partialorder %v4125, 0.0
        %vm4147 = vcmp.ge.f32.partialorder %v4126, 0.0
        %vm4148 = vcmp.ge.f32.partialorder %v4127, 0.0
        %vm4149 = vcmp.ge.f32.partialorder %v4128, 0.0
        %vm4150 = vcmp.ge.f32.partialorder %v4129, 0.0
        %vm4151 = vcmp.ge.f32.partialorder %v4130, 0.0
        %vm4152 = vcmp.ge.f32.partialorder %v4131, 0.0
        %vm4153 = vcmp.ge.f32.partialorder %v4132, 0.0
        %vm4154 = vcmp.ge.f32.partialorder %v4133, 0.0
        %vm4155 = vcmp.ge.f32.partialorder %v4134, 0.0
        %vm4156 = vcmp.ge.f32.partialorder %v4135, 0.0
        %vm4157 = vcmp.ge.f32.partialorder %v4136, 0.0
        %vm4158 = vcmp.ge.f32.partialorder %v4137, 0.0
        %vm4159 = vcmp.ge.f32.partialorder %v4138, 0.0
        %vm4160 = vcmp.ge.f32.partialorder %v4139, 0.0
        %vm4161 = vcmp.ge.f32.partialorder %v4140, 0.0
        %vm4162 = vcmp.ge.f32.partialorder %v4141, 0.0
        %vm4163 = vcmp.ge.f32.partialorder %v4142, 0.0
        %vm4164 = vcmp.ge.f32.partialorder %v4143, 0.0
        %vm4165 = vcmp.ge.f32.partialorder %v4144, 0.0
        %v4166 = vstv %s4145
        %v4167 = vmul.f32 %v4166, %v4125
        %v4168 = vmul.f32 %v4166, %v4126
        %v4169 = vmul.f32 %v4166, %v4127
        %v4170 = vmul.f32 %v4166, %v4128
        %v4171 = vmul.f32 %v4166, %v4129
        %v4172 = vmul.f32 %v4166, %v4130
        %v4173 = vmul.f32 %v4166, %v4131
        %v4174 = vmul.f32 %v4166, %v4132
        %v4175 = vmul.f32 %v4166, %v4133
        %v4176 = vmul.f32 %v4166, %v4134
        %v4177 = vmul.f32 %v4166, %v4135
        %v4178 = vmul.f32 %v4166, %v4136
        %v4179 = vmul.f32 %v4166, %v4137
        %v4180 = vmul.f32 %v4166, %v4138
        %v4181 = vmul.f32 %v4166, %v4139
        %v4182 = vmul.f32 %v4166, %v4140
        %v4183 = vmul.f32 %v4166, %v4141
        %v4184 = vmul.f32 %v4166, %v4142
        %v4185 = vmul.f32 %v4166, %v4143
        %v4186 = vmul.f32 %v4166, %v4144
        %v4187 = vsel %vm4146, %v4125, %v4167
        %v4188 = vsel %vm4147, %v4126, %v4168
        %v4189 = vsel %vm4148, %v4127, %v4169
        %v4190 = vsel %vm4149, %v4128, %v4170
        %v4191 = vsel %vm4150, %v4129, %v4171
        %v4192 = vsel %vm4151, %v4130, %v4172
        %v4193 = vsel %vm4152, %v4131, %v4173
        %v4194 = vsel %vm4153, %v4132, %v4174
        %v4195 = vsel %vm4154, %v4133, %v4175
        %v4196 = vsel %vm4155, %v4134, %v4176
        %v4197 = vsel %vm4156, %v4135, %v4177
        %v4198 = vsel %vm4157, %v4136, %v4178
        %v4199 = vsel %vm4158, %v4137, %v4179
        %v4200 = vsel %vm4159, %v4138, %v4180
        %v4201 = vsel %vm4160, %v4139, %v4181
        %v4202 = vsel %vm4161, %v4140, %v4182
        %v4203 = vsel %vm4162, %v4141, %v4183
        %v4204 = vsel %vm4163, %v4142, %v4184
        %v4205 = vsel %vm4164, %v4143, %v4185
        %v4206 = vsel %vm4165, %v4144, %v4186
        %v4207 = vpack.c.bf16 %v4189, %v4187
        %v4208 = vpack.c.bf16 %v4190, %v4188
        %v4209 = vpack.c.bf16 %v4193, %v4191
        %v4210 = vpack.c.bf16 %v4194, %v4192
        %v4211 = vpack.c.bf16 %v4197, %v4195
        %v4212 = vpack.c.bf16 %v4198, %v4196
        %v4213 = vpack.c.bf16 %v4201, %v4199
        %v4214 = vpack.c.bf16 %v4202, %v4200
        %v4215 = vpack.c.bf16 %v4205, %v4203
        %v4216 = vpack.c.bf16 %v4206, %v4204
        %v4217 = vld [vmem:[%s8] sm:$0xff]
        %v4218 = vld [vmem:[%s8 + $0x8] sm:$0xff]
        %v4219 = vld [vmem:[%s8 + $0x10] sm:$0xff]
        %v4220 = vld [vmem:[%s8 + $0x18] sm:$0xff]
        %v4221 = vld [vmem:[%s8 + $0x20] sm:$0xff]
        %v4222 = vld [vmem:[%s8 + $0x28] sm:$0xff]
        %v4223 = vld [vmem:[%s8 + $0x30] sm:$0xff]
        %v4224 = vld [vmem:[%s8 + $0x38] sm:$0xff]
        %v4225 = vld [vmem:[%s8 + $0x40] sm:$0xff]
        %v4226 = vld [vmem:[%s8 + $0x48] sm:$0xff]
        %v4227 = vld [vmem:[%s8 + $0x50] sm:$0xff]
        %v4228 = vld [vmem:[%s8 + $0x58] sm:$0xff]
        %v4229 = vld [vmem:[%s8 + $0x60] sm:$0xff]
        %v4230 = vld [vmem:[%s8 + $0x68] sm:$0xff]
        %v4231 = vld [vmem:[%s8 + $0x70] sm:$0xff]
        %v4232 = vld [vmem:[%s8 + $0x78] sm:$0xff]
        %v4233 = vld [vmem:[%s8 + $0x80] sm:$0xff]
        %v4234 = vld [vmem:[%s8 + $0x88] sm:$0xff]
        %v4235 = vld [vmem:[%s8 + $0x90] sm:$0xff]
        %v4236 = vld [vmem:[%s8 + $0x98] sm:$0xff]
        %v4237 = vld [vmem:[%s8 + $0xa0] sm:$0xff]
        %v4238 = vld [vmem:[%s8 + $0xa8] sm:$0xff]
        %v4239 = vld [vmem:[%s8 + $0xb0] sm:$0xff]
        %v4240 = vld [vmem:[%s8 + $0xb8] sm:$0xff]
        %v4241 = vld [vmem:[%s8 + $0xc0] sm:$0xff]
        %v4242 = vld [vmem:[%s8 + $0xc8] sm:$0xff]
        %v4243 = vld [vmem:[%s8 + $0xd0] sm:$0xff]
        %v4244 = vld [vmem:[%s8 + $0xd8] sm:$0xff]
        %v4245 = vld [vmem:[%s8 + $0xe0] sm:$0xff]
        %v4246 = vld [vmem:[%s8 + $0xe8] sm:$0xff]
        %v4247 = vld [vmem:[%s8 + $0xf0] sm:$0xff]
        %v4248 = vld [vmem:[%s8 + $0xf8] sm:$0xff]
        %v4249 = vld [vmem:[%s8 + $0x100] sm:$0xff]
        %v4250 = vld [vmem:[%s8 + $0x108] sm:$0xff]
        %v4251 = vld [vmem:[%s8 + $0x110] sm:$0xff]
        %v4252 = vld [vmem:[%s8 + $0x118] sm:$0xff]
        %v4253 = vld [vmem:[%s8 + $0x120] sm:$0xff]
        %v4254 = vld [vmem:[%s8 + $0x128] sm:$0xff]
        %v4255 = vld [vmem:[%s8 + $0x130] sm:$0xff]
        %v4256 = vld [vmem:[%s8 + $0x138] sm:$0xff]
        %v4257 = vld [vmem:[%s8 + $0x140] sm:$0xff]
        %v4258 = vld [vmem:[%s8 + $0x148] sm:$0xff]
        %v4259 = vld [vmem:[%s8 + $0x150] sm:$0xff]
        %v4260 = vld [vmem:[%s8 + $0x158] sm:$0xff]
        %v4261 = vld [vmem:[%s8 + $0x160] sm:$0xff]
        %v4262 = vld [vmem:[%s8 + $0x168] sm:$0xff]
        %v4263 = vld [vmem:[%s8 + $0x170] sm:$0xff]
        %v4264 = vld [vmem:[%s8 + $0x178] sm:$0xff]
        %v4265 = vld [vmem:[%s8 + $0x180] sm:$0xff]
        %v4266 = vld [vmem:[%s8 + $0x188] sm:$0xff]
        %v4267 = vld [vmem:[%s8 + $0x190] sm:$0xff]
        %v4268 = vld [vmem:[%s8 + $0x198] sm:$0xff]
        %v4269 = vld [vmem:[%s8 + $0x1a0] sm:$0xff]
        %v4270 = vld [vmem:[%s8 + $0x1a8] sm:$0xff]
        %v4271 = vld [vmem:[%s8 + $0x1b0] sm:$0xff]
        %v4272 = vld [vmem:[%s8 + $0x1b8] sm:$0xff]
        %v4273 = vld [vmem:[%s8 + $0x1c0] sm:$0xff]
        %v4274 = vld [vmem:[%s8 + $0x1c8] sm:$0xff]
        %v4275 = vld [vmem:[%s8 + $0x1d0] sm:$0xff]
        %v4276 = vld [vmem:[%s8 + $0x1d8] sm:$0xff]
        %v4277 = vld [vmem:[%s8 + $0x1e0] sm:$0xff]
        %v4278 = vld [vmem:[%s8 + $0x1e8] sm:$0xff]
        %v4279 = vld [vmem:[%s8 + $0x1f0] sm:$0xff]
        %v4280 = vld [vmem:[%s8 + $0x1f8] sm:$0xff]
        %v4281 = vld [vmem:[%s8 + $0x200] sm:$0xff]
        %v4282 = vld [vmem:[%s8 + $0x208] sm:$0xff]
        %v4283 = vld [vmem:[%s8 + $0x210] sm:$0xff]
        %v4284 = vld [vmem:[%s8 + $0x218] sm:$0xff]
        %v4285 = vld [vmem:[%s8 + $0x220] sm:$0xff]
        %v4286 = vld [vmem:[%s8 + $0x228] sm:$0xff]
        %v4287 = vld [vmem:[%s8 + $0x230] sm:$0xff]
        %v4288 = vld [vmem:[%s8 + $0x238] sm:$0xff]
        %v4289 = vld [vmem:[%s8 + $0x240] sm:$0xff]
        %v4290 = vld [vmem:[%s8 + $0x248] sm:$0xff]
        %v4291 = vld [vmem:[%s8 + $0x250] sm:$0xff]
        %v4292 = vld [vmem:[%s8 + $0x258] sm:$0xff]
        %v4293 = vld [vmem:[%s8 + $0x260] sm:$0xff]
        %v4294 = vld [vmem:[%s8 + $0x268] sm:$0xff]
        %v4295 = vld [vmem:[%s8 + $0x270] sm:$0xff]
        %v4296 = vld [vmem:[%s8 + $0x278] sm:$0xff]
        %v4297 = vld [vmem:[%s8 + $0x280] sm:$0xff]
        %v4298 = vld [vmem:[%s8 + $0x288] sm:$0xff]
        %v4299 = vld [vmem:[%s8 + $0x290] sm:$0xff]
        %v4300 = vld [vmem:[%s8 + $0x298] sm:$0xff]
        %v4301 = vld [vmem:[%s8 + $0x2a0] sm:$0xff]
        %v4302 = vld [vmem:[%s8 + $0x2a8] sm:$0xff]
        %v4303 = vld [vmem:[%s8 + $0x2b0] sm:$0xff]
        %v4304 = vld [vmem:[%s8 + $0x2b8] sm:$0xff]
        %v4305 = vld [vmem:[%s8 + $0x2c0] sm:$0xff]
        %v4306 = vld [vmem:[%s8 + $0x2c8] sm:$0xff]
        %v4307 = vld [vmem:[%s8 + $0x2d0] sm:$0xff]
        %v4308 = vld [vmem:[%s8 + $0x2d8] sm:$0xff]
        %v4309 = vld [vmem:[%s8 + $0x2e0] sm:$0xff]
        %v4310 = vld [vmem:[%s8 + $0x2e8] sm:$0xff]
        %v4311 = vld [vmem:[%s8 + $0x2f0] sm:$0xff]
        %v4312 = vld [vmem:[%s8 + $0x2f8] sm:$0xff]
        %v4409 = vunpack.c.l.b16 %v4217
        %v4410 = vunpack.c.h.b16 %v4217
        %v4411 = vunpack.c.l.b16 %v4218
        %v4412 = vunpack.c.h.b16 %v4218
        %v4413 = vunpack.c.l.b16 %v4219
        %v4414 = vunpack.c.h.b16 %v4219
        %v4415 = vunpack.c.l.b16 %v4220
        %v4416 = vunpack.c.h.b16 %v4220
        %v4417 = vunpack.c.l.b16 %v4221
        %v4418 = vunpack.c.h.b16 %v4221
        %v4419 = vunpack.c.l.b16 %v4222
        %v4420 = vunpack.c.h.b16 %v4222
        %v4421 = vunpack.c.l.b16 %v4223
        %v4422 = vunpack.c.h.b16 %v4223
        %v4423 = vunpack.c.l.b16 %v4224
        %v4424 = vunpack.c.h.b16 %v4224
        %v4425 = vunpack.c.l.b16 %v4225
        %v4426 = vunpack.c.h.b16 %v4225
        %v4427 = vunpack.c.l.b16 %v4226
        %v4428 = vunpack.c.h.b16 %v4226
        %v4429 = vunpack.c.l.b16 %v4227
        %v4430 = vunpack.c.h.b16 %v4227
        %v4431 = vunpack.c.l.b16 %v4228
        %v4432 = vunpack.c.h.b16 %v4228
        %v4433 = vunpack.c.l.b16 %v4229
        %v4434 = vunpack.c.h.b16 %v4229
        %v4435 = vunpack.c.l.b16 %v4230
        %v4436 = vunpack.c.h.b16 %v4230
        %v4437 = vunpack.c.l.b16 %v4231
        %v4438 = vunpack.c.h.b16 %v4231
        %v4439 = vunpack.c.l.b16 %v4232
        %v4440 = vunpack.c.h.b16 %v4232
        %v4441 = vunpack.c.l.b16 %v4233
        %v4442 = vunpack.c.h.b16 %v4233
        %v4443 = vunpack.c.l.b16 %v4234
        %v4444 = vunpack.c.h.b16 %v4234
        %v4445 = vunpack.c.l.b16 %v4235
        %v4446 = vunpack.c.h.b16 %v4235
        %v4447 = vunpack.c.l.b16 %v4236
        %v4448 = vunpack.c.h.b16 %v4236
        %v4449 = vunpack.c.l.b16 %v4237
        %v4450 = vunpack.c.h.b16 %v4237
        %v4451 = vunpack.c.l.b16 %v4238
        %v4452 = vunpack.c.h.b16 %v4238
        %v4453 = vunpack.c.l.b16 %v4239
        %v4454 = vunpack.c.h.b16 %v4239
        %v4455 = vunpack.c.l.b16 %v4240
        %v4456 = vunpack.c.h.b16 %v4240
        %v4457 = vunpack.c.l.b16 %v4241
        %v4458 = vunpack.c.h.b16 %v4241
        %v4459 = vunpack.c.l.b16 %v4242
        %v4460 = vunpack.c.h.b16 %v4242
        %v4461 = vunpack.c.l.b16 %v4243
        %v4462 = vunpack.c.h.b16 %v4243
        %v4463 = vunpack.c.l.b16 %v4244
        %v4464 = vunpack.c.h.b16 %v4244
        %v4465 = vunpack.c.l.b16 %v4245
        %v4466 = vunpack.c.h.b16 %v4245
        %v4467 = vunpack.c.l.b16 %v4246
        %v4468 = vunpack.c.h.b16 %v4246
        %v4469 = vunpack.c.l.b16 %v4247
        %v4470 = vunpack.c.h.b16 %v4247
        %v4471 = vunpack.c.l.b16 %v4248
        %v4472 = vunpack.c.h.b16 %v4248
        %v4473 = vunpack.c.l.b16 %v4249
        %v4474 = vunpack.c.h.b16 %v4249
        %v4475 = vunpack.c.l.b16 %v4250
        %v4476 = vunpack.c.h.b16 %v4250
        %v4477 = vunpack.c.l.b16 %v4251
        %v4478 = vunpack.c.h.b16 %v4251
        %v4479 = vunpack.c.l.b16 %v4252
        %v4480 = vunpack.c.h.b16 %v4252
        %v4481 = vunpack.c.l.b16 %v4253
        %v4482 = vunpack.c.h.b16 %v4253
        %v4483 = vunpack.c.l.b16 %v4254
        %v4484 = vunpack.c.h.b16 %v4254
        %v4485 = vunpack.c.l.b16 %v4255
        %v4486 = vunpack.c.h.b16 %v4255
        %v4487 = vunpack.c.l.b16 %v4256
        %v4488 = vunpack.c.h.b16 %v4256
        %v4489 = vunpack.c.l.b16 %v4257
        %v4490 = vunpack.c.h.b16 %v4257
        %v4491 = vunpack.c.l.b16 %v4258
        %v4492 = vunpack.c.h.b16 %v4258
        %v4493 = vunpack.c.l.b16 %v4259
        %v4494 = vunpack.c.h.b16 %v4259
        %v4495 = vunpack.c.l.b16 %v4260
        %v4496 = vunpack.c.h.b16 %v4260
        %v4497 = vunpack.c.l.b16 %v4261
        %v4498 = vunpack.c.h.b16 %v4261
        %v4499 = vunpack.c.l.b16 %v4262
        %v4500 = vunpack.c.h.b16 %v4262
        %v4501 = vunpack.c.l.b16 %v4263
        %v4502 = vunpack.c.h.b16 %v4263
        %v4503 = vunpack.c.l.b16 %v4264
        %v4504 = vunpack.c.h.b16 %v4264
        %v4505 = vunpack.c.l.b16 %v4265
        %v4506 = vunpack.c.h.b16 %v4265
        %v4507 = vunpack.c.l.b16 %v4266
        %v4508 = vunpack.c.h.b16 %v4266
        %v4509 = vunpack.c.l.b16 %v4267
        %v4510 = vunpack.c.h.b16 %v4267
        %v4511 = vunpack.c.l.b16 %v4268
        %v4512 = vunpack.c.h.b16 %v4268
        %v4513 = vunpack.c.l.b16 %v4269
        %v4514 = vunpack.c.h.b16 %v4269
        %v4515 = vunpack.c.l.b16 %v4270
        %v4516 = vunpack.c.h.b16 %v4270
        %v4517 = vunpack.c.l.b16 %v4271
        %v4518 = vunpack.c.h.b16 %v4271
        %v4519 = vunpack.c.l.b16 %v4272
        %v4520 = vunpack.c.h.b16 %v4272
        %v4521 = vunpack.c.l.b16 %v4273
        %v4522 = vunpack.c.h.b16 %v4273
        %v4523 = vunpack.c.l.b16 %v4274
        %v4524 = vunpack.c.h.b16 %v4274
        %v4525 = vunpack.c.l.b16 %v4275
        %v4526 = vunpack.c.h.b16 %v4275
        %v4527 = vunpack.c.l.b16 %v4276
        %v4528 = vunpack.c.h.b16 %v4276
        %v4529 = vunpack.c.l.b16 %v4277
        %v4530 = vunpack.c.h.b16 %v4277
        %v4531 = vunpack.c.l.b16 %v4278
        %v4532 = vunpack.c.h.b16 %v4278
        %v4533 = vunpack.c.l.b16 %v4279
        %v4534 = vunpack.c.h.b16 %v4279
        %v4535 = vunpack.c.l.b16 %v4280
        %v4536 = vunpack.c.h.b16 %v4280
        %v4537 = vunpack.c.l.b16 %v4281
        %v4538 = vunpack.c.h.b16 %v4281
        %v4539 = vunpack.c.l.b16 %v4282
        %v4540 = vunpack.c.h.b16 %v4282
        %v4541 = vunpack.c.l.b16 %v4283
        %v4542 = vunpack.c.h.b16 %v4283
        %v4543 = vunpack.c.l.b16 %v4284
        %v4544 = vunpack.c.h.b16 %v4284
        %v4545 = vunpack.c.l.b16 %v4285
        %v4546 = vunpack.c.h.b16 %v4285
        %v4547 = vunpack.c.l.b16 %v4286
        %v4548 = vunpack.c.h.b16 %v4286
        %v4549 = vunpack.c.l.b16 %v4287
        %v4550 = vunpack.c.h.b16 %v4287
        %v4551 = vunpack.c.l.b16 %v4288
        %v4552 = vunpack.c.h.b16 %v4288
        %v4553 = vunpack.c.l.b16 %v4289
        %v4554 = vunpack.c.h.b16 %v4289
        %v4555 = vunpack.c.l.b16 %v4290
        %v4556 = vunpack.c.h.b16 %v4290
        %v4557 = vunpack.c.l.b16 %v4291
        %v4558 = vunpack.c.h.b16 %v4291
        %v4559 = vunpack.c.l.b16 %v4292
        %v4560 = vunpack.c.h.b16 %v4292
        %v4561 = vunpack.c.l.b16 %v4293
        %v4562 = vunpack.c.h.b16 %v4293
        %v4563 = vunpack.c.l.b16 %v4294
        %v4564 = vunpack.c.h.b16 %v4294
        %v4565 = vunpack.c.l.b16 %v4295
        %v4566 = vunpack.c.h.b16 %v4295
        %v4567 = vunpack.c.l.b16 %v4296
        %v4568 = vunpack.c.h.b16 %v4296
        %v4569 = vunpack.c.l.b16 %v4297
        %v4570 = vunpack.c.h.b16 %v4297
        %v4571 = vunpack.c.l.b16 %v4298
        %v4572 = vunpack.c.h.b16 %v4298
        %v4573 = vunpack.c.l.b16 %v4299
        %v4574 = vunpack.c.h.b16 %v4299
        %v4575 = vunpack.c.l.b16 %v4300
        %v4576 = vunpack.c.h.b16 %v4300
        %v4577 = vunpack.c.l.b16 %v4301
        %v4578 = vunpack.c.h.b16 %v4301
        %v4579 = vunpack.c.l.b16 %v4302
        %v4580 = vunpack.c.h.b16 %v4302
        %v4581 = vunpack.c.l.b16 %v4303
        %v4582 = vunpack.c.h.b16 %v4303
        %v4583 = vunpack.c.l.b16 %v4304
        %v4584 = vunpack.c.h.b16 %v4304
        %v4585 = vunpack.c.l.b16 %v4305
        %v4586 = vunpack.c.h.b16 %v4305
        %v4587 = vunpack.c.l.b16 %v4306
        %v4588 = vunpack.c.h.b16 %v4306
        %v4589 = vunpack.c.l.b16 %v4307
        %v4590 = vunpack.c.h.b16 %v4307
        %v4591 = vunpack.c.l.b16 %v4308
        %v4592 = vunpack.c.h.b16 %v4308
        %v4593 = vunpack.c.l.b16 %v4309
        %v4594 = vunpack.c.h.b16 %v4309
        %v4595 = vunpack.c.l.b16 %v4310
        %v4596 = vunpack.c.h.b16 %v4310
        %v4597 = vunpack.c.l.b16 %v4311
        %v4598 = vunpack.c.h.b16 %v4311
        %v4599 = vunpack.c.l.b16 %v4312
        %v4600 = vunpack.c.h.b16 %v4312
        %v4601 = vpack.c.b16 %v4415, %v4409
        %v4602 = vpack.c.b16 %v4416, %v4410
        %v4603 = vpack.c.b16 %v4417, %v4411
        %v4604 = vpack.c.b16 %v4418, %v4412
        %v4605 = vpack.c.b16 %v4419, %v4413
        %v4606 = vpack.c.b16 %v4420, %v4414
        %v4607 = vpack.c.b16 %v4427, %v4421
        %v4608 = vpack.c.b16 %v4428, %v4422
        %v4609 = vpack.c.b16 %v4429, %v4423
        %v4610 = vpack.c.b16 %v4430, %v4424
        %v4611 = vpack.c.b16 %v4431, %v4425
        %v4612 = vpack.c.b16 %v4432, %v4426
        %v4613 = vpack.c.b16 %v4439, %v4433
        %v4614 = vpack.c.b16 %v4440, %v4434
        %v4615 = vpack.c.b16 %v4441, %v4435
        %v4616 = vpack.c.b16 %v4442, %v4436
        %v4617 = vpack.c.b16 %v4443, %v4437
        %v4618 = vpack.c.b16 %v4444, %v4438
        %v4619 = vpack.c.b16 %v4451, %v4445
        %v4620 = vpack.c.b16 %v4452, %v4446
        %v4621 = vpack.c.b16 %v4453, %v4447
        %v4622 = vpack.c.b16 %v4454, %v4448
        %v4623 = vpack.c.b16 %v4455, %v4449
        %v4624 = vpack.c.b16 %v4456, %v4450
        %v4625 = vpack.c.b16 %v4463, %v4457
        %v4626 = vpack.c.b16 %v4464, %v4458
        %v4627 = vpack.c.b16 %v4465, %v4459
        %v4628 = vpack.c.b16 %v4466, %v4460
        %v4629 = vpack.c.b16 %v4467, %v4461
        %v4630 = vpack.c.b16 %v4468, %v4462
        %v4631 = vpack.c.b16 %v4475, %v4469
        %v4632 = vpack.c.b16 %v4476, %v4470
        %v4633 = vpack.c.b16 %v4477, %v4471
        %v4634 = vpack.c.b16 %v4478, %v4472
        %v4635 = vpack.c.b16 %v4479, %v4473
        %v4636 = vpack.c.b16 %v4480, %v4474
        %v4637 = vpack.c.b16 %v4487, %v4481
        %v4638 = vpack.c.b16 %v4488, %v4482
        %v4639 = vpack.c.b16 %v4489, %v4483
        %v4640 = vpack.c.b16 %v4490, %v4484
        %v4641 = vpack.c.b16 %v4491, %v4485
        %v4642 = vpack.c.b16 %v4492, %v4486
        %v4643 = vpack.c.b16 %v4499, %v4493
        %v4644 = vpack.c.b16 %v4500, %v4494
        %v4645 = vpack.c.b16 %v4501, %v4495
        %v4646 = vpack.c.b16 %v4502, %v4496
        %v4647 = vpack.c.b16 %v4503, %v4497
        %v4648 = vpack.c.b16 %v4504, %v4498
        %v4649 = vpack.c.b16 %v4511, %v4505
        %v4650 = vpack.c.b16 %v4512, %v4506
        %v4651 = vpack.c.b16 %v4513, %v4507
        %v4652 = vpack.c.b16 %v4514, %v4508
        %v4653 = vpack.c.b16 %v4515, %v4509
        %v4654 = vpack.c.b16 %v4516, %v4510
        %v4655 = vpack.c.b16 %v4523, %v4517
        %v4656 = vpack.c.b16 %v4524, %v4518
        %v4657 = vpack.c.b16 %v4525, %v4519
        %v4658 = vpack.c.b16 %v4526, %v4520
        %v4659 = vpack.c.b16 %v4527, %v4521
        %v4660 = vpack.c.b16 %v4528, %v4522
        %v4661 = vpack.c.b16 %v4535, %v4529
        %v4662 = vpack.c.b16 %v4536, %v4530
        %v4663 = vpack.c.b16 %v4537, %v4531
        %v4664 = vpack.c.b16 %v4538, %v4532
        %v4665 = vpack.c.b16 %v4539, %v4533
        %v4666 = vpack.c.b16 %v4540, %v4534
        %v4667 = vpack.c.b16 %v4547, %v4541
        %v4668 = vpack.c.b16 %v4548, %v4542
        %v4669 = vpack.c.b16 %v4549, %v4543
        %v4670 = vpack.c.b16 %v4550, %v4544
        %v4671 = vpack.c.b16 %v4551, %v4545
        %v4672 = vpack.c.b16 %v4552, %v4546
        %v4673 = vpack.c.b16 %v4559, %v4553
        %v4674 = vpack.c.b16 %v4560, %v4554
        %v4675 = vpack.c.b16 %v4561, %v4555
        %v4676 = vpack.c.b16 %v4562, %v4556
        %v4677 = vpack.c.b16 %v4563, %v4557
        %v4678 = vpack.c.b16 %v4564, %v4558
        %v4679 = vpack.c.b16 %v4571, %v4565
        %v4680 = vpack.c.b16 %v4572, %v4566
        %v4681 = vpack.c.b16 %v4573, %v4567
        %v4682 = vpack.c.b16 %v4574, %v4568
        %v4683 = vpack.c.b16 %v4575, %v4569
        %v4684 = vpack.c.b16 %v4576, %v4570
        %v4685 = vpack.c.b16 %v4583, %v4577
        %v4686 = vpack.c.b16 %v4584, %v4578
        %v4687 = vpack.c.b16 %v4585, %v4579
        %v4688 = vpack.c.b16 %v4586, %v4580
        %v4689 = vpack.c.b16 %v4587, %v4581
        %v4690 = vpack.c.b16 %v4588, %v4582
        %v4691 = vpack.c.b16 %v4595, %v4589
        %v4692 = vpack.c.b16 %v4596, %v4590
        %v4693 = vpack.c.b16 %v4597, %v4591
        %v4694 = vpack.c.b16 %v4598, %v4592
        %v4695 = vpack.c.b16 %v4599, %v4593
        %v4696 = vpack.c.b16 %v4600, %v4594
        %4793 = vmatpush.bf16.msra.mxu0 %v4643
        %4794 = vmatpush.bf16.msra.mxu0 %v4637
        %4795 = vmatpush.bf16.msra.mxu0 %v4631
        %4796 = vmatpush.bf16.msra.mxu0 %v4625
        %4797 = vmatpush.bf16.msra.mxu0 %v4619
        %4798 = vmatpush.bf16.msra.mxu0 %v4613
        %4799 = vmatpush.bf16.msra.mxu0 %v4607
        %4800 = vmatpush.bf16.msra.mxu0 %v4601
        %4801 = vmatmul.bf16.gmra.mxu0 %v4207
        %v4802 = vpop.f32.mrf.mxu0
        %v4803 = vadd.f32 0.0, %v4802
        %v4804 = vpop.f32.mrf.mxu0
        %v4805 = vadd.f32 0.0, %v4804
        %4806 = vmatmul.bf16.gmra.mxu0 %v4209
        %v4807 = vpop.f32.mrf.mxu0
        %v4808 = vadd.f32 0.0, %v4807
        %v4809 = vpop.f32.mrf.mxu0
        %v4810 = vadd.f32 0.0, %v4809
        %4811 = vmatmul.bf16.gmra.mxu0 %v4211
        %v4812 = vpop.f32.mrf.mxu0
        %v4813 = vadd.f32 0.0, %v4812
        %v4814 = vpop.f32.mrf.mxu0
        %v4815 = vadd.f32 0.0, %v4814
        %4816 = vmatmul.bf16.gmra.mxu0 %v4213
        %v4817 = vpop.f32.mrf.mxu0
        %v4818 = vadd.f32 0.0, %v4817
        %v4819 = vpop.f32.mrf.mxu0
        %v4820 = vadd.f32 0.0, %v4819
        %4821 = vmatmul.bf16.gmra.mxu0 %v4215
        %v4822 = vpop.f32.mrf.mxu0
        %v4823 = vadd.f32 0.0, %v4822
        %v4824 = vpop.f32.mrf.mxu0
        %v4825 = vadd.f32 0.0, %v4824
        %4826 = vdwg.mxu0
        %4827 = vmatpush.bf16.msra.mxu0 %v4691
        %4828 = vmatpush.bf16.msra.mxu0 %v4685
        %4829 = vmatpush.bf16.msra.mxu0 %v4679
        %4830 = vmatpush.bf16.msra.mxu0 %v4673
        %4831 = vmatpush.bf16.msra.mxu0 %v4667
        %4832 = vmatpush.bf16.msra.mxu0 %v4661
        %4833 = vmatpush.bf16.msra.mxu0 %v4655
        %4834 = vmatpush.bf16.msra.mxu0 %v4649
        %4835 = vmatmul.bf16.gmra.mxu0 %v4208
        %v4836 = vpop.f32.mrf.mxu0
        %v4837 = vadd.f32 %v4803, %v4836
        %v4838 = vpop.f32.mrf.mxu0
        %v4839 = vadd.f32 %v4805, %v4838
        %4840 = vmatmul.bf16.gmra.mxu0 %v4210
        %v4841 = vpop.f32.mrf.mxu0
        %v4842 = vadd.f32 %v4808, %v4841
        %v4843 = vpop.f32.mrf.mxu0
        %v4844 = vadd.f32 %v4810, %v4843
        %4845 = vmatmul.bf16.gmra.mxu0 %v4212
        %v4846 = vpop.f32.mrf.mxu0
        %v4847 = vadd.f32 %v4813, %v4846
        %v4848 = vpop.f32.mrf.mxu0
        %v4849 = vadd.f32 %v4815, %v4848
        %4850 = vmatmul.bf16.gmra.mxu0 %v4214
        %v4851 = vpop.f32.mrf.mxu0
        %v4852 = vadd.f32 %v4818, %v4851
        %v4853 = vpop.f32.mrf.mxu0
        %v4854 = vadd.f32 %v4820, %v4853
        %4855 = vmatmul.bf16.gmra.mxu0 %v4216
        %v4856 = vpop.f32.mrf.mxu0
        %v4857 = vadd.f32 %v4823, %v4856
        %v4858 = vpop.f32.mrf.mxu0
        %v4859 = vadd.f32 %v4825, %v4858
        %4860 = vdwg.mxu0
        %4861 = vmatpush.bf16.msra.mxu0 %v4644
        %4862 = vmatpush.bf16.msra.mxu0 %v4638
        %4863 = vmatpush.bf16.msra.mxu0 %v4632
        %4864 = vmatpush.bf16.msra.mxu0 %v4626
        %4865 = vmatpush.bf16.msra.mxu0 %v4620
        %4866 = vmatpush.bf16.msra.mxu0 %v4614
        %4867 = vmatpush.bf16.msra.mxu0 %v4608
        %4868 = vmatpush.bf16.msra.mxu0 %v4602
        %4869 = vmatmul.bf16.gmra.mxu0 %v4207
        %v4870 = vpop.f32.mrf.mxu0
        %v4871 = vadd.f32 0.0, %v4870
        %v4872 = vpop.f32.mrf.mxu0
        %v4873 = vadd.f32 0.0, %v4872
        %4874 = vmatmul.bf16.gmra.mxu0 %v4209
        %v4875 = vpop.f32.mrf.mxu0
        %v4876 = vadd.f32 0.0, %v4875
        %v4877 = vpop.f32.mrf.mxu0
        %v4878 = vadd.f32 0.0, %v4877
        %4879 = vmatmul.bf16.gmra.mxu0 %v4211
        %v4880 = vpop.f32.mrf.mxu0
        %v4881 = vadd.f32 0.0, %v4880
        %v4882 = vpop.f32.mrf.mxu0
        %v4883 = vadd.f32 0.0, %v4882
        %4884 = vmatmul.bf16.gmra.mxu0 %v4213
        %v4885 = vpop.f32.mrf.mxu0
        %v4886 = vadd.f32 0.0, %v4885
        %v4887 = vpop.f32.mrf.mxu0
        %v4888 = vadd.f32 0.0, %v4887
        %4889 = vmatmul.bf16.gmra.mxu0 %v4215
        %v4890 = vpop.f32.mrf.mxu0
        %v4891 = vadd.f32 0.0, %v4890
        %v4892 = vpop.f32.mrf.mxu0
        %v4893 = vadd.f32 0.0, %v4892
        %4894 = vdwg.mxu0
        %4895 = vmatpush.bf16.msra.mxu0 %v4692
        %4896 = vmatpush.bf16.msra.mxu0 %v4686
        %4897 = vmatpush.bf16.msra.mxu0 %v4680
        %4898 = vmatpush.bf16.msra.mxu0 %v4674
        %4899 = vmatpush.bf16.msra.mxu0 %v4668
        %4900 = vmatpush.bf16.msra.mxu0 %v4662
        %4901 = vmatpush.bf16.msra.mxu0 %v4656
        %4902 = vmatpush.bf16.msra.mxu0 %v4650
        %4903 = vmatmul.bf16.gmra.mxu0 %v4208
        %v4904 = vpop.f32.mrf.mxu0
        %v4905 = vadd.f32 %v4871, %v4904
        %v4906 = vpop.f32.mrf.mxu0
        %v4907 = vadd.f32 %v4873, %v4906
        %4908 = vmatmul.bf16.gmra.mxu0 %v4210
        %v4909 = vpop.f32.mrf.mxu0
        %v4910 = vadd.f32 %v4876, %v4909
        %v4911 = vpop.f32.mrf.mxu0
        %v4912 = vadd.f32 %v4878, %v4911
        %4913 = vmatmul.bf16.gmra.mxu0 %v4212
        %v4914 = vpop.f32.mrf.mxu0
        %v4915 = vadd.f32 %v4881, %v4914
        %v4916 = vpop.f32.mrf.mxu0
        %v4917 = vadd.f32 %v4883, %v4916
        %4918 = vmatmul.bf16.gmra.mxu0 %v4214
        %v4919 = vpop.f32.mrf.mxu0
        %v4920 = vadd.f32 %v4886, %v4919
        %v4921 = vpop.f32.mrf.mxu0
        %v4922 = vadd.f32 %v4888, %v4921
        %4923 = vmatmul.bf16.gmra.mxu0 %v4216
        %v4924 = vpop.f32.mrf.mxu0
        %v4925 = vadd.f32 %v4891, %v4924
        %v4926 = vpop.f32.mrf.mxu0
        %v4927 = vadd.f32 %v4893, %v4926
        %4928 = vdwg.mxu0
        %4929 = vmatpush.bf16.msra.mxu0 %v4645
        %4930 = vmatpush.bf16.msra.mxu0 %v4639
        %4931 = vmatpush.bf16.msra.mxu0 %v4633
        %4932 = vmatpush.bf16.msra.mxu0 %v4627
        %4933 = vmatpush.bf16.msra.mxu0 %v4621
        %4934 = vmatpush.bf16.msra.mxu0 %v4615
        %4935 = vmatpush.bf16.msra.mxu0 %v4609
        %4936 = vmatpush.bf16.msra.mxu0 %v4603
        %4937 = vmatmul.bf16.gmra.mxu0 %v4207
        %v4938 = vpop.f32.mrf.mxu0
        %v4939 = vadd.f32 0.0, %v4938
        %v4940 = vpop.f32.mrf.mxu0
        %v4941 = vadd.f32 0.0, %v4940
        %4942 = vmatmul.bf16.gmra.mxu0 %v4209
        %v4943 = vpop.f32.mrf.mxu0
        %v4944 = vadd.f32 0.0, %v4943
        %v4945 = vpop.f32.mrf.mxu0
        %v4946 = vadd.f32 0.0, %v4945
        %4947 = vmatmul.bf16.gmra.mxu0 %v4211
        %v4948 = vpop.f32.mrf.mxu0
        %v4949 = vadd.f32 0.0, %v4948
        %v4950 = vpop.f32.mrf.mxu0
        %v4951 = vadd.f32 0.0, %v4950
        %4952 = vmatmul.bf16.gmra.mxu0 %v4213
        %v4953 = vpop.f32.mrf.mxu0
        %v4954 = vadd.f32 0.0, %v4953
        %v4955 = vpop.f32.mrf.mxu0
        %v4956 = vadd.f32 0.0, %v4955
        %4957 = vmatmul.bf16.gmra.mxu0 %v4215
        %v4958 = vpop.f32.mrf.mxu0
        %v4959 = vadd.f32 0.0, %v4958
        %v4960 = vpop.f32.mrf.mxu0
        %v4961 = vadd.f32 0.0, %v4960
        %4962 = vdwg.mxu0
        %4963 = vmatpush.bf16.msra.mxu0 %v4693
        %4964 = vmatpush.bf16.msra.mxu0 %v4687
        %4965 = vmatpush.bf16.msra.mxu0 %v4681
        %4966 = vmatpush.bf16.msra.mxu0 %v4675
        %4967 = vmatpush.bf16.msra.mxu0 %v4669
        %4968 = vmatpush.bf16.msra.mxu0 %v4663
        %4969 = vmatpush.bf16.msra.mxu0 %v4657
        %4970 = vmatpush.bf16.msra.mxu0 %v4651
        %4971 = vmatmul.bf16.gmra.mxu0 %v4208
        %v4972 = vpop.f32.mrf.mxu0
        %v4973 = vadd.f32 %v4939, %v4972
        %v4974 = vpop.f32.mrf.mxu0
        %v4975 = vadd.f32 %v4941, %v4974
        %4976 = vmatmul.bf16.gmra.mxu0 %v4210
        %v4977 = vpop.f32.mrf.mxu0
        %v4978 = vadd.f32 %v4944, %v4977
        %v4979 = vpop.f32.mrf.mxu0
        %v4980 = vadd.f32 %v4946, %v4979
        %4981 = vmatmul.bf16.gmra.mxu0 %v4212
        %v4982 = vpop.f32.mrf.mxu0
        %v4983 = vadd.f32 %v4949, %v4982
        %v4984 = vpop.f32.mrf.mxu0
        %v4985 = vadd.f32 %v4951, %v4984
        %4986 = vmatmul.bf16.gmra.mxu0 %v4214
        %v4987 = vpop.f32.mrf.mxu0
        %v4988 = vadd.f32 %v4954, %v4987
        %v4989 = vpop.f32.mrf.mxu0
        %v4990 = vadd.f32 %v4956, %v4989
        %4991 = vmatmul.bf16.gmra.mxu0 %v4216
        %v4992 = vpop.f32.mrf.mxu0
        %v4993 = vadd.f32 %v4959, %v4992
        %v4994 = vpop.f32.mrf.mxu0
        %v4995 = vadd.f32 %v4961, %v4994
        %4996 = vdwg.mxu0
        %4997 = vmatpush.bf16.msra.mxu0 %v4646
        %4998 = vmatpush.bf16.msra.mxu0 %v4640
        %4999 = vmatpush.bf16.msra.mxu0 %v4634
        %5000 = vmatpush.bf16.msra.mxu0 %v4628
        %5001 = vmatpush.bf16.msra.mxu0 %v4622
        %5002 = vmatpush.bf16.msra.mxu0 %v4616
        %5003 = vmatpush.bf16.msra.mxu0 %v4610
        %5004 = vmatpush.bf16.msra.mxu0 %v4604
        %5005 = vmatmul.bf16.gmra.mxu0 %v4207
        %v5006 = vpop.f32.mrf.mxu0
        %v5007 = vadd.f32 0.0, %v5006
        %v5008 = vpop.f32.mrf.mxu0
        %v5009 = vadd.f32 0.0, %v5008
        %5010 = vmatmul.bf16.gmra.mxu0 %v4209
        %v5011 = vpop.f32.mrf.mxu0
        %v5012 = vadd.f32 0.0, %v5011
        %v5013 = vpop.f32.mrf.mxu0
        %v5014 = vadd.f32 0.0, %v5013
        %5015 = vmatmul.bf16.gmra.mxu0 %v4211
        %v5016 = vpop.f32.mrf.mxu0
        %v5017 = vadd.f32 0.0, %v5016
        %v5018 = vpop.f32.mrf.mxu0
        %v5019 = vadd.f32 0.0, %v5018
        %5020 = vmatmul.bf16.gmra.mxu0 %v4213
        %v5021 = vpop.f32.mrf.mxu0
        %v5022 = vadd.f32 0.0, %v5021
        %v5023 = vpop.f32.mrf.mxu0
        %v5024 = vadd.f32 0.0, %v5023
        %5025 = vmatmul.bf16.gmra.mxu0 %v4215
        %v5026 = vpop.f32.mrf.mxu0
        %v5027 = vadd.f32 0.0, %v5026
        %v5028 = vpop.f32.mrf.mxu0
        %v5029 = vadd.f32 0.0, %v5028
        %5030 = vdwg.mxu0
        %5031 = vmatpush.bf16.msra.mxu0 %v4694
        %5032 = vmatpush.bf16.msra.mxu0 %v4688
        %5033 = vmatpush.bf16.msra.mxu0 %v4682
        %5034 = vmatpush.bf16.msra.mxu0 %v4676
        %5035 = vmatpush.bf16.msra.mxu0 %v4670
        %5036 = vmatpush.bf16.msra.mxu0 %v4664
        %5037 = vmatpush.bf16.msra.mxu0 %v4658
        %5038 = vmatpush.bf16.msra.mxu0 %v4652
        %5039 = vmatmul.bf16.gmra.mxu0 %v4208
        %v5040 = vpop.f32.mrf.mxu0
        %v5041 = vadd.f32 %v5007, %v5040
        %v5042 = vpop.f32.mrf.mxu0
        %v5043 = vadd.f32 %v5009, %v5042
        %5044 = vmatmul.bf16.gmra.mxu0 %v4210
        %v5045 = vpop.f32.mrf.mxu0
        %v5046 = vadd.f32 %v5012, %v5045
        %v5047 = vpop.f32.mrf.mxu0
        %v5048 = vadd.f32 %v5014, %v5047
        %5049 = vmatmul.bf16.gmra.mxu0 %v4212
        %v5050 = vpop.f32.mrf.mxu0
        %v5051 = vadd.f32 %v5017, %v5050
        %v5052 = vpop.f32.mrf.mxu0
        %v5053 = vadd.f32 %v5019, %v5052
        %5054 = vmatmul.bf16.gmra.mxu0 %v4214
        %v5055 = vpop.f32.mrf.mxu0
        %v5056 = vadd.f32 %v5022, %v5055
        %v5057 = vpop.f32.mrf.mxu0
        %v5058 = vadd.f32 %v5024, %v5057
        %5059 = vmatmul.bf16.gmra.mxu0 %v4216
        %v5060 = vpop.f32.mrf.mxu0
        %v5061 = vadd.f32 %v5027, %v5060
        %v5062 = vpop.f32.mrf.mxu0
        %v5063 = vadd.f32 %v5029, %v5062
        %5064 = vdwg.mxu0
        %5065 = vmatpush.bf16.msra.mxu0 %v4647
        %5066 = vmatpush.bf16.msra.mxu0 %v4641
        %5067 = vmatpush.bf16.msra.mxu0 %v4635
        %5068 = vmatpush.bf16.msra.mxu0 %v4629
        %5069 = vmatpush.bf16.msra.mxu0 %v4623
        %5070 = vmatpush.bf16.msra.mxu0 %v4617
        %5071 = vmatpush.bf16.msra.mxu0 %v4611
        %5072 = vmatpush.bf16.msra.mxu0 %v4605
        %5073 = vmatmul.bf16.gmra.mxu0 %v4207
        %v5074 = vpop.f32.mrf.mxu0
        %v5075 = vadd.f32 0.0, %v5074
        %v5076 = vpop.f32.mrf.mxu0
        %v5077 = vadd.f32 0.0, %v5076
        %5078 = vmatmul.bf16.gmra.mxu0 %v4209
        %v5079 = vpop.f32.mrf.mxu0
        %v5080 = vadd.f32 0.0, %v5079
        %v5081 = vpop.f32.mrf.mxu0
        %v5082 = vadd.f32 0.0, %v5081
        %5083 = vmatmul.bf16.gmra.mxu0 %v4211
        %v5084 = vpop.f32.mrf.mxu0
        %v5085 = vadd.f32 0.0, %v5084
        %v5086 = vpop.f32.mrf.mxu0
        %v5087 = vadd.f32 0.0, %v5086
        %5088 = vmatmul.bf16.gmra.mxu0 %v4213
        %v5089 = vpop.f32.mrf.mxu0
        %v5090 = vadd.f32 0.0, %v5089
        %v5091 = vpop.f32.mrf.mxu0
        %v5092 = vadd.f32 0.0, %v5091
        %5093 = vmatmul.bf16.gmra.mxu0 %v4215
        %v5094 = vpop.f32.mrf.mxu0
        %v5095 = vadd.f32 0.0, %v5094
        %v5096 = vpop.f32.mrf.mxu0
        %v5097 = vadd.f32 0.0, %v5096
        %5098 = vdwg.mxu0
        %5099 = vmatpush.bf16.msra.mxu0 %v4695
        %5100 = vmatpush.bf16.msra.mxu0 %v4689
        %5101 = vmatpush.bf16.msra.mxu0 %v4683
        %5102 = vmatpush.bf16.msra.mxu0 %v4677
        %5103 = vmatpush.bf16.msra.mxu0 %v4671
        %5104 = vmatpush.bf16.msra.mxu0 %v4665
        %5105 = vmatpush.bf16.msra.mxu0 %v4659
        %5106 = vmatpush.bf16.msra.mxu0 %v4653
        %5107 = vmatmul.bf16.gmra.mxu0 %v4208
        %v5108 = vpop.f32.mrf.mxu0
        %v5109 = vadd.f32 %v5075, %v5108
        %v5110 = vpop.f32.mrf.mxu0
        %v5111 = vadd.f32 %v5077, %v5110
        %5112 = vmatmul.bf16.gmra.mxu0 %v4210
        %v5113 = vpop.f32.mrf.mxu0
        %v5114 = vadd.f32 %v5080, %v5113
        %v5115 = vpop.f32.mrf.mxu0
        %v5116 = vadd.f32 %v5082, %v5115
        %5117 = vmatmul.bf16.gmra.mxu0 %v4212
        %v5118 = vpop.f32.mrf.mxu0
        %v5119 = vadd.f32 %v5085, %v5118
        %v5120 = vpop.f32.mrf.mxu0
        %v5121 = vadd.f32 %v5087, %v5120
        %5122 = vmatmul.bf16.gmra.mxu0 %v4214
        %v5123 = vpop.f32.mrf.mxu0
        %v5124 = vadd.f32 %v5090, %v5123
        %v5125 = vpop.f32.mrf.mxu0
        %v5126 = vadd.f32 %v5092, %v5125
        %5127 = vmatmul.bf16.gmra.mxu0 %v4216
        %v5128 = vpop.f32.mrf.mxu0
        %v5129 = vadd.f32 %v5095, %v5128
        %v5130 = vpop.f32.mrf.mxu0
        %v5131 = vadd.f32 %v5097, %v5130
        %5132 = vdwg.mxu0
        %5133 = vmatpush.bf16.msra.mxu0 %v4648
        %5134 = vmatpush.bf16.msra.mxu0 %v4642
        %5135 = vmatpush.bf16.msra.mxu0 %v4636
        %5136 = vmatpush.bf16.msra.mxu0 %v4630
        %5137 = vmatpush.bf16.msra.mxu0 %v4624
        %5138 = vmatpush.bf16.msra.mxu0 %v4618
        %5139 = vmatpush.bf16.msra.mxu0 %v4612
        %5140 = vmatpush.bf16.msra.mxu0 %v4606
        %5141 = vmatmul.bf16.gmra.mxu0 %v4207
        %v5142 = vpop.f32.mrf.mxu0
        %v5143 = vadd.f32 0.0, %v5142
        %v5144 = vpop.f32.mrf.mxu0
        %v5145 = vadd.f32 0.0, %v5144
        %5146 = vmatmul.bf16.gmra.mxu0 %v4209
        %v5147 = vpop.f32.mrf.mxu0
        %v5148 = vadd.f32 0.0, %v5147
        %v5149 = vpop.f32.mrf.mxu0
        %v5150 = vadd.f32 0.0, %v5149
        %5151 = vmatmul.bf16.gmra.mxu0 %v4211
        %v5152 = vpop.f32.mrf.mxu0
        %v5153 = vadd.f32 0.0, %v5152
        %v5154 = vpop.f32.mrf.mxu0
        %v5155 = vadd.f32 0.0, %v5154
        %5156 = vmatmul.bf16.gmra.mxu0 %v4213
        %v5157 = vpop.f32.mrf.mxu0
        %v5158 = vadd.f32 0.0, %v5157
        %v5159 = vpop.f32.mrf.mxu0
        %v5160 = vadd.f32 0.0, %v5159
        %5161 = vmatmul.bf16.gmra.mxu0 %v4215
        %v5162 = vpop.f32.mrf.mxu0
        %v5163 = vadd.f32 0.0, %v5162
        %v5164 = vpop.f32.mrf.mxu0
        %v5165 = vadd.f32 0.0, %v5164
        %5166 = vdwg.mxu0
        %5167 = vmatpush.bf16.msra.mxu0 %v4696
        %5168 = vmatpush.bf16.msra.mxu0 %v4690
        %5169 = vmatpush.bf16.msra.mxu0 %v4684
        %5170 = vmatpush.bf16.msra.mxu0 %v4678
        %5171 = vmatpush.bf16.msra.mxu0 %v4672
        %5172 = vmatpush.bf16.msra.mxu0 %v4666
        %5173 = vmatpush.bf16.msra.mxu0 %v4660
        %5174 = vmatpush.bf16.msra.mxu0 %v4654
        %5175 = vmatmul.bf16.gmra.mxu0 %v4208
        %v5176 = vpop.f32.mrf.mxu0
        %v5177 = vadd.f32 %v5143, %v5176
        %v5178 = vpop.f32.mrf.mxu0
        %v5179 = vadd.f32 %v5145, %v5178
        %5180 = vmatmul.bf16.gmra.mxu0 %v4210
        %v5181 = vpop.f32.mrf.mxu0
        %v5182 = vadd.f32 %v5148, %v5181
        %v5183 = vpop.f32.mrf.mxu0
        %v5184 = vadd.f32 %v5150, %v5183
        %5185 = vmatmul.bf16.gmra.mxu0 %v4212
        %v5186 = vpop.f32.mrf.mxu0
        %v5187 = vadd.f32 %v5153, %v5186
        %v5188 = vpop.f32.mrf.mxu0
        %v5189 = vadd.f32 %v5155, %v5188
        %5190 = vmatmul.bf16.gmra.mxu0 %v4214
        %v5191 = vpop.f32.mrf.mxu0
        %v5192 = vadd.f32 %v5158, %v5191
        %v5193 = vpop.f32.mrf.mxu0
        %v5194 = vadd.f32 %v5160, %v5193
        %5195 = vmatmul.bf16.gmra.mxu0 %v4216
        %v5196 = vpop.f32.mrf.mxu0
        %v5197 = vadd.f32 %v5163, %v5196
        %v5198 = vpop.f32.mrf.mxu0
        %v5199 = vadd.f32 %v5165, %v5198
        %5200 = vdwg.mxu0
        %v5221 = vrot.slane %v4837, 1
        %v5222 = vrot.slane %v4839, 1
        %v5223 = vsel %vm3839, %v5221, %v5222
        %v5224 = vrot.slane %v4905, 1
        %v5225 = vrot.slane %v4907, 1
        %v5226 = vsel %vm3839, %v5224, %v5225
        %v5227 = vrot.slane %v4842, 1
        %v5228 = vsel %vm3839, %v5222, %v5227
        %v5229 = vrot.slane %v4910, 1
        %v5230 = vsel %vm3839, %v5225, %v5229
        %v5231 = vrot.slane %v4844, 1
        %v5232 = vsel %vm3839, %v5227, %v5231
        %v5233 = vrot.slane %v4912, 1
        %v5234 = vsel %vm3839, %v5229, %v5233
        %v5235 = vrot.slane %v4847, 1
        %v5236 = vsel %vm3839, %v5231, %v5235
        %v5237 = vrot.slane %v4915, 1
        %v5238 = vsel %vm3839, %v5233, %v5237
        %v5239 = vrot.slane %v4849, 1
        %v5240 = vsel %vm3839, %v5235, %v5239
        %v5241 = vrot.slane %v4917, 1
        %v5242 = vsel %vm3839, %v5237, %v5241
        %v5243 = vrot.slane %v4852, 1
        %v5244 = vsel %vm3839, %v5239, %v5243
        %v5245 = vrot.slane %v4920, 1
        %v5246 = vsel %vm3839, %v5241, %v5245
        %v5247 = vrot.slane %v4854, 1
        %v5248 = vsel %vm3839, %v5243, %v5247
        %v5249 = vrot.slane %v4922, 1
        %v5250 = vsel %vm3839, %v5245, %v5249
        %v5251 = vrot.slane %v4857, 1
        %v5252 = vsel %vm3839, %v5247, %v5251
        %v5253 = vrot.slane %v4925, 1
        %v5254 = vsel %vm3839, %v5249, %v5253
        %v5255 = vrot.slane %v4859, 1
        %v5256 = vsel %vm3839, %v5251, %v5255
        %v5257 = vrot.slane %v4927, 1
        %v5258 = vsel %vm3839, %v5253, %v5257
        %v5279 = vsel %vm3839, %v5255, 0.0
        %v5280 = vsel %vm3839, %v5257, 0.0
        %v5281 = vadd.f32 %v5223, %v4973
        %v5282 = vadd.f32 %v5226, %v5041
        %v5283 = vadd.f32 %v5228, %v4975
        %v5284 = vadd.f32 %v5230, %v5043
        %v5285 = vadd.f32 %v5232, %v4978
        %v5286 = vadd.f32 %v5234, %v5046
        %v5287 = vadd.f32 %v5236, %v4980
        %v5288 = vadd.f32 %v5238, %v5048
        %v5289 = vadd.f32 %v5240, %v4983
        %v5290 = vadd.f32 %v5242, %v5051
        %v5291 = vadd.f32 %v5244, %v4985
        %v5292 = vadd.f32 %v5246, %v5053
        %v5293 = vadd.f32 %v5248, %v4988
        %v5294 = vadd.f32 %v5250, %v5056
        %v5295 = vadd.f32 %v5252, %v4990
        %v5296 = vadd.f32 %v5254, %v5058
        %v5297 = vadd.f32 %v5256, %v4993
        %v5298 = vadd.f32 %v5258, %v5061
        %v5299 = vadd.f32 %v5279, %v4995
        %v5300 = vadd.f32 %v5280, %v5063
        %v5321 = vrot.slane %v5109, 7
        %v5322 = vrot.slane %v5177, 7
        %v5323 = vrot.slane %v5111, 7
        %v5324 = vsel %vm3940, %v5321, %v5323
        %v5325 = vrot.slane %v5179, 7
        %v5326 = vsel %vm3940, %v5322, %v5325
        %v5327 = vrot.slane %v5114, 7
        %v5328 = vsel %vm3940, %v5323, %v5327
        %v5329 = vrot.slane %v5182, 7
        %v5330 = vsel %vm3940, %v5325, %v5329
        %v5331 = vrot.slane %v5116, 7
        %v5332 = vsel %vm3940, %v5327, %v5331
        %v5333 = vrot.slane %v5184, 7
        %v5334 = vsel %vm3940, %v5329, %v5333
        %v5335 = vrot.slane %v5119, 7
        %v5336 = vsel %vm3940, %v5331, %v5335
        %v5337 = vrot.slane %v5187, 7
        %v5338 = vsel %vm3940, %v5333, %v5337
        %v5339 = vrot.slane %v5121, 7
        %v5340 = vsel %vm3940, %v5335, %v5339
        %v5341 = vrot.slane %v5189, 7
        %v5342 = vsel %vm3940, %v5337, %v5341
        %v5343 = vrot.slane %v5124, 7
        %v5344 = vsel %vm3940, %v5339, %v5343
        %v5345 = vrot.slane %v5192, 7
        %v5346 = vsel %vm3940, %v5341, %v5345
        %v5347 = vrot.slane %v5126, 7
        %v5348 = vsel %vm3940, %v5343, %v5347
        %v5349 = vrot.slane %v5194, 7
        %v5350 = vsel %vm3940, %v5345, %v5349
        %v5351 = vrot.slane %v5129, 7
        %v5352 = vsel %vm3940, %v5347, %v5351
        %v5353 = vrot.slane %v5197, 7
        %v5354 = vsel %vm3940, %v5349, %v5353
        %v5355 = vrot.slane %v5131, 7
        %v5356 = vsel %vm3940, %v5351, %v5355
        %v5357 = vrot.slane %v5199, 7
        %v5358 = vsel %vm3940, %v5353, %v5357
        %v5379 = vsel %vm3940, 0.0, %v5321
        %v5380 = vsel %vm3940, 0.0, %v5322
        %v5381 = vadd.f32 %v5281, %v5379
        %v5382 = vadd.f32 %v5282, %v5380
        %v5383 = vadd.f32 %v5283, %v5324
        %v5384 = vadd.f32 %v5284, %v5326
        %v5385 = vadd.f32 %v5285, %v5328
        %v5386 = vadd.f32 %v5286, %v5330
        %v5387 = vadd.f32 %v5287, %v5332
        %v5388 = vadd.f32 %v5288, %v5334
        %v5389 = vadd.f32 %v5289, %v5336
        %v5390 = vadd.f32 %v5290, %v5338
        %v5391 = vadd.f32 %v5291, %v5340
        %v5392 = vadd.f32 %v5292, %v5342
        %v5393 = vadd.f32 %v5293, %v5344
        %v5394 = vadd.f32 %v5294, %v5346
        %v5395 = vadd.f32 %v5295, %v5348
        %v5396 = vadd.f32 %v5296, %v5350
        %v5397 = vadd.f32 %v5297, %v5352
        %v5398 = vadd.f32 %v5298, %v5354
        %v5399 = vadd.f32 %v5299, %v5356
        %v5400 = vadd.f32 %v5300, %v5358
        %v5401 = vld [vmem:[#allocation9] sm:$0xf]
        %v5403 = vperm.slane %v5401, 0
        %v5404 = vperm.slane %v5401, 2
        %v5407 = vperm.slane %v5403, 0
        %v5408 = vperm.slane %v5404, 0
        %v5409 = vmul.f32 %v5381, %v5407
        %v5410 = vmul.f32 %v5382, %v5408
        %v5411 = vmul.f32 %v5383, %v5407
        %v5412 = vmul.f32 %v5384, %v5408
        %v5413 = vmul.f32 %v5385, %v5407
        %v5414 = vmul.f32 %v5386, %v5408
        %v5415 = vmul.f32 %v5387, %v5407
        %v5416 = vmul.f32 %v5388, %v5408
        %v5417 = vmul.f32 %v5389, %v5407
        %v5418 = vmul.f32 %v5390, %v5408
        %v5419 = vmul.f32 %v5391, %v5407
        %v5420 = vmul.f32 %v5392, %v5408
        %v5421 = vmul.f32 %v5393, %v5407
        %v5422 = vmul.f32 %v5394, %v5408
        %v5423 = vmul.f32 %v5395, %v5407
        %v5424 = vmul.f32 %v5396, %v5408
        %v5425 = vmul.f32 %v5397, %v5407
        %v5426 = vmul.f32 %v5398, %v5408
        %v5427 = vmul.f32 %v5399, %v5407
        %v5428 = vmul.f32 %v5400, %v5408
        %v5429 = vperm.slane %v5401, 1
        %v5430 = vperm.slane %v5401, 3
        %v5433 = vperm.slane %v5429, 1
        %v5434 = vperm.slane %v5430, 1
        %v5435 = vadd.f32 %v5409, %v5433
        %v5436 = vadd.f32 %v5410, %v5434
        %v5437 = vadd.f32 %v5411, %v5433
        %v5438 = vadd.f32 %v5412, %v5434
        %v5439 = vadd.f32 %v5413, %v5433
        %v5440 = vadd.f32 %v5414, %v5434
        %v5441 = vadd.f32 %v5415, %v5433
        %v5442 = vadd.f32 %v5416, %v5434
        %v5443 = vadd.f32 %v5417, %v5433
        %v5444 = vadd.f32 %v5418, %v5434
        %v5445 = vadd.f32 %v5419, %v5433
        %v5446 = vadd.f32 %v5420, %v5434
        %v5447 = vadd.f32 %v5421, %v5433
        %v5448 = vadd.f32 %v5422, %v5434
        %v5449 = vadd.f32 %v5423, %v5433
        %v5450 = vadd.f32 %v5424, %v5434
        %v5451 = vadd.f32 %v5425, %v5433
        %v5452 = vadd.f32 %v5426, %v5434
        %v5453 = vadd.f32 %v5427, %v5433
        %v5454 = vadd.f32 %v5428, %v5434
        %v5455 = vmul.f32 %v5435, %v4078
        %v5456 = vmul.f32 %v5436, %v4078
        %v5457 = vmul.f32 %v5437, %v4083
        %v5458 = vmul.f32 %v5438, %v4083
        %v5459 = vmul.f32 %v5439, %v4088
        %v5460 = vmul.f32 %v5440, %v4088
        %v5461 = vmul.f32 %v5441, %v4093
        %v5462 = vmul.f32 %v5442, %v4093
        %v5463 = vmul.f32 %v5443, %v4098
        %v5464 = vmul.f32 %v5444, %v4098
        %v5465 = vmul.f32 %v5445, %v4103
        %v5466 = vmul.f32 %v5446, %v4103
        %v5467 = vmul.f32 %v5447, %v4108
        %v5468 = vmul.f32 %v5448, %v4108
        %v5469 = vmul.f32 %v5449, %v4113
        %v5470 = vmul.f32 %v5450, %v4113
        %v5471 = vmul.f32 %v5451, %v4118
        %v5472 = vmul.f32 %v5452, %v4118
        %v5473 = vmul.f32 %v5453, %v4123
        %v5474 = vmul.f32 %v5454, %v4123
        %s5475 = sld [smem:[#allocation6 + $0x3]]
        %vm5476 = vcmp.ge.f32.partialorder %v5455, 0.0
        %vm5477 = vcmp.ge.f32.partialorder %v5456, 0.0
        %vm5478 = vcmp.ge.f32.partialorder %v5457, 0.0
        %vm5479 = vcmp.ge.f32.partialorder %v5458, 0.0
        %vm5480 = vcmp.ge.f32.partialorder %v5459, 0.0
        %vm5481 = vcmp.ge.f32.partialorder %v5460, 0.0
        %vm5482 = vcmp.ge.f32.partialorder %v5461, 0.0
        %vm5483 = vcmp.ge.f32.partialorder %v5462, 0.0
        %vm5484 = vcmp.ge.f32.partialorder %v5463, 0.0
        %vm5485 = vcmp.ge.f32.partialorder %v5464, 0.0
        %vm5486 = vcmp.ge.f32.partialorder %v5465, 0.0
        %vm5487 = vcmp.ge.f32.partialorder %v5466, 0.0
        %vm5488 = vcmp.ge.f32.partialorder %v5467, 0.0
        %vm5489 = vcmp.ge.f32.partialorder %v5468, 0.0
        %vm5490 = vcmp.ge.f32.partialorder %v5469, 0.0
        %vm5491 = vcmp.ge.f32.partialorder %v5470, 0.0
        %vm5492 = vcmp.ge.f32.partialorder %v5471, 0.0
        %vm5493 = vcmp.ge.f32.partialorder %v5472, 0.0
        %vm5494 = vcmp.ge.f32.partialorder %v5473, 0.0
        %vm5495 = vcmp.ge.f32.partialorder %v5474, 0.0
        %v5496 = vstv %s5475
        %v5497 = vmul.f32 %v5496, %v5455
        %v5498 = vmul.f32 %v5496, %v5456
        %v5499 = vmul.f32 %v5496, %v5457
        %v5500 = vmul.f32 %v5496, %v5458
        %v5501 = vmul.f32 %v5496, %v5459
        %v5502 = vmul.f32 %v5496, %v5460
        %v5503 = vmul.f32 %v5496, %v5461
        %v5504 = vmul.f32 %v5496, %v5462
        %v5505 = vmul.f32 %v5496, %v5463
        %v5506 = vmul.f32 %v5496, %v5464
        %v5507 = vmul.f32 %v5496, %v5465
        %v5508 = vmul.f32 %v5496, %v5466
        %v5509 = vmul.f32 %v5496, %v5467
        %v5510 = vmul.f32 %v5496, %v5468
        %v5511 = vmul.f32 %v5496, %v5469
        %v5512 = vmul.f32 %v5496, %v5470
        %v5513 = vmul.f32 %v5496, %v5471
        %v5514 = vmul.f32 %v5496, %v5472
        %v5515 = vmul.f32 %v5496, %v5473
        %v5516 = vmul.f32 %v5496, %v5474
        %v5517 = vsel %vm5476, %v5455, %v5497
        %v5518 = vsel %vm5477, %v5456, %v5498
        %v5519 = vsel %vm5478, %v5457, %v5499
        %v5520 = vsel %vm5479, %v5458, %v5500
        %v5521 = vsel %vm5480, %v5459, %v5501
        %v5522 = vsel %vm5481, %v5460, %v5502
        %v5523 = vsel %vm5482, %v5461, %v5503
        %v5524 = vsel %vm5483, %v5462, %v5504
        %v5525 = vsel %vm5484, %v5463, %v5505
        %v5526 = vsel %vm5485, %v5464, %v5506
        %v5527 = vsel %vm5486, %v5465, %v5507
        %v5528 = vsel %vm5487, %v5466, %v5508
        %v5529 = vsel %vm5488, %v5467, %v5509
        %v5530 = vsel %vm5489, %v5468, %v5510
        %v5531 = vsel %vm5490, %v5469, %v5511
        %v5532 = vsel %vm5491, %v5470, %v5512
        %v5533 = vsel %vm5492, %v5471, %v5513
        %v5534 = vsel %vm5493, %v5472, %v5514
        %v5535 = vsel %vm5494, %v5473, %v5515
        %v5536 = vsel %vm5495, %v5474, %v5516
        %v5537 = vpack.c.bf16 %v5519, %v5517
        %v5538 = vpack.c.bf16 %v5520, %v5518
        %v5539 = vpack.c.bf16 %v5523, %v5521
        %v5540 = vpack.c.bf16 %v5524, %v5522
        %v5541 = vpack.c.bf16 %v5527, %v5525
        %v5542 = vpack.c.bf16 %v5528, %v5526
        %v5543 = vpack.c.bf16 %v5531, %v5529
        %v5544 = vpack.c.bf16 %v5532, %v5530
        %v5545 = vpack.c.bf16 %v5535, %v5533
        %v5546 = vpack.c.bf16 %v5536, %v5534
        %v5547 = vld [vmem:[#allocation11] sm:$0xff]
        %v5548 = vld [vmem:[#allocation11 + $0x8] sm:$0xff]
        %v5549 = vld [vmem:[#allocation11 + $0x10] sm:$0xff]
        %v5550 = vld [vmem:[#allocation11 + $0x18] sm:$0xff]
        %v5551 = vld [vmem:[#allocation11 + $0x20] sm:$0xff]
        %v5552 = vld [vmem:[#allocation11 + $0x28] sm:$0xff]
        %v5553 = vld [vmem:[#allocation11 + $0x30] sm:$0xff]
        %v5554 = vld [vmem:[#allocation11 + $0x38] sm:$0xff]
        %v5555 = vld [vmem:[#allocation11 + $0x40] sm:$0xff]
        %v5556 = vld [vmem:[#allocation11 + $0x48] sm:$0xff]
        %v5557 = vld [vmem:[#allocation11 + $0x50] sm:$0xff]
        %v5558 = vld [vmem:[#allocation11 + $0x58] sm:$0xff]
        %v5559 = vld [vmem:[#allocation11 + $0x60] sm:$0xff]
        %v5560 = vld [vmem:[#allocation11 + $0x68] sm:$0xff]
        %v5561 = vld [vmem:[#allocation11 + $0x70] sm:$0xff]
        %v5562 = vld [vmem:[#allocation11 + $0x78] sm:$0xff]
        %v5563 = vld [vmem:[#allocation11 + $0x80] sm:$0xff]
        %v5564 = vld [vmem:[#allocation11 + $0x88] sm:$0xff]
        %v5565 = vld [vmem:[#allocation11 + $0x90] sm:$0xff]
        %v5566 = vld [vmem:[#allocation11 + $0x98] sm:$0xff]
        %v5567 = vld [vmem:[#allocation11 + $0xa0] sm:$0xff]
        %v5568 = vld [vmem:[#allocation11 + $0xa8] sm:$0xff]
        %v5569 = vld [vmem:[#allocation11 + $0xb0] sm:$0xff]
        %v5570 = vld [vmem:[#allocation11 + $0xb8] sm:$0xff]
        %v5571 = vld [vmem:[#allocation11 + $0xc0] sm:$0xff]
        %v5572 = vld [vmem:[#allocation11 + $0xc8] sm:$0xff]
        %v5573 = vld [vmem:[#allocation11 + $0xd0] sm:$0xff]
        %v5574 = vld [vmem:[#allocation11 + $0xd8] sm:$0xff]
        %v5575 = vld [vmem:[#allocation11 + $0xe0] sm:$0xff]
        %v5576 = vld [vmem:[#allocation11 + $0xe8] sm:$0xff]
        %v5577 = vld [vmem:[#allocation11 + $0xf0] sm:$0xff]
        %v5578 = vld [vmem:[#allocation11 + $0xf8] sm:$0xff]
        %v5579 = vld [vmem:[#allocation11 + $0x100] sm:$0xff]
        %v5580 = vld [vmem:[#allocation11 + $0x108] sm:$0xff]
        %v5581 = vld [vmem:[#allocation11 + $0x110] sm:$0xff]
        %v5582 = vld [vmem:[#allocation11 + $0x118] sm:$0xff]
        %v5583 = vld [vmem:[#allocation11 + $0x120] sm:$0xff]
        %v5584 = vld [vmem:[#allocation11 + $0x128] sm:$0xff]
        %v5585 = vld [vmem:[#allocation11 + $0x130] sm:$0xff]
        %v5586 = vld [vmem:[#allocation11 + $0x138] sm:$0xff]
        %v5587 = vld [vmem:[#allocation11 + $0x140] sm:$0xff]
        %v5588 = vld [vmem:[#allocation11 + $0x148] sm:$0xff]
        %v5589 = vld [vmem:[#allocation11 + $0x150] sm:$0xff]
        %v5590 = vld [vmem:[#allocation11 + $0x158] sm:$0xff]
        %v5591 = vld [vmem:[#allocation11 + $0x160] sm:$0xff]
        %v5592 = vld [vmem:[#allocation11 + $0x168] sm:$0xff]
        %v5593 = vld [vmem:[#allocation11 + $0x170] sm:$0xff]
        %v5594 = vld [vmem:[#allocation11 + $0x178] sm:$0xff]
        %v5595 = vld [vmem:[#allocation11 + $0x180] sm:$0xff]
        %v5596 = vld [vmem:[#allocation11 + $0x188] sm:$0xff]
        %v5597 = vld [vmem:[#allocation11 + $0x190] sm:$0xff]
        %v5598 = vld [vmem:[#allocation11 + $0x198] sm:$0xff]
        %v5599 = vld [vmem:[#allocation11 + $0x1a0] sm:$0xff]
        %v5600 = vld [vmem:[#allocation11 + $0x1a8] sm:$0xff]
        %v5601 = vld [vmem:[#allocation11 + $0x1b0] sm:$0xff]
        %v5602 = vld [vmem:[#allocation11 + $0x1b8] sm:$0xff]
        %v5603 = vld [vmem:[#allocation11 + $0x1c0] sm:$0xff]
        %v5604 = vld [vmem:[#allocation11 + $0x1c8] sm:$0xff]
        %v5605 = vld [vmem:[#allocation11 + $0x1d0] sm:$0xff]
        %v5606 = vld [vmem:[#allocation11 + $0x1d8] sm:$0xff]
        %v5607 = vld [vmem:[#allocation11 + $0x1e0] sm:$0xff]
        %v5608 = vld [vmem:[#allocation11 + $0x1e8] sm:$0xff]
        %v5609 = vld [vmem:[#allocation11 + $0x1f0] sm:$0xff]
        %v5610 = vld [vmem:[#allocation11 + $0x1f8] sm:$0xff]
        %v5611 = vld [vmem:[#allocation11 + $0x200] sm:$0xff]
        %v5612 = vld [vmem:[#allocation11 + $0x208] sm:$0xff]
        %v5613 = vld [vmem:[#allocation11 + $0x210] sm:$0xff]
        %v5614 = vld [vmem:[#allocation11 + $0x218] sm:$0xff]
        %v5615 = vld [vmem:[#allocation11 + $0x220] sm:$0xff]
        %v5616 = vld [vmem:[#allocation11 + $0x228] sm:$0xff]
        %v5617 = vld [vmem:[#allocation11 + $0x230] sm:$0xff]
        %v5618 = vld [vmem:[#allocation11 + $0x238] sm:$0xff]
        %v5619 = vld [vmem:[#allocation11 + $0x240] sm:$0xff]
        %v5620 = vld [vmem:[#allocation11 + $0x248] sm:$0xff]
        %v5621 = vld [vmem:[#allocation11 + $0x250] sm:$0xff]
        %v5622 = vld [vmem:[#allocation11 + $0x258] sm:$0xff]
        %v5623 = vld [vmem:[#allocation11 + $0x260] sm:$0xff]
        %v5624 = vld [vmem:[#allocation11 + $0x268] sm:$0xff]
        %v5625 = vld [vmem:[#allocation11 + $0x270] sm:$0xff]
        %v5626 = vld [vmem:[#allocation11 + $0x278] sm:$0xff]
        %v5627 = vld [vmem:[#allocation11 + $0x280] sm:$0xff]
        %v5628 = vld [vmem:[#allocation11 + $0x288] sm:$0xff]
        %v5629 = vld [vmem:[#allocation11 + $0x290] sm:$0xff]
        %v5630 = vld [vmem:[#allocation11 + $0x298] sm:$0xff]
        %v5631 = vld [vmem:[#allocation11 + $0x2a0] sm:$0xff]
        %v5632 = vld [vmem:[#allocation11 + $0x2a8] sm:$0xff]
        %v5633 = vld [vmem:[#allocation11 + $0x2b0] sm:$0xff]
        %v5634 = vld [vmem:[#allocation11 + $0x2b8] sm:$0xff]
        %v5635 = vld [vmem:[#allocation11 + $0x2c0] sm:$0xff]
        %v5636 = vld [vmem:[#allocation11 + $0x2c8] sm:$0xff]
        %v5637 = vld [vmem:[#allocation11 + $0x2d0] sm:$0xff]
        %v5638 = vld [vmem:[#allocation11 + $0x2d8] sm:$0xff]
        %v5639 = vld [vmem:[#allocation11 + $0x2e0] sm:$0xff]
        %v5640 = vld [vmem:[#allocation11 + $0x2e8] sm:$0xff]
        %v5641 = vld [vmem:[#allocation11 + $0x2f0] sm:$0xff]
        %v5642 = vld [vmem:[#allocation11 + $0x2f8] sm:$0xff]
        %v5739 = vunpack.c.l.b16 %v5547
        %v5740 = vunpack.c.h.b16 %v5547
        %v5741 = vunpack.c.l.b16 %v5548
        %v5742 = vunpack.c.h.b16 %v5548
        %v5743 = vunpack.c.l.b16 %v5549
        %v5744 = vunpack.c.h.b16 %v5549
        %v5745 = vunpack.c.l.b16 %v5550
        %v5746 = vunpack.c.h.b16 %v5550
        %v5747 = vunpack.c.l.b16 %v5551
        %v5748 = vunpack.c.h.b16 %v5551
        %v5749 = vunpack.c.l.b16 %v5552
        %v5750 = vunpack.c.h.b16 %v5552
        %v5751 = vunpack.c.l.b16 %v5553
        %v5752 = vunpack.c.h.b16 %v5553
        %v5753 = vunpack.c.l.b16 %v5554
        %v5754 = vunpack.c.h.b16 %v5554
        %v5755 = vunpack.c.l.b16 %v5555
        %v5756 = vunpack.c.h.b16 %v5555
        %v5757 = vunpack.c.l.b16 %v5556
        %v5758 = vunpack.c.h.b16 %v5556
        %v5759 = vunpack.c.l.b16 %v5557
        %v5760 = vunpack.c.h.b16 %v5557
        %v5761 = vunpack.c.l.b16 %v5558
        %v5762 = vunpack.c.h.b16 %v5558
        %v5763 = vunpack.c.l.b16 %v5559
        %v5764 = vunpack.c.h.b16 %v5559
        %v5765 = vunpack.c.l.b16 %v5560
        %v5766 = vunpack.c.h.b16 %v5560
        %v5767 = vunpack.c.l.b16 %v5561
        %v5768 = vunpack.c.h.b16 %v5561
        %v5769 = vunpack.c.l.b16 %v5562
        %v5770 = vunpack.c.h.b16 %v5562
        %v5771 = vunpack.c.l.b16 %v5563
        %v5772 = vunpack.c.h.b16 %v5563
        %v5773 = vunpack.c.l.b16 %v5564
        %v5774 = vunpack.c.h.b16 %v5564
        %v5775 = vunpack.c.l.b16 %v5565
        %v5776 = vunpack.c.h.b16 %v5565
        %v5777 = vunpack.c.l.b16 %v5566
        %v5778 = vunpack.c.h.b16 %v5566
        %v5779 = vunpack.c.l.b16 %v5567
        %v5780 = vunpack.c.h.b16 %v5567
        %v5781 = vunpack.c.l.b16 %v5568
        %v5782 = vunpack.c.h.b16 %v5568
        %v5783 = vunpack.c.l.b16 %v5569
        %v5784 = vunpack.c.h.b16 %v5569
        %v5785 = vunpack.c.l.b16 %v5570
        %v5786 = vunpack.c.h.b16 %v5570
        %v5787 = vunpack.c.l.b16 %v5571
        %v5788 = vunpack.c.h.b16 %v5571
        %v5789 = vunpack.c.l.b16 %v5572
        %v5790 = vunpack.c.h.b16 %v5572
        %v5791 = vunpack.c.l.b16 %v5573
        %v5792 = vunpack.c.h.b16 %v5573
        %v5793 = vunpack.c.l.b16 %v5574
        %v5794 = vunpack.c.h.b16 %v5574
        %v5795 = vunpack.c.l.b16 %v5575
        %v5796 = vunpack.c.h.b16 %v5575
        %v5797 = vunpack.c.l.b16 %v5576
        %v5798 = vunpack.c.h.b16 %v5576
        %v5799 = vunpack.c.l.b16 %v5577
        %v5800 = vunpack.c.h.b16 %v5577
        %v5801 = vunpack.c.l.b16 %v5578
        %v5802 = vunpack.c.h.b16 %v5578
        %v5803 = vunpack.c.l.b16 %v5579
        %v5804 = vunpack.c.h.b16 %v5579
        %v5805 = vunpack.c.l.b16 %v5580
        %v5806 = vunpack.c.h.b16 %v5580
        %v5807 = vunpack.c.l.b16 %v5581
        %v5808 = vunpack.c.h.b16 %v5581
        %v5809 = vunpack.c.l.b16 %v5582
        %v5810 = vunpack.c.h.b16 %v5582
        %v5811 = vunpack.c.l.b16 %v5583
        %v5812 = vunpack.c.h.b16 %v5583
        %v5813 = vunpack.c.l.b16 %v5584
        %v5814 = vunpack.c.h.b16 %v5584
        %v5815 = vunpack.c.l.b16 %v5585
        %v5816 = vunpack.c.h.b16 %v5585
        %v5817 = vunpack.c.l.b16 %v5586
        %v5818 = vunpack.c.h.b16 %v5586
        %v5819 = vunpack.c.l.b16 %v5587
        %v5820 = vunpack.c.h.b16 %v5587
        %v5821 = vunpack.c.l.b16 %v5588
        %v5822 = vunpack.c.h.b16 %v5588
        %v5823 = vunpack.c.l.b16 %v5589
        %v5824 = vunpack.c.h.b16 %v5589
        %v5825 = vunpack.c.l.b16 %v5590
        %v5826 = vunpack.c.h.b16 %v5590
        %v5827 = vunpack.c.l.b16 %v5591
        %v5828 = vunpack.c.h.b16 %v5591
        %v5829 = vunpack.c.l.b16 %v5592
        %v5830 = vunpack.c.h.b16 %v5592
        %v5831 = vunpack.c.l.b16 %v5593
        %v5832 = vunpack.c.h.b16 %v5593
        %v5833 = vunpack.c.l.b16 %v5594
        %v5834 = vunpack.c.h.b16 %v5594
        %v5835 = vunpack.c.l.b16 %v5595
        %v5836 = vunpack.c.h.b16 %v5595
        %v5837 = vunpack.c.l.b16 %v5596
        %v5838 = vunpack.c.h.b16 %v5596
        %v5839 = vunpack.c.l.b16 %v5597
        %v5840 = vunpack.c.h.b16 %v5597
        %v5841 = vunpack.c.l.b16 %v5598
        %v5842 = vunpack.c.h.b16 %v5598
        %v5843 = vunpack.c.l.b16 %v5599
        %v5844 = vunpack.c.h.b16 %v5599
        %v5845 = vunpack.c.l.b16 %v5600
        %v5846 = vunpack.c.h.b16 %v5600
        %v5847 = vunpack.c.l.b16 %v5601
        %v5848 = vunpack.c.h.b16 %v5601
        %v5849 = vunpack.c.l.b16 %v5602
        %v5850 = vunpack.c.h.b16 %v5602
        %v5851 = vunpack.c.l.b16 %v5603
        %v5852 = vunpack.c.h.b16 %v5603
        %v5853 = vunpack.c.l.b16 %v5604
        %v5854 = vunpack.c.h.b16 %v5604
        %v5855 = vunpack.c.l.b16 %v5605
        %v5856 = vunpack.c.h.b16 %v5605
        %v5857 = vunpack.c.l.b16 %v5606
        %v5858 = vunpack.c.h.b16 %v5606
        %v5859 = vunpack.c.l.b16 %v5607
        %v5860 = vunpack.c.h.b16 %v5607
        %v5861 = vunpack.c.l.b16 %v5608
        %v5862 = vunpack.c.h.b16 %v5608
        %v5863 = vunpack.c.l.b16 %v5609
        %v5864 = vunpack.c.h.b16 %v5609
        %v5865 = vunpack.c.l.b16 %v5610
        %v5866 = vunpack.c.h.b16 %v5610
        %v5867 = vunpack.c.l.b16 %v5611
        %v5868 = vunpack.c.h.b16 %v5611
        %v5869 = vunpack.c.l.b16 %v5612
        %v5870 = vunpack.c.h.b16 %v5612
        %v5871 = vunpack.c.l.b16 %v5613
        %v5872 = vunpack.c.h.b16 %v5613
        %v5873 = vunpack.c.l.b16 %v5614
        %v5874 = vunpack.c.h.b16 %v5614
        %v5875 = vunpack.c.l.b16 %v5615
        %v5876 = vunpack.c.h.b16 %v5615
        %v5877 = vunpack.c.l.b16 %v5616
        %v5878 = vunpack.c.h.b16 %v5616
        %v5879 = vunpack.c.l.b16 %v5617
        %v5880 = vunpack.c.h.b16 %v5617
        %v5881 = vunpack.c.l.b16 %v5618
        %v5882 = vunpack.c.h.b16 %v5618
        %v5883 = vunpack.c.l.b16 %v5619
        %v5884 = vunpack.c.h.b16 %v5619
        %v5885 = vunpack.c.l.b16 %v5620
        %v5886 = vunpack.c.h.b16 %v5620
        %v5887 = vunpack.c.l.b16 %v5621
        %v5888 = vunpack.c.h.b16 %v5621
        %v5889 = vunpack.c.l.b16 %v5622
        %v5890 = vunpack.c.h.b16 %v5622
        %v5891 = vunpack.c.l.b16 %v5623
        %v5892 = vunpack.c.h.b16 %v5623
        %v5893 = vunpack.c.l.b16 %v5624
        %v5894 = vunpack.c.h.b16 %v5624
        %v5895 = vunpack.c.l.b16 %v5625
        %v5896 = vunpack.c.h.b16 %v5625
        %v5897 = vunpack.c.l.b16 %v5626
        %v5898 = vunpack.c.h.b16 %v5626
        %v5899 = vunpack.c.l.b16 %v5627
        %v5900 = vunpack.c.h.b16 %v5627
        %v5901 = vunpack.c.l.b16 %v5628
        %v5902 = vunpack.c.h.b16 %v5628
        %v5903 = vunpack.c.l.b16 %v5629
        %v5904 = vunpack.c.h.b16 %v5629
        %v5905 = vunpack.c.l.b16 %v5630
        %v5906 = vunpack.c.h.b16 %v5630
        %v5907 = vunpack.c.l.b16 %v5631
        %v5908 = vunpack.c.h.b16 %v5631
        %v5909 = vunpack.c.l.b16 %v5632
        %v5910 = vunpack.c.h.b16 %v5632
        %v5911 = vunpack.c.l.b16 %v5633
        %v5912 = vunpack.c.h.b16 %v5633
        %v5913 = vunpack.c.l.b16 %v5634
        %v5914 = vunpack.c.h.b16 %v5634
        %v5915 = vunpack.c.l.b16 %v5635
        %v5916 = vunpack.c.h.b16 %v5635
        %v5917 = vunpack.c.l.b16 %v5636
        %v5918 = vunpack.c.h.b16 %v5636
        %v5919 = vunpack.c.l.b16 %v5637
        %v5920 = vunpack.c.h.b16 %v5637
        %v5921 = vunpack.c.l.b16 %v5638
        %v5922 = vunpack.c.h.b16 %v5638
        %v5923 = vunpack.c.l.b16 %v5639
        %v5924 = vunpack.c.h.b16 %v5639
        %v5925 = vunpack.c.l.b16 %v5640
        %v5926 = vunpack.c.h.b16 %v5640
        %v5927 = vunpack.c.l.b16 %v5641
        %v5928 = vunpack.c.h.b16 %v5641
        %v5929 = vunpack.c.l.b16 %v5642
        %v5930 = vunpack.c.h.b16 %v5642
        %v5931 = vpack.c.b16 %v5745, %v5739
        %v5932 = vpack.c.b16 %v5746, %v5740
        %v5933 = vpack.c.b16 %v5747, %v5741
        %v5934 = vpack.c.b16 %v5748, %v5742
        %v5935 = vpack.c.b16 %v5749, %v5743
        %v5936 = vpack.c.b16 %v5750, %v5744
        %v5937 = vpack.c.b16 %v5757, %v5751
        %v5938 = vpack.c.b16 %v5758, %v5752
        %v5939 = vpack.c.b16 %v5759, %v5753
        %v5940 = vpack.c.b16 %v5760, %v5754
        %v5941 = vpack.c.b16 %v5761, %v5755
        %v5942 = vpack.c.b16 %v5762, %v5756
        %v5943 = vpack.c.b16 %v5769, %v5763
        %v5944 = vpack.c.b16 %v5770, %v5764
        %v5945 = vpack.c.b16 %v5771, %v5765
        %v5946 = vpack.c.b16 %v5772, %v5766
        %v5947 = vpack.c.b16 %v5773, %v5767
        %v5948 = vpack.c.b16 %v5774, %v5768
        %v5949 = vpack.c.b16 %v5781, %v5775
        %v5950 = vpack.c.b16 %v5782, %v5776
        %v5951 = vpack.c.b16 %v5783, %v5777
        %v5952 = vpack.c.b16 %v5784, %v5778
        %v5953 = vpack.c.b16 %v5785, %v5779
        %v5954 = vpack.c.b16 %v5786, %v5780
        %v5955 = vpack.c.b16 %v5793, %v5787
        %v5956 = vpack.c.b16 %v5794, %v5788
        %v5957 = vpack.c.b16 %v5795, %v5789
        %v5958 = vpack.c.b16 %v5796, %v5790
        %v5959 = vpack.c.b16 %v5797, %v5791
        %v5960 = vpack.c.b16 %v5798, %v5792
        %v5961 = vpack.c.b16 %v5805, %v5799
        %v5962 = vpack.c.b16 %v5806, %v5800
        %v5963 = vpack.c.b16 %v5807, %v5801
        %v5964 = vpack.c.b16 %v5808, %v5802
        %v5965 = vpack.c.b16 %v5809, %v5803
        %v5966 = vpack.c.b16 %v5810, %v5804
        %v5967 = vpack.c.b16 %v5817, %v5811
        %v5968 = vpack.c.b16 %v5818, %v5812
        %v5969 = vpack.c.b16 %v5819, %v5813
        %v5970 = vpack.c.b16 %v5820, %v5814
        %v5971 = vpack.c.b16 %v5821, %v5815
        %v5972 = vpack.c.b16 %v5822, %v5816
        %v5973 = vpack.c.b16 %v5829, %v5823
        %v5974 = vpack.c.b16 %v5830, %v5824
        %v5975 = vpack.c.b16 %v5831, %v5825
        %v5976 = vpack.c.b16 %v5832, %v5826
        %v5977 = vpack.c.b16 %v5833, %v5827
        %v5978 = vpack.c.b16 %v5834, %v5828
        %v5979 = vpack.c.b16 %v5841, %v5835
        %v5980 = vpack.c.b16 %v5842, %v5836
        %v5981 = vpack.c.b16 %v5843, %v5837
        %v5982 = vpack.c.b16 %v5844, %v5838
        %v5983 = vpack.c.b16 %v5845, %v5839
        %v5984 = vpack.c.b16 %v5846, %v5840
        %v5985 = vpack.c.b16 %v5853, %v5847
        %v5986 = vpack.c.b16 %v5854, %v5848
        %v5987 = vpack.c.b16 %v5855, %v5849
        %v5988 = vpack.c.b16 %v5856, %v5850
        %v5989 = vpack.c.b16 %v5857, %v5851
        %v5990 = vpack.c.b16 %v5858, %v5852
        %v5991 = vpack.c.b16 %v5865, %v5859
        %v5992 = vpack.c.b16 %v5866, %v5860
        %v5993 = vpack.c.b16 %v5867, %v5861
        %v5994 = vpack.c.b16 %v5868, %v5862
        %v5995 = vpack.c.b16 %v5869, %v5863
        %v5996 = vpack.c.b16 %v5870, %v5864
        %v5997 = vpack.c.b16 %v5877, %v5871
        %v5998 = vpack.c.b16 %v5878, %v5872
        %v5999 = vpack.c.b16 %v5879, %v5873
        %v6000 = vpack.c.b16 %v5880, %v5874
        %v6001 = vpack.c.b16 %v5881, %v5875
        %v6002 = vpack.c.b16 %v5882, %v5876
        %v6003 = vpack.c.b16 %v5889, %v5883
        %v6004 = vpack.c.b16 %v5890, %v5884
        %v6005 = vpack.c.b16 %v5891, %v5885
        %v6006 = vpack.c.b16 %v5892, %v5886
        %v6007 = vpack.c.b16 %v5893, %v5887
        %v6008 = vpack.c.b16 %v5894, %v5888
        %v6009 = vpack.c.b16 %v5901, %v5895
        %v6010 = vpack.c.b16 %v5902, %v5896
        %v6011 = vpack.c.b16 %v5903, %v5897
        %v6012 = vpack.c.b16 %v5904, %v5898
        %v6013 = vpack.c.b16 %v5905, %v5899
        %v6014 = vpack.c.b16 %v5906, %v5900
        %v6015 = vpack.c.b16 %v5913, %v5907
        %v6016 = vpack.c.b16 %v5914, %v5908
        %v6017 = vpack.c.b16 %v5915, %v5909
        %v6018 = vpack.c.b16 %v5916, %v5910
        %v6019 = vpack.c.b16 %v5917, %v5911
        %v6020 = vpack.c.b16 %v5918, %v5912
        %v6021 = vpack.c.b16 %v5925, %v5919
        %v6022 = vpack.c.b16 %v5926, %v5920
        %v6023 = vpack.c.b16 %v5927, %v5921
        %v6024 = vpack.c.b16 %v5928, %v5922
        %v6025 = vpack.c.b16 %v5929, %v5923
        %v6026 = vpack.c.b16 %v5930, %v5924
        %6123 = vmatpush.bf16.msra.mxu0 %v5973
        %6124 = vmatpush.bf16.msra.mxu0 %v5967
        %6125 = vmatpush.bf16.msra.mxu0 %v5961
        %6126 = vmatpush.bf16.msra.mxu0 %v5955
        %6127 = vmatpush.bf16.msra.mxu0 %v5949
        %6128 = vmatpush.bf16.msra.mxu0 %v5943
        %6129 = vmatpush.bf16.msra.mxu0 %v5937
        %6130 = vmatpush.bf16.msra.mxu0 %v5931
        %6131 = vmatmul.bf16.gmra.mxu0 %v5537
        %v6132 = vpop.f32.mrf.mxu0
        %v6133 = vadd.f32 0.0, %v6132
        %v6134 = vpop.f32.mrf.mxu0
        %v6135 = vadd.f32 0.0, %v6134
        %6136 = vmatmul.bf16.gmra.mxu0 %v5539
        %v6137 = vpop.f32.mrf.mxu0
        %v6138 = vadd.f32 0.0, %v6137
        %v6139 = vpop.f32.mrf.mxu0
        %v6140 = vadd.f32 0.0, %v6139
        %6141 = vmatmul.bf16.gmra.mxu0 %v5541
        %v6142 = vpop.f32.mrf.mxu0
        %v6143 = vadd.f32 0.0, %v6142
        %v6144 = vpop.f32.mrf.mxu0
        %v6145 = vadd.f32 0.0, %v6144
        %6146 = vmatmul.bf16.gmra.mxu0 %v5543
        %v6147 = vpop.f32.mrf.mxu0
        %v6148 = vadd.f32 0.0, %v6147
        %v6149 = vpop.f32.mrf.mxu0
        %v6150 = vadd.f32 0.0, %v6149
        %6151 = vmatmul.bf16.gmra.mxu0 %v5545
        %v6152 = vpop.f32.mrf.mxu0
        %v6153 = vadd.f32 0.0, %v6152
        %v6154 = vpop.f32.mrf.mxu0
        %v6155 = vadd.f32 0.0, %v6154
        %6156 = vdwg.mxu0
        %6157 = vmatpush.bf16.msra.mxu0 %v6021
        %6158 = vmatpush.bf16.msra.mxu0 %v6015
        %6159 = vmatpush.bf16.msra.mxu0 %v6009
        %6160 = vmatpush.bf16.msra.mxu0 %v6003
        %6161 = vmatpush.bf16.msra.mxu0 %v5997
        %6162 = vmatpush.bf16.msra.mxu0 %v5991
        %6163 = vmatpush.bf16.msra.mxu0 %v5985
        %6164 = vmatpush.bf16.msra.mxu0 %v5979
        %6165 = vmatmul.bf16.gmra.mxu0 %v5538
        %v6166 = vpop.f32.mrf.mxu0
        %v6167 = vadd.f32 %v6133, %v6166
        %v6168 = vpop.f32.mrf.mxu0
        %v6169 = vadd.f32 %v6135, %v6168
        %6170 = vmatmul.bf16.gmra.mxu0 %v5540
        %v6171 = vpop.f32.mrf.mxu0
        %v6172 = vadd.f32 %v6138, %v6171
        %v6173 = vpop.f32.mrf.mxu0
        %v6174 = vadd.f32 %v6140, %v6173
        %6175 = vmatmul.bf16.gmra.mxu0 %v5542
        %v6176 = vpop.f32.mrf.mxu0
        %v6177 = vadd.f32 %v6143, %v6176
        %v6178 = vpop.f32.mrf.mxu0
        %v6179 = vadd.f32 %v6145, %v6178
        %6180 = vmatmul.bf16.gmra.mxu0 %v5544
        %v6181 = vpop.f32.mrf.mxu0
        %v6182 = vadd.f32 %v6148, %v6181
        %v6183 = vpop.f32.mrf.mxu0
        %v6184 = vadd.f32 %v6150, %v6183
        %6185 = vmatmul.bf16.gmra.mxu0 %v5546
        %v6186 = vpop.f32.mrf.mxu0
        %v6187 = vadd.f32 %v6153, %v6186
        %v6188 = vpop.f32.mrf.mxu0
        %v6189 = vadd.f32 %v6155, %v6188
        %6190 = vdwg.mxu0
        %6191 = vmatpush.bf16.msra.mxu0 %v5974
        %6192 = vmatpush.bf16.msra.mxu0 %v5968
        %6193 = vmatpush.bf16.msra.mxu0 %v5962
        %6194 = vmatpush.bf16.msra.mxu0 %v5956
        %6195 = vmatpush.bf16.msra.mxu0 %v5950
        %6196 = vmatpush.bf16.msra.mxu0 %v5944
        %6197 = vmatpush.bf16.msra.mxu0 %v5938
        %6198 = vmatpush.bf16.msra.mxu0 %v5932
        %6199 = vmatmul.bf16.gmra.mxu0 %v5537
        %v6200 = vpop.f32.mrf.mxu0
        %v6201 = vadd.f32 0.0, %v6200
        %v6202 = vpop.f32.mrf.mxu0
        %v6203 = vadd.f32 0.0, %v6202
        %6204 = vmatmul.bf16.gmra.mxu0 %v5539
        %v6205 = vpop.f32.mrf.mxu0
        %v6206 = vadd.f32 0.0, %v6205
        %v6207 = vpop.f32.mrf.mxu0
        %v6208 = vadd.f32 0.0, %v6207
        %6209 = vmatmul.bf16.gmra.mxu0 %v5541
        %v6210 = vpop.f32.mrf.mxu0
        %v6211 = vadd.f32 0.0, %v6210
        %v6212 = vpop.f32.mrf.mxu0
        %v6213 = vadd.f32 0.0, %v6212
        %6214 = vmatmul.bf16.gmra.mxu0 %v5543
        %v6215 = vpop.f32.mrf.mxu0
        %v6216 = vadd.f32 0.0, %v6215
        %v6217 = vpop.f32.mrf.mxu0
        %v6218 = vadd.f32 0.0, %v6217
        %6219 = vmatmul.bf16.gmra.mxu0 %v5545
        %v6220 = vpop.f32.mrf.mxu0
        %v6221 = vadd.f32 0.0, %v6220
        %v6222 = vpop.f32.mrf.mxu0
        %v6223 = vadd.f32 0.0, %v6222
        %6224 = vdwg.mxu0
        %6225 = vmatpush.bf16.msra.mxu0 %v6022
        %6226 = vmatpush.bf16.msra.mxu0 %v6016
        %6227 = vmatpush.bf16.msra.mxu0 %v6010
        %6228 = vmatpush.bf16.msra.mxu0 %v6004
        %6229 = vmatpush.bf16.msra.mxu0 %v5998
        %6230 = vmatpush.bf16.msra.mxu0 %v5992
        %6231 = vmatpush.bf16.msra.mxu0 %v5986
        %6232 = vmatpush.bf16.msra.mxu0 %v5980
        %6233 = vmatmul.bf16.gmra.mxu0 %v5538
        %v6234 = vpop.f32.mrf.mxu0
        %v6235 = vadd.f32 %v6201, %v6234
        %v6236 = vpop.f32.mrf.mxu0
        %v6237 = vadd.f32 %v6203, %v6236
        %6238 = vmatmul.bf16.gmra.mxu0 %v5540
        %v6239 = vpop.f32.mrf.mxu0
        %v6240 = vadd.f32 %v6206, %v6239
        %v6241 = vpop.f32.mrf.mxu0
        %v6242 = vadd.f32 %v6208, %v6241
        %6243 = vmatmul.bf16.gmra.mxu0 %v5542
        %v6244 = vpop.f32.mrf.mxu0
        %v6245 = vadd.f32 %v6211, %v6244
        %v6246 = vpop.f32.mrf.mxu0
        %v6247 = vadd.f32 %v6213, %v6246
        %6248 = vmatmul.bf16.gmra.mxu0 %v5544
        %v6249 = vpop.f32.mrf.mxu0
        %v6250 = vadd.f32 %v6216, %v6249
        %v6251 = vpop.f32.mrf.mxu0
        %v6252 = vadd.f32 %v6218, %v6251
        %6253 = vmatmul.bf16.gmra.mxu0 %v5546
        %v6254 = vpop.f32.mrf.mxu0
        %v6255 = vadd.f32 %v6221, %v6254
        %v6256 = vpop.f32.mrf.mxu0
        %v6257 = vadd.f32 %v6223, %v6256
        %6258 = vdwg.mxu0
        %6259 = vmatpush.bf16.msra.mxu0 %v5975
        %6260 = vmatpush.bf16.msra.mxu0 %v5969
        %6261 = vmatpush.bf16.msra.mxu0 %v5963
        %6262 = vmatpush.bf16.msra.mxu0 %v5957
        %6263 = vmatpush.bf16.msra.mxu0 %v5951
        %6264 = vmatpush.bf16.msra.mxu0 %v5945
        %6265 = vmatpush.bf16.msra.mxu0 %v5939
        %6266 = vmatpush.bf16.msra.mxu0 %v5933
        %6267 = vmatmul.bf16.gmra.mxu0 %v5537
        %v6268 = vpop.f32.mrf.mxu0
        %v6269 = vadd.f32 0.0, %v6268
        %v6270 = vpop.f32.mrf.mxu0
        %v6271 = vadd.f32 0.0, %v6270
        %6272 = vmatmul.bf16.gmra.mxu0 %v5539
        %v6273 = vpop.f32.mrf.mxu0
        %v6274 = vadd.f32 0.0, %v6273
        %v6275 = vpop.f32.mrf.mxu0
        %v6276 = vadd.f32 0.0, %v6275
        %6277 = vmatmul.bf16.gmra.mxu0 %v5541
        %v6278 = vpop.f32.mrf.mxu0
        %v6279 = vadd.f32 0.0, %v6278
        %v6280 = vpop.f32.mrf.mxu0
        %v6281 = vadd.f32 0.0, %v6280
        %6282 = vmatmul.bf16.gmra.mxu0 %v5543
        %v6283 = vpop.f32.mrf.mxu0
        %v6284 = vadd.f32 0.0, %v6283
        %v6285 = vpop.f32.mrf.mxu0
        %v6286 = vadd.f32 0.0, %v6285
        %6287 = vmatmul.bf16.gmra.mxu0 %v5545
        %v6288 = vpop.f32.mrf.mxu0
        %v6289 = vadd.f32 0.0, %v6288
        %v6290 = vpop.f32.mrf.mxu0
        %v6291 = vadd.f32 0.0, %v6290
        %6292 = vdwg.mxu0
        %6293 = vmatpush.bf16.msra.mxu0 %v6023
        %6294 = vmatpush.bf16.msra.mxu0 %v6017
        %6295 = vmatpush.bf16.msra.mxu0 %v6011
        %6296 = vmatpush.bf16.msra.mxu0 %v6005
        %6297 = vmatpush.bf16.msra.mxu0 %v5999
        %6298 = vmatpush.bf16.msra.mxu0 %v5993
        %6299 = vmatpush.bf16.msra.mxu0 %v5987
        %6300 = vmatpush.bf16.msra.mxu0 %v5981
        %6301 = vmatmul.bf16.gmra.mxu0 %v5538
        %v6302 = vpop.f32.mrf.mxu0
        %v6303 = vadd.f32 %v6269, %v6302
        %v6304 = vpop.f32.mrf.mxu0
        %v6305 = vadd.f32 %v6271, %v6304
        %6306 = vmatmul.bf16.gmra.mxu0 %v5540
        %v6307 = vpop.f32.mrf.mxu0
        %v6308 = vadd.f32 %v6274, %v6307
        %v6309 = vpop.f32.mrf.mxu0
        %v6310 = vadd.f32 %v6276, %v6309
        %6311 = vmatmul.bf16.gmra.mxu0 %v5542
        %v6312 = vpop.f32.mrf.mxu0
        %v6313 = vadd.f32 %v6279, %v6312
        %v6314 = vpop.f32.mrf.mxu0
        %v6315 = vadd.f32 %v6281, %v6314
        %6316 = vmatmul.bf16.gmra.mxu0 %v5544
        %v6317 = vpop.f32.mrf.mxu0
        %v6318 = vadd.f32 %v6284, %v6317
        %v6319 = vpop.f32.mrf.mxu0
        %v6320 = vadd.f32 %v6286, %v6319
        %6321 = vmatmul.bf16.gmra.mxu0 %v5546
        %v6322 = vpop.f32.mrf.mxu0
        %v6323 = vadd.f32 %v6289, %v6322
        %v6324 = vpop.f32.mrf.mxu0
        %v6325 = vadd.f32 %v6291, %v6324
        %6326 = vdwg.mxu0
        %6327 = vmatpush.bf16.msra.mxu0 %v5976
        %6328 = vmatpush.bf16.msra.mxu0 %v5970
        %6329 = vmatpush.bf16.msra.mxu0 %v5964
        %6330 = vmatpush.bf16.msra.mxu0 %v5958
        %6331 = vmatpush.bf16.msra.mxu0 %v5952
        %6332 = vmatpush.bf16.msra.mxu0 %v5946
        %6333 = vmatpush.bf16.msra.mxu0 %v5940
        %6334 = vmatpush.bf16.msra.mxu0 %v5934
        %6335 = vmatmul.bf16.gmra.mxu0 %v5537
        %v6336 = vpop.f32.mrf.mxu0
        %v6337 = vadd.f32 0.0, %v6336
        %v6338 = vpop.f32.mrf.mxu0
        %v6339 = vadd.f32 0.0, %v6338
        %6340 = vmatmul.bf16.gmra.mxu0 %v5539
        %v6341 = vpop.f32.mrf.mxu0
        %v6342 = vadd.f32 0.0, %v6341
        %v6343 = vpop.f32.mrf.mxu0
        %v6344 = vadd.f32 0.0, %v6343
        %6345 = vmatmul.bf16.gmra.mxu0 %v5541
        %v6346 = vpop.f32.mrf.mxu0
        %v6347 = vadd.f32 0.0, %v6346
        %v6348 = vpop.f32.mrf.mxu0
        %v6349 = vadd.f32 0.0, %v6348
        %6350 = vmatmul.bf16.gmra.mxu0 %v5543
        %v6351 = vpop.f32.mrf.mxu0
        %v6352 = vadd.f32 0.0, %v6351
        %v6353 = vpop.f32.mrf.mxu0
        %v6354 = vadd.f32 0.0, %v6353
        %6355 = vmatmul.bf16.gmra.mxu0 %v5545
        %v6356 = vpop.f32.mrf.mxu0
        %v6357 = vadd.f32 0.0, %v6356
        %v6358 = vpop.f32.mrf.mxu0
        %v6359 = vadd.f32 0.0, %v6358
        %6360 = vdwg.mxu0
        %6361 = vmatpush.bf16.msra.mxu0 %v6024
        %6362 = vmatpush.bf16.msra.mxu0 %v6018
        %6363 = vmatpush.bf16.msra.mxu0 %v6012
        %6364 = vmatpush.bf16.msra.mxu0 %v6006
        %6365 = vmatpush.bf16.msra.mxu0 %v6000
        %6366 = vmatpush.bf16.msra.mxu0 %v5994
        %6367 = vmatpush.bf16.msra.mxu0 %v5988
        %6368 = vmatpush.bf16.msra.mxu0 %v5982
        %6369 = vmatmul.bf16.gmra.mxu0 %v5538
        %v6370 = vpop.f32.mrf.mxu0
        %v6371 = vadd.f32 %v6337, %v6370
        %v6372 = vpop.f32.mrf.mxu0
        %v6373 = vadd.f32 %v6339, %v6372
        %6374 = vmatmul.bf16.gmra.mxu0 %v5540
        %v6375 = vpop.f32.mrf.mxu0
        %v6376 = vadd.f32 %v6342, %v6375
        %v6377 = vpop.f32.mrf.mxu0
        %v6378 = vadd.f32 %v6344, %v6377
        %6379 = vmatmul.bf16.gmra.mxu0 %v5542
        %v6380 = vpop.f32.mrf.mxu0
        %v6381 = vadd.f32 %v6347, %v6380
        %v6382 = vpop.f32.mrf.mxu0
        %v6383 = vadd.f32 %v6349, %v6382
        %6384 = vmatmul.bf16.gmra.mxu0 %v5544
        %v6385 = vpop.f32.mrf.mxu0
        %v6386 = vadd.f32 %v6352, %v6385
        %v6387 = vpop.f32.mrf.mxu0
        %v6388 = vadd.f32 %v6354, %v6387
        %6389 = vmatmul.bf16.gmra.mxu0 %v5546
        %v6390 = vpop.f32.mrf.mxu0
        %v6391 = vadd.f32 %v6357, %v6390
        %v6392 = vpop.f32.mrf.mxu0
        %v6393 = vadd.f32 %v6359, %v6392
        %6394 = vdwg.mxu0
        %6395 = vmatpush.bf16.msra.mxu0 %v5977
        %6396 = vmatpush.bf16.msra.mxu0 %v5971
        %6397 = vmatpush.bf16.msra.mxu0 %v5965
        %6398 = vmatpush.bf16.msra.mxu0 %v5959
        %6399 = vmatpush.bf16.msra.mxu0 %v5953
        %6400 = vmatpush.bf16.msra.mxu0 %v5947
        %6401 = vmatpush.bf16.msra.mxu0 %v5941
        %6402 = vmatpush.bf16.msra.mxu0 %v5935
        %6403 = vmatmul.bf16.gmra.mxu0 %v5537
        %v6404 = vpop.f32.mrf.mxu0
        %v6405 = vadd.f32 0.0, %v6404
        %v6406 = vpop.f32.mrf.mxu0
        %v6407 = vadd.f32 0.0, %v6406
        %6408 = vmatmul.bf16.gmra.mxu0 %v5539
        %v6409 = vpop.f32.mrf.mxu0
        %v6410 = vadd.f32 0.0, %v6409
        %v6411 = vpop.f32.mrf.mxu0
        %v6412 = vadd.f32 0.0, %v6411
        %6413 = vmatmul.bf16.gmra.mxu0 %v5541
        %v6414 = vpop.f32.mrf.mxu0
        %v6415 = vadd.f32 0.0, %v6414
        %v6416 = vpop.f32.mrf.mxu0
        %v6417 = vadd.f32 0.0, %v6416
        %6418 = vmatmul.bf16.gmra.mxu0 %v5543
        %v6419 = vpop.f32.mrf.mxu0
        %v6420 = vadd.f32 0.0, %v6419
        %v6421 = vpop.f32.mrf.mxu0
        %v6422 = vadd.f32 0.0, %v6421
        %6423 = vmatmul.bf16.gmra.mxu0 %v5545
        %v6424 = vpop.f32.mrf.mxu0
        %v6425 = vadd.f32 0.0, %v6424
        %v6426 = vpop.f32.mrf.mxu0
        %v6427 = vadd.f32 0.0, %v6426
        %6428 = vdwg.mxu0
        %6429 = vmatpush.bf16.msra.mxu0 %v6025
        %6430 = vmatpush.bf16.msra.mxu0 %v6019
        %6431 = vmatpush.bf16.msra.mxu0 %v6013
        %6432 = vmatpush.bf16.msra.mxu0 %v6007
        %6433 = vmatpush.bf16.msra.mxu0 %v6001
        %6434 = vmatpush.bf16.msra.mxu0 %v5995
        %6435 = vmatpush.bf16.msra.mxu0 %v5989
        %6436 = vmatpush.bf16.msra.mxu0 %v5983
        %6437 = vmatmul.bf16.gmra.mxu0 %v5538
        %v6438 = vpop.f32.mrf.mxu0
        %v6439 = vadd.f32 %v6405, %v6438
        %v6440 = vpop.f32.mrf.mxu0
        %v6441 = vadd.f32 %v6407, %v6440
        %6442 = vmatmul.bf16.gmra.mxu0 %v5540
        %v6443 = vpop.f32.mrf.mxu0
        %v6444 = vadd.f32 %v6410, %v6443
        %v6445 = vpop.f32.mrf.mxu0
        %v6446 = vadd.f32 %v6412, %v6445
        %6447 = vmatmul.bf16.gmra.mxu0 %v5542
        %v6448 = vpop.f32.mrf.mxu0
        %v6449 = vadd.f32 %v6415, %v6448
        %v6450 = vpop.f32.mrf.mxu0
        %v6451 = vadd.f32 %v6417, %v6450
        %6452 = vmatmul.bf16.gmra.mxu0 %v5544
        %v6453 = vpop.f32.mrf.mxu0
        %v6454 = vadd.f32 %v6420, %v6453
        %v6455 = vpop.f32.mrf.mxu0
        %v6456 = vadd.f32 %v6422, %v6455
        %6457 = vmatmul.bf16.gmra.mxu0 %v5546
        %v6458 = vpop.f32.mrf.mxu0
        %v6459 = vadd.f32 %v6425, %v6458
        %v6460 = vpop.f32.mrf.mxu0
        %v6461 = vadd.f32 %v6427, %v6460
        %6462 = vdwg.mxu0
        %6463 = vmatpush.bf16.msra.mxu0 %v5978
        %6464 = vmatpush.bf16.msra.mxu0 %v5972
        %6465 = vmatpush.bf16.msra.mxu0 %v5966
        %6466 = vmatpush.bf16.msra.mxu0 %v5960
        %6467 = vmatpush.bf16.msra.mxu0 %v5954
        %6468 = vmatpush.bf16.msra.mxu0 %v5948
        %6469 = vmatpush.bf16.msra.mxu0 %v5942
        %6470 = vmatpush.bf16.msra.mxu0 %v5936
        %6471 = vmatmul.bf16.gmra.mxu0 %v5537
        %v6472 = vpop.f32.mrf.mxu0
        %v6473 = vadd.f32 0.0, %v6472
        %v6474 = vpop.f32.mrf.mxu0
        %v6475 = vadd.f32 0.0, %v6474
        %6476 = vmatmul.bf16.gmra.mxu0 %v5539
        %v6477 = vpop.f32.mrf.mxu0
        %v6478 = vadd.f32 0.0, %v6477
        %v6479 = vpop.f32.mrf.mxu0
        %v6480 = vadd.f32 0.0, %v6479
        %6481 = vmatmul.bf16.gmra.mxu0 %v5541
        %v6482 = vpop.f32.mrf.mxu0
        %v6483 = vadd.f32 0.0, %v6482
        %v6484 = vpop.f32.mrf.mxu0
        %v6485 = vadd.f32 0.0, %v6484
        %6486 = vmatmul.bf16.gmra.mxu0 %v5543
        %v6487 = vpop.f32.mrf.mxu0
        %v6488 = vadd.f32 0.0, %v6487
        %v6489 = vpop.f32.mrf.mxu0
        %v6490 = vadd.f32 0.0, %v6489
        %6491 = vmatmul.bf16.gmra.mxu0 %v5545
        %v6492 = vpop.f32.mrf.mxu0
        %v6493 = vadd.f32 0.0, %v6492
        %v6494 = vpop.f32.mrf.mxu0
        %v6495 = vadd.f32 0.0, %v6494
        %6496 = vdwg.mxu0
        %6497 = vmatpush.bf16.msra.mxu0 %v6026
        %6498 = vmatpush.bf16.msra.mxu0 %v6020
        %6499 = vmatpush.bf16.msra.mxu0 %v6014
        %6500 = vmatpush.bf16.msra.mxu0 %v6008
        %6501 = vmatpush.bf16.msra.mxu0 %v6002
        %6502 = vmatpush.bf16.msra.mxu0 %v5996
        %6503 = vmatpush.bf16.msra.mxu0 %v5990
        %6504 = vmatpush.bf16.msra.mxu0 %v5984
        %6505 = vmatmul.bf16.gmra.mxu0 %v5538
        %v6506 = vpop.f32.mrf.mxu0
        %v6507 = vadd.f32 %v6473, %v6506
        %v6508 = vpop.f32.mrf.mxu0
        %v6509 = vadd.f32 %v6475, %v6508
        %6510 = vmatmul.bf16.gmra.mxu0 %v5540
        %v6511 = vpop.f32.mrf.mxu0
        %v6512 = vadd.f32 %v6478, %v6511
        %v6513 = vpop.f32.mrf.mxu0
        %v6514 = vadd.f32 %v6480, %v6513
        %6515 = vmatmul.bf16.gmra.mxu0 %v5542
        %v6516 = vpop.f32.mrf.mxu0
        %v6517 = vadd.f32 %v6483, %v6516
        %v6518 = vpop.f32.mrf.mxu0
        %v6519 = vadd.f32 %v6485, %v6518
        %6520 = vmatmul.bf16.gmra.mxu0 %v5544
        %v6521 = vpop.f32.mrf.mxu0
        %v6522 = vadd.f32 %v6488, %v6521
        %v6523 = vpop.f32.mrf.mxu0
        %v6524 = vadd.f32 %v6490, %v6523
        %6525 = vmatmul.bf16.gmra.mxu0 %v5546
        %v6526 = vpop.f32.mrf.mxu0
        %v6527 = vadd.f32 %v6493, %v6526
        %v6528 = vpop.f32.mrf.mxu0
        %v6529 = vadd.f32 %v6495, %v6528
        %6530 = vdwg.mxu0
        %v6551 = vrot.slane %v6167, 1
        %v6552 = vrot.slane %v6169, 1
        %v6553 = vsel %vm3839, %v6551, %v6552
        %v6554 = vrot.slane %v6235, 1
        %v6555 = vrot.slane %v6237, 1
        %v6556 = vsel %vm3839, %v6554, %v6555
        %v6557 = vrot.slane %v6172, 1
        %v6558 = vsel %vm3839, %v6552, %v6557
        %v6559 = vrot.slane %v6240, 1
        %v6560 = vsel %vm3839, %v6555, %v6559
        %v6561 = vrot.slane %v6174, 1
        %v6562 = vsel %vm3839, %v6557, %v6561
        %v6563 = vrot.slane %v6242, 1
        %v6564 = vsel %vm3839, %v6559, %v6563
        %v6565 = vrot.slane %v6177, 1
        %v6566 = vsel %vm3839, %v6561, %v6565
        %v6567 = vrot.slane %v6245, 1
        %v6568 = vsel %vm3839, %v6563, %v6567
        %v6569 = vrot.slane %v6179, 1
        %v6570 = vsel %vm3839, %v6565, %v6569
        %v6571 = vrot.slane %v6247, 1
        %v6572 = vsel %vm3839, %v6567, %v6571
        %v6573 = vrot.slane %v6182, 1
        %v6574 = vsel %vm3839, %v6569, %v6573
        %v6575 = vrot.slane %v6250, 1
        %v6576 = vsel %vm3839, %v6571, %v6575
        %v6577 = vrot.slane %v6184, 1
        %v6578 = vsel %vm3839, %v6573, %v6577
        %v6579 = vrot.slane %v6252, 1
        %v6580 = vsel %vm3839, %v6575, %v6579
        %v6581 = vrot.slane %v6187, 1
        %v6582 = vsel %vm3839, %v6577, %v6581
        %v6583 = vrot.slane %v6255, 1
        %v6584 = vsel %vm3839, %v6579, %v6583
        %v6585 = vrot.slane %v6189, 1
        %v6586 = vsel %vm3839, %v6581, %v6585
        %v6587 = vrot.slane %v6257, 1
        %v6588 = vsel %vm3839, %v6583, %v6587
        %v6609 = vsel %vm3839, %v6585, 0.0
        %v6610 = vsel %vm3839, %v6587, 0.0
        %v6611 = vadd.f32 %v6553, %v6303
        %v6612 = vadd.f32 %v6556, %v6371
        %v6613 = vadd.f32 %v6558, %v6305
        %v6614 = vadd.f32 %v6560, %v6373
        %v6615 = vadd.f32 %v6562, %v6308
        %v6616 = vadd.f32 %v6564, %v6376
        %v6617 = vadd.f32 %v6566, %v6310
        %v6618 = vadd.f32 %v6568, %v6378
        %v6619 = vadd.f32 %v6570, %v6313
        %v6620 = vadd.f32 %v6572, %v6381
        %v6621 = vadd.f32 %v6574, %v6315
        %v6622 = vadd.f32 %v6576, %v6383
        %v6623 = vadd.f32 %v6578, %v6318
        %v6624 = vadd.f32 %v6580, %v6386
        %v6625 = vadd.f32 %v6582, %v6320
        %v6626 = vadd.f32 %v6584, %v6388
        %v6627 = vadd.f32 %v6586, %v6323
        %v6628 = vadd.f32 %v6588, %v6391
        %v6629 = vadd.f32 %v6609, %v6325
        %v6630 = vadd.f32 %v6610, %v6393
        %v6651 = vrot.slane %v6439, 7
        %v6652 = vrot.slane %v6507, 7
        %v6653 = vrot.slane %v6441, 7
        %v6654 = vsel %vm3940, %v6651, %v6653
        %v6655 = vrot.slane %v6509, 7
        %v6656 = vsel %vm3940, %v6652, %v6655
        %v6657 = vrot.slane %v6444, 7
        %v6658 = vsel %vm3940, %v6653, %v6657
        %v6659 = vrot.slane %v6512, 7
        %v6660 = vsel %vm3940, %v6655, %v6659
        %v6661 = vrot.slane %v6446, 7
        %v6662 = vsel %vm3940, %v6657, %v6661
        %v6663 = vrot.slane %v6514, 7
        %v6664 = vsel %vm3940, %v6659, %v6663
        %v6665 = vrot.slane %v6449, 7
        %v6666 = vsel %vm3940, %v6661, %v6665
        %v6667 = vrot.slane %v6517, 7
        %v6668 = vsel %vm3940, %v6663, %v6667
        %v6669 = vrot.slane %v6451, 7
        %v6670 = vsel %vm3940, %v6665, %v6669
        %v6671 = vrot.slane %v6519, 7
        %v6672 = vsel %vm3940, %v6667, %v6671
        %v6673 = vrot.slane %v6454, 7
        %v6674 = vsel %vm3940, %v6669, %v6673
        %v6675 = vrot.slane %v6522, 7
        %v6676 = vsel %vm3940, %v6671, %v6675
        %v6677 = vrot.slane %v6456, 7
        %v6678 = vsel %vm3940, %v6673, %v6677
        %v6679 = vrot.slane %v6524, 7
        %v6680 = vsel %vm3940, %v6675, %v6679
        %v6681 = vrot.slane %v6459, 7
        %v6682 = vsel %vm3940, %v6677, %v6681
        %v6683 = vrot.slane %v6527, 7
        %v6684 = vsel %vm3940, %v6679, %v6683
        %v6685 = vrot.slane %v6461, 7
        %v6686 = vsel %vm3940, %v6681, %v6685
        %v6687 = vrot.slane %v6529, 7
        %v6688 = vsel %vm3940, %v6683, %v6687
        %v6709 = vsel %vm3940, 0.0, %v6651
        %v6710 = vsel %vm3940, 0.0, %v6652
        %v6711 = vadd.f32 %v6611, %v6709
        %v6712 = vadd.f32 %v6612, %v6710
        %v6713 = vadd.f32 %v6613, %v6654
        %v6714 = vadd.f32 %v6614, %v6656
        %v6715 = vadd.f32 %v6615, %v6658
        %v6716 = vadd.f32 %v6616, %v6660
        %v6717 = vadd.f32 %v6617, %v6662
        %v6718 = vadd.f32 %v6618, %v6664
        %v6719 = vadd.f32 %v6619, %v6666
        %v6720 = vadd.f32 %v6620, %v6668
        %v6721 = vadd.f32 %v6621, %v6670
        %v6722 = vadd.f32 %v6622, %v6672
        %v6723 = vadd.f32 %v6623, %v6674
        %v6724 = vadd.f32 %v6624, %v6676
        %v6725 = vadd.f32 %v6625, %v6678
        %v6726 = vadd.f32 %v6626, %v6680
        %v6727 = vadd.f32 %v6627, %v6682
        %v6728 = vadd.f32 %v6628, %v6684
        %v6729 = vadd.f32 %v6629, %v6686
        %v6730 = vadd.f32 %v6630, %v6688
        %v6731 = vld [vmem:[#allocation12] sm:$0xf]
        %v6733 = vperm.slane %v6731, 0
        %v6734 = vperm.slane %v6731, 2
        %v6737 = vperm.slane %v6733, 0
        %v6738 = vperm.slane %v6734, 0
        %v6739 = vmul.f32 %v6711, %v6737
        %v6740 = vmul.f32 %v6712, %v6738
        %v6741 = vmul.f32 %v6713, %v6737
        %v6742 = vmul.f32 %v6714, %v6738
        %v6743 = vmul.f32 %v6715, %v6737
        %v6744 = vmul.f32 %v6716, %v6738
        %v6745 = vmul.f32 %v6717, %v6737
        %v6746 = vmul.f32 %v6718, %v6738
        %v6747 = vmul.f32 %v6719, %v6737
        %v6748 = vmul.f32 %v6720, %v6738
        %v6749 = vmul.f32 %v6721, %v6737
        %v6750 = vmul.f32 %v6722, %v6738
        %v6751 = vmul.f32 %v6723, %v6737
        %v6752 = vmul.f32 %v6724, %v6738
        %v6753 = vmul.f32 %v6725, %v6737
        %v6754 = vmul.f32 %v6726, %v6738
        %v6755 = vmul.f32 %v6727, %v6737
        %v6756 = vmul.f32 %v6728, %v6738
        %v6757 = vmul.f32 %v6729, %v6737
        %v6758 = vmul.f32 %v6730, %v6738
        %v6759 = vperm.slane %v6731, 1
        %v6760 = vperm.slane %v6731, 3
        %v6763 = vperm.slane %v6759, 1
        %v6764 = vperm.slane %v6760, 1
        %v6765 = vadd.f32 %v6739, %v6763
        %v6766 = vadd.f32 %v6740, %v6764
        %v6767 = vadd.f32 %v6741, %v6763
        %v6768 = vadd.f32 %v6742, %v6764
        %v6769 = vadd.f32 %v6743, %v6763
        %v6770 = vadd.f32 %v6744, %v6764
        %v6771 = vadd.f32 %v6745, %v6763
        %v6772 = vadd.f32 %v6746, %v6764
        %v6773 = vadd.f32 %v6747, %v6763
        %v6774 = vadd.f32 %v6748, %v6764
        %v6775 = vadd.f32 %v6749, %v6763
        %v6776 = vadd.f32 %v6750, %v6764
        %v6777 = vadd.f32 %v6751, %v6763
        %v6778 = vadd.f32 %v6752, %v6764
        %v6779 = vadd.f32 %v6753, %v6763
        %v6780 = vadd.f32 %v6754, %v6764
        %v6781 = vadd.f32 %v6755, %v6763
        %v6782 = vadd.f32 %v6756, %v6764
        %v6783 = vadd.f32 %v6757, %v6763
        %v6784 = vadd.f32 %v6758, %v6764
        %v6785 = vmul.f32 %v6765, %v4078
        %v6786 = vmul.f32 %v6766, %v4078
        %v6787 = vmul.f32 %v6767, %v4083
        %v6788 = vmul.f32 %v6768, %v4083
        %v6789 = vmul.f32 %v6769, %v4088
        %v6790 = vmul.f32 %v6770, %v4088
        %v6791 = vmul.f32 %v6771, %v4093
        %v6792 = vmul.f32 %v6772, %v4093
        %v6793 = vmul.f32 %v6773, %v4098
        %v6794 = vmul.f32 %v6774, %v4098
        %v6795 = vmul.f32 %v6775, %v4103
        %v6796 = vmul.f32 %v6776, %v4103
        %v6797 = vmul.f32 %v6777, %v4108
        %v6798 = vmul.f32 %v6778, %v4108
        %v6799 = vmul.f32 %v6779, %v4113
        %v6800 = vmul.f32 %v6780, %v4113
        %v6801 = vmul.f32 %v6781, %v4118
        %v6802 = vmul.f32 %v6782, %v4118
        %v6803 = vmul.f32 %v6783, %v4123
        %v6804 = vmul.f32 %v6784, %v4123
        %s6805 = sld [smem:[#allocation6 + $0x4]]
        %vm6806 = vcmp.ge.f32.partialorder %v6785, 0.0
        %vm6807 = vcmp.ge.f32.partialorder %v6786, 0.0
        %vm6808 = vcmp.ge.f32.partialorder %v6787, 0.0
        %vm6809 = vcmp.ge.f32.partialorder %v6788, 0.0
        %vm6810 = vcmp.ge.f32.partialorder %v6789, 0.0
        %vm6811 = vcmp.ge.f32.partialorder %v6790, 0.0
        %vm6812 = vcmp.ge.f32.partialorder %v6791, 0.0
        %vm6813 = vcmp.ge.f32.partialorder %v6792, 0.0
        %vm6814 = vcmp.ge.f32.partialorder %v6793, 0.0
        %vm6815 = vcmp.ge.f32.partialorder %v6794, 0.0
        %vm6816 = vcmp.ge.f32.partialorder %v6795, 0.0
        %vm6817 = vcmp.ge.f32.partialorder %v6796, 0.0
        %vm6818 = vcmp.ge.f32.partialorder %v6797, 0.0
        %vm6819 = vcmp.ge.f32.partialorder %v6798, 0.0
        %vm6820 = vcmp.ge.f32.partialorder %v6799, 0.0
        %vm6821 = vcmp.ge.f32.partialorder %v6800, 0.0
        %vm6822 = vcmp.ge.f32.partialorder %v6801, 0.0
        %vm6823 = vcmp.ge.f32.partialorder %v6802, 0.0
        %vm6824 = vcmp.ge.f32.partialorder %v6803, 0.0
        %vm6825 = vcmp.ge.f32.partialorder %v6804, 0.0
        %v6826 = vstv %s6805
        %v6827 = vmul.f32 %v6826, %v6785
        %v6828 = vmul.f32 %v6826, %v6786
        %v6829 = vmul.f32 %v6826, %v6787
        %v6830 = vmul.f32 %v6826, %v6788
        %v6831 = vmul.f32 %v6826, %v6789
        %v6832 = vmul.f32 %v6826, %v6790
        %v6833 = vmul.f32 %v6826, %v6791
        %v6834 = vmul.f32 %v6826, %v6792
        %v6835 = vmul.f32 %v6826, %v6793
        %v6836 = vmul.f32 %v6826, %v6794
        %v6837 = vmul.f32 %v6826, %v6795
        %v6838 = vmul.f32 %v6826, %v6796
        %v6839 = vmul.f32 %v6826, %v6797
        %v6840 = vmul.f32 %v6826, %v6798
        %v6841 = vmul.f32 %v6826, %v6799
        %v6842 = vmul.f32 %v6826, %v6800
        %v6843 = vmul.f32 %v6826, %v6801
        %v6844 = vmul.f32 %v6826, %v6802
        %v6845 = vmul.f32 %v6826, %v6803
        %v6846 = vmul.f32 %v6826, %v6804
        %v6847 = vsel %vm6806, %v6785, %v6827
        %v6848 = vsel %vm6807, %v6786, %v6828
        %v6849 = vsel %vm6808, %v6787, %v6829
        %v6850 = vsel %vm6809, %v6788, %v6830
        %v6851 = vsel %vm6810, %v6789, %v6831
        %v6852 = vsel %vm6811, %v6790, %v6832
        %v6853 = vsel %vm6812, %v6791, %v6833
        %v6854 = vsel %vm6813, %v6792, %v6834
        %v6855 = vsel %vm6814, %v6793, %v6835
        %v6856 = vsel %vm6815, %v6794, %v6836
        %v6857 = vsel %vm6816, %v6795, %v6837
        %v6858 = vsel %vm6817, %v6796, %v6838
        %v6859 = vsel %vm6818, %v6797, %v6839
        %v6860 = vsel %vm6819, %v6798, %v6840
        %v6861 = vsel %vm6820, %v6799, %v6841
        %v6862 = vsel %vm6821, %v6800, %v6842
        %v6863 = vsel %vm6822, %v6801, %v6843
        %v6864 = vsel %vm6823, %v6802, %v6844
        %v6865 = vsel %vm6824, %v6803, %v6845
        %v6866 = vsel %vm6825, %v6804, %v6846
        %v6867 = vpack.c.bf16 %v6849, %v6847
        %v6868 = vpack.c.bf16 %v6850, %v6848
        %v6869 = vpack.c.bf16 %v6853, %v6851
        %v6870 = vpack.c.bf16 %v6854, %v6852
        %v6871 = vpack.c.bf16 %v6857, %v6855
        %v6872 = vpack.c.bf16 %v6858, %v6856
        %v6873 = vpack.c.bf16 %v6861, %v6859
        %v6874 = vpack.c.bf16 %v6862, %v6860
        %v6875 = vpack.c.bf16 %v6865, %v6863
        %v6876 = vpack.c.bf16 %v6866, %v6864
        %v6877 = vld [vmem:[%s12] sm:$0xff]
        %v6878 = vld [vmem:[%s12 + $0x8] sm:$0xff]
        %v6879 = vld [vmem:[%s12 + $0x10] sm:$0xff]
        %v6880 = vld [vmem:[%s12 + $0x18] sm:$0xff]
        %v6881 = vld [vmem:[%s12 + $0x20] sm:$0xff]
        %v6882 = vld [vmem:[%s12 + $0x28] sm:$0xff]
        %v6883 = vld [vmem:[%s12 + $0x30] sm:$0xff]
        %v6884 = vld [vmem:[%s12 + $0x38] sm:$0xff]
        %v6885 = vld [vmem:[%s12 + $0x40] sm:$0xff]
        %v6886 = vld [vmem:[%s12 + $0x48] sm:$0xff]
        %v6887 = vld [vmem:[%s12 + $0x50] sm:$0xff]
        %v6888 = vld [vmem:[%s12 + $0x58] sm:$0xff]
        %v6889 = vld [vmem:[%s12 + $0x60] sm:$0xff]
        %v6890 = vld [vmem:[%s12 + $0x68] sm:$0xff]
        %v6891 = vld [vmem:[%s12 + $0x70] sm:$0xff]
        %v6892 = vld [vmem:[%s12 + $0x78] sm:$0xff]
        %v6893 = vld [vmem:[%s12 + $0x80] sm:$0xff]
        %v6894 = vld [vmem:[%s12 + $0x88] sm:$0xff]
        %v6895 = vld [vmem:[%s12 + $0x90] sm:$0xff]
        %v6896 = vld [vmem:[%s12 + $0x98] sm:$0xff]
        %v6897 = vld [vmem:[%s12 + $0xa0] sm:$0xff]
        %v6898 = vld [vmem:[%s12 + $0xa8] sm:$0xff]
        %v6899 = vld [vmem:[%s12 + $0xb0] sm:$0xff]
        %v6900 = vld [vmem:[%s12 + $0xb8] sm:$0xff]
        %v6901 = vld [vmem:[%s12 + $0xc0] sm:$0xff]
        %v6902 = vld [vmem:[%s12 + $0xc8] sm:$0xff]
        %v6903 = vld [vmem:[%s12 + $0xd0] sm:$0xff]
        %v6904 = vld [vmem:[%s12 + $0xd8] sm:$0xff]
        %v6905 = vld [vmem:[%s12 + $0xe0] sm:$0xff]
        %v6906 = vld [vmem:[%s12 + $0xe8] sm:$0xff]
        %v6907 = vld [vmem:[%s12 + $0xf0] sm:$0xff]
        %v6908 = vld [vmem:[%s12 + $0xf8] sm:$0xff]
        %v6909 = vld [vmem:[%s12 + $0x100] sm:$0xff]
        %v6910 = vld [vmem:[%s12 + $0x108] sm:$0xff]
        %v6911 = vld [vmem:[%s12 + $0x110] sm:$0xff]
        %v6912 = vld [vmem:[%s12 + $0x118] sm:$0xff]
        %v6913 = vld [vmem:[%s12 + $0x120] sm:$0xff]
        %v6914 = vld [vmem:[%s12 + $0x128] sm:$0xff]
        %v6915 = vld [vmem:[%s12 + $0x130] sm:$0xff]
        %v6916 = vld [vmem:[%s12 + $0x138] sm:$0xff]
        %v6917 = vld [vmem:[%s12 + $0x140] sm:$0xff]
        %v6918 = vld [vmem:[%s12 + $0x148] sm:$0xff]
        %v6919 = vld [vmem:[%s12 + $0x150] sm:$0xff]
        %v6920 = vld [vmem:[%s12 + $0x158] sm:$0xff]
        %v6921 = vld [vmem:[%s12 + $0x160] sm:$0xff]
        %v6922 = vld [vmem:[%s12 + $0x168] sm:$0xff]
        %v6923 = vld [vmem:[%s12 + $0x170] sm:$0xff]
        %v6924 = vld [vmem:[%s12 + $0x178] sm:$0xff]
        %v6925 = vld [vmem:[%s12 + $0x180] sm:$0xff]
        %v6926 = vld [vmem:[%s12 + $0x188] sm:$0xff]
        %v6927 = vld [vmem:[%s12 + $0x190] sm:$0xff]
        %v6928 = vld [vmem:[%s12 + $0x198] sm:$0xff]
        %v6929 = vld [vmem:[%s12 + $0x1a0] sm:$0xff]
        %v6930 = vld [vmem:[%s12 + $0x1a8] sm:$0xff]
        %v6931 = vld [vmem:[%s12 + $0x1b0] sm:$0xff]
        %v6932 = vld [vmem:[%s12 + $0x1b8] sm:$0xff]
        %v6933 = vld [vmem:[%s12 + $0x1c0] sm:$0xff]
        %v6934 = vld [vmem:[%s12 + $0x1c8] sm:$0xff]
        %v6935 = vld [vmem:[%s12 + $0x1d0] sm:$0xff]
        %v6936 = vld [vmem:[%s12 + $0x1d8] sm:$0xff]
        %v6937 = vld [vmem:[%s12 + $0x1e0] sm:$0xff]
        %v6938 = vld [vmem:[%s12 + $0x1e8] sm:$0xff]
        %v6939 = vld [vmem:[%s12 + $0x1f0] sm:$0xff]
        %v6940 = vld [vmem:[%s12 + $0x1f8] sm:$0xff]
        %v6941 = vld [vmem:[%s12 + $0x200] sm:$0xff]
        %v6942 = vld [vmem:[%s12 + $0x208] sm:$0xff]
        %v6943 = vld [vmem:[%s12 + $0x210] sm:$0xff]
        %v6944 = vld [vmem:[%s12 + $0x218] sm:$0xff]
        %v6945 = vld [vmem:[%s12 + $0x220] sm:$0xff]
        %v6946 = vld [vmem:[%s12 + $0x228] sm:$0xff]
        %v6947 = vld [vmem:[%s12 + $0x230] sm:$0xff]
        %v6948 = vld [vmem:[%s12 + $0x238] sm:$0xff]
        %v6949 = vld [vmem:[%s12 + $0x240] sm:$0xff]
        %v6950 = vld [vmem:[%s12 + $0x248] sm:$0xff]
        %v6951 = vld [vmem:[%s12 + $0x250] sm:$0xff]
        %v6952 = vld [vmem:[%s12 + $0x258] sm:$0xff]
        %v6953 = vld [vmem:[%s12 + $0x260] sm:$0xff]
        %v6954 = vld [vmem:[%s12 + $0x268] sm:$0xff]
        %v6955 = vld [vmem:[%s12 + $0x270] sm:$0xff]
        %v6956 = vld [vmem:[%s12 + $0x278] sm:$0xff]
        %v6957 = vld [vmem:[%s12 + $0x280] sm:$0xff]
        %v6958 = vld [vmem:[%s12 + $0x288] sm:$0xff]
        %v6959 = vld [vmem:[%s12 + $0x290] sm:$0xff]
        %v6960 = vld [vmem:[%s12 + $0x298] sm:$0xff]
        %v6961 = vld [vmem:[%s12 + $0x2a0] sm:$0xff]
        %v6962 = vld [vmem:[%s12 + $0x2a8] sm:$0xff]
        %v6963 = vld [vmem:[%s12 + $0x2b0] sm:$0xff]
        %v6964 = vld [vmem:[%s12 + $0x2b8] sm:$0xff]
        %v6965 = vld [vmem:[%s12 + $0x2c0] sm:$0xff]
        %v6966 = vld [vmem:[%s12 + $0x2c8] sm:$0xff]
        %v6967 = vld [vmem:[%s12 + $0x2d0] sm:$0xff]
        %v6968 = vld [vmem:[%s12 + $0x2d8] sm:$0xff]
        %v6969 = vld [vmem:[%s12 + $0x2e0] sm:$0xff]
        %v6970 = vld [vmem:[%s12 + $0x2e8] sm:$0xff]
        %v6971 = vld [vmem:[%s12 + $0x2f0] sm:$0xff]
        %v6972 = vld [vmem:[%s12 + $0x2f8] sm:$0xff]
        %v6973 = vld [vmem:[%s12 + $0x300] sm:$0xff]
        %v6974 = vld [vmem:[%s12 + $0x308] sm:$0xff]
        %v6975 = vld [vmem:[%s12 + $0x310] sm:$0xff]
        %v6976 = vld [vmem:[%s12 + $0x318] sm:$0xff]
        %v6977 = vld [vmem:[%s12 + $0x320] sm:$0xff]
        %v6978 = vld [vmem:[%s12 + $0x328] sm:$0xff]
        %v6979 = vld [vmem:[%s12 + $0x330] sm:$0xff]
        %v6980 = vld [vmem:[%s12 + $0x338] sm:$0xff]
        %v6981 = vld [vmem:[%s12 + $0x340] sm:$0xff]
        %v6982 = vld [vmem:[%s12 + $0x348] sm:$0xff]
        %v6983 = vld [vmem:[%s12 + $0x350] sm:$0xff]
        %v6984 = vld [vmem:[%s12 + $0x358] sm:$0xff]
        %v6985 = vld [vmem:[%s12 + $0x360] sm:$0xff]
        %v6986 = vld [vmem:[%s12 + $0x368] sm:$0xff]
        %v6987 = vld [vmem:[%s12 + $0x370] sm:$0xff]
        %v6988 = vld [vmem:[%s12 + $0x378] sm:$0xff]
        %v6989 = vld [vmem:[%s12 + $0x380] sm:$0xff]
        %v6990 = vld [vmem:[%s12 + $0x388] sm:$0xff]
        %v6991 = vld [vmem:[%s12 + $0x390] sm:$0xff]
        %v6992 = vld [vmem:[%s12 + $0x398] sm:$0xff]
        %v6993 = vld [vmem:[%s12 + $0x3a0] sm:$0xff]
        %v6994 = vld [vmem:[%s12 + $0x3a8] sm:$0xff]
        %v6995 = vld [vmem:[%s12 + $0x3b0] sm:$0xff]
        %v6996 = vld [vmem:[%s12 + $0x3b8] sm:$0xff]
        %v6997 = vld [vmem:[%s12 + $0x3c0] sm:$0xff]
        %v6998 = vld [vmem:[%s12 + $0x3c8] sm:$0xff]
        %v6999 = vld [vmem:[%s12 + $0x3d0] sm:$0xff]
        %v7000 = vld [vmem:[%s12 + $0x3d8] sm:$0xff]
        %v7001 = vld [vmem:[%s12 + $0x3e0] sm:$0xff]
        %v7002 = vld [vmem:[%s12 + $0x3e8] sm:$0xff]
        %v7003 = vld [vmem:[%s12 + $0x3f0] sm:$0xff]
        %v7004 = vld [vmem:[%s12 + $0x3f8] sm:$0xff]
        %v7133 = vunpack.c.l.b16 %v6877
        %v7134 = vunpack.c.h.b16 %v6877
        %v7135 = vunpack.c.l.b16 %v6878
        %v7136 = vunpack.c.h.b16 %v6878
        %v7137 = vunpack.c.l.b16 %v6879
        %v7138 = vunpack.c.h.b16 %v6879
        %v7139 = vunpack.c.l.b16 %v6880
        %v7140 = vunpack.c.h.b16 %v6880
        %v7141 = vunpack.c.l.b16 %v6881
        %v7142 = vunpack.c.h.b16 %v6881
        %v7143 = vunpack.c.l.b16 %v6882
        %v7144 = vunpack.c.h.b16 %v6882
        %v7145 = vunpack.c.l.b16 %v6883
        %v7146 = vunpack.c.h.b16 %v6883
        %v7147 = vunpack.c.l.b16 %v6884
        %v7148 = vunpack.c.h.b16 %v6884
        %v7149 = vunpack.c.l.b16 %v6885
        %v7150 = vunpack.c.h.b16 %v6885
        %v7151 = vunpack.c.l.b16 %v6886
        %v7152 = vunpack.c.h.b16 %v6886
        %v7153 = vunpack.c.l.b16 %v6887
        %v7154 = vunpack.c.h.b16 %v6887
        %v7155 = vunpack.c.l.b16 %v6888
        %v7156 = vunpack.c.h.b16 %v6888
        %v7157 = vunpack.c.l.b16 %v6889
        %v7158 = vunpack.c.h.b16 %v6889
        %v7159 = vunpack.c.l.b16 %v6890
        %v7160 = vunpack.c.h.b16 %v6890
        %v7161 = vunpack.c.l.b16 %v6891
        %v7162 = vunpack.c.h.b16 %v6891
        %v7163 = vunpack.c.l.b16 %v6892
        %v7164 = vunpack.c.h.b16 %v6892
        %v7165 = vunpack.c.l.b16 %v6893
        %v7166 = vunpack.c.h.b16 %v6893
        %v7167 = vunpack.c.l.b16 %v6894
        %v7168 = vunpack.c.h.b16 %v6894
        %v7169 = vunpack.c.l.b16 %v6895
        %v7170 = vunpack.c.h.b16 %v6895
        %v7171 = vunpack.c.l.b16 %v6896
        %v7172 = vunpack.c.h.b16 %v6896
        %v7173 = vunpack.c.l.b16 %v6897
        %v7174 = vunpack.c.h.b16 %v6897
        %v7175 = vunpack.c.l.b16 %v6898
        %v7176 = vunpack.c.h.b16 %v6898
        %v7177 = vunpack.c.l.b16 %v6899
        %v7178 = vunpack.c.h.b16 %v6899
        %v7179 = vunpack.c.l.b16 %v6900
        %v7180 = vunpack.c.h.b16 %v6900
        %v7181 = vunpack.c.l.b16 %v6901
        %v7182 = vunpack.c.h.b16 %v6901
        %v7183 = vunpack.c.l.b16 %v6902
        %v7184 = vunpack.c.h.b16 %v6902
        %v7185 = vunpack.c.l.b16 %v6903
        %v7186 = vunpack.c.h.b16 %v6903
        %v7187 = vunpack.c.l.b16 %v6904
        %v7188 = vunpack.c.h.b16 %v6904
        %v7189 = vunpack.c.l.b16 %v6905
        %v7190 = vunpack.c.h.b16 %v6905
        %v7191 = vunpack.c.l.b16 %v6906
        %v7192 = vunpack.c.h.b16 %v6906
        %v7193 = vunpack.c.l.b16 %v6907
        %v7194 = vunpack.c.h.b16 %v6907
        %v7195 = vunpack.c.l.b16 %v6908
        %v7196 = vunpack.c.h.b16 %v6908
        %v7197 = vunpack.c.l.b16 %v6909
        %v7198 = vunpack.c.h.b16 %v6909
        %v7199 = vunpack.c.l.b16 %v6910
        %v7200 = vunpack.c.h.b16 %v6910
        %v7201 = vunpack.c.l.b16 %v6911
        %v7202 = vunpack.c.h.b16 %v6911
        %v7203 = vunpack.c.l.b16 %v6912
        %v7204 = vunpack.c.h.b16 %v6912
        %v7205 = vunpack.c.l.b16 %v6913
        %v7206 = vunpack.c.h.b16 %v6913
        %v7207 = vunpack.c.l.b16 %v6914
        %v7208 = vunpack.c.h.b16 %v6914
        %v7209 = vunpack.c.l.b16 %v6915
        %v7210 = vunpack.c.h.b16 %v6915
        %v7211 = vunpack.c.l.b16 %v6916
        %v7212 = vunpack.c.h.b16 %v6916
        %v7213 = vunpack.c.l.b16 %v6917
        %v7214 = vunpack.c.h.b16 %v6917
        %v7215 = vunpack.c.l.b16 %v6918
        %v7216 = vunpack.c.h.b16 %v6918
        %v7217 = vunpack.c.l.b16 %v6919
        %v7218 = vunpack.c.h.b16 %v6919
        %v7219 = vunpack.c.l.b16 %v6920
        %v7220 = vunpack.c.h.b16 %v6920
        %v7221 = vunpack.c.l.b16 %v6921
        %v7222 = vunpack.c.h.b16 %v6921
        %v7223 = vunpack.c.l.b16 %v6922
        %v7224 = vunpack.c.h.b16 %v6922
        %v7225 = vunpack.c.l.b16 %v6923
        %v7226 = vunpack.c.h.b16 %v6923
        %v7227 = vunpack.c.l.b16 %v6924
        %v7228 = vunpack.c.h.b16 %v6924
        %v7229 = vunpack.c.l.b16 %v6925
        %v7230 = vunpack.c.h.b16 %v6925
        %v7231 = vunpack.c.l.b16 %v6926
        %v7232 = vunpack.c.h.b16 %v6926
        %v7233 = vunpack.c.l.b16 %v6927
        %v7234 = vunpack.c.h.b16 %v6927
        %v7235 = vunpack.c.l.b16 %v6928
        %v7236 = vunpack.c.h.b16 %v6928
        %v7237 = vunpack.c.l.b16 %v6929
        %v7238 = vunpack.c.h.b16 %v6929
        %v7239 = vunpack.c.l.b16 %v6930
        %v7240 = vunpack.c.h.b16 %v6930
        %v7241 = vunpack.c.l.b16 %v6931
        %v7242 = vunpack.c.h.b16 %v6931
        %v7243 = vunpack.c.l.b16 %v6932
        %v7244 = vunpack.c.h.b16 %v6932
        %v7245 = vunpack.c.l.b16 %v6933
        %v7246 = vunpack.c.h.b16 %v6933
        %v7247 = vunpack.c.l.b16 %v6934
        %v7248 = vunpack.c.h.b16 %v6934
        %v7249 = vunpack.c.l.b16 %v6935
        %v7250 = vunpack.c.h.b16 %v6935
        %v7251 = vunpack.c.l.b16 %v6936
        %v7252 = vunpack.c.h.b16 %v6936
        %v7253 = vunpack.c.l.b16 %v6937
        %v7254 = vunpack.c.h.b16 %v6937
        %v7255 = vunpack.c.l.b16 %v6938
        %v7256 = vunpack.c.h.b16 %v6938
        %v7257 = vunpack.c.l.b16 %v6939
        %v7258 = vunpack.c.h.b16 %v6939
        %v7259 = vunpack.c.l.b16 %v6940
        %v7260 = vunpack.c.h.b16 %v6940
        %v7261 = vunpack.c.l.b16 %v6941
        %v7262 = vunpack.c.h.b16 %v6941
        %v7263 = vunpack.c.l.b16 %v6942
        %v7264 = vunpack.c.h.b16 %v6942
        %v7265 = vunpack.c.l.b16 %v6943
        %v7266 = vunpack.c.h.b16 %v6943
        %v7267 = vunpack.c.l.b16 %v6944
        %v7268 = vunpack.c.h.b16 %v6944
        %v7269 = vunpack.c.l.b16 %v6945
        %v7270 = vunpack.c.h.b16 %v6945
        %v7271 = vunpack.c.l.b16 %v6946
        %v7272 = vunpack.c.h.b16 %v6946
        %v7273 = vunpack.c.l.b16 %v6947
        %v7274 = vunpack.c.h.b16 %v6947
        %v7275 = vunpack.c.l.b16 %v6948
        %v7276 = vunpack.c.h.b16 %v6948
        %v7277 = vunpack.c.l.b16 %v6949
        %v7278 = vunpack.c.h.b16 %v6949
        %v7279 = vunpack.c.l.b16 %v6950
        %v7280 = vunpack.c.h.b16 %v6950
        %v7281 = vunpack.c.l.b16 %v6951
        %v7282 = vunpack.c.h.b16 %v6951
        %v7283 = vunpack.c.l.b16 %v6952
        %v7284 = vunpack.c.h.b16 %v6952
        %v7285 = vunpack.c.l.b16 %v6953
        %v7286 = vunpack.c.h.b16 %v6953
        %v7287 = vunpack.c.l.b16 %v6954
        %v7288 = vunpack.c.h.b16 %v6954
        %v7289 = vunpack.c.l.b16 %v6955
        %v7290 = vunpack.c.h.b16 %v6955
        %v7291 = vunpack.c.l.b16 %v6956
        %v7292 = vunpack.c.h.b16 %v6956
        %v7293 = vunpack.c.l.b16 %v6957
        %v7294 = vunpack.c.h.b16 %v6957
        %v7295 = vunpack.c.l.b16 %v6958
        %v7296 = vunpack.c.h.b16 %v6958
        %v7297 = vunpack.c.l.b16 %v6959
        %v7298 = vunpack.c.h.b16 %v6959
        %v7299 = vunpack.c.l.b16 %v6960
        %v7300 = vunpack.c.h.b16 %v6960
        %v7301 = vunpack.c.l.b16 %v6961
        %v7302 = vunpack.c.h.b16 %v6961
        %v7303 = vunpack.c.l.b16 %v6962
        %v7304 = vunpack.c.h.b16 %v6962
        %v7305 = vunpack.c.l.b16 %v6963
        %v7306 = vunpack.c.h.b16 %v6963
        %v7307 = vunpack.c.l.b16 %v6964
        %v7308 = vunpack.c.h.b16 %v6964
        %v7309 = vunpack.c.l.b16 %v6965
        %v7310 = vunpack.c.h.b16 %v6965
        %v7311 = vunpack.c.l.b16 %v6966
        %v7312 = vunpack.c.h.b16 %v6966
        %v7313 = vunpack.c.l.b16 %v6967
        %v7314 = vunpack.c.h.b16 %v6967
        %v7315 = vunpack.c.l.b16 %v6968
        %v7316 = vunpack.c.h.b16 %v6968
        %v7317 = vunpack.c.l.b16 %v6969
        %v7318 = vunpack.c.h.b16 %v6969
        %v7319 = vunpack.c.l.b16 %v6970
        %v7320 = vunpack.c.h.b16 %v6970
        %v7321 = vunpack.c.l.b16 %v6971
        %v7322 = vunpack.c.h.b16 %v6971
        %v7323 = vunpack.c.l.b16 %v6972
        %v7324 = vunpack.c.h.b16 %v6972
        %v7325 = vunpack.c.l.b16 %v6973
        %v7326 = vunpack.c.h.b16 %v6973
        %v7327 = vunpack.c.l.b16 %v6974
        %v7328 = vunpack.c.h.b16 %v6974
        %v7329 = vunpack.c.l.b16 %v6975
        %v7330 = vunpack.c.h.b16 %v6975
        %v7331 = vunpack.c.l.b16 %v6976
        %v7332 = vunpack.c.h.b16 %v6976
        %v7333 = vunpack.c.l.b16 %v6977
        %v7334 = vunpack.c.h.b16 %v6977
        %v7335 = vunpack.c.l.b16 %v6978
        %v7336 = vunpack.c.h.b16 %v6978
        %v7337 = vunpack.c.l.b16 %v6979
        %v7338 = vunpack.c.h.b16 %v6979
        %v7339 = vunpack.c.l.b16 %v6980
        %v7340 = vunpack.c.h.b16 %v6980
        %v7341 = vunpack.c.l.b16 %v6981
        %v7342 = vunpack.c.h.b16 %v6981
        %v7343 = vunpack.c.l.b16 %v6982
        %v7344 = vunpack.c.h.b16 %v6982
        %v7345 = vunpack.c.l.b16 %v6983
        %v7346 = vunpack.c.h.b16 %v6983
        %v7347 = vunpack.c.l.b16 %v6984
        %v7348 = vunpack.c.h.b16 %v6984
        %v7349 = vunpack.c.l.b16 %v6985
        %v7350 = vunpack.c.h.b16 %v6985
        %v7351 = vunpack.c.l.b16 %v6986
        %v7352 = vunpack.c.h.b16 %v6986
        %v7353 = vunpack.c.l.b16 %v6987
        %v7354 = vunpack.c.h.b16 %v6987
        %v7355 = vunpack.c.l.b16 %v6988
        %v7356 = vunpack.c.h.b16 %v6988
        %v7357 = vunpack.c.l.b16 %v6989
        %v7358 = vunpack.c.h.b16 %v6989
        %v7359 = vunpack.c.l.b16 %v6990
        %v7360 = vunpack.c.h.b16 %v6990
        %v7361 = vunpack.c.l.b16 %v6991
        %v7362 = vunpack.c.h.b16 %v6991
        %v7363 = vunpack.c.l.b16 %v6992
        %v7364 = vunpack.c.h.b16 %v6992
        %v7365 = vunpack.c.l.b16 %v6993
        %v7366 = vunpack.c.h.b16 %v6993
        %v7367 = vunpack.c.l.b16 %v6994
        %v7368 = vunpack.c.h.b16 %v6994
        %v7369 = vunpack.c.l.b16 %v6995
        %v7370 = vunpack.c.h.b16 %v6995
        %v7371 = vunpack.c.l.b16 %v6996
        %v7372 = vunpack.c.h.b16 %v6996
        %v7373 = vunpack.c.l.b16 %v6997
        %v7374 = vunpack.c.h.b16 %v6997
        %v7375 = vunpack.c.l.b16 %v6998
        %v7376 = vunpack.c.h.b16 %v6998
        %v7377 = vunpack.c.l.b16 %v6999
        %v7378 = vunpack.c.h.b16 %v6999
        %v7379 = vunpack.c.l.b16 %v7000
        %v7380 = vunpack.c.h.b16 %v7000
        %v7381 = vunpack.c.l.b16 %v7001
        %v7382 = vunpack.c.h.b16 %v7001
        %v7383 = vunpack.c.l.b16 %v7002
        %v7384 = vunpack.c.h.b16 %v7002
        %v7385 = vunpack.c.l.b16 %v7003
        %v7386 = vunpack.c.h.b16 %v7003
        %v7387 = vunpack.c.l.b16 %v7004
        %v7388 = vunpack.c.h.b16 %v7004
        %v7389 = vpack.c.b16 %v7141, %v7133
        %v7390 = vpack.c.b16 %v7142, %v7134
        %v7391 = vpack.c.b16 %v7143, %v7135
        %v7392 = vpack.c.b16 %v7144, %v7136
        %v7393 = vpack.c.b16 %v7145, %v7137
        %v7394 = vpack.c.b16 %v7146, %v7138
        %v7395 = vpack.c.b16 %v7147, %v7139
        %v7396 = vpack.c.b16 %v7148, %v7140
        %v7397 = vpack.c.b16 %v7157, %v7149
        %v7398 = vpack.c.b16 %v7158, %v7150
        %v7399 = vpack.c.b16 %v7159, %v7151
        %v7400 = vpack.c.b16 %v7160, %v7152
        %v7401 = vpack.c.b16 %v7161, %v7153
        %v7402 = vpack.c.b16 %v7162, %v7154
        %v7403 = vpack.c.b16 %v7163, %v7155
        %v7404 = vpack.c.b16 %v7164, %v7156
        %v7405 = vpack.c.b16 %v7173, %v7165
        %v7406 = vpack.c.b16 %v7174, %v7166
        %v7407 = vpack.c.b16 %v7175, %v7167
        %v7408 = vpack.c.b16 %v7176, %v7168
        %v7409 = vpack.c.b16 %v7177, %v7169
        %v7410 = vpack.c.b16 %v7178, %v7170
        %v7411 = vpack.c.b16 %v7179, %v7171
        %v7412 = vpack.c.b16 %v7180, %v7172
        %v7413 = vpack.c.b16 %v7189, %v7181
        %v7414 = vpack.c.b16 %v7190, %v7182
        %v7415 = vpack.c.b16 %v7191, %v7183
        %v7416 = vpack.c.b16 %v7192, %v7184
        %v7417 = vpack.c.b16 %v7193, %v7185
        %v7418 = vpack.c.b16 %v7194, %v7186
        %v7419 = vpack.c.b16 %v7195, %v7187
        %v7420 = vpack.c.b16 %v7196, %v7188
        %v7421 = vpack.c.b16 %v7205, %v7197
        %v7422 = vpack.c.b16 %v7206, %v7198
        %v7423 = vpack.c.b16 %v7207, %v7199
        %v7424 = vpack.c.b16 %v7208, %v7200
        %v7425 = vpack.c.b16 %v7209, %v7201
        %v7426 = vpack.c.b16 %v7210, %v7202
        %v7427 = vpack.c.b16 %v7211, %v7203
        %v7428 = vpack.c.b16 %v7212, %v7204
        %v7429 = vpack.c.b16 %v7221, %v7213
        %v7430 = vpack.c.b16 %v7222, %v7214
        %v7431 = vpack.c.b16 %v7223, %v7215
        %v7432 = vpack.c.b16 %v7224, %v7216
        %v7433 = vpack.c.b16 %v7225, %v7217
        %v7434 = vpack.c.b16 %v7226, %v7218
        %v7435 = vpack.c.b16 %v7227, %v7219
        %v7436 = vpack.c.b16 %v7228, %v7220
        %v7437 = vpack.c.b16 %v7237, %v7229
        %v7438 = vpack.c.b16 %v7238, %v7230
        %v7439 = vpack.c.b16 %v7239, %v7231
        %v7440 = vpack.c.b16 %v7240, %v7232
        %v7441 = vpack.c.b16 %v7241, %v7233
        %v7442 = vpack.c.b16 %v7242, %v7234
        %v7443 = vpack.c.b16 %v7243, %v7235
        %v7444 = vpack.c.b16 %v7244, %v7236
        %v7445 = vpack.c.b16 %v7253, %v7245
        %v7446 = vpack.c.b16 %v7254, %v7246
        %v7447 = vpack.c.b16 %v7255, %v7247
        %v7448 = vpack.c.b16 %v7256, %v7248
        %v7449 = vpack.c.b16 %v7257, %v7249
        %v7450 = vpack.c.b16 %v7258, %v7250
        %v7451 = vpack.c.b16 %v7259, %v7251
        %v7452 = vpack.c.b16 %v7260, %v7252
        %v7453 = vpack.c.b16 %v7269, %v7261
        %v7454 = vpack.c.b16 %v7270, %v7262
        %v7455 = vpack.c.b16 %v7271, %v7263
        %v7456 = vpack.c.b16 %v7272, %v7264
        %v7457 = vpack.c.b16 %v7273, %v7265
        %v7458 = vpack.c.b16 %v7274, %v7266
        %v7459 = vpack.c.b16 %v7275, %v7267
        %v7460 = vpack.c.b16 %v7276, %v7268
        %v7461 = vpack.c.b16 %v7285, %v7277
        %v7462 = vpack.c.b16 %v7286, %v7278
        %v7463 = vpack.c.b16 %v7287, %v7279
        %v7464 = vpack.c.b16 %v7288, %v7280
        %v7465 = vpack.c.b16 %v7289, %v7281
        %v7466 = vpack.c.b16 %v7290, %v7282
        %v7467 = vpack.c.b16 %v7291, %v7283
        %v7468 = vpack.c.b16 %v7292, %v7284
        %v7469 = vpack.c.b16 %v7301, %v7293
        %v7470 = vpack.c.b16 %v7302, %v7294
        %v7471 = vpack.c.b16 %v7303, %v7295
        %v7472 = vpack.c.b16 %v7304, %v7296
        %v7473 = vpack.c.b16 %v7305, %v7297
        %v7474 = vpack.c.b16 %v7306, %v7298
        %v7475 = vpack.c.b16 %v7307, %v7299
        %v7476 = vpack.c.b16 %v7308, %v7300
        %v7477 = vpack.c.b16 %v7317, %v7309
        %v7478 = vpack.c.b16 %v7318, %v7310
        %v7479 = vpack.c.b16 %v7319, %v7311
        %v7480 = vpack.c.b16 %v7320, %v7312
        %v7481 = vpack.c.b16 %v7321, %v7313
        %v7482 = vpack.c.b16 %v7322, %v7314
        %v7483 = vpack.c.b16 %v7323, %v7315
        %v7484 = vpack.c.b16 %v7324, %v7316
        %v7485 = vpack.c.b16 %v7333, %v7325
        %v7486 = vpack.c.b16 %v7334, %v7326
        %v7487 = vpack.c.b16 %v7335, %v7327
        %v7488 = vpack.c.b16 %v7336, %v7328
        %v7489 = vpack.c.b16 %v7337, %v7329
        %v7490 = vpack.c.b16 %v7338, %v7330
        %v7491 = vpack.c.b16 %v7339, %v7331
        %v7492 = vpack.c.b16 %v7340, %v7332
        %v7493 = vpack.c.b16 %v7349, %v7341
        %v7494 = vpack.c.b16 %v7350, %v7342
        %v7495 = vpack.c.b16 %v7351, %v7343
        %v7496 = vpack.c.b16 %v7352, %v7344
        %v7497 = vpack.c.b16 %v7353, %v7345
        %v7498 = vpack.c.b16 %v7354, %v7346
        %v7499 = vpack.c.b16 %v7355, %v7347
        %v7500 = vpack.c.b16 %v7356, %v7348
        %v7501 = vpack.c.b16 %v7365, %v7357
        %v7502 = vpack.c.b16 %v7366, %v7358
        %v7503 = vpack.c.b16 %v7367, %v7359
        %v7504 = vpack.c.b16 %v7368, %v7360
        %v7505 = vpack.c.b16 %v7369, %v7361
        %v7506 = vpack.c.b16 %v7370, %v7362
        %v7507 = vpack.c.b16 %v7371, %v7363
        %v7508 = vpack.c.b16 %v7372, %v7364
        %v7509 = vpack.c.b16 %v7381, %v7373
        %v7510 = vpack.c.b16 %v7382, %v7374
        %v7511 = vpack.c.b16 %v7383, %v7375
        %v7512 = vpack.c.b16 %v7384, %v7376
        %v7513 = vpack.c.b16 %v7385, %v7377
        %v7514 = vpack.c.b16 %v7386, %v7378
        %v7515 = vpack.c.b16 %v7387, %v7379
        %v7516 = vpack.c.b16 %v7388, %v7380
        %7645 = vmatpush.bf16.msra.mxu0 %v7445
        %7646 = vmatpush.bf16.msra.mxu0 %v7437
        %7647 = vmatpush.bf16.msra.mxu0 %v7429
        %7648 = vmatpush.bf16.msra.mxu0 %v7421
        %7649 = vmatpush.bf16.msra.mxu0 %v7413
        %7650 = vmatpush.bf16.msra.mxu0 %v7405
        %7651 = vmatpush.bf16.msra.mxu0 %v7397
        %7652 = vmatpush.bf16.msra.mxu0 %v7389
        %7653 = vmatmul.bf16.gmra.mxu0 %v6867
        %v7654 = vpop.f32.mrf.mxu0
        %v7655 = vadd.f32 0.0, %v7654
        %v7656 = vpop.f32.mrf.mxu0
        %v7657 = vadd.f32 0.0, %v7656
        %7658 = vmatmul.bf16.gmra.mxu0 %v6869
        %v7659 = vpop.f32.mrf.mxu0
        %v7660 = vadd.f32 0.0, %v7659
        %v7661 = vpop.f32.mrf.mxu0
        %v7662 = vadd.f32 0.0, %v7661
        %7663 = vmatmul.bf16.gmra.mxu0 %v6871
        %v7664 = vpop.f32.mrf.mxu0
        %v7665 = vadd.f32 0.0, %v7664
        %v7666 = vpop.f32.mrf.mxu0
        %v7667 = vadd.f32 0.0, %v7666
        %7668 = vmatmul.bf16.gmra.mxu0 %v6873
        %v7669 = vpop.f32.mrf.mxu0
        %v7670 = vadd.f32 0.0, %v7669
        %v7671 = vpop.f32.mrf.mxu0
        %v7672 = vadd.f32 0.0, %v7671
        %7673 = vmatmul.bf16.gmra.mxu0 %v6875
        %v7674 = vpop.f32.mrf.mxu0
        %v7675 = vadd.f32 0.0, %v7674
        %v7676 = vpop.f32.mrf.mxu0
        %v7677 = vadd.f32 0.0, %v7676
        %7678 = vdwg.mxu0
        %7679 = vmatpush.bf16.msra.mxu0 %v7509
        %7680 = vmatpush.bf16.msra.mxu0 %v7501
        %7681 = vmatpush.bf16.msra.mxu0 %v7493
        %7682 = vmatpush.bf16.msra.mxu0 %v7485
        %7683 = vmatpush.bf16.msra.mxu0 %v7477
        %7684 = vmatpush.bf16.msra.mxu0 %v7469
        %7685 = vmatpush.bf16.msra.mxu0 %v7461
        %7686 = vmatpush.bf16.msra.mxu0 %v7453
        %7687 = vmatmul.bf16.gmra.mxu0 %v6868
        %v7688 = vpop.f32.mrf.mxu0
        %v7689 = vadd.f32 %v7655, %v7688
        %v7690 = vpop.f32.mrf.mxu0
        %v7691 = vadd.f32 %v7657, %v7690
        %7692 = vmatmul.bf16.gmra.mxu0 %v6870
        %v7693 = vpop.f32.mrf.mxu0
        %v7694 = vadd.f32 %v7660, %v7693
        %v7695 = vpop.f32.mrf.mxu0
        %v7696 = vadd.f32 %v7662, %v7695
        %7697 = vmatmul.bf16.gmra.mxu0 %v6872
        %v7698 = vpop.f32.mrf.mxu0
        %v7699 = vadd.f32 %v7665, %v7698
        %v7700 = vpop.f32.mrf.mxu0
        %v7701 = vadd.f32 %v7667, %v7700
        %7702 = vmatmul.bf16.gmra.mxu0 %v6874
        %v7703 = vpop.f32.mrf.mxu0
        %v7704 = vadd.f32 %v7670, %v7703
        %v7705 = vpop.f32.mrf.mxu0
        %v7706 = vadd.f32 %v7672, %v7705
        %7707 = vmatmul.bf16.gmra.mxu0 %v6876
        %v7708 = vpop.f32.mrf.mxu0
        %v7709 = vadd.f32 %v7675, %v7708
        %v7710 = vpop.f32.mrf.mxu0
        %v7711 = vadd.f32 %v7677, %v7710
        %7712 = vdwg.mxu0
        %7713 = vmatpush.bf16.msra.mxu0 %v7446
        %7714 = vmatpush.bf16.msra.mxu0 %v7438
        %7715 = vmatpush.bf16.msra.mxu0 %v7430
        %7716 = vmatpush.bf16.msra.mxu0 %v7422
        %7717 = vmatpush.bf16.msra.mxu0 %v7414
        %7718 = vmatpush.bf16.msra.mxu0 %v7406
        %7719 = vmatpush.bf16.msra.mxu0 %v7398
        %7720 = vmatpush.bf16.msra.mxu0 %v7390
        %7721 = vmatmul.bf16.gmra.mxu0 %v6867
        %v7722 = vpop.f32.mrf.mxu0
        %v7723 = vadd.f32 0.0, %v7722
        %v7724 = vpop.f32.mrf.mxu0
        %v7725 = vadd.f32 0.0, %v7724
        %7726 = vmatmul.bf16.gmra.mxu0 %v6869
        %v7727 = vpop.f32.mrf.mxu0
        %v7728 = vadd.f32 0.0, %v7727
        %v7729 = vpop.f32.mrf.mxu0
        %v7730 = vadd.f32 0.0, %v7729
        %7731 = vmatmul.bf16.gmra.mxu0 %v6871
        %v7732 = vpop.f32.mrf.mxu0
        %v7733 = vadd.f32 0.0, %v7732
        %v7734 = vpop.f32.mrf.mxu0
        %v7735 = vadd.f32 0.0, %v7734
        %7736 = vmatmul.bf16.gmra.mxu0 %v6873
        %v7737 = vpop.f32.mrf.mxu0
        %v7738 = vadd.f32 0.0, %v7737
        %v7739 = vpop.f32.mrf.mxu0
        %v7740 = vadd.f32 0.0, %v7739
        %7741 = vmatmul.bf16.gmra.mxu0 %v6875
        %v7742 = vpop.f32.mrf.mxu0
        %v7743 = vadd.f32 0.0, %v7742
        %v7744 = vpop.f32.mrf.mxu0
        %v7745 = vadd.f32 0.0, %v7744
        %7746 = vdwg.mxu0
        %7747 = vmatpush.bf16.msra.mxu0 %v7510
        %7748 = vmatpush.bf16.msra.mxu0 %v7502
        %7749 = vmatpush.bf16.msra.mxu0 %v7494
        %7750 = vmatpush.bf16.msra.mxu0 %v7486
        %7751 = vmatpush.bf16.msra.mxu0 %v7478
        %7752 = vmatpush.bf16.msra.mxu0 %v7470
        %7753 = vmatpush.bf16.msra.mxu0 %v7462
        %7754 = vmatpush.bf16.msra.mxu0 %v7454
        %7755 = vmatmul.bf16.gmra.mxu0 %v6868
        %v7756 = vpop.f32.mrf.mxu0
        %v7757 = vadd.f32 %v7723, %v7756
        %v7758 = vpop.f32.mrf.mxu0
        %v7759 = vadd.f32 %v7725, %v7758
        %7760 = vmatmul.bf16.gmra.mxu0 %v6870
        %v7761 = vpop.f32.mrf.mxu0
        %v7762 = vadd.f32 %v7728, %v7761
        %v7763 = vpop.f32.mrf.mxu0
        %v7764 = vadd.f32 %v7730, %v7763
        %7765 = vmatmul.bf16.gmra.mxu0 %v6872
        %v7766 = vpop.f32.mrf.mxu0
        %v7767 = vadd.f32 %v7733, %v7766
        %v7768 = vpop.f32.mrf.mxu0
        %v7769 = vadd.f32 %v7735, %v7768
        %7770 = vmatmul.bf16.gmra.mxu0 %v6874
        %v7771 = vpop.f32.mrf.mxu0
        %v7772 = vadd.f32 %v7738, %v7771
        %v7773 = vpop.f32.mrf.mxu0
        %v7774 = vadd.f32 %v7740, %v7773
        %7775 = vmatmul.bf16.gmra.mxu0 %v6876
        %v7776 = vpop.f32.mrf.mxu0
        %v7777 = vadd.f32 %v7743, %v7776
        %v7778 = vpop.f32.mrf.mxu0
        %v7779 = vadd.f32 %v7745, %v7778
        %7780 = vdwg.mxu0
        %7781 = vmatpush.bf16.msra.mxu0 %v7447
        %7782 = vmatpush.bf16.msra.mxu0 %v7439
        %7783 = vmatpush.bf16.msra.mxu0 %v7431
        %7784 = vmatpush.bf16.msra.mxu0 %v7423
        %7785 = vmatpush.bf16.msra.mxu0 %v7415
        %7786 = vmatpush.bf16.msra.mxu0 %v7407
        %7787 = vmatpush.bf16.msra.mxu0 %v7399
        %7788 = vmatpush.bf16.msra.mxu0 %v7391
        %7789 = vmatmul.bf16.gmra.mxu0 %v6867
        %v7790 = vpop.f32.mrf.mxu0
        %v7791 = vadd.f32 0.0, %v7790
        %v7792 = vpop.f32.mrf.mxu0
        %v7793 = vadd.f32 0.0, %v7792
        %7794 = vmatmul.bf16.gmra.mxu0 %v6869
        %v7795 = vpop.f32.mrf.mxu0
        %v7796 = vadd.f32 0.0, %v7795
        %v7797 = vpop.f32.mrf.mxu0
        %v7798 = vadd.f32 0.0, %v7797
        %7799 = vmatmul.bf16.gmra.mxu0 %v6871
        %v7800 = vpop.f32.mrf.mxu0
        %v7801 = vadd.f32 0.0, %v7800
        %v7802 = vpop.f32.mrf.mxu0
        %v7803 = vadd.f32 0.0, %v7802
        %7804 = vmatmul.bf16.gmra.mxu0 %v6873
        %v7805 = vpop.f32.mrf.mxu0
        %v7806 = vadd.f32 0.0, %v7805
        %v7807 = vpop.f32.mrf.mxu0
        %v7808 = vadd.f32 0.0, %v7807
        %7809 = vmatmul.bf16.gmra.mxu0 %v6875
        %v7810 = vpop.f32.mrf.mxu0
        %v7811 = vadd.f32 0.0, %v7810
        %v7812 = vpop.f32.mrf.mxu0
        %v7813 = vadd.f32 0.0, %v7812
        %7814 = vdwg.mxu0
        %7815 = vmatpush.bf16.msra.mxu0 %v7511
        %7816 = vmatpush.bf16.msra.mxu0 %v7503
        %7817 = vmatpush.bf16.msra.mxu0 %v7495
        %7818 = vmatpush.bf16.msra.mxu0 %v7487
        %7819 = vmatpush.bf16.msra.mxu0 %v7479
        %7820 = vmatpush.bf16.msra.mxu0 %v7471
        %7821 = vmatpush.bf16.msra.mxu0 %v7463
        %7822 = vmatpush.bf16.msra.mxu0 %v7455
        %7823 = vmatmul.bf16.gmra.mxu0 %v6868
        %v7824 = vpop.f32.mrf.mxu0
        %v7825 = vadd.f32 %v7791, %v7824
        %v7826 = vpop.f32.mrf.mxu0
        %v7827 = vadd.f32 %v7793, %v7826
        %7828 = vmatmul.bf16.gmra.mxu0 %v6870
        %v7829 = vpop.f32.mrf.mxu0
        %v7830 = vadd.f32 %v7796, %v7829
        %v7831 = vpop.f32.mrf.mxu0
        %v7832 = vadd.f32 %v7798, %v7831
        %7833 = vmatmul.bf16.gmra.mxu0 %v6872
        %v7834 = vpop.f32.mrf.mxu0
        %v7835 = vadd.f32 %v7801, %v7834
        %v7836 = vpop.f32.mrf.mxu0
        %v7837 = vadd.f32 %v7803, %v7836
        %7838 = vmatmul.bf16.gmra.mxu0 %v6874
        %v7839 = vpop.f32.mrf.mxu0
        %v7840 = vadd.f32 %v7806, %v7839
        %v7841 = vpop.f32.mrf.mxu0
        %v7842 = vadd.f32 %v7808, %v7841
        %7843 = vmatmul.bf16.gmra.mxu0 %v6876
        %v7844 = vpop.f32.mrf.mxu0
        %v7845 = vadd.f32 %v7811, %v7844
        %v7846 = vpop.f32.mrf.mxu0
        %v7847 = vadd.f32 %v7813, %v7846
        %7848 = vdwg.mxu0
        %7849 = vmatpush.bf16.msra.mxu0 %v7448
        %7850 = vmatpush.bf16.msra.mxu0 %v7440
        %7851 = vmatpush.bf16.msra.mxu0 %v7432
        %7852 = vmatpush.bf16.msra.mxu0 %v7424
        %7853 = vmatpush.bf16.msra.mxu0 %v7416
        %7854 = vmatpush.bf16.msra.mxu0 %v7408
        %7855 = vmatpush.bf16.msra.mxu0 %v7400
        %7856 = vmatpush.bf16.msra.mxu0 %v7392
        %7857 = vmatmul.bf16.gmra.mxu0 %v6867
        %v7858 = vpop.f32.mrf.mxu0
        %v7859 = vadd.f32 0.0, %v7858
        %v7860 = vpop.f32.mrf.mxu0
        %v7861 = vadd.f32 0.0, %v7860
        %7862 = vmatmul.bf16.gmra.mxu0 %v6869
        %v7863 = vpop.f32.mrf.mxu0
        %v7864 = vadd.f32 0.0, %v7863
        %v7865 = vpop.f32.mrf.mxu0
        %v7866 = vadd.f32 0.0, %v7865
        %7867 = vmatmul.bf16.gmra.mxu0 %v6871
        %v7868 = vpop.f32.mrf.mxu0
        %v7869 = vadd.f32 0.0, %v7868
        %v7870 = vpop.f32.mrf.mxu0
        %v7871 = vadd.f32 0.0, %v7870
        %7872 = vmatmul.bf16.gmra.mxu0 %v6873
        %v7873 = vpop.f32.mrf.mxu0
        %v7874 = vadd.f32 0.0, %v7873
        %v7875 = vpop.f32.mrf.mxu0
        %v7876 = vadd.f32 0.0, %v7875
        %7877 = vmatmul.bf16.gmra.mxu0 %v6875
        %v7878 = vpop.f32.mrf.mxu0
        %v7879 = vadd.f32 0.0, %v7878
        %v7880 = vpop.f32.mrf.mxu0
        %v7881 = vadd.f32 0.0, %v7880
        %7882 = vdwg.mxu0
        %7883 = vmatpush.bf16.msra.mxu0 %v7512
        %7884 = vmatpush.bf16.msra.mxu0 %v7504
        %7885 = vmatpush.bf16.msra.mxu0 %v7496
        %7886 = vmatpush.bf16.msra.mxu0 %v7488
        %7887 = vmatpush.bf16.msra.mxu0 %v7480
        %7888 = vmatpush.bf16.msra.mxu0 %v7472
        %7889 = vmatpush.bf16.msra.mxu0 %v7464
        %7890 = vmatpush.bf16.msra.mxu0 %v7456
        %7891 = vmatmul.bf16.gmra.mxu0 %v6868
        %v7892 = vpop.f32.mrf.mxu0
        %v7893 = vadd.f32 %v7859, %v7892
        %v7894 = vpop.f32.mrf.mxu0
        %v7895 = vadd.f32 %v7861, %v7894
        %7896 = vmatmul.bf16.gmra.mxu0 %v6870
        %v7897 = vpop.f32.mrf.mxu0
        %v7898 = vadd.f32 %v7864, %v7897
        %v7899 = vpop.f32.mrf.mxu0
        %v7900 = vadd.f32 %v7866, %v7899
        %7901 = vmatmul.bf16.gmra.mxu0 %v6872
        %v7902 = vpop.f32.mrf.mxu0
        %v7903 = vadd.f32 %v7869, %v7902
        %v7904 = vpop.f32.mrf.mxu0
        %v7905 = vadd.f32 %v7871, %v7904
        %7906 = vmatmul.bf16.gmra.mxu0 %v6874
        %v7907 = vpop.f32.mrf.mxu0
        %v7908 = vadd.f32 %v7874, %v7907
        %v7909 = vpop.f32.mrf.mxu0
        %v7910 = vadd.f32 %v7876, %v7909
        %7911 = vmatmul.bf16.gmra.mxu0 %v6876
        %v7912 = vpop.f32.mrf.mxu0
        %v7913 = vadd.f32 %v7879, %v7912
        %v7914 = vpop.f32.mrf.mxu0
        %v7915 = vadd.f32 %v7881, %v7914
        %7916 = vdwg.mxu0
        %7917 = vmatpush.bf16.msra.mxu0 %v7449
        %7918 = vmatpush.bf16.msra.mxu0 %v7441
        %7919 = vmatpush.bf16.msra.mxu0 %v7433
        %7920 = vmatpush.bf16.msra.mxu0 %v7425
        %7921 = vmatpush.bf16.msra.mxu0 %v7417
        %7922 = vmatpush.bf16.msra.mxu0 %v7409
        %7923 = vmatpush.bf16.msra.mxu0 %v7401
        %7924 = vmatpush.bf16.msra.mxu0 %v7393
        %7925 = vmatmul.bf16.gmra.mxu0 %v6867
        %v7926 = vpop.f32.mrf.mxu0
        %v7927 = vadd.f32 0.0, %v7926
        %v7928 = vpop.f32.mrf.mxu0
        %v7929 = vadd.f32 0.0, %v7928
        %7930 = vmatmul.bf16.gmra.mxu0 %v6869
        %v7931 = vpop.f32.mrf.mxu0
        %v7932 = vadd.f32 0.0, %v7931
        %v7933 = vpop.f32.mrf.mxu0
        %v7934 = vadd.f32 0.0, %v7933
        %7935 = vmatmul.bf16.gmra.mxu0 %v6871
        %v7936 = vpop.f32.mrf.mxu0
        %v7937 = vadd.f32 0.0, %v7936
        %v7938 = vpop.f32.mrf.mxu0
        %v7939 = vadd.f32 0.0, %v7938
        %7940 = vmatmul.bf16.gmra.mxu0 %v6873
        %v7941 = vpop.f32.mrf.mxu0
        %v7942 = vadd.f32 0.0, %v7941
        %v7943 = vpop.f32.mrf.mxu0
        %v7944 = vadd.f32 0.0, %v7943
        %7945 = vmatmul.bf16.gmra.mxu0 %v6875
        %v7946 = vpop.f32.mrf.mxu0
        %v7947 = vadd.f32 0.0, %v7946
        %v7948 = vpop.f32.mrf.mxu0
        %v7949 = vadd.f32 0.0, %v7948
        %7950 = vdwg.mxu0
        %7951 = vmatpush.bf16.msra.mxu0 %v7513
        %7952 = vmatpush.bf16.msra.mxu0 %v7505
        %7953 = vmatpush.bf16.msra.mxu0 %v7497
        %7954 = vmatpush.bf16.msra.mxu0 %v7489
        %7955 = vmatpush.bf16.msra.mxu0 %v7481
        %7956 = vmatpush.bf16.msra.mxu0 %v7473
        %7957 = vmatpush.bf16.msra.mxu0 %v7465
        %7958 = vmatpush.bf16.msra.mxu0 %v7457
        %7959 = vmatmul.bf16.gmra.mxu0 %v6868
        %v7960 = vpop.f32.mrf.mxu0
        %v7961 = vadd.f32 %v7927, %v7960
        %v7962 = vpop.f32.mrf.mxu0
        %v7963 = vadd.f32 %v7929, %v7962
        %7964 = vmatmul.bf16.gmra.mxu0 %v6870
        %v7965 = vpop.f32.mrf.mxu0
        %v7966 = vadd.f32 %v7932, %v7965
        %v7967 = vpop.f32.mrf.mxu0
        %v7968 = vadd.f32 %v7934, %v7967
        %7969 = vmatmul.bf16.gmra.mxu0 %v6872
        %v7970 = vpop.f32.mrf.mxu0
        %v7971 = vadd.f32 %v7937, %v7970
        %v7972 = vpop.f32.mrf.mxu0
        %v7973 = vadd.f32 %v7939, %v7972
        %7974 = vmatmul.bf16.gmra.mxu0 %v6874
        %v7975 = vpop.f32.mrf.mxu0
        %v7976 = vadd.f32 %v7942, %v7975
        %v7977 = vpop.f32.mrf.mxu0
        %v7978 = vadd.f32 %v7944, %v7977
        %7979 = vmatmul.bf16.gmra.mxu0 %v6876
        %v7980 = vpop.f32.mrf.mxu0
        %v7981 = vadd.f32 %v7947, %v7980
        %v7982 = vpop.f32.mrf.mxu0
        %v7983 = vadd.f32 %v7949, %v7982
        %7984 = vdwg.mxu0
        %7985 = vmatpush.bf16.msra.mxu0 %v7450
        %7986 = vmatpush.bf16.msra.mxu0 %v7442
        %7987 = vmatpush.bf16.msra.mxu0 %v7434
        %7988 = vmatpush.bf16.msra.mxu0 %v7426
        %7989 = vmatpush.bf16.msra.mxu0 %v7418
        %7990 = vmatpush.bf16.msra.mxu0 %v7410
        %7991 = vmatpush.bf16.msra.mxu0 %v7402
        %7992 = vmatpush.bf16.msra.mxu0 %v7394
        %7993 = vmatmul.bf16.gmra.mxu0 %v6867
        %v7994 = vpop.f32.mrf.mxu0
        %v7995 = vadd.f32 0.0, %v7994
        %v7996 = vpop.f32.mrf.mxu0
        %v7997 = vadd.f32 0.0, %v7996
        %7998 = vmatmul.bf16.gmra.mxu0 %v6869
        %v7999 = vpop.f32.mrf.mxu0
        %v8000 = vadd.f32 0.0, %v7999
        %v8001 = vpop.f32.mrf.mxu0
        %v8002 = vadd.f32 0.0, %v8001
        %8003 = vmatmul.bf16.gmra.mxu0 %v6871
        %v8004 = vpop.f32.mrf.mxu0
        %v8005 = vadd.f32 0.0, %v8004
        %v8006 = vpop.f32.mrf.mxu0
        %v8007 = vadd.f32 0.0, %v8006
        %8008 = vmatmul.bf16.gmra.mxu0 %v6873
        %v8009 = vpop.f32.mrf.mxu0
        %v8010 = vadd.f32 0.0, %v8009
        %v8011 = vpop.f32.mrf.mxu0
        %v8012 = vadd.f32 0.0, %v8011
        %8013 = vmatmul.bf16.gmra.mxu0 %v6875
        %v8014 = vpop.f32.mrf.mxu0
        %v8015 = vadd.f32 0.0, %v8014
        %v8016 = vpop.f32.mrf.mxu0
        %v8017 = vadd.f32 0.0, %v8016
        %8018 = vdwg.mxu0
        %8019 = vmatpush.bf16.msra.mxu0 %v7514
        %8020 = vmatpush.bf16.msra.mxu0 %v7506
        %8021 = vmatpush.bf16.msra.mxu0 %v7498
        %8022 = vmatpush.bf16.msra.mxu0 %v7490
        %8023 = vmatpush.bf16.msra.mxu0 %v7482
        %8024 = vmatpush.bf16.msra.mxu0 %v7474
        %8025 = vmatpush.bf16.msra.mxu0 %v7466
        %8026 = vmatpush.bf16.msra.mxu0 %v7458
        %8027 = vmatmul.bf16.gmra.mxu0 %v6868
        %v8028 = vpop.f32.mrf.mxu0
        %v8029 = vadd.f32 %v7995, %v8028
        %v8030 = vpop.f32.mrf.mxu0
        %v8031 = vadd.f32 %v7997, %v8030
        %8032 = vmatmul.bf16.gmra.mxu0 %v6870
        %v8033 = vpop.f32.mrf.mxu0
        %v8034 = vadd.f32 %v8000, %v8033
        %v8035 = vpop.f32.mrf.mxu0
        %v8036 = vadd.f32 %v8002, %v8035
        %8037 = vmatmul.bf16.gmra.mxu0 %v6872
        %v8038 = vpop.f32.mrf.mxu0
        %v8039 = vadd.f32 %v8005, %v8038
        %v8040 = vpop.f32.mrf.mxu0
        %v8041 = vadd.f32 %v8007, %v8040
        %8042 = vmatmul.bf16.gmra.mxu0 %v6874
        %v8043 = vpop.f32.mrf.mxu0
        %v8044 = vadd.f32 %v8010, %v8043
        %v8045 = vpop.f32.mrf.mxu0
        %v8046 = vadd.f32 %v8012, %v8045
        %8047 = vmatmul.bf16.gmra.mxu0 %v6876
        %v8048 = vpop.f32.mrf.mxu0
        %v8049 = vadd.f32 %v8015, %v8048
        %v8050 = vpop.f32.mrf.mxu0
        %v8051 = vadd.f32 %v8017, %v8050
        %8052 = vdwg.mxu0
        %8053 = vmatpush.bf16.msra.mxu0 %v7451
        %8054 = vmatpush.bf16.msra.mxu0 %v7443
        %8055 = vmatpush.bf16.msra.mxu0 %v7435
        %8056 = vmatpush.bf16.msra.mxu0 %v7427
        %8057 = vmatpush.bf16.msra.mxu0 %v7419
        %8058 = vmatpush.bf16.msra.mxu0 %v7411
        %8059 = vmatpush.bf16.msra.mxu0 %v7403
        %8060 = vmatpush.bf16.msra.mxu0 %v7395
        %8061 = vmatmul.bf16.gmra.mxu0 %v6867
        %v8062 = vpop.f32.mrf.mxu0
        %v8063 = vadd.f32 0.0, %v8062
        %v8064 = vpop.f32.mrf.mxu0
        %v8065 = vadd.f32 0.0, %v8064
        %8066 = vmatmul.bf16.gmra.mxu0 %v6869
        %v8067 = vpop.f32.mrf.mxu0
        %v8068 = vadd.f32 0.0, %v8067
        %v8069 = vpop.f32.mrf.mxu0
        %v8070 = vadd.f32 0.0, %v8069
        %8071 = vmatmul.bf16.gmra.mxu0 %v6871
        %v8072 = vpop.f32.mrf.mxu0
        %v8073 = vadd.f32 0.0, %v8072
        %v8074 = vpop.f32.mrf.mxu0
        %v8075 = vadd.f32 0.0, %v8074
        %8076 = vmatmul.bf16.gmra.mxu0 %v6873
        %v8077 = vpop.f32.mrf.mxu0
        %v8078 = vadd.f32 0.0, %v8077
        %v8079 = vpop.f32.mrf.mxu0
        %v8080 = vadd.f32 0.0, %v8079
        %8081 = vmatmul.bf16.gmra.mxu0 %v6875
        %v8082 = vpop.f32.mrf.mxu0
        %v8083 = vadd.f32 0.0, %v8082
        %v8084 = vpop.f32.mrf.mxu0
        %v8085 = vadd.f32 0.0, %v8084
        %8086 = vdwg.mxu0
        %8087 = vmatpush.bf16.msra.mxu0 %v7515
        %8088 = vmatpush.bf16.msra.mxu0 %v7507
        %8089 = vmatpush.bf16.msra.mxu0 %v7499
        %8090 = vmatpush.bf16.msra.mxu0 %v7491
        %8091 = vmatpush.bf16.msra.mxu0 %v7483
        %8092 = vmatpush.bf16.msra.mxu0 %v7475
        %8093 = vmatpush.bf16.msra.mxu0 %v7467
        %8094 = vmatpush.bf16.msra.mxu0 %v7459
        %8095 = vmatmul.bf16.gmra.mxu0 %v6868
        %v8096 = vpop.f32.mrf.mxu0
        %v8097 = vadd.f32 %v8063, %v8096
        %v8098 = vpop.f32.mrf.mxu0
        %v8099 = vadd.f32 %v8065, %v8098
        %8100 = vmatmul.bf16.gmra.mxu0 %v6870
        %v8101 = vpop.f32.mrf.mxu0
        %v8102 = vadd.f32 %v8068, %v8101
        %v8103 = vpop.f32.mrf.mxu0
        %v8104 = vadd.f32 %v8070, %v8103
        %8105 = vmatmul.bf16.gmra.mxu0 %v6872
        %v8106 = vpop.f32.mrf.mxu0
        %v8107 = vadd.f32 %v8073, %v8106
        %v8108 = vpop.f32.mrf.mxu0
        %v8109 = vadd.f32 %v8075, %v8108
        %8110 = vmatmul.bf16.gmra.mxu0 %v6874
        %v8111 = vpop.f32.mrf.mxu0
        %v8112 = vadd.f32 %v8078, %v8111
        %v8113 = vpop.f32.mrf.mxu0
        %v8114 = vadd.f32 %v8080, %v8113
        %8115 = vmatmul.bf16.gmra.mxu0 %v6876
        %v8116 = vpop.f32.mrf.mxu0
        %v8117 = vadd.f32 %v8083, %v8116
        %v8118 = vpop.f32.mrf.mxu0
        %v8119 = vadd.f32 %v8085, %v8118
        %8120 = vdwg.mxu0
        %8121 = vmatpush.bf16.msra.mxu0 %v7452
        %8122 = vmatpush.bf16.msra.mxu0 %v7444
        %8123 = vmatpush.bf16.msra.mxu0 %v7436
        %8124 = vmatpush.bf16.msra.mxu0 %v7428
        %8125 = vmatpush.bf16.msra.mxu0 %v7420
        %8126 = vmatpush.bf16.msra.mxu0 %v7412
        %8127 = vmatpush.bf16.msra.mxu0 %v7404
        %8128 = vmatpush.bf16.msra.mxu0 %v7396
        %8129 = vmatmul.bf16.gmra.mxu0 %v6867
        %v8130 = vpop.f32.mrf.mxu0
        %v8131 = vadd.f32 0.0, %v8130
        %v8132 = vpop.f32.mrf.mxu0
        %v8133 = vadd.f32 0.0, %v8132
        %8134 = vmatmul.bf16.gmra.mxu0 %v6869
        %v8135 = vpop.f32.mrf.mxu0
        %v8136 = vadd.f32 0.0, %v8135
        %v8137 = vpop.f32.mrf.mxu0
        %v8138 = vadd.f32 0.0, %v8137
        %8139 = vmatmul.bf16.gmra.mxu0 %v6871
        %v8140 = vpop.f32.mrf.mxu0
        %v8141 = vadd.f32 0.0, %v8140
        %v8142 = vpop.f32.mrf.mxu0
        %v8143 = vadd.f32 0.0, %v8142
        %8144 = vmatmul.bf16.gmra.mxu0 %v6873
        %v8145 = vpop.f32.mrf.mxu0
        %v8146 = vadd.f32 0.0, %v8145
        %v8147 = vpop.f32.mrf.mxu0
        %v8148 = vadd.f32 0.0, %v8147
        %8149 = vmatmul.bf16.gmra.mxu0 %v6875
        %v8150 = vpop.f32.mrf.mxu0
        %v8151 = vadd.f32 0.0, %v8150
        %v8152 = vpop.f32.mrf.mxu0
        %v8153 = vadd.f32 0.0, %v8152
        %8154 = vdwg.mxu0
        %8155 = vmatpush.bf16.msra.mxu0 %v7516
        %8156 = vmatpush.bf16.msra.mxu0 %v7508
        %8157 = vmatpush.bf16.msra.mxu0 %v7500
        %8158 = vmatpush.bf16.msra.mxu0 %v7492
        %8159 = vmatpush.bf16.msra.mxu0 %v7484
        %8160 = vmatpush.bf16.msra.mxu0 %v7476
        %8161 = vmatpush.bf16.msra.mxu0 %v7468
        %8162 = vmatpush.bf16.msra.mxu0 %v7460
        %8163 = vmatmul.bf16.gmra.mxu0 %v6868
        %v8164 = vpop.f32.mrf.mxu0
        %v8165 = vadd.f32 %v8131, %v8164
        %v8166 = vpop.f32.mrf.mxu0
        %v8167 = vadd.f32 %v8133, %v8166
        %8168 = vmatmul.bf16.gmra.mxu0 %v6870
        %v8169 = vpop.f32.mrf.mxu0
        %v8170 = vadd.f32 %v8136, %v8169
        %v8171 = vpop.f32.mrf.mxu0
        %v8172 = vadd.f32 %v8138, %v8171
        %8173 = vmatmul.bf16.gmra.mxu0 %v6872
        %v8174 = vpop.f32.mrf.mxu0
        %v8175 = vadd.f32 %v8141, %v8174
        %v8176 = vpop.f32.mrf.mxu0
        %v8177 = vadd.f32 %v8143, %v8176
        %8178 = vmatmul.bf16.gmra.mxu0 %v6874
        %v8179 = vpop.f32.mrf.mxu0
        %v8180 = vadd.f32 %v8146, %v8179
        %v8181 = vpop.f32.mrf.mxu0
        %v8182 = vadd.f32 %v8148, %v8181
        %8183 = vmatmul.bf16.gmra.mxu0 %v6876
        %v8184 = vpop.f32.mrf.mxu0
        %v8185 = vadd.f32 %v8151, %v8184
        %v8186 = vpop.f32.mrf.mxu0
        %v8187 = vadd.f32 %v8153, %v8186
        %8188 = vdwg.mxu0
        %v8189 = vld [vmem:[%s13] sm:$0xff]
        %v8190 = vld [vmem:[%s13 + $0x8] sm:$0xff]
        %v8191 = vld [vmem:[%s13 + $0x10] sm:$0xff]
        %v8192 = vld [vmem:[%s13 + $0x18] sm:$0xff]
        %v8193 = vld [vmem:[%s13 + $0x20] sm:$0xff]
        %v8194 = vld [vmem:[%s13 + $0x28] sm:$0xff]
        %v8195 = vld [vmem:[%s13 + $0x30] sm:$0xff]
        %v8196 = vld [vmem:[%s13 + $0x38] sm:$0xff]
        %v8197 = vld [vmem:[%s13 + $0x40] sm:$0xff]
        %v8198 = vld [vmem:[%s13 + $0x48] sm:$0xff]
        %v8199 = vld [vmem:[%s13 + $0x50] sm:$0xff]
        %v8200 = vld [vmem:[%s13 + $0x58] sm:$0xff]
        %v8201 = vld [vmem:[%s13 + $0x60] sm:$0xff]
        %v8202 = vld [vmem:[%s13 + $0x68] sm:$0xff]
        %v8203 = vld [vmem:[%s13 + $0x70] sm:$0xff]
        %v8204 = vld [vmem:[%s13 + $0x78] sm:$0xff]
        %s8205 = scalar_lea.vmem %s13, 128
        %v8206 = vld [vmem:[%s8205] sm:$0xff]
        %v8207 = vld [vmem:[%s8205 + $0x8] sm:$0xff]
        %v8208 = vld [vmem:[%s8205 + $0x10] sm:$0xff]
        %v8209 = vld [vmem:[%s8205 + $0x18] sm:$0xff]
        %v8210 = vld [vmem:[%s8205 + $0x20] sm:$0xff]
        %v8211 = vld [vmem:[%s8205 + $0x28] sm:$0xff]
        %v8212 = vld [vmem:[%s8205 + $0x30] sm:$0xff]
        %v8213 = vld [vmem:[%s8205 + $0x38] sm:$0xff]
        %v8214 = vld [vmem:[%s8205 + $0x40] sm:$0xff]
        %v8215 = vld [vmem:[%s8205 + $0x48] sm:$0xff]
        %v8216 = vld [vmem:[%s8205 + $0x50] sm:$0xff]
        %v8217 = vld [vmem:[%s8205 + $0x58] sm:$0xff]
        %v8218 = vld [vmem:[%s8205 + $0x60] sm:$0xff]
        %v8219 = vld [vmem:[%s8205 + $0x68] sm:$0xff]
        %v8220 = vld [vmem:[%s8205 + $0x70] sm:$0xff]
        %v8221 = vld [vmem:[%s8205 + $0x78] sm:$0xff]
        %vm8222 = vcmask 654336
        %v8224 = vsel %vm8222, %v8206, 0
        %v8227 = vsel %vm8222, %v8207, 0
        %v8230 = vsel %vm8222, %v8208, 0
        %v8233 = vsel %vm8222, %v8209, 0
        %v8236 = vsel %vm8222, %v8210, 0
        %v8239 = vsel %vm8222, %v8211, 0
        %v8242 = vsel %vm8222, %v8212, 0
        %v8245 = vsel %vm8222, %v8213, 0
        %v8248 = vsel %vm8222, %v8214, 0
        %v8251 = vsel %vm8222, %v8215, 0
        %v8254 = vsel %vm8222, %v8216, 0
        %v8257 = vsel %vm8222, %v8217, 0
        %v8260 = vsel %vm8222, %v8218, 0
        %v8263 = vsel %vm8222, %v8219, 0
        %v8266 = vsel %vm8222, %v8220, 0
        %v8269 = vsel %vm8222, %v8221, 0
        %8271 = vmatpush.msra.mxu0 0.0
        %8272 = vmatpush.msra.mxu0 0.0
        %8273 = vmatpush.msra.mxu0 0.0
        %8274 = vmatpush.msra.mxu0 0.0
        %8275 = vmatpush.msra.mxu0 0.0
        %8276 = vmatpush.msra.mxu0 0.0
        %8277 = vmatpush.msra.mxu0 %v7847
        %8278 = vmatpush.msra.mxu0 %v7845
        %8279 = vmatpush.msra.mxu0 %v7842
        %8280 = vmatpush.msra.mxu0 %v7840
        %8281 = vmatpush.msra.mxu0 %v7837
        %8282 = vmatpush.msra.mxu0 %v7835
        %8283 = vmatpush.msra.mxu0 %v7832
        %8284 = vmatpush.msra.mxu0 %v7830
        %8285 = vmatpush.msra.mxu0 %v7827
        %8286 = vmatpush.msra.mxu0 %v7825
        %8287 = vmatmul.f32.gmra.mxu0 %v8224
        %v8288 = vpop.f32.mrf.mxu0
        %v8289 = vadd.f32 0.0, %v8288
        %8290 = vmatmul.f32.gmra.mxu0 %v8227
        %v8291 = vpop.f32.mrf.mxu0
        %v8292 = vadd.f32 0.0, %v8291
        %8293 = vmatmul.f32.gmra.mxu0 %v8230
        %v8294 = vpop.f32.mrf.mxu0
        %v8295 = vadd.f32 0.0, %v8294
        %8296 = vmatmul.f32.gmra.mxu0 %v8233
        %v8297 = vpop.f32.mrf.mxu0
        %v8298 = vadd.f32 0.0, %v8297
        %8299 = vmatmul.f32.gmra.mxu0 %v8236
        %v8300 = vpop.f32.mrf.mxu0
        %v8301 = vadd.f32 0.0, %v8300
        %8302 = vmatmul.f32.gmra.mxu0 %v8239
        %v8303 = vpop.f32.mrf.mxu0
        %v8304 = vadd.f32 0.0, %v8303
        %8305 = vmatmul.f32.gmra.mxu0 %v8242
        %v8306 = vpop.f32.mrf.mxu0
        %v8307 = vadd.f32 0.0, %v8306
        %8308 = vmatmul.f32.gmra.mxu0 %v8245
        %v8309 = vpop.f32.mrf.mxu0
        %v8310 = vadd.f32 0.0, %v8309
        %8311 = vmatmul.f32.gmra.mxu0 %v8248
        %v8312 = vpop.f32.mrf.mxu0
        %v8313 = vadd.f32 0.0, %v8312
        %8314 = vmatmul.f32.gmra.mxu0 %v8251
        %v8315 = vpop.f32.mrf.mxu0
        %v8316 = vadd.f32 0.0, %v8315
        %8317 = vmatmul.f32.gmra.mxu0 %v8254
        %v8318 = vpop.f32.mrf.mxu0
        %v8319 = vadd.f32 0.0, %v8318
        %8320 = vmatmul.f32.gmra.mxu0 %v8257
        %v8321 = vpop.f32.mrf.mxu0
        %v8322 = vadd.f32 0.0, %v8321
        %8323 = vmatmul.f32.gmra.mxu0 %v8260
        %v8324 = vpop.f32.mrf.mxu0
        %v8325 = vadd.f32 0.0, %v8324
        %8326 = vmatmul.f32.gmra.mxu0 %v8263
        %v8327 = vpop.f32.mrf.mxu0
        %v8328 = vadd.f32 0.0, %v8327
        %8329 = vmatmul.f32.gmra.mxu0 %v8266
        %v8330 = vpop.f32.mrf.mxu0
        %v8331 = vadd.f32 0.0, %v8330
        %8332 = vmatmul.f32.gmra.mxu0 %v8269
        %v8333 = vpop.f32.mrf.mxu0
        %v8334 = vadd.f32 0.0, %v8333
        %8335 = vdwg.mxu0
        %8336 = vmatpush.msra.mxu0 0.0
        %8337 = vmatpush.msra.mxu0 0.0
        %8338 = vmatpush.msra.mxu0 0.0
        %8339 = vmatpush.msra.mxu0 0.0
        %8340 = vmatpush.msra.mxu0 0.0
        %8341 = vmatpush.msra.mxu0 0.0
        %8342 = vmatpush.msra.mxu0 %v7915
        %8343 = vmatpush.msra.mxu0 %v7913
        %8344 = vmatpush.msra.mxu0 %v7910
        %8345 = vmatpush.msra.mxu0 %v7908
        %8346 = vmatpush.msra.mxu0 %v7905
        %8347 = vmatpush.msra.mxu0 %v7903
        %8348 = vmatpush.msra.mxu0 %v7900
        %8349 = vmatpush.msra.mxu0 %v7898
        %8350 = vmatpush.msra.mxu0 %v7895
        %8351 = vmatpush.msra.mxu0 %v7893
        %8352 = vmatmul.f32.gmra.mxu0 %v8224
        %v8353 = vpop.f32.mrf.mxu0
        %v8354 = vadd.f32 0.0, %v8353
        %8355 = vmatmul.f32.gmra.mxu0 %v8227
        %v8356 = vpop.f32.mrf.mxu0
        %v8357 = vadd.f32 0.0, %v8356
        %8358 = vmatmul.f32.gmra.mxu0 %v8230
        %v8359 = vpop.f32.mrf.mxu0
        %v8360 = vadd.f32 0.0, %v8359
        %8361 = vmatmul.f32.gmra.mxu0 %v8233
        %v8362 = vpop.f32.mrf.mxu0
        %v8363 = vadd.f32 0.0, %v8362
        %8364 = vmatmul.f32.gmra.mxu0 %v8236
        %v8365 = vpop.f32.mrf.mxu0
        %v8366 = vadd.f32 0.0, %v8365
        %8367 = vmatmul.f32.gmra.mxu0 %v8239
        %v8368 = vpop.f32.mrf.mxu0
        %v8369 = vadd.f32 0.0, %v8368
        %8370 = vmatmul.f32.gmra.mxu0 %v8242
        %v8371 = vpop.f32.mrf.mxu0
        %v8372 = vadd.f32 0.0, %v8371
        %8373 = vmatmul.f32.gmra.mxu0 %v8245
        %v8374 = vpop.f32.mrf.mxu0
        %v8375 = vadd.f32 0.0, %v8374
        %8376 = vmatmul.f32.gmra.mxu0 %v8248
        %v8377 = vpop.f32.mrf.mxu0
        %v8378 = vadd.f32 0.0, %v8377
        %8379 = vmatmul.f32.gmra.mxu0 %v8251
        %v8380 = vpop.f32.mrf.mxu0
        %v8381 = vadd.f32 0.0, %v8380
        %8382 = vmatmul.f32.gmra.mxu0 %v8254
        %v8383 = vpop.f32.mrf.mxu0
        %v8384 = vadd.f32 0.0, %v8383
        %8385 = vmatmul.f32.gmra.mxu0 %v8257
        %v8386 = vpop.f32.mrf.mxu0
        %v8387 = vadd.f32 0.0, %v8386
        %8388 = vmatmul.f32.gmra.mxu0 %v8260
        %v8389 = vpop.f32.mrf.mxu0
        %v8390 = vadd.f32 0.0, %v8389
        %8391 = vmatmul.f32.gmra.mxu0 %v8263
        %v8392 = vpop.f32.mrf.mxu0
        %v8393 = vadd.f32 0.0, %v8392
        %8394 = vmatmul.f32.gmra.mxu0 %v8266
        %v8395 = vpop.f32.mrf.mxu0
        %v8396 = vadd.f32 0.0, %v8395
        %8397 = vmatmul.f32.gmra.mxu0 %v8269
        %v8398 = vpop.f32.mrf.mxu0
        %v8399 = vadd.f32 0.0, %v8398
        %8400 = vdwg.mxu0
        %v8402 = vsel %vm8222, %v8189, 0
        %v8405 = vsel %vm8222, %v8190, 0
        %v8408 = vsel %vm8222, %v8191, 0
        %v8411 = vsel %vm8222, %v8192, 0
        %v8414 = vsel %vm8222, %v8193, 0
        %v8417 = vsel %vm8222, %v8194, 0
        %v8420 = vsel %vm8222, %v8195, 0
        %v8423 = vsel %vm8222, %v8196, 0
        %v8426 = vsel %vm8222, %v8197, 0
        %v8429 = vsel %vm8222, %v8198, 0
        %v8432 = vsel %vm8222, %v8199, 0
        %v8435 = vsel %vm8222, %v8200, 0
        %v8438 = vsel %vm8222, %v8201, 0
        %v8441 = vsel %vm8222, %v8202, 0
        %v8444 = vsel %vm8222, %v8203, 0
        %v8447 = vsel %vm8222, %v8204, 0
        %8449 = vmatpush.msra.mxu0 0.0
        %8450 = vmatpush.msra.mxu0 0.0
        %8451 = vmatpush.msra.mxu0 0.0
        %8452 = vmatpush.msra.mxu0 0.0
        %8453 = vmatpush.msra.mxu0 0.0
        %8454 = vmatpush.msra.mxu0 0.0
        %8455 = vmatpush.msra.mxu0 %v7711
        %8456 = vmatpush.msra.mxu0 %v7709
        %8457 = vmatpush.msra.mxu0 %v7706
        %8458 = vmatpush.msra.mxu0 %v7704
        %8459 = vmatpush.msra.mxu0 %v7701
        %8460 = vmatpush.msra.mxu0 %v7699
        %8461 = vmatpush.msra.mxu0 %v7696
        %8462 = vmatpush.msra.mxu0 %v7694
        %8463 = vmatpush.msra.mxu0 %v7691
        %8464 = vmatpush.msra.mxu0 %v7689
        %8465 = vmatmul.f32.gmra.mxu0 %v8402
        %v8466 = vpop.f32.mrf.mxu0
        %v8467 = vadd.f32 %v8289, %v8466
        %8468 = vmatmul.f32.gmra.mxu0 %v8405
        %v8469 = vpop.f32.mrf.mxu0
        %v8470 = vadd.f32 %v8292, %v8469
        %8471 = vmatmul.f32.gmra.mxu0 %v8408
        %v8472 = vpop.f32.mrf.mxu0
        %v8473 = vadd.f32 %v8295, %v8472
        %8474 = vmatmul.f32.gmra.mxu0 %v8411
        %v8475 = vpop.f32.mrf.mxu0
        %v8476 = vadd.f32 %v8298, %v8475
        %8477 = vmatmul.f32.gmra.mxu0 %v8414
        %v8478 = vpop.f32.mrf.mxu0
        %v8479 = vadd.f32 %v8301, %v8478
        %8480 = vmatmul.f32.gmra.mxu0 %v8417
        %v8481 = vpop.f32.mrf.mxu0
        %v8482 = vadd.f32 %v8304, %v8481
        %8483 = vmatmul.f32.gmra.mxu0 %v8420
        %v8484 = vpop.f32.mrf.mxu0
        %v8485 = vadd.f32 %v8307, %v8484
        %8486 = vmatmul.f32.gmra.mxu0 %v8423
        %v8487 = vpop.f32.mrf.mxu0
        %v8488 = vadd.f32 %v8310, %v8487
        %8489 = vmatmul.f32.gmra.mxu0 %v8426
        %v8490 = vpop.f32.mrf.mxu0
        %v8491 = vadd.f32 %v8313, %v8490
        %8492 = vmatmul.f32.gmra.mxu0 %v8429
        %v8493 = vpop.f32.mrf.mxu0
        %v8494 = vadd.f32 %v8316, %v8493
        %8495 = vmatmul.f32.gmra.mxu0 %v8432
        %v8496 = vpop.f32.mrf.mxu0
        %v8497 = vadd.f32 %v8319, %v8496
        %8498 = vmatmul.f32.gmra.mxu0 %v8435
        %v8499 = vpop.f32.mrf.mxu0
        %v8500 = vadd.f32 %v8322, %v8499
        %8501 = vmatmul.f32.gmra.mxu0 %v8438
        %v8502 = vpop.f32.mrf.mxu0
        %v8503 = vadd.f32 %v8325, %v8502
        %8504 = vmatmul.f32.gmra.mxu0 %v8441
        %v8505 = vpop.f32.mrf.mxu0
        %v8506 = vadd.f32 %v8328, %v8505
        %8507 = vmatmul.f32.gmra.mxu0 %v8444
        %v8508 = vpop.f32.mrf.mxu0
        %v8509 = vadd.f32 %v8331, %v8508
        %8510 = vmatmul.f32.gmra.mxu0 %v8447
        %v8511 = vpop.f32.mrf.mxu0
        %v8512 = vadd.f32 %v8334, %v8511
        %8513 = vdwg.mxu0
        %8514 = vmatpush.msra.mxu0 0.0
        %8515 = vmatpush.msra.mxu0 0.0
        %8516 = vmatpush.msra.mxu0 0.0
        %8517 = vmatpush.msra.mxu0 0.0
        %8518 = vmatpush.msra.mxu0 0.0
        %8519 = vmatpush.msra.mxu0 0.0
        %8520 = vmatpush.msra.mxu0 %v7779
        %8521 = vmatpush.msra.mxu0 %v7777
        %8522 = vmatpush.msra.mxu0 %v7774
        %8523 = vmatpush.msra.mxu0 %v7772
        %8524 = vmatpush.msra.mxu0 %v7769
        %8525 = vmatpush.msra.mxu0 %v7767
        %8526 = vmatpush.msra.mxu0 %v7764
        %8527 = vmatpush.msra.mxu0 %v7762
        %8528 = vmatpush.msra.mxu0 %v7759
        %8529 = vmatpush.msra.mxu0 %v7757
        %8530 = vmatmul.f32.gmra.mxu0 %v8402
        %v8531 = vpop.f32.mrf.mxu0
        %v8532 = vadd.f32 %v8354, %v8531
        %8533 = vmatmul.f32.gmra.mxu0 %v8405
        %v8534 = vpop.f32.mrf.mxu0
        %v8535 = vadd.f32 %v8357, %v8534
        %8536 = vmatmul.f32.gmra.mxu0 %v8408
        %v8537 = vpop.f32.mrf.mxu0
        %v8538 = vadd.f32 %v8360, %v8537
        %8539 = vmatmul.f32.gmra.mxu0 %v8411
        %v8540 = vpop.f32.mrf.mxu0
        %v8541 = vadd.f32 %v8363, %v8540
        %8542 = vmatmul.f32.gmra.mxu0 %v8414
        %v8543 = vpop.f32.mrf.mxu0
        %v8544 = vadd.f32 %v8366, %v8543
        %8545 = vmatmul.f32.gmra.mxu0 %v8417
        %v8546 = vpop.f32.mrf.mxu0
        %v8547 = vadd.f32 %v8369, %v8546
        %8548 = vmatmul.f32.gmra.mxu0 %v8420
        %v8549 = vpop.f32.mrf.mxu0
        %v8550 = vadd.f32 %v8372, %v8549
        %8551 = vmatmul.f32.gmra.mxu0 %v8423
        %v8552 = vpop.f32.mrf.mxu0
        %v8553 = vadd.f32 %v8375, %v8552
        %8554 = vmatmul.f32.gmra.mxu0 %v8426
        %v8555 = vpop.f32.mrf.mxu0
        %v8556 = vadd.f32 %v8378, %v8555
        %8557 = vmatmul.f32.gmra.mxu0 %v8429
        %v8558 = vpop.f32.mrf.mxu0
        %v8559 = vadd.f32 %v8381, %v8558
        %8560 = vmatmul.f32.gmra.mxu0 %v8432
        %v8561 = vpop.f32.mrf.mxu0
        %v8562 = vadd.f32 %v8384, %v8561
        %8563 = vmatmul.f32.gmra.mxu0 %v8435
        %v8564 = vpop.f32.mrf.mxu0
        %v8565 = vadd.f32 %v8387, %v8564
        %8566 = vmatmul.f32.gmra.mxu0 %v8438
        %v8567 = vpop.f32.mrf.mxu0
        %v8568 = vadd.f32 %v8390, %v8567
        %8569 = vmatmul.f32.gmra.mxu0 %v8441
        %v8570 = vpop.f32.mrf.mxu0
        %v8571 = vadd.f32 %v8393, %v8570
        %8572 = vmatmul.f32.gmra.mxu0 %v8444
        %v8573 = vpop.f32.mrf.mxu0
        %v8574 = vadd.f32 %v8396, %v8573
        %8575 = vmatmul.f32.gmra.mxu0 %v8447
        %v8576 = vpop.f32.mrf.mxu0
        %v8577 = vadd.f32 %v8399, %v8576
        %8578 = vdwg.mxu0
        %s8579 = scalar_lea.vmem %s13, 256
        %v8580 = vld [vmem:[%s8579] sm:$0xff]
        %v8581 = vld [vmem:[%s8579 + $0x8] sm:$0xff]
        %v8582 = vld [vmem:[%s8579 + $0x10] sm:$0xff]
        %v8583 = vld [vmem:[%s8579 + $0x18] sm:$0xff]
        %v8584 = vld [vmem:[%s8579 + $0x20] sm:$0xff]
        %v8585 = vld [vmem:[%s8579 + $0x28] sm:$0xff]
        %v8586 = vld [vmem:[%s8579 + $0x30] sm:$0xff]
        %v8587 = vld [vmem:[%s8579 + $0x38] sm:$0xff]
        %v8588 = vld [vmem:[%s8579 + $0x40] sm:$0xff]
        %v8589 = vld [vmem:[%s8579 + $0x48] sm:$0xff]
        %v8590 = vld [vmem:[%s8579 + $0x50] sm:$0xff]
        %v8591 = vld [vmem:[%s8579 + $0x58] sm:$0xff]
        %v8592 = vld [vmem:[%s8579 + $0x60] sm:$0xff]
        %v8593 = vld [vmem:[%s8579 + $0x68] sm:$0xff]
        %v8594 = vld [vmem:[%s8579 + $0x70] sm:$0xff]
        %v8595 = vld [vmem:[%s8579 + $0x78] sm:$0xff]
        %v8597 = vsel %vm8222, %v8580, 0
        %v8600 = vsel %vm8222, %v8581, 0
        %v8603 = vsel %vm8222, %v8582, 0
        %v8606 = vsel %vm8222, %v8583, 0
        %v8609 = vsel %vm8222, %v8584, 0
        %v8612 = vsel %vm8222, %v8585, 0
        %v8615 = vsel %vm8222, %v8586, 0
        %v8618 = vsel %vm8222, %v8587, 0
        %v8621 = vsel %vm8222, %v8588, 0
        %v8624 = vsel %vm8222, %v8589, 0
        %v8627 = vsel %vm8222, %v8590, 0
        %v8630 = vsel %vm8222, %v8591, 0
        %v8633 = vsel %vm8222, %v8592, 0
        %v8636 = vsel %vm8222, %v8593, 0
        %v8639 = vsel %vm8222, %v8594, 0
        %v8642 = vsel %vm8222, %v8595, 0
        %8644 = vmatpush.msra.mxu0 0.0
        %8645 = vmatpush.msra.mxu0 0.0
        %8646 = vmatpush.msra.mxu0 0.0
        %8647 = vmatpush.msra.mxu0 0.0
        %8648 = vmatpush.msra.mxu0 0.0
        %8649 = vmatpush.msra.mxu0 0.0
        %8650 = vmatpush.msra.mxu0 %v7983
        %8651 = vmatpush.msra.mxu0 %v7981
        %8652 = vmatpush.msra.mxu0 %v7978
        %8653 = vmatpush.msra.mxu0 %v7976
        %8654 = vmatpush.msra.mxu0 %v7973
        %8655 = vmatpush.msra.mxu0 %v7971
        %8656 = vmatpush.msra.mxu0 %v7968
        %8657 = vmatpush.msra.mxu0 %v7966
        %8658 = vmatpush.msra.mxu0 %v7963
        %8659 = vmatpush.msra.mxu0 %v7961
        %8660 = vmatmul.f32.gmra.mxu0 %v8597
        %v8661 = vpop.f32.mrf.mxu0
        %v8662 = vadd.f32 0.0, %v8661
        %8663 = vmatmul.f32.gmra.mxu0 %v8600
        %v8664 = vpop.f32.mrf.mxu0
        %v8665 = vadd.f32 0.0, %v8664
        %8666 = vmatmul.f32.gmra.mxu0 %v8603
        %v8667 = vpop.f32.mrf.mxu0
        %v8668 = vadd.f32 0.0, %v8667
        %8669 = vmatmul.f32.gmra.mxu0 %v8606
        %v8670 = vpop.f32.mrf.mxu0
        %v8671 = vadd.f32 0.0, %v8670
        %8672 = vmatmul.f32.gmra.mxu0 %v8609
        %v8673 = vpop.f32.mrf.mxu0
        %v8674 = vadd.f32 0.0, %v8673
        %8675 = vmatmul.f32.gmra.mxu0 %v8612
        %v8676 = vpop.f32.mrf.mxu0
        %v8677 = vadd.f32 0.0, %v8676
        %8678 = vmatmul.f32.gmra.mxu0 %v8615
        %v8679 = vpop.f32.mrf.mxu0
        %v8680 = vadd.f32 0.0, %v8679
        %8681 = vmatmul.f32.gmra.mxu0 %v8618
        %v8682 = vpop.f32.mrf.mxu0
        %v8683 = vadd.f32 0.0, %v8682
        %8684 = vmatmul.f32.gmra.mxu0 %v8621
        %v8685 = vpop.f32.mrf.mxu0
        %v8686 = vadd.f32 0.0, %v8685
        %8687 = vmatmul.f32.gmra.mxu0 %v8624
        %v8688 = vpop.f32.mrf.mxu0
        %v8689 = vadd.f32 0.0, %v8688
        %8690 = vmatmul.f32.gmra.mxu0 %v8627
        %v8691 = vpop.f32.mrf.mxu0
        %v8692 = vadd.f32 0.0, %v8691
        %8693 = vmatmul.f32.gmra.mxu0 %v8630
        %v8694 = vpop.f32.mrf.mxu0
        %v8695 = vadd.f32 0.0, %v8694
        %8696 = vmatmul.f32.gmra.mxu0 %v8633
        %v8697 = vpop.f32.mrf.mxu0
        %v8698 = vadd.f32 0.0, %v8697
        %8699 = vmatmul.f32.gmra.mxu0 %v8636
        %v8700 = vpop.f32.mrf.mxu0
        %v8701 = vadd.f32 0.0, %v8700
        %8702 = vmatmul.f32.gmra.mxu0 %v8639
        %v8703 = vpop.f32.mrf.mxu0
        %v8704 = vadd.f32 0.0, %v8703
        %8705 = vmatmul.f32.gmra.mxu0 %v8642
        %v8706 = vpop.f32.mrf.mxu0
        %v8707 = vadd.f32 0.0, %v8706
        %8708 = vdwg.mxu0
        %8709 = vmatpush.msra.mxu0 0.0
        %8710 = vmatpush.msra.mxu0 0.0
        %8711 = vmatpush.msra.mxu0 0.0
        %8712 = vmatpush.msra.mxu0 0.0
        %8713 = vmatpush.msra.mxu0 0.0
        %8714 = vmatpush.msra.mxu0 0.0
        %8715 = vmatpush.msra.mxu0 %v8051
        %8716 = vmatpush.msra.mxu0 %v8049
        %8717 = vmatpush.msra.mxu0 %v8046
        %8718 = vmatpush.msra.mxu0 %v8044
        %8719 = vmatpush.msra.mxu0 %v8041
        %8720 = vmatpush.msra.mxu0 %v8039
        %8721 = vmatpush.msra.mxu0 %v8036
        %8722 = vmatpush.msra.mxu0 %v8034
        %8723 = vmatpush.msra.mxu0 %v8031
        %8724 = vmatpush.msra.mxu0 %v8029
        %8725 = vmatmul.f32.gmra.mxu0 %v8597
        %v8726 = vpop.f32.mrf.mxu0
        %v8727 = vadd.f32 0.0, %v8726
        %8728 = vmatmul.f32.gmra.mxu0 %v8600
        %v8729 = vpop.f32.mrf.mxu0
        %v8730 = vadd.f32 0.0, %v8729
        %8731 = vmatmul.f32.gmra.mxu0 %v8603
        %v8732 = vpop.f32.mrf.mxu0
        %v8733 = vadd.f32 0.0, %v8732
        %8734 = vmatmul.f32.gmra.mxu0 %v8606
        %v8735 = vpop.f32.mrf.mxu0
        %v8736 = vadd.f32 0.0, %v8735
        %8737 = vmatmul.f32.gmra.mxu0 %v8609
        %v8738 = vpop.f32.mrf.mxu0
        %v8739 = vadd.f32 0.0, %v8738
        %8740 = vmatmul.f32.gmra.mxu0 %v8612
        %v8741 = vpop.f32.mrf.mxu0
        %v8742 = vadd.f32 0.0, %v8741
        %8743 = vmatmul.f32.gmra.mxu0 %v8615
        %v8744 = vpop.f32.mrf.mxu0
        %v8745 = vadd.f32 0.0, %v8744
        %8746 = vmatmul.f32.gmra.mxu0 %v8618
        %v8747 = vpop.f32.mrf.mxu0
        %v8748 = vadd.f32 0.0, %v8747
        %8749 = vmatmul.f32.gmra.mxu0 %v8621
        %v8750 = vpop.f32.mrf.mxu0
        %v8751 = vadd.f32 0.0, %v8750
        %8752 = vmatmul.f32.gmra.mxu0 %v8624
        %v8753 = vpop.f32.mrf.mxu0
        %v8754 = vadd.f32 0.0, %v8753
        %8755 = vmatmul.f32.gmra.mxu0 %v8627
        %v8756 = vpop.f32.mrf.mxu0
        %v8757 = vadd.f32 0.0, %v8756
        %8758 = vmatmul.f32.gmra.mxu0 %v8630
        %v8759 = vpop.f32.mrf.mxu0
        %v8760 = vadd.f32 0.0, %v8759
        %8761 = vmatmul.f32.gmra.mxu0 %v8633
        %v8762 = vpop.f32.mrf.mxu0
        %v8763 = vadd.f32 0.0, %v8762
        %8764 = vmatmul.f32.gmra.mxu0 %v8636
        %v8765 = vpop.f32.mrf.mxu0
        %v8766 = vadd.f32 0.0, %v8765
        %8767 = vmatmul.f32.gmra.mxu0 %v8639
        %v8768 = vpop.f32.mrf.mxu0
        %v8769 = vadd.f32 0.0, %v8768
        %8770 = vmatmul.f32.gmra.mxu0 %v8642
        %v8771 = vpop.f32.mrf.mxu0
        %v8772 = vadd.f32 0.0, %v8771
        %8773 = vdwg.mxu0
        %v8774 = vadd.f32 %v8467, %v8662
        %v8775 = vadd.f32 %v8532, %v8727
        %v8776 = vadd.f32 %v8470, %v8665
        %v8777 = vadd.f32 %v8535, %v8730
        %v8778 = vadd.f32 %v8473, %v8668
        %v8779 = vadd.f32 %v8538, %v8733
        %v8780 = vadd.f32 %v8476, %v8671
        %v8781 = vadd.f32 %v8541, %v8736
        %v8782 = vadd.f32 %v8479, %v8674
        %v8783 = vadd.f32 %v8544, %v8739
        %v8784 = vadd.f32 %v8482, %v8677
        %v8785 = vadd.f32 %v8547, %v8742
        %v8786 = vadd.f32 %v8485, %v8680
        %v8787 = vadd.f32 %v8550, %v8745
        %v8788 = vadd.f32 %v8488, %v8683
        %v8789 = vadd.f32 %v8553, %v8748
        %v8790 = vadd.f32 %v8491, %v8686
        %v8791 = vadd.f32 %v8556, %v8751
        %v8792 = vadd.f32 %v8494, %v8689
        %v8793 = vadd.f32 %v8559, %v8754
        %v8794 = vadd.f32 %v8497, %v8692
        %v8795 = vadd.f32 %v8562, %v8757
        %v8796 = vadd.f32 %v8500, %v8695
        %v8797 = vadd.f32 %v8565, %v8760
        %v8798 = vadd.f32 %v8503, %v8698
        %v8799 = vadd.f32 %v8568, %v8763
        %v8800 = vadd.f32 %v8506, %v8701
        %v8801 = vadd.f32 %v8571, %v8766
        %v8802 = vadd.f32 %v8509, %v8704
        %v8803 = vadd.f32 %v8574, %v8769
        %v8804 = vadd.f32 %v8512, %v8707
        %v8805 = vadd.f32 %v8577, %v8772
        %s8806 = scalar_lea.vmem %s13, 384
        %v8807 = vld [vmem:[%s8806] sm:$0xff]
        %v8808 = vld [vmem:[%s8806 + $0x8] sm:$0xff]
        %v8809 = vld [vmem:[%s8806 + $0x10] sm:$0xff]
        %v8810 = vld [vmem:[%s8806 + $0x18] sm:$0xff]
        %v8811 = vld [vmem:[%s8806 + $0x20] sm:$0xff]
        %v8812 = vld [vmem:[%s8806 + $0x28] sm:$0xff]
        %v8813 = vld [vmem:[%s8806 + $0x30] sm:$0xff]
        %v8814 = vld [vmem:[%s8806 + $0x38] sm:$0xff]
        %v8815 = vld [vmem:[%s8806 + $0x40] sm:$0xff]
        %v8816 = vld [vmem:[%s8806 + $0x48] sm:$0xff]
        %v8817 = vld [vmem:[%s8806 + $0x50] sm:$0xff]
        %v8818 = vld [vmem:[%s8806 + $0x58] sm:$0xff]
        %v8819 = vld [vmem:[%s8806 + $0x60] sm:$0xff]
        %v8820 = vld [vmem:[%s8806 + $0x68] sm:$0xff]
        %v8821 = vld [vmem:[%s8806 + $0x70] sm:$0xff]
        %v8822 = vld [vmem:[%s8806 + $0x78] sm:$0xff]
        %v8824 = vsel %vm8222, %v8807, 0
        %v8827 = vsel %vm8222, %v8808, 0
        %v8830 = vsel %vm8222, %v8809, 0
        %v8833 = vsel %vm8222, %v8810, 0
        %v8836 = vsel %vm8222, %v8811, 0
        %v8839 = vsel %vm8222, %v8812, 0
        %v8842 = vsel %vm8222, %v8813, 0
        %v8845 = vsel %vm8222, %v8814, 0
        %v8848 = vsel %vm8222, %v8815, 0
        %v8851 = vsel %vm8222, %v8816, 0
        %v8854 = vsel %vm8222, %v8817, 0
        %v8857 = vsel %vm8222, %v8818, 0
        %v8860 = vsel %vm8222, %v8819, 0
        %v8863 = vsel %vm8222, %v8820, 0
        %v8866 = vsel %vm8222, %v8821, 0
        %v8869 = vsel %vm8222, %v8822, 0
        %8871 = vmatpush.msra.mxu0 0.0
        %8872 = vmatpush.msra.mxu0 0.0
        %8873 = vmatpush.msra.mxu0 0.0
        %8874 = vmatpush.msra.mxu0 0.0
        %8875 = vmatpush.msra.mxu0 0.0
        %8876 = vmatpush.msra.mxu0 0.0
        %8877 = vmatpush.msra.mxu0 %v8119
        %8878 = vmatpush.msra.mxu0 %v8117
        %8879 = vmatpush.msra.mxu0 %v8114
        %8880 = vmatpush.msra.mxu0 %v8112
        %8881 = vmatpush.msra.mxu0 %v8109
        %8882 = vmatpush.msra.mxu0 %v8107
        %8883 = vmatpush.msra.mxu0 %v8104
        %8884 = vmatpush.msra.mxu0 %v8102
        %8885 = vmatpush.msra.mxu0 %v8099
        %8886 = vmatpush.msra.mxu0 %v8097
        %8887 = vmatmul.f32.gmra.mxu0 %v8824
        %v8888 = vpop.f32.mrf.mxu0
        %v8889 = vadd.f32 0.0, %v8888
        %8890 = vmatmul.f32.gmra.mxu0 %v8827
        %v8891 = vpop.f32.mrf.mxu0
        %v8892 = vadd.f32 0.0, %v8891
        %8893 = vmatmul.f32.gmra.mxu0 %v8830
        %v8894 = vpop.f32.mrf.mxu0
        %v8895 = vadd.f32 0.0, %v8894
        %8896 = vmatmul.f32.gmra.mxu0 %v8833
        %v8897 = vpop.f32.mrf.mxu0
        %v8898 = vadd.f32 0.0, %v8897
        %8899 = vmatmul.f32.gmra.mxu0 %v8836
        %v8900 = vpop.f32.mrf.mxu0
        %v8901 = vadd.f32 0.0, %v8900
        %8902 = vmatmul.f32.gmra.mxu0 %v8839
        %v8903 = vpop.f32.mrf.mxu0
        %v8904 = vadd.f32 0.0, %v8903
        %8905 = vmatmul.f32.gmra.mxu0 %v8842
        %v8906 = vpop.f32.mrf.mxu0
        %v8907 = vadd.f32 0.0, %v8906
        %8908 = vmatmul.f32.gmra.mxu0 %v8845
        %v8909 = vpop.f32.mrf.mxu0
        %v8910 = vadd.f32 0.0, %v8909
        %8911 = vmatmul.f32.gmra.mxu0 %v8848
        %v8912 = vpop.f32.mrf.mxu0
        %v8913 = vadd.f32 0.0, %v8912
        %8914 = vmatmul.f32.gmra.mxu0 %v8851
        %v8915 = vpop.f32.mrf.mxu0
        %v8916 = vadd.f32 0.0, %v8915
        %8917 = vmatmul.f32.gmra.mxu0 %v8854
        %v8918 = vpop.f32.mrf.mxu0
        %v8919 = vadd.f32 0.0, %v8918
        %8920 = vmatmul.f32.gmra.mxu0 %v8857
        %v8921 = vpop.f32.mrf.mxu0
        %v8922 = vadd.f32 0.0, %v8921
        %8923 = vmatmul.f32.gmra.mxu0 %v8860
        %v8924 = vpop.f32.mrf.mxu0
        %v8925 = vadd.f32 0.0, %v8924
        %8926 = vmatmul.f32.gmra.mxu0 %v8863
        %v8927 = vpop.f32.mrf.mxu0
        %v8928 = vadd.f32 0.0, %v8927
        %8929 = vmatmul.f32.gmra.mxu0 %v8866
        %v8930 = vpop.f32.mrf.mxu0
        %v8931 = vadd.f32 0.0, %v8930
        %8932 = vmatmul.f32.gmra.mxu0 %v8869
        %v8933 = vpop.f32.mrf.mxu0
        %v8934 = vadd.f32 0.0, %v8933
        %8935 = vdwg.mxu0
        %8936 = vmatpush.msra.mxu0 0.0
        %8937 = vmatpush.msra.mxu0 0.0
        %8938 = vmatpush.msra.mxu0 0.0
        %8939 = vmatpush.msra.mxu0 0.0
        %8940 = vmatpush.msra.mxu0 0.0
        %8941 = vmatpush.msra.mxu0 0.0
        %8942 = vmatpush.msra.mxu0 %v8187
        %8943 = vmatpush.msra.mxu0 %v8185
        %8944 = vmatpush.msra.mxu0 %v8182
        %8945 = vmatpush.msra.mxu0 %v8180
        %8946 = vmatpush.msra.mxu0 %v8177
        %8947 = vmatpush.msra.mxu0 %v8175
        %8948 = vmatpush.msra.mxu0 %v8172
        %8949 = vmatpush.msra.mxu0 %v8170
        %8950 = vmatpush.msra.mxu0 %v8167
        %8951 = vmatpush.msra.mxu0 %v8165
        %8952 = vmatmul.f32.gmra.mxu0 %v8824
        %v8953 = vpop.f32.mrf.mxu0
        %v8954 = vadd.f32 0.0, %v8953
        %8955 = vmatmul.f32.gmra.mxu0 %v8827
        %v8956 = vpop.f32.mrf.mxu0
        %v8957 = vadd.f32 0.0, %v8956
        %8958 = vmatmul.f32.gmra.mxu0 %v8830
        %v8959 = vpop.f32.mrf.mxu0
        %v8960 = vadd.f32 0.0, %v8959
        %8961 = vmatmul.f32.gmra.mxu0 %v8833
        %v8962 = vpop.f32.mrf.mxu0
        %v8963 = vadd.f32 0.0, %v8962
        %8964 = vmatmul.f32.gmra.mxu0 %v8836
        %v8965 = vpop.f32.mrf.mxu0
        %v8966 = vadd.f32 0.0, %v8965
        %8967 = vmatmul.f32.gmra.mxu0 %v8839
        %v8968 = vpop.f32.mrf.mxu0
        %v8969 = vadd.f32 0.0, %v8968
        %8970 = vmatmul.f32.gmra.mxu0 %v8842
        %v8971 = vpop.f32.mrf.mxu0
        %v8972 = vadd.f32 0.0, %v8971
        %8973 = vmatmul.f32.gmra.mxu0 %v8845
        %v8974 = vpop.f32.mrf.mxu0
        %v8975 = vadd.f32 0.0, %v8974
        %8976 = vmatmul.f32.gmra.mxu0 %v8848
        %v8977 = vpop.f32.mrf.mxu0
        %v8978 = vadd.f32 0.0, %v8977
        %8979 = vmatmul.f32.gmra.mxu0 %v8851
        %v8980 = vpop.f32.mrf.mxu0
        %v8981 = vadd.f32 0.0, %v8980
        %8982 = vmatmul.f32.gmra.mxu0 %v8854
        %v8983 = vpop.f32.mrf.mxu0
        %v8984 = vadd.f32 0.0, %v8983
        %8985 = vmatmul.f32.gmra.mxu0 %v8857
        %v8986 = vpop.f32.mrf.mxu0
        %v8987 = vadd.f32 0.0, %v8986
        %8988 = vmatmul.f32.gmra.mxu0 %v8860
        %v8989 = vpop.f32.mrf.mxu0
        %v8990 = vadd.f32 0.0, %v8989
        %8991 = vmatmul.f32.gmra.mxu0 %v8863
        %v8992 = vpop.f32.mrf.mxu0
        %v8993 = vadd.f32 0.0, %v8992
        %8994 = vmatmul.f32.gmra.mxu0 %v8866
        %v8995 = vpop.f32.mrf.mxu0
        %v8996 = vadd.f32 0.0, %v8995
        %8997 = vmatmul.f32.gmra.mxu0 %v8869
        %v8998 = vpop.f32.mrf.mxu0
        %v8999 = vadd.f32 0.0, %v8998
        %9000 = vdwg.mxu0
        %v9001 = vadd.f32 %v8774, %v8889
        %v9002 = vadd.f32 %v8775, %v8954
        %v9003 = vadd.f32 %v8776, %v8892
        %v9004 = vadd.f32 %v8777, %v8957
        %v9005 = vadd.f32 %v8778, %v8895
        %v9006 = vadd.f32 %v8779, %v8960
        %v9007 = vadd.f32 %v8780, %v8898
        %v9008 = vadd.f32 %v8781, %v8963
        %v9009 = vadd.f32 %v8782, %v8901
        %v9010 = vadd.f32 %v8783, %v8966
        %v9011 = vadd.f32 %v8784, %v8904
        %v9012 = vadd.f32 %v8785, %v8969
        %v9013 = vadd.f32 %v8786, %v8907
        %v9014 = vadd.f32 %v8787, %v8972
        %v9015 = vadd.f32 %v8788, %v8910
        %v9016 = vadd.f32 %v8789, %v8975
        %v9017 = vadd.f32 %v8790, %v8913
        %v9018 = vadd.f32 %v8791, %v8978
        %v9019 = vadd.f32 %v8792, %v8916
        %v9020 = vadd.f32 %v8793, %v8981
        %v9021 = vadd.f32 %v8794, %v8919
        %v9022 = vadd.f32 %v8795, %v8984
        %v9023 = vadd.f32 %v8796, %v8922
        %v9024 = vadd.f32 %v8797, %v8987
        %v9025 = vadd.f32 %v8798, %v8925
        %v9026 = vadd.f32 %v8799, %v8990
        %v9027 = vadd.f32 %v8800, %v8928
        %v9028 = vadd.f32 %v8801, %v8993
        %v9029 = vadd.f32 %v8802, %v8931
        %v9030 = vadd.f32 %v8803, %v8996
        %v9031 = vadd.f32 %v8804, %v8934
        %v9032 = vadd.f32 %v8805, %v8999
        %v9033 = vld [vmem:[#allocation14] sm:$0xf]
        %v9035 = vperm.slane %v9033, 0
        %v9036 = vperm.slane %v9033, 2
        %v9039 = vperm.slane %v9035, 0
        %v9040 = vperm.slane %v9036, 0
        %v9041 = vmul.f32 %v9001, %v9039
        %v9042 = vmul.f32 %v9002, %v9040
        %v9043 = vmul.f32 %v9003, %v9039
        %v9044 = vmul.f32 %v9004, %v9040
        %v9045 = vmul.f32 %v9005, %v9039
        %v9046 = vmul.f32 %v9006, %v9040
        %v9047 = vmul.f32 %v9007, %v9039
        %v9048 = vmul.f32 %v9008, %v9040
        %v9049 = vmul.f32 %v9009, %v9039
        %v9050 = vmul.f32 %v9010, %v9040
        %v9051 = vmul.f32 %v9011, %v9039
        %v9052 = vmul.f32 %v9012, %v9040
        %v9053 = vmul.f32 %v9013, %v9039
        %v9054 = vmul.f32 %v9014, %v9040
        %v9055 = vmul.f32 %v9015, %v9039
        %v9056 = vmul.f32 %v9016, %v9040
        %v9057 = vmul.f32 %v9017, %v9039
        %v9058 = vmul.f32 %v9018, %v9040
        %v9059 = vmul.f32 %v9019, %v9039
        %v9060 = vmul.f32 %v9020, %v9040
        %v9061 = vmul.f32 %v9021, %v9039
        %v9062 = vmul.f32 %v9022, %v9040
        %v9063 = vmul.f32 %v9023, %v9039
        %v9064 = vmul.f32 %v9024, %v9040
        %v9065 = vmul.f32 %v9025, %v9039
        %v9066 = vmul.f32 %v9026, %v9040
        %v9067 = vmul.f32 %v9027, %v9039
        %v9068 = vmul.f32 %v9028, %v9040
        %v9069 = vmul.f32 %v9029, %v9039
        %v9070 = vmul.f32 %v9030, %v9040
        %v9071 = vmul.f32 %v9031, %v9039
        %v9072 = vmul.f32 %v9032, %v9040
        %v9073 = vperm.slane %v9033, 1
        %v9074 = vperm.slane %v9033, 3
        %v9077 = vperm.slane %v9073, 1
        %v9078 = vperm.slane %v9074, 1
        %v9079 = vadd.f32 %v9041, %v9077
        %v9080 = vadd.f32 %v9042, %v9078
        %v9081 = vadd.f32 %v9043, %v9077
        %v9082 = vadd.f32 %v9044, %v9078
        %v9083 = vadd.f32 %v9045, %v9077
        %v9084 = vadd.f32 %v9046, %v9078
        %v9085 = vadd.f32 %v9047, %v9077
        %v9086 = vadd.f32 %v9048, %v9078
        %v9087 = vadd.f32 %v9049, %v9077
        %v9088 = vadd.f32 %v9050, %v9078
        %v9089 = vadd.f32 %v9051, %v9077
        %v9090 = vadd.f32 %v9052, %v9078
        %v9091 = vadd.f32 %v9053, %v9077
        %v9092 = vadd.f32 %v9054, %v9078
        %v9093 = vadd.f32 %v9055, %v9077
        %v9094 = vadd.f32 %v9056, %v9078
        %v9095 = vadd.f32 %v9057, %v9077
        %v9096 = vadd.f32 %v9058, %v9078
        %v9097 = vadd.f32 %v9059, %v9077
        %v9098 = vadd.f32 %v9060, %v9078
        %v9099 = vadd.f32 %v9061, %v9077
        %v9100 = vadd.f32 %v9062, %v9078
        %v9101 = vadd.f32 %v9063, %v9077
        %v9102 = vadd.f32 %v9064, %v9078
        %v9103 = vadd.f32 %v9065, %v9077
        %v9104 = vadd.f32 %v9066, %v9078
        %v9105 = vadd.f32 %v9067, %v9077
        %v9106 = vadd.f32 %v9068, %v9078
        %v9107 = vadd.f32 %v9069, %v9077
        %v9108 = vadd.f32 %v9070, %v9078
        %v9109 = vadd.f32 %v9071, %v9077
        %v9110 = vadd.f32 %v9072, %v9078
        %s9111 = sld [smem:[#allocation6 + $0x5]]
        %vm9112 = vcmp.ge.f32.partialorder %v9079, 0.0
        %vm9113 = vcmp.ge.f32.partialorder %v9080, 0.0
        %vm9114 = vcmp.ge.f32.partialorder %v9081, 0.0
        %vm9115 = vcmp.ge.f32.partialorder %v9082, 0.0
        %vm9116 = vcmp.ge.f32.partialorder %v9083, 0.0
        %vm9117 = vcmp.ge.f32.partialorder %v9084, 0.0
        %vm9118 = vcmp.ge.f32.partialorder %v9085, 0.0
        %vm9119 = vcmp.ge.f32.partialorder %v9086, 0.0
        %vm9120 = vcmp.ge.f32.partialorder %v9087, 0.0
        %vm9121 = vcmp.ge.f32.partialorder %v9088, 0.0
        %vm9122 = vcmp.ge.f32.partialorder %v9089, 0.0
        %vm9123 = vcmp.ge.f32.partialorder %v9090, 0.0
        %vm9124 = vcmp.ge.f32.partialorder %v9091, 0.0
        %vm9125 = vcmp.ge.f32.partialorder %v9092, 0.0
        %vm9126 = vcmp.ge.f32.partialorder %v9093, 0.0
        %vm9127 = vcmp.ge.f32.partialorder %v9094, 0.0
        %vm9128 = vcmp.ge.f32.partialorder %v9095, 0.0
        %vm9129 = vcmp.ge.f32.partialorder %v9096, 0.0
        %vm9130 = vcmp.ge.f32.partialorder %v9097, 0.0
        %vm9131 = vcmp.ge.f32.partialorder %v9098, 0.0
        %vm9132 = vcmp.ge.f32.partialorder %v9099, 0.0
        %vm9133 = vcmp.ge.f32.partialorder %v9100, 0.0
        %vm9134 = vcmp.ge.f32.partialorder %v9101, 0.0
        %vm9135 = vcmp.ge.f32.partialorder %v9102, 0.0
        %vm9136 = vcmp.ge.f32.partialorder %v9103, 0.0
        %vm9137 = vcmp.ge.f32.partialorder %v9104, 0.0
        %vm9138 = vcmp.ge.f32.partialorder %v9105, 0.0
        %vm9139 = vcmp.ge.f32.partialorder %v9106, 0.0
        %vm9140 = vcmp.ge.f32.partialorder %v9107, 0.0
        %vm9141 = vcmp.ge.f32.partialorder %v9108, 0.0
        %vm9142 = vcmp.ge.f32.partialorder %v9109, 0.0
        %vm9143 = vcmp.ge.f32.partialorder %v9110, 0.0
        %v9144 = vstv %s9111
        %v9145 = vmul.f32 %v9144, %v9079
        %v9146 = vmul.f32 %v9144, %v9080
        %v9147 = vmul.f32 %v9144, %v9081
        %v9148 = vmul.f32 %v9144, %v9082
        %v9149 = vmul.f32 %v9144, %v9083
        %v9150 = vmul.f32 %v9144, %v9084
        %v9151 = vmul.f32 %v9144, %v9085
        %v9152 = vmul.f32 %v9144, %v9086
        %v9153 = vmul.f32 %v9144, %v9087
        %v9154 = vmul.f32 %v9144, %v9088
        %v9155 = vmul.f32 %v9144, %v9089
        %v9156 = vmul.f32 %v9144, %v9090
        %v9157 = vmul.f32 %v9144, %v9091
        %v9158 = vmul.f32 %v9144, %v9092
        %v9159 = vmul.f32 %v9144, %v9093
        %v9160 = vmul.f32 %v9144, %v9094
        %v9161 = vmul.f32 %v9144, %v9095
        %v9162 = vmul.f32 %v9144, %v9096
        %v9163 = vmul.f32 %v9144, %v9097
        %v9164 = vmul.f32 %v9144, %v9098
        %v9165 = vmul.f32 %v9144, %v9099
        %v9166 = vmul.f32 %v9144, %v9100
        %v9167 = vmul.f32 %v9144, %v9101
        %v9168 = vmul.f32 %v9144, %v9102
        %v9169 = vmul.f32 %v9144, %v9103
        %v9170 = vmul.f32 %v9144, %v9104
        %v9171 = vmul.f32 %v9144, %v9105
        %v9172 = vmul.f32 %v9144, %v9106
        %v9173 = vmul.f32 %v9144, %v9107
        %v9174 = vmul.f32 %v9144, %v9108
        %v9175 = vmul.f32 %v9144, %v9109
        %v9176 = vmul.f32 %v9144, %v9110
        %v9177 = vsel %vm9112, %v9079, %v9145
        %v9178 = vsel %vm9113, %v9080, %v9146
        %v9179 = vsel %vm9114, %v9081, %v9147
        %v9180 = vsel %vm9115, %v9082, %v9148
        %v9181 = vsel %vm9116, %v9083, %v9149
        %v9182 = vsel %vm9117, %v9084, %v9150
        %v9183 = vsel %vm9118, %v9085, %v9151
        %v9184 = vsel %vm9119, %v9086, %v9152
        %v9185 = vsel %vm9120, %v9087, %v9153
        %v9186 = vsel %vm9121, %v9088, %v9154
        %v9187 = vsel %vm9122, %v9089, %v9155
        %v9188 = vsel %vm9123, %v9090, %v9156
        %v9189 = vsel %vm9124, %v9091, %v9157
        %v9190 = vsel %vm9125, %v9092, %v9158
        %v9191 = vsel %vm9126, %v9093, %v9159
        %v9192 = vsel %vm9127, %v9094, %v9160
        %v9193 = vsel %vm9128, %v9095, %v9161
        %v9194 = vsel %vm9129, %v9096, %v9162
        %v9195 = vsel %vm9130, %v9097, %v9163
        %v9196 = vsel %vm9131, %v9098, %v9164
        %v9197 = vsel %vm9132, %v9099, %v9165
        %v9198 = vsel %vm9133, %v9100, %v9166
        %v9199 = vsel %vm9134, %v9101, %v9167
        %v9200 = vsel %vm9135, %v9102, %v9168
        %v9201 = vsel %vm9136, %v9103, %v9169
        %v9202 = vsel %vm9137, %v9104, %v9170
        %v9203 = vsel %vm9138, %v9105, %v9171
        %v9204 = vsel %vm9139, %v9106, %v9172
        %v9205 = vsel %vm9140, %v9107, %v9173
        %v9206 = vsel %vm9141, %v9108, %v9174
        %v9207 = vsel %vm9142, %v9109, %v9175
        %v9208 = vsel %vm9143, %v9110, %v9176
        %v9209 = vpack.c.bf16 %v9179, %v9177
        %v9210 = vpack.c.bf16 %v9180, %v9178
        %v9211 = vpack.c.bf16 %v9183, %v9181
        %v9212 = vpack.c.bf16 %v9184, %v9182
        %v9213 = vpack.c.bf16 %v9187, %v9185
        %v9214 = vpack.c.bf16 %v9188, %v9186
        %v9215 = vpack.c.bf16 %v9191, %v9189
        %v9216 = vpack.c.bf16 %v9192, %v9190
        %v9217 = vpack.c.bf16 %v9195, %v9193
        %v9218 = vpack.c.bf16 %v9196, %v9194
        %v9219 = vpack.c.bf16 %v9199, %v9197
        %v9220 = vpack.c.bf16 %v9200, %v9198
        %v9221 = vpack.c.bf16 %v9203, %v9201
        %v9222 = vpack.c.bf16 %v9204, %v9202
        %v9223 = vpack.c.bf16 %v9207, %v9205
        %v9224 = vpack.c.bf16 %v9208, %v9206
        %v9225 = vld [vmem:[#allocation15] sm:$0xff]
        %v9226 = vld [vmem:[#allocation15 + $0x8] sm:$0xff]
        %v9227 = vld [vmem:[#allocation15 + $0x10] sm:$0xff]
        %v9228 = vld [vmem:[#allocation15 + $0x18] sm:$0xff]
        %v9229 = vld [vmem:[#allocation15 + $0x20] sm:$0xff]
        %v9230 = vld [vmem:[#allocation15 + $0x28] sm:$0xff]
        %v9231 = vld [vmem:[#allocation15 + $0x30] sm:$0xff]
        %v9232 = vld [vmem:[#allocation15 + $0x38] sm:$0xff]
        %v9233 = vld [vmem:[#allocation15 + $0x40] sm:$0xff]
        %v9234 = vld [vmem:[#allocation15 + $0x48] sm:$0xff]
        %v9235 = vld [vmem:[#allocation15 + $0x50] sm:$0xff]
        %v9236 = vld [vmem:[#allocation15 + $0x58] sm:$0xff]
        %v9237 = vld [vmem:[#allocation15 + $0x60] sm:$0xff]
        %v9238 = vld [vmem:[#allocation15 + $0x68] sm:$0xff]
        %v9239 = vld [vmem:[#allocation15 + $0x70] sm:$0xff]
        %v9240 = vld [vmem:[#allocation15 + $0x78] sm:$0xff]
        %v9241 = vld [vmem:[#allocation15 + $0x80] sm:$0xff]
        %v9242 = vld [vmem:[#allocation15 + $0x88] sm:$0xff]
        %v9243 = vld [vmem:[#allocation15 + $0x90] sm:$0xff]
        %v9244 = vld [vmem:[#allocation15 + $0x98] sm:$0xff]
        %v9245 = vld [vmem:[#allocation15 + $0xa0] sm:$0xff]
        %v9246 = vld [vmem:[#allocation15 + $0xa8] sm:$0xff]
        %v9247 = vld [vmem:[#allocation15 + $0xb0] sm:$0xff]
        %v9248 = vld [vmem:[#allocation15 + $0xb8] sm:$0xff]
        %v9249 = vld [vmem:[#allocation15 + $0xc0] sm:$0xff]
        %v9250 = vld [vmem:[#allocation15 + $0xc8] sm:$0xff]
        %v9251 = vld [vmem:[#allocation15 + $0xd0] sm:$0xff]
        %v9252 = vld [vmem:[#allocation15 + $0xd8] sm:$0xff]
        %v9253 = vld [vmem:[#allocation15 + $0xe0] sm:$0xff]
        %v9254 = vld [vmem:[#allocation15 + $0xe8] sm:$0xff]
        %v9255 = vld [vmem:[#allocation15 + $0xf0] sm:$0xff]
        %v9256 = vld [vmem:[#allocation15 + $0xf8] sm:$0xff]
        %v9257 = vld [vmem:[#allocation15 + $0x100] sm:$0xff]
        %v9258 = vld [vmem:[#allocation15 + $0x108] sm:$0xff]
        %v9259 = vld [vmem:[#allocation15 + $0x110] sm:$0xff]
        %v9260 = vld [vmem:[#allocation15 + $0x118] sm:$0xff]
        %v9261 = vld [vmem:[#allocation15 + $0x120] sm:$0xff]
        %v9262 = vld [vmem:[#allocation15 + $0x128] sm:$0xff]
        %v9263 = vld [vmem:[#allocation15 + $0x130] sm:$0xff]
        %v9264 = vld [vmem:[#allocation15 + $0x138] sm:$0xff]
        %v9265 = vld [vmem:[#allocation15 + $0x140] sm:$0xff]
        %v9266 = vld [vmem:[#allocation15 + $0x148] sm:$0xff]
        %v9267 = vld [vmem:[#allocation15 + $0x150] sm:$0xff]
        %v9268 = vld [vmem:[#allocation15 + $0x158] sm:$0xff]
        %v9269 = vld [vmem:[#allocation15 + $0x160] sm:$0xff]
        %v9270 = vld [vmem:[#allocation15 + $0x168] sm:$0xff]
        %v9271 = vld [vmem:[#allocation15 + $0x170] sm:$0xff]
        %v9272 = vld [vmem:[#allocation15 + $0x178] sm:$0xff]
        %v9273 = vld [vmem:[#allocation15 + $0x180] sm:$0xff]
        %v9274 = vld [vmem:[#allocation15 + $0x188] sm:$0xff]
        %v9275 = vld [vmem:[#allocation15 + $0x190] sm:$0xff]
        %v9276 = vld [vmem:[#allocation15 + $0x198] sm:$0xff]
        %v9277 = vld [vmem:[#allocation15 + $0x1a0] sm:$0xff]
        %v9278 = vld [vmem:[#allocation15 + $0x1a8] sm:$0xff]
        %v9279 = vld [vmem:[#allocation15 + $0x1b0] sm:$0xff]
        %v9280 = vld [vmem:[#allocation15 + $0x1b8] sm:$0xff]
        %v9281 = vld [vmem:[#allocation15 + $0x1c0] sm:$0xff]
        %v9282 = vld [vmem:[#allocation15 + $0x1c8] sm:$0xff]
        %v9283 = vld [vmem:[#allocation15 + $0x1d0] sm:$0xff]
        %v9284 = vld [vmem:[#allocation15 + $0x1d8] sm:$0xff]
        %v9285 = vld [vmem:[#allocation15 + $0x1e0] sm:$0xff]
        %v9286 = vld [vmem:[#allocation15 + $0x1e8] sm:$0xff]
        %v9287 = vld [vmem:[#allocation15 + $0x1f0] sm:$0xff]
        %v9288 = vld [vmem:[#allocation15 + $0x1f8] sm:$0xff]
        %v9353 = vunpack.c.l.b16 %v9225
        %v9354 = vunpack.c.h.b16 %v9225
        %v9355 = vunpack.c.l.b16 %v9226
        %v9356 = vunpack.c.h.b16 %v9226
        %v9357 = vunpack.c.l.b16 %v9227
        %v9358 = vunpack.c.h.b16 %v9227
        %v9359 = vunpack.c.l.b16 %v9228
        %v9360 = vunpack.c.h.b16 %v9228
        %v9361 = vunpack.c.l.b16 %v9229
        %v9362 = vunpack.c.h.b16 %v9229
        %v9363 = vunpack.c.l.b16 %v9230
        %v9364 = vunpack.c.h.b16 %v9230
        %v9365 = vunpack.c.l.b16 %v9231
        %v9366 = vunpack.c.h.b16 %v9231
        %v9367 = vunpack.c.l.b16 %v9232
        %v9368 = vunpack.c.h.b16 %v9232
        %v9369 = vunpack.c.l.b16 %v9233
        %v9370 = vunpack.c.h.b16 %v9233
        %v9371 = vunpack.c.l.b16 %v9234
        %v9372 = vunpack.c.h.b16 %v9234
        %v9373 = vunpack.c.l.b16 %v9235
        %v9374 = vunpack.c.h.b16 %v9235
        %v9375 = vunpack.c.l.b16 %v9236
        %v9376 = vunpack.c.h.b16 %v9236
        %v9377 = vunpack.c.l.b16 %v9237
        %v9378 = vunpack.c.h.b16 %v9237
        %v9379 = vunpack.c.l.b16 %v9238
        %v9380 = vunpack.c.h.b16 %v9238
        %v9381 = vunpack.c.l.b16 %v9239
        %v9382 = vunpack.c.h.b16 %v9239
        %v9383 = vunpack.c.l.b16 %v9240
        %v9384 = vunpack.c.h.b16 %v9240
        %v9385 = vunpack.c.l.b16 %v9241
        %v9386 = vunpack.c.h.b16 %v9241
        %v9387 = vunpack.c.l.b16 %v9242
        %v9388 = vunpack.c.h.b16 %v9242
        %v9389 = vunpack.c.l.b16 %v9243
        %v9390 = vunpack.c.h.b16 %v9243
        %v9391 = vunpack.c.l.b16 %v9244
        %v9392 = vunpack.c.h.b16 %v9244
        %v9393 = vunpack.c.l.b16 %v9245
        %v9394 = vunpack.c.h.b16 %v9245
        %v9395 = vunpack.c.l.b16 %v9246
        %v9396 = vunpack.c.h.b16 %v9246
        %v9397 = vunpack.c.l.b16 %v9247
        %v9398 = vunpack.c.h.b16 %v9247
        %v9399 = vunpack.c.l.b16 %v9248
        %v9400 = vunpack.c.h.b16 %v9248
        %v9401 = vunpack.c.l.b16 %v9249
        %v9402 = vunpack.c.h.b16 %v9249
        %v9403 = vunpack.c.l.b16 %v9250
        %v9404 = vunpack.c.h.b16 %v9250
        %v9405 = vunpack.c.l.b16 %v9251
        %v9406 = vunpack.c.h.b16 %v9251
        %v9407 = vunpack.c.l.b16 %v9252
        %v9408 = vunpack.c.h.b16 %v9252
        %v9409 = vunpack.c.l.b16 %v9253
        %v9410 = vunpack.c.h.b16 %v9253
        %v9411 = vunpack.c.l.b16 %v9254
        %v9412 = vunpack.c.h.b16 %v9254
        %v9413 = vunpack.c.l.b16 %v9255
        %v9414 = vunpack.c.h.b16 %v9255
        %v9415 = vunpack.c.l.b16 %v9256
        %v9416 = vunpack.c.h.b16 %v9256
        %v9417 = vunpack.c.l.b16 %v9257
        %v9418 = vunpack.c.h.b16 %v9257
        %v9419 = vunpack.c.l.b16 %v9258
        %v9420 = vunpack.c.h.b16 %v9258
        %v9421 = vunpack.c.l.b16 %v9259
        %v9422 = vunpack.c.h.b16 %v9259
        %v9423 = vunpack.c.l.b16 %v9260
        %v9424 = vunpack.c.h.b16 %v9260
        %v9425 = vunpack.c.l.b16 %v9261
        %v9426 = vunpack.c.h.b16 %v9261
        %v9427 = vunpack.c.l.b16 %v9262
        %v9428 = vunpack.c.h.b16 %v9262
        %v9429 = vunpack.c.l.b16 %v9263
        %v9430 = vunpack.c.h.b16 %v9263
        %v9431 = vunpack.c.l.b16 %v9264
        %v9432 = vunpack.c.h.b16 %v9264
        %v9433 = vunpack.c.l.b16 %v9265
        %v9434 = vunpack.c.h.b16 %v9265
        %v9435 = vunpack.c.l.b16 %v9266
        %v9436 = vunpack.c.h.b16 %v9266
        %v9437 = vunpack.c.l.b16 %v9267
        %v9438 = vunpack.c.h.b16 %v9267
        %v9439 = vunpack.c.l.b16 %v9268
        %v9440 = vunpack.c.h.b16 %v9268
        %v9441 = vunpack.c.l.b16 %v9269
        %v9442 = vunpack.c.h.b16 %v9269
        %v9443 = vunpack.c.l.b16 %v9270
        %v9444 = vunpack.c.h.b16 %v9270
        %v9445 = vunpack.c.l.b16 %v9271
        %v9446 = vunpack.c.h.b16 %v9271
        %v9447 = vunpack.c.l.b16 %v9272
        %v9448 = vunpack.c.h.b16 %v9272
        %v9449 = vunpack.c.l.b16 %v9273
        %v9450 = vunpack.c.h.b16 %v9273
        %v9451 = vunpack.c.l.b16 %v9274
        %v9452 = vunpack.c.h.b16 %v9274
        %v9453 = vunpack.c.l.b16 %v9275
        %v9454 = vunpack.c.h.b16 %v9275
        %v9455 = vunpack.c.l.b16 %v9276
        %v9456 = vunpack.c.h.b16 %v9276
        %v9457 = vunpack.c.l.b16 %v9277
        %v9458 = vunpack.c.h.b16 %v9277
        %v9459 = vunpack.c.l.b16 %v9278
        %v9460 = vunpack.c.h.b16 %v9278
        %v9461 = vunpack.c.l.b16 %v9279
        %v9462 = vunpack.c.h.b16 %v9279
        %v9463 = vunpack.c.l.b16 %v9280
        %v9464 = vunpack.c.h.b16 %v9280
        %v9465 = vunpack.c.l.b16 %v9281
        %v9466 = vunpack.c.h.b16 %v9281
        %v9467 = vunpack.c.l.b16 %v9282
        %v9468 = vunpack.c.h.b16 %v9282
        %v9469 = vunpack.c.l.b16 %v9283
        %v9470 = vunpack.c.h.b16 %v9283
        %v9471 = vunpack.c.l.b16 %v9284
        %v9472 = vunpack.c.h.b16 %v9284
        %v9473 = vunpack.c.l.b16 %v9285
        %v9474 = vunpack.c.h.b16 %v9285
        %v9475 = vunpack.c.l.b16 %v9286
        %v9476 = vunpack.c.h.b16 %v9286
        %v9477 = vunpack.c.l.b16 %v9287
        %v9478 = vunpack.c.h.b16 %v9287
        %v9479 = vunpack.c.l.b16 %v9288
        %v9480 = vunpack.c.h.b16 %v9288
        %v9481 = vpack.c.b16 %v9357, %v9353
        %v9482 = vpack.c.b16 %v9358, %v9354
        %v9483 = vpack.c.b16 %v9359, %v9355
        %v9484 = vpack.c.b16 %v9360, %v9356
        %v9485 = vpack.c.b16 %v9365, %v9361
        %v9486 = vpack.c.b16 %v9366, %v9362
        %v9487 = vpack.c.b16 %v9367, %v9363
        %v9488 = vpack.c.b16 %v9368, %v9364
        %v9489 = vpack.c.b16 %v9373, %v9369
        %v9490 = vpack.c.b16 %v9374, %v9370
        %v9491 = vpack.c.b16 %v9375, %v9371
        %v9492 = vpack.c.b16 %v9376, %v9372
        %v9493 = vpack.c.b16 %v9381, %v9377
        %v9494 = vpack.c.b16 %v9382, %v9378
        %v9495 = vpack.c.b16 %v9383, %v9379
        %v9496 = vpack.c.b16 %v9384, %v9380
        %v9497 = vpack.c.b16 %v9389, %v9385
        %v9498 = vpack.c.b16 %v9390, %v9386
        %v9499 = vpack.c.b16 %v9391, %v9387
        %v9500 = vpack.c.b16 %v9392, %v9388
        %v9501 = vpack.c.b16 %v9397, %v9393
        %v9502 = vpack.c.b16 %v9398, %v9394
        %v9503 = vpack.c.b16 %v9399, %v9395
        %v9504 = vpack.c.b16 %v9400, %v9396
        %v9505 = vpack.c.b16 %v9405, %v9401
        %v9506 = vpack.c.b16 %v9406, %v9402
        %v9507 = vpack.c.b16 %v9407, %v9403
        %v9508 = vpack.c.b16 %v9408, %v9404
        %v9509 = vpack.c.b16 %v9413, %v9409
        %v9510 = vpack.c.b16 %v9414, %v9410
        %v9511 = vpack.c.b16 %v9415, %v9411
        %v9512 = vpack.c.b16 %v9416, %v9412
        %v9513 = vpack.c.b16 %v9421, %v9417
        %v9514 = vpack.c.b16 %v9422, %v9418
        %v9515 = vpack.c.b16 %v9423, %v9419
        %v9516 = vpack.c.b16 %v9424, %v9420
        %v9517 = vpack.c.b16 %v9429, %v9425
        %v9518 = vpack.c.b16 %v9430, %v9426
        %v9519 = vpack.c.b16 %v9431, %v9427
        %v9520 = vpack.c.b16 %v9432, %v9428
        %v9521 = vpack.c.b16 %v9437, %v9433
        %v9522 = vpack.c.b16 %v9438, %v9434
        %v9523 = vpack.c.b16 %v9439, %v9435
        %v9524 = vpack.c.b16 %v9440, %v9436
        %v9525 = vpack.c.b16 %v9445, %v9441
        %v9526 = vpack.c.b16 %v9446, %v9442
        %v9527 = vpack.c.b16 %v9447, %v9443
        %v9528 = vpack.c.b16 %v9448, %v9444
        %v9529 = vpack.c.b16 %v9453, %v9449
        %v9530 = vpack.c.b16 %v9454, %v9450
        %v9531 = vpack.c.b16 %v9455, %v9451
        %v9532 = vpack.c.b16 %v9456, %v9452
        %v9533 = vpack.c.b16 %v9461, %v9457
        %v9534 = vpack.c.b16 %v9462, %v9458
        %v9535 = vpack.c.b16 %v9463, %v9459
        %v9536 = vpack.c.b16 %v9464, %v9460
        %v9537 = vpack.c.b16 %v9469, %v9465
        %v9538 = vpack.c.b16 %v9470, %v9466
        %v9539 = vpack.c.b16 %v9471, %v9467
        %v9540 = vpack.c.b16 %v9472, %v9468
        %v9541 = vpack.c.b16 %v9477, %v9473
        %v9542 = vpack.c.b16 %v9478, %v9474
        %v9543 = vpack.c.b16 %v9479, %v9475
        %v9544 = vpack.c.b16 %v9480, %v9476
        %9609 = vmatpush.bf16.msra.mxu0 %v9509
        %9610 = vmatpush.bf16.msra.mxu0 %v9505
        %9611 = vmatpush.bf16.msra.mxu0 %v9501
        %9612 = vmatpush.bf16.msra.mxu0 %v9497
        %9613 = vmatpush.bf16.msra.mxu0 %v9493
        %9614 = vmatpush.bf16.msra.mxu0 %v9489
        %9615 = vmatpush.bf16.msra.mxu0 %v9485
        %9616 = vmatpush.bf16.msra.mxu0 %v9481
        %9617 = vmatmul.bf16.gmra.mxu0 %v9209
        %v9618 = vpop.f32.mrf.mxu0
        %v9619 = vadd.f32 0.0, %v9618
        %v9620 = vpop.f32.mrf.mxu0
        %v9621 = vadd.f32 0.0, %v9620
        %9622 = vmatmul.bf16.gmra.mxu0 %v9211
        %v9623 = vpop.f32.mrf.mxu0
        %v9624 = vadd.f32 0.0, %v9623
        %v9625 = vpop.f32.mrf.mxu0
        %v9626 = vadd.f32 0.0, %v9625
        %9627 = vmatmul.bf16.gmra.mxu0 %v9213
        %v9628 = vpop.f32.mrf.mxu0
        %v9629 = vadd.f32 0.0, %v9628
        %v9630 = vpop.f32.mrf.mxu0
        %v9631 = vadd.f32 0.0, %v9630
        %9632 = vmatmul.bf16.gmra.mxu0 %v9215
        %v9633 = vpop.f32.mrf.mxu0
        %v9634 = vadd.f32 0.0, %v9633
        %v9635 = vpop.f32.mrf.mxu0
        %v9636 = vadd.f32 0.0, %v9635
        %9637 = vmatmul.bf16.gmra.mxu0 %v9217
        %v9638 = vpop.f32.mrf.mxu0
        %v9639 = vadd.f32 0.0, %v9638
        %v9640 = vpop.f32.mrf.mxu0
        %v9641 = vadd.f32 0.0, %v9640
        %9642 = vmatmul.bf16.gmra.mxu0 %v9219
        %v9643 = vpop.f32.mrf.mxu0
        %v9644 = vadd.f32 0.0, %v9643
        %v9645 = vpop.f32.mrf.mxu0
        %v9646 = vadd.f32 0.0, %v9645
        %9647 = vmatmul.bf16.gmra.mxu0 %v9221
        %v9648 = vpop.f32.mrf.mxu0
        %v9649 = vadd.f32 0.0, %v9648
        %v9650 = vpop.f32.mrf.mxu0
        %v9651 = vadd.f32 0.0, %v9650
        %9652 = vmatmul.bf16.gmra.mxu0 %v9223
        %v9653 = vpop.f32.mrf.mxu0
        %v9654 = vadd.f32 0.0, %v9653
        %v9655 = vpop.f32.mrf.mxu0
        %v9656 = vadd.f32 0.0, %v9655
        %9657 = vdwg.mxu0
        %9658 = vmatpush.bf16.msra.mxu0 %v9541
        %9659 = vmatpush.bf16.msra.mxu0 %v9537
        %9660 = vmatpush.bf16.msra.mxu0 %v9533
        %9661 = vmatpush.bf16.msra.mxu0 %v9529
        %9662 = vmatpush.bf16.msra.mxu0 %v9525
        %9663 = vmatpush.bf16.msra.mxu0 %v9521
        %9664 = vmatpush.bf16.msra.mxu0 %v9517
        %9665 = vmatpush.bf16.msra.mxu0 %v9513
        %9666 = vmatmul.bf16.gmra.mxu0 %v9210
        %v9667 = vpop.f32.mrf.mxu0
        %v9668 = vadd.f32 %v9619, %v9667
        %v9669 = vpop.f32.mrf.mxu0
        %v9670 = vadd.f32 %v9621, %v9669
        %9671 = vmatmul.bf16.gmra.mxu0 %v9212
        %v9672 = vpop.f32.mrf.mxu0
        %v9673 = vadd.f32 %v9624, %v9672
        %v9674 = vpop.f32.mrf.mxu0
        %v9675 = vadd.f32 %v9626, %v9674
        %9676 = vmatmul.bf16.gmra.mxu0 %v9214
        %v9677 = vpop.f32.mrf.mxu0
        %v9678 = vadd.f32 %v9629, %v9677
        %v9679 = vpop.f32.mrf.mxu0
        %v9680 = vadd.f32 %v9631, %v9679
        %9681 = vmatmul.bf16.gmra.mxu0 %v9216
        %v9682 = vpop.f32.mrf.mxu0
        %v9683 = vadd.f32 %v9634, %v9682
        %v9684 = vpop.f32.mrf.mxu0
        %v9685 = vadd.f32 %v9636, %v9684
        %9686 = vmatmul.bf16.gmra.mxu0 %v9218
        %v9687 = vpop.f32.mrf.mxu0
        %v9688 = vadd.f32 %v9639, %v9687
        %v9689 = vpop.f32.mrf.mxu0
        %v9690 = vadd.f32 %v9641, %v9689
        %9691 = vmatmul.bf16.gmra.mxu0 %v9220
        %v9692 = vpop.f32.mrf.mxu0
        %v9693 = vadd.f32 %v9644, %v9692
        %v9694 = vpop.f32.mrf.mxu0
        %v9695 = vadd.f32 %v9646, %v9694
        %9696 = vmatmul.bf16.gmra.mxu0 %v9222
        %v9697 = vpop.f32.mrf.mxu0
        %v9698 = vadd.f32 %v9649, %v9697
        %v9699 = vpop.f32.mrf.mxu0
        %v9700 = vadd.f32 %v9651, %v9699
        %9701 = vmatmul.bf16.gmra.mxu0 %v9224
        %v9702 = vpop.f32.mrf.mxu0
        %v9703 = vadd.f32 %v9654, %v9702
        %v9704 = vpop.f32.mrf.mxu0
        %v9705 = vadd.f32 %v9656, %v9704
        %9706 = vdwg.mxu0
        %9707 = vmatpush.bf16.msra.mxu0 %v9510
        %9708 = vmatpush.bf16.msra.mxu0 %v9506
        %9709 = vmatpush.bf16.msra.mxu0 %v9502
        %9710 = vmatpush.bf16.msra.mxu0 %v9498
        %9711 = vmatpush.bf16.msra.mxu0 %v9494
        %9712 = vmatpush.bf16.msra.mxu0 %v9490
        %9713 = vmatpush.bf16.msra.mxu0 %v9486
        %9714 = vmatpush.bf16.msra.mxu0 %v9482
        %9715 = vmatmul.bf16.gmra.mxu0 %v9209
        %v9716 = vpop.f32.mrf.mxu0
        %v9717 = vadd.f32 0.0, %v9716
        %v9718 = vpop.f32.mrf.mxu0
        %v9719 = vadd.f32 0.0, %v9718
        %9720 = vmatmul.bf16.gmra.mxu0 %v9211
        %v9721 = vpop.f32.mrf.mxu0
        %v9722 = vadd.f32 0.0, %v9721
        %v9723 = vpop.f32.mrf.mxu0
        %v9724 = vadd.f32 0.0, %v9723
        %9725 = vmatmul.bf16.gmra.mxu0 %v9213
        %v9726 = vpop.f32.mrf.mxu0
        %v9727 = vadd.f32 0.0, %v9726
        %v9728 = vpop.f32.mrf.mxu0
        %v9729 = vadd.f32 0.0, %v9728
        %9730 = vmatmul.bf16.gmra.mxu0 %v9215
        %v9731 = vpop.f32.mrf.mxu0
        %v9732 = vadd.f32 0.0, %v9731
        %v9733 = vpop.f32.mrf.mxu0
        %v9734 = vadd.f32 0.0, %v9733
        %9735 = vmatmul.bf16.gmra.mxu0 %v9217
        %v9736 = vpop.f32.mrf.mxu0
        %v9737 = vadd.f32 0.0, %v9736
        %v9738 = vpop.f32.mrf.mxu0
        %v9739 = vadd.f32 0.0, %v9738
        %9740 = vmatmul.bf16.gmra.mxu0 %v9219
        %v9741 = vpop.f32.mrf.mxu0
        %v9742 = vadd.f32 0.0, %v9741
        %v9743 = vpop.f32.mrf.mxu0
        %v9744 = vadd.f32 0.0, %v9743
        %9745 = vmatmul.bf16.gmra.mxu0 %v9221
        %v9746 = vpop.f32.mrf.mxu0
        %v9747 = vadd.f32 0.0, %v9746
        %v9748 = vpop.f32.mrf.mxu0
        %v9749 = vadd.f32 0.0, %v9748
        %9750 = vmatmul.bf16.gmra.mxu0 %v9223
        %v9751 = vpop.f32.mrf.mxu0
        %v9752 = vadd.f32 0.0, %v9751
        %v9753 = vpop.f32.mrf.mxu0
        %v9754 = vadd.f32 0.0, %v9753
        %9755 = vdwg.mxu0
        %9756 = vmatpush.bf16.msra.mxu0 %v9542
        %9757 = vmatpush.bf16.msra.mxu0 %v9538
        %9758 = vmatpush.bf16.msra.mxu0 %v9534
        %9759 = vmatpush.bf16.msra.mxu0 %v9530
        %9760 = vmatpush.bf16.msra.mxu0 %v9526
        %9761 = vmatpush.bf16.msra.mxu0 %v9522
        %9762 = vmatpush.bf16.msra.mxu0 %v9518
        %9763 = vmatpush.bf16.msra.mxu0 %v9514
        %9764 = vmatmul.bf16.gmra.mxu0 %v9210
        %v9765 = vpop.f32.mrf.mxu0
        %v9766 = vadd.f32 %v9717, %v9765
        %v9767 = vpop.f32.mrf.mxu0
        %v9768 = vadd.f32 %v9719, %v9767
        %9769 = vmatmul.bf16.gmra.mxu0 %v9212
        %v9770 = vpop.f32.mrf.mxu0
        %v9771 = vadd.f32 %v9722, %v9770
        %v9772 = vpop.f32.mrf.mxu0
        %v9773 = vadd.f32 %v9724, %v9772
        %9774 = vmatmul.bf16.gmra.mxu0 %v9214
        %v9775 = vpop.f32.mrf.mxu0
        %v9776 = vadd.f32 %v9727, %v9775
        %v9777 = vpop.f32.mrf.mxu0
        %v9778 = vadd.f32 %v9729, %v9777
        %9779 = vmatmul.bf16.gmra.mxu0 %v9216
        %v9780 = vpop.f32.mrf.mxu0
        %v9781 = vadd.f32 %v9732, %v9780
        %v9782 = vpop.f32.mrf.mxu0
        %v9783 = vadd.f32 %v9734, %v9782
        %9784 = vmatmul.bf16.gmra.mxu0 %v9218
        %v9785 = vpop.f32.mrf.mxu0
        %v9786 = vadd.f32 %v9737, %v9785
        %v9787 = vpop.f32.mrf.mxu0
        %v9788 = vadd.f32 %v9739, %v9787
        %9789 = vmatmul.bf16.gmra.mxu0 %v9220
        %v9790 = vpop.f32.mrf.mxu0
        %v9791 = vadd.f32 %v9742, %v9790
        %v9792 = vpop.f32.mrf.mxu0
        %v9793 = vadd.f32 %v9744, %v9792
        %9794 = vmatmul.bf16.gmra.mxu0 %v9222
        %v9795 = vpop.f32.mrf.mxu0
        %v9796 = vadd.f32 %v9747, %v9795
        %v9797 = vpop.f32.mrf.mxu0
        %v9798 = vadd.f32 %v9749, %v9797
        %9799 = vmatmul.bf16.gmra.mxu0 %v9224
        %v9800 = vpop.f32.mrf.mxu0
        %v9801 = vadd.f32 %v9752, %v9800
        %v9802 = vpop.f32.mrf.mxu0
        %v9803 = vadd.f32 %v9754, %v9802
        %9804 = vdwg.mxu0
        %9805 = vmatpush.bf16.msra.mxu0 %v9511
        %9806 = vmatpush.bf16.msra.mxu0 %v9507
        %9807 = vmatpush.bf16.msra.mxu0 %v9503
        %9808 = vmatpush.bf16.msra.mxu0 %v9499
        %9809 = vmatpush.bf16.msra.mxu0 %v9495
        %9810 = vmatpush.bf16.msra.mxu0 %v9491
        %9811 = vmatpush.bf16.msra.mxu0 %v9487
        %9812 = vmatpush.bf16.msra.mxu0 %v9483
        %9813 = vmatmul.bf16.gmra.mxu0 %v9209
        %v9814 = vpop.f32.mrf.mxu0
        %v9815 = vadd.f32 0.0, %v9814
        %v9816 = vpop.f32.mrf.mxu0
        %v9817 = vadd.f32 0.0, %v9816
        %9818 = vmatmul.bf16.gmra.mxu0 %v9211
        %v9819 = vpop.f32.mrf.mxu0
        %v9820 = vadd.f32 0.0, %v9819
        %v9821 = vpop.f32.mrf.mxu0
        %v9822 = vadd.f32 0.0, %v9821
        %9823 = vmatmul.bf16.gmra.mxu0 %v9213
        %v9824 = vpop.f32.mrf.mxu0
        %v9825 = vadd.f32 0.0, %v9824
        %v9826 = vpop.f32.mrf.mxu0
        %v9827 = vadd.f32 0.0, %v9826
        %9828 = vmatmul.bf16.gmra.mxu0 %v9215
        %v9829 = vpop.f32.mrf.mxu0
        %v9830 = vadd.f32 0.0, %v9829
        %v9831 = vpop.f32.mrf.mxu0
        %v9832 = vadd.f32 0.0, %v9831
        %9833 = vmatmul.bf16.gmra.mxu0 %v9217
        %v9834 = vpop.f32.mrf.mxu0
        %v9835 = vadd.f32 0.0, %v9834
        %v9836 = vpop.f32.mrf.mxu0
        %v9837 = vadd.f32 0.0, %v9836
        %9838 = vmatmul.bf16.gmra.mxu0 %v9219
        %v9839 = vpop.f32.mrf.mxu0
        %v9840 = vadd.f32 0.0, %v9839
        %v9841 = vpop.f32.mrf.mxu0
        %v9842 = vadd.f32 0.0, %v9841
        %9843 = vmatmul.bf16.gmra.mxu0 %v9221
        %v9844 = vpop.f32.mrf.mxu0
        %v9845 = vadd.f32 0.0, %v9844
        %v9846 = vpop.f32.mrf.mxu0
        %v9847 = vadd.f32 0.0, %v9846
        %9848 = vmatmul.bf16.gmra.mxu0 %v9223
        %v9849 = vpop.f32.mrf.mxu0
        %v9850 = vadd.f32 0.0, %v9849
        %v9851 = vpop.f32.mrf.mxu0
        %v9852 = vadd.f32 0.0, %v9851
        %9853 = vdwg.mxu0
        %9854 = vmatpush.bf16.msra.mxu0 %v9543
        %9855 = vmatpush.bf16.msra.mxu0 %v9539
        %9856 = vmatpush.bf16.msra.mxu0 %v9535
        %9857 = vmatpush.bf16.msra.mxu0 %v9531
        %9858 = vmatpush.bf16.msra.mxu0 %v9527
        %9859 = vmatpush.bf16.msra.mxu0 %v9523
        %9860 = vmatpush.bf16.msra.mxu0 %v9519
        %9861 = vmatpush.bf16.msra.mxu0 %v9515
        %9862 = vmatmul.bf16.gmra.mxu0 %v9210
        %v9863 = vpop.f32.mrf.mxu0
        %v9864 = vadd.f32 %v9815, %v9863
        %v9865 = vpop.f32.mrf.mxu0
        %v9866 = vadd.f32 %v9817, %v9865
        %9867 = vmatmul.bf16.gmra.mxu0 %v9212
        %v9868 = vpop.f32.mrf.mxu0
        %v9869 = vadd.f32 %v9820, %v9868
        %v9870 = vpop.f32.mrf.mxu0
        %v9871 = vadd.f32 %v9822, %v9870
        %9872 = vmatmul.bf16.gmra.mxu0 %v9214
        %v9873 = vpop.f32.mrf.mxu0
        %v9874 = vadd.f32 %v9825, %v9873
        %v9875 = vpop.f32.mrf.mxu0
        %v9876 = vadd.f32 %v9827, %v9875
        %9877 = vmatmul.bf16.gmra.mxu0 %v9216
        %v9878 = vpop.f32.mrf.mxu0
        %v9879 = vadd.f32 %v9830, %v9878
        %v9880 = vpop.f32.mrf.mxu0
        %v9881 = vadd.f32 %v9832, %v9880
        %9882 = vmatmul.bf16.gmra.mxu0 %v9218
        %v9883 = vpop.f32.mrf.mxu0
        %v9884 = vadd.f32 %v9835, %v9883
        %v9885 = vpop.f32.mrf.mxu0
        %v9886 = vadd.f32 %v9837, %v9885
        %9887 = vmatmul.bf16.gmra.mxu0 %v9220
        %v9888 = vpop.f32.mrf.mxu0
        %v9889 = vadd.f32 %v9840, %v9888
        %v9890 = vpop.f32.mrf.mxu0
        %v9891 = vadd.f32 %v9842, %v9890
        %9892 = vmatmul.bf16.gmra.mxu0 %v9222
        %v9893 = vpop.f32.mrf.mxu0
        %v9894 = vadd.f32 %v9845, %v9893
        %v9895 = vpop.f32.mrf.mxu0
        %v9896 = vadd.f32 %v9847, %v9895
        %9897 = vmatmul.bf16.gmra.mxu0 %v9224
        %v9898 = vpop.f32.mrf.mxu0
        %v9899 = vadd.f32 %v9850, %v9898
        %v9900 = vpop.f32.mrf.mxu0
        %v9901 = vadd.f32 %v9852, %v9900
        %9902 = vdwg.mxu0
        %9903 = vmatpush.bf16.msra.mxu0 %v9512
        %9904 = vmatpush.bf16.msra.mxu0 %v9508
        %9905 = vmatpush.bf16.msra.mxu0 %v9504
        %9906 = vmatpush.bf16.msra.mxu0 %v9500
        %9907 = vmatpush.bf16.msra.mxu0 %v9496
        %9908 = vmatpush.bf16.msra.mxu0 %v9492
        %9909 = vmatpush.bf16.msra.mxu0 %v9488
        %9910 = vmatpush.bf16.msra.mxu0 %v9484
        %9911 = vmatmul.bf16.gmra.mxu0 %v9209
        %v9912 = vpop.f32.mrf.mxu0
        %v9913 = vadd.f32 0.0, %v9912
        %v9914 = vpop.f32.mrf.mxu0
        %v9915 = vadd.f32 0.0, %v9914
        %9916 = vmatmul.bf16.gmra.mxu0 %v9211
        %v9917 = vpop.f32.mrf.mxu0
        %v9918 = vadd.f32 0.0, %v9917
        %v9919 = vpop.f32.mrf.mxu0
        %v9920 = vadd.f32 0.0, %v9919
        %9921 = vmatmul.bf16.gmra.mxu0 %v9213
        %v9922 = vpop.f32.mrf.mxu0
        %v9923 = vadd.f32 0.0, %v9922
        %v9924 = vpop.f32.mrf.mxu0
        %v9925 = vadd.f32 0.0, %v9924
        %9926 = vmatmul.bf16.gmra.mxu0 %v9215
        %v9927 = vpop.f32.mrf.mxu0
        %v9928 = vadd.f32 0.0, %v9927
        %v9929 = vpop.f32.mrf.mxu0
        %v9930 = vadd.f32 0.0, %v9929
        %9931 = vmatmul.bf16.gmra.mxu0 %v9217
        %v9932 = vpop.f32.mrf.mxu0
        %v9933 = vadd.f32 0.0, %v9932
        %v9934 = vpop.f32.mrf.mxu0
        %v9935 = vadd.f32 0.0, %v9934
        %9936 = vmatmul.bf16.gmra.mxu0 %v9219
        %v9937 = vpop.f32.mrf.mxu0
        %v9938 = vadd.f32 0.0, %v9937
        %v9939 = vpop.f32.mrf.mxu0
        %v9940 = vadd.f32 0.0, %v9939
        %9941 = vmatmul.bf16.gmra.mxu0 %v9221
        %v9942 = vpop.f32.mrf.mxu0
        %v9943 = vadd.f32 0.0, %v9942
        %v9944 = vpop.f32.mrf.mxu0
        %v9945 = vadd.f32 0.0, %v9944
        %9946 = vmatmul.bf16.gmra.mxu0 %v9223
        %v9947 = vpop.f32.mrf.mxu0
        %v9948 = vadd.f32 0.0, %v9947
        %v9949 = vpop.f32.mrf.mxu0
        %v9950 = vadd.f32 0.0, %v9949
        %9951 = vdwg.mxu0
        %9952 = vmatpush.bf16.msra.mxu0 %v9544
        %9953 = vmatpush.bf16.msra.mxu0 %v9540
        %9954 = vmatpush.bf16.msra.mxu0 %v9536
        %9955 = vmatpush.bf16.msra.mxu0 %v9532
        %9956 = vmatpush.bf16.msra.mxu0 %v9528
        %9957 = vmatpush.bf16.msra.mxu0 %v9524
        %9958 = vmatpush.bf16.msra.mxu0 %v9520
        %9959 = vmatpush.bf16.msra.mxu0 %v9516
        %9960 = vmatmul.bf16.gmra.mxu0 %v9210
        %v9961 = vpop.f32.mrf.mxu0
        %v9962 = vadd.f32 %v9913, %v9961
        %v9963 = vpop.f32.mrf.mxu0
        %v9964 = vadd.f32 %v9915, %v9963
        %9965 = vmatmul.bf16.gmra.mxu0 %v9212
        %v9966 = vpop.f32.mrf.mxu0
        %v9967 = vadd.f32 %v9918, %v9966
        %v9968 = vpop.f32.mrf.mxu0
        %v9969 = vadd.f32 %v9920, %v9968
        %9970 = vmatmul.bf16.gmra.mxu0 %v9214
        %v9971 = vpop.f32.mrf.mxu0
        %v9972 = vadd.f32 %v9923, %v9971
        %v9973 = vpop.f32.mrf.mxu0
        %v9974 = vadd.f32 %v9925, %v9973
        %9975 = vmatmul.bf16.gmra.mxu0 %v9216
        %v9976 = vpop.f32.mrf.mxu0
        %v9977 = vadd.f32 %v9928, %v9976
        %v9978 = vpop.f32.mrf.mxu0
        %v9979 = vadd.f32 %v9930, %v9978
        %9980 = vmatmul.bf16.gmra.mxu0 %v9218
        %v9981 = vpop.f32.mrf.mxu0
        %v9982 = vadd.f32 %v9933, %v9981
        %v9983 = vpop.f32.mrf.mxu0
        %v9984 = vadd.f32 %v9935, %v9983
        %9985 = vmatmul.bf16.gmra.mxu0 %v9220
        %v9986 = vpop.f32.mrf.mxu0
        %v9987 = vadd.f32 %v9938, %v9986
        %v9988 = vpop.f32.mrf.mxu0
        %v9989 = vadd.f32 %v9940, %v9988
        %9990 = vmatmul.bf16.gmra.mxu0 %v9222
        %v9991 = vpop.f32.mrf.mxu0
        %v9992 = vadd.f32 %v9943, %v9991
        %v9993 = vpop.f32.mrf.mxu0
        %v9994 = vadd.f32 %v9945, %v9993
        %9995 = vmatmul.bf16.gmra.mxu0 %v9224
        %v9996 = vpop.f32.mrf.mxu0
        %v9997 = vadd.f32 %v9948, %v9996
        %v9998 = vpop.f32.mrf.mxu0
        %v9999 = vadd.f32 %v9950, %v9998
        %10000 = vdwg.mxu0
        %v10001 = vld [vmem:[#allocation17] sm:$0xff]
        %v10002 = vld [vmem:[#allocation17 + $0x8] sm:$0xff]
        %v10003 = vld [vmem:[#allocation17 + $0x10] sm:$0xff]
        %v10004 = vld [vmem:[#allocation17 + $0x18] sm:$0xff]
        %v10005 = vld [vmem:[#allocation17 + $0x20] sm:$0xff]
        %v10006 = vld [vmem:[#allocation17 + $0x28] sm:$0xff]
        %v10007 = vld [vmem:[#allocation17 + $0x30] sm:$0xff]
        %v10008 = vld [vmem:[#allocation17 + $0x38] sm:$0xff]
        %v10009 = vld [vmem:[#allocation17 + $0x40] sm:$0xff]
        %v10010 = vld [vmem:[#allocation17 + $0x48] sm:$0xff]
        %v10011 = vld [vmem:[#allocation17 + $0x50] sm:$0xff]
        %v10012 = vld [vmem:[#allocation17 + $0x58] sm:$0xff]
        %v10013 = vld [vmem:[#allocation17 + $0x60] sm:$0xff]
        %v10014 = vld [vmem:[#allocation17 + $0x68] sm:$0xff]
        %v10015 = vld [vmem:[#allocation17 + $0x70] sm:$0xff]
        %v10016 = vld [vmem:[#allocation17 + $0x78] sm:$0xff]
        %v10017 = vld [vmem:[#allocation17 + $0x80] sm:$0xff]
        %v10018 = vld [vmem:[#allocation17 + $0x88] sm:$0xff]
        %v10019 = vld [vmem:[#allocation17 + $0x90] sm:$0xff]
        %v10020 = vld [vmem:[#allocation17 + $0x98] sm:$0xff]
        %v10021 = vld [vmem:[#allocation17 + $0xa0] sm:$0xff]
        %v10022 = vld [vmem:[#allocation17 + $0xa8] sm:$0xff]
        %v10023 = vld [vmem:[#allocation17 + $0xb0] sm:$0xff]
        %v10024 = vld [vmem:[#allocation17 + $0xb8] sm:$0xff]
        %v10025 = vld [vmem:[#allocation17 + $0xc0] sm:$0xff]
        %v10026 = vld [vmem:[#allocation17 + $0xc8] sm:$0xff]
        %v10027 = vld [vmem:[#allocation17 + $0xd0] sm:$0xff]
        %v10028 = vld [vmem:[#allocation17 + $0xd8] sm:$0xff]
        %v10029 = vld [vmem:[#allocation17 + $0xe0] sm:$0xff]
        %v10030 = vld [vmem:[#allocation17 + $0xe8] sm:$0xff]
        %v10031 = vld [vmem:[#allocation17 + $0xf0] sm:$0xff]
        %v10032 = vld [vmem:[#allocation17 + $0xf8] sm:$0xff]
        %s10033 = scalar_lea.vmem [#allocation17], 256
        %v10034 = vld [vmem:[%s10033] sm:$0xff]
        %v10035 = vld [vmem:[%s10033 + $0x8] sm:$0xff]
        %v10036 = vld [vmem:[%s10033 + $0x10] sm:$0xff]
        %v10037 = vld [vmem:[%s10033 + $0x18] sm:$0xff]
        %v10038 = vld [vmem:[%s10033 + $0x20] sm:$0xff]
        %v10039 = vld [vmem:[%s10033 + $0x28] sm:$0xff]
        %v10040 = vld [vmem:[%s10033 + $0x30] sm:$0xff]
        %v10041 = vld [vmem:[%s10033 + $0x38] sm:$0xff]
        %v10042 = vld [vmem:[%s10033 + $0x40] sm:$0xff]
        %v10043 = vld [vmem:[%s10033 + $0x48] sm:$0xff]
        %v10044 = vld [vmem:[%s10033 + $0x50] sm:$0xff]
        %v10045 = vld [vmem:[%s10033 + $0x58] sm:$0xff]
        %v10046 = vld [vmem:[%s10033 + $0x60] sm:$0xff]
        %v10047 = vld [vmem:[%s10033 + $0x68] sm:$0xff]
        %v10048 = vld [vmem:[%s10033 + $0x70] sm:$0xff]
        %v10049 = vld [vmem:[%s10033 + $0x78] sm:$0xff]
        %v10050 = vld [vmem:[%s10033 + $0x80] sm:$0xff]
        %v10051 = vld [vmem:[%s10033 + $0x88] sm:$0xff]
        %v10052 = vld [vmem:[%s10033 + $0x90] sm:$0xff]
        %v10053 = vld [vmem:[%s10033 + $0x98] sm:$0xff]
        %v10054 = vld [vmem:[%s10033 + $0xa0] sm:$0xff]
        %v10055 = vld [vmem:[%s10033 + $0xa8] sm:$0xff]
        %v10056 = vld [vmem:[%s10033 + $0xb0] sm:$0xff]
        %v10057 = vld [vmem:[%s10033 + $0xb8] sm:$0xff]
        %v10058 = vld [vmem:[%s10033 + $0xc0] sm:$0xff]
        %v10059 = vld [vmem:[%s10033 + $0xc8] sm:$0xff]
        %v10060 = vld [vmem:[%s10033 + $0xd0] sm:$0xff]
        %v10061 = vld [vmem:[%s10033 + $0xd8] sm:$0xff]
        %v10062 = vld [vmem:[%s10033 + $0xe0] sm:$0xff]
        %v10063 = vld [vmem:[%s10033 + $0xe8] sm:$0xff]
        %v10064 = vld [vmem:[%s10033 + $0xf0] sm:$0xff]
        %v10065 = vld [vmem:[%s10033 + $0xf8] sm:$0xff]
        %10066 = vmatpush.msra.mxu0 %v9803
        %10067 = vmatpush.msra.mxu0 %v9801
        %10068 = vmatpush.msra.mxu0 %v9798
        %10069 = vmatpush.msra.mxu0 %v9796
        %10070 = vmatpush.msra.mxu0 %v9793
        %10071 = vmatpush.msra.mxu0 %v9791
        %10072 = vmatpush.msra.mxu0 %v9788
        %10073 = vmatpush.msra.mxu0 %v9786
        %10074 = vmatpush.msra.mxu0 %v9783
        %10075 = vmatpush.msra.mxu0 %v9781
        %10076 = vmatpush.msra.mxu0 %v9778
        %10077 = vmatpush.msra.mxu0 %v9776
        %10078 = vmatpush.msra.mxu0 %v9773
        %10079 = vmatpush.msra.mxu0 %v9771
        %10080 = vmatpush.msra.mxu0 %v9768
        %10081 = vmatpush.msra.mxu0 %v9766
        %10082 = vmatmul.f32.gmra.mxu0 %v10034
        %v10083 = vpop.f32.mrf.mxu0
        %v10084 = vadd.f32 0.0, %v10083
        %10085 = vmatmul.f32.gmra.mxu0 %v10035
        %v10086 = vpop.f32.mrf.mxu0
        %v10087 = vadd.f32 0.0, %v10086
        %10088 = vmatmul.f32.gmra.mxu0 %v10036
        %v10089 = vpop.f32.mrf.mxu0
        %v10090 = vadd.f32 0.0, %v10089
        %10091 = vmatmul.f32.gmra.mxu0 %v10037
        %v10092 = vpop.f32.mrf.mxu0
        %v10093 = vadd.f32 0.0, %v10092
        %10094 = vmatmul.f32.gmra.mxu0 %v10038
        %v10095 = vpop.f32.mrf.mxu0
        %v10096 = vadd.f32 0.0, %v10095
        %10097 = vmatmul.f32.gmra.mxu0 %v10039
        %v10098 = vpop.f32.mrf.mxu0
        %v10099 = vadd.f32 0.0, %v10098
        %10100 = vmatmul.f32.gmra.mxu0 %v10040
        %v10101 = vpop.f32.mrf.mxu0
        %v10102 = vadd.f32 0.0, %v10101
        %10103 = vmatmul.f32.gmra.mxu0 %v10041
        %v10104 = vpop.f32.mrf.mxu0
        %v10105 = vadd.f32 0.0, %v10104
        %10106 = vmatmul.f32.gmra.mxu0 %v10042
        %v10107 = vpop.f32.mrf.mxu0
        %v10108 = vadd.f32 0.0, %v10107
        %10109 = vmatmul.f32.gmra.mxu0 %v10043
        %v10110 = vpop.f32.mrf.mxu0
        %v10111 = vadd.f32 0.0, %v10110
        %10112 = vmatmul.f32.gmra.mxu0 %v10044
        %v10113 = vpop.f32.mrf.mxu0
        %v10114 = vadd.f32 0.0, %v10113
        %10115 = vmatmul.f32.gmra.mxu0 %v10045
        %v10116 = vpop.f32.mrf.mxu0
        %v10117 = vadd.f32 0.0, %v10116
        %10118 = vmatmul.f32.gmra.mxu0 %v10046
        %v10119 = vpop.f32.mrf.mxu0
        %v10120 = vadd.f32 0.0, %v10119
        %10121 = vmatmul.f32.gmra.mxu0 %v10047
        %v10122 = vpop.f32.mrf.mxu0
        %v10123 = vadd.f32 0.0, %v10122
        %10124 = vmatmul.f32.gmra.mxu0 %v10048
        %v10125 = vpop.f32.mrf.mxu0
        %v10126 = vadd.f32 0.0, %v10125
        %10127 = vmatmul.f32.gmra.mxu0 %v10049
        %v10128 = vpop.f32.mrf.mxu0
        %v10129 = vadd.f32 0.0, %v10128
        %10130 = vmatmul.f32.gmra.mxu0 %v10050
        %v10131 = vpop.f32.mrf.mxu0
        %v10132 = vadd.f32 0.0, %v10131
        %10133 = vmatmul.f32.gmra.mxu0 %v10051
        %v10134 = vpop.f32.mrf.mxu0
        %v10135 = vadd.f32 0.0, %v10134
        %10136 = vmatmul.f32.gmra.mxu0 %v10052
        %v10137 = vpop.f32.mrf.mxu0
        %v10138 = vadd.f32 0.0, %v10137
        %10139 = vmatmul.f32.gmra.mxu0 %v10053
        %v10140 = vpop.f32.mrf.mxu0
        %v10141 = vadd.f32 0.0, %v10140
        %10142 = vmatmul.f32.gmra.mxu0 %v10054
        %v10143 = vpop.f32.mrf.mxu0
        %v10144 = vadd.f32 0.0, %v10143
        %10145 = vmatmul.f32.gmra.mxu0 %v10055
        %v10146 = vpop.f32.mrf.mxu0
        %v10147 = vadd.f32 0.0, %v10146
        %10148 = vmatmul.f32.gmra.mxu0 %v10056
        %v10149 = vpop.f32.mrf.mxu0
        %v10150 = vadd.f32 0.0, %v10149
        %10151 = vmatmul.f32.gmra.mxu0 %v10057
        %v10152 = vpop.f32.mrf.mxu0
        %v10153 = vadd.f32 0.0, %v10152
        %10154 = vmatmul.f32.gmra.mxu0 %v10058
        %v10155 = vpop.f32.mrf.mxu0
        %v10156 = vadd.f32 0.0, %v10155
        %10157 = vmatmul.f32.gmra.mxu0 %v10059
        %v10158 = vpop.f32.mrf.mxu0
        %v10159 = vadd.f32 0.0, %v10158
        %10160 = vmatmul.f32.gmra.mxu0 %v10060
        %v10161 = vpop.f32.mrf.mxu0
        %v10162 = vadd.f32 0.0, %v10161
        %10163 = vmatmul.f32.gmra.mxu0 %v10061
        %v10164 = vpop.f32.mrf.mxu0
        %v10165 = vadd.f32 0.0, %v10164
        %10166 = vmatmul.f32.gmra.mxu0 %v10062
        %v10167 = vpop.f32.mrf.mxu0
        %v10168 = vadd.f32 0.0, %v10167
        %10169 = vmatmul.f32.gmra.mxu0 %v10063
        %v10170 = vpop.f32.mrf.mxu0
        %v10171 = vadd.f32 0.0, %v10170
        %10172 = vmatmul.f32.gmra.mxu0 %v10064
        %v10173 = vpop.f32.mrf.mxu0
        %v10174 = vadd.f32 0.0, %v10173
        %10175 = vmatmul.f32.gmra.mxu0 %v10065
        %v10176 = vpop.f32.mrf.mxu0
        %v10177 = vadd.f32 0.0, %v10176
        %10178 = vdwg.mxu0
        %10179 = vmatpush.msra.mxu0 %v9705
        %10180 = vmatpush.msra.mxu0 %v9703
        %10181 = vmatpush.msra.mxu0 %v9700
        %10182 = vmatpush.msra.mxu0 %v9698
        %10183 = vmatpush.msra.mxu0 %v9695
        %10184 = vmatpush.msra.mxu0 %v9693
        %10185 = vmatpush.msra.mxu0 %v9690
        %10186 = vmatpush.msra.mxu0 %v9688
        %10187 = vmatpush.msra.mxu0 %v9685
        %10188 = vmatpush.msra.mxu0 %v9683
        %10189 = vmatpush.msra.mxu0 %v9680
        %10190 = vmatpush.msra.mxu0 %v9678
        %10191 = vmatpush.msra.mxu0 %v9675
        %10192 = vmatpush.msra.mxu0 %v9673
        %10193 = vmatpush.msra.mxu0 %v9670
        %10194 = vmatpush.msra.mxu0 %v9668
        %10195 = vmatmul.f32.gmra.mxu0 %v10001
        %v10196 = vpop.f32.mrf.mxu0
        %v10197 = vadd.f32 %v10084, %v10196
        %10198 = vmatmul.f32.gmra.mxu0 %v10002
        %v10199 = vpop.f32.mrf.mxu0
        %v10200 = vadd.f32 %v10087, %v10199
        %10201 = vmatmul.f32.gmra.mxu0 %v10003
        %v10202 = vpop.f32.mrf.mxu0
        %v10203 = vadd.f32 %v10090, %v10202
        %10204 = vmatmul.f32.gmra.mxu0 %v10004
        %v10205 = vpop.f32.mrf.mxu0
        %v10206 = vadd.f32 %v10093, %v10205
        %10207 = vmatmul.f32.gmra.mxu0 %v10005
        %v10208 = vpop.f32.mrf.mxu0
        %v10209 = vadd.f32 %v10096, %v10208
        %10210 = vmatmul.f32.gmra.mxu0 %v10006
        %v10211 = vpop.f32.mrf.mxu0
        %v10212 = vadd.f32 %v10099, %v10211
        %10213 = vmatmul.f32.gmra.mxu0 %v10007
        %v10214 = vpop.f32.mrf.mxu0
        %v10215 = vadd.f32 %v10102, %v10214
        %10216 = vmatmul.f32.gmra.mxu0 %v10008
        %v10217 = vpop.f32.mrf.mxu0
        %v10218 = vadd.f32 %v10105, %v10217
        %10219 = vmatmul.f32.gmra.mxu0 %v10009
        %v10220 = vpop.f32.mrf.mxu0
        %v10221 = vadd.f32 %v10108, %v10220
        %10222 = vmatmul.f32.gmra.mxu0 %v10010
        %v10223 = vpop.f32.mrf.mxu0
        %v10224 = vadd.f32 %v10111, %v10223
        %10225 = vmatmul.f32.gmra.mxu0 %v10011
        %v10226 = vpop.f32.mrf.mxu0
        %v10227 = vadd.f32 %v10114, %v10226
        %10228 = vmatmul.f32.gmra.mxu0 %v10012
        %v10229 = vpop.f32.mrf.mxu0
        %v10230 = vadd.f32 %v10117, %v10229
        %10231 = vmatmul.f32.gmra.mxu0 %v10013
        %v10232 = vpop.f32.mrf.mxu0
        %v10233 = vadd.f32 %v10120, %v10232
        %10234 = vmatmul.f32.gmra.mxu0 %v10014
        %v10235 = vpop.f32.mrf.mxu0
        %v10236 = vadd.f32 %v10123, %v10235
        %10237 = vmatmul.f32.gmra.mxu0 %v10015
        %v10238 = vpop.f32.mrf.mxu0
        %v10239 = vadd.f32 %v10126, %v10238
        %10240 = vmatmul.f32.gmra.mxu0 %v10016
        %v10241 = vpop.f32.mrf.mxu0
        %v10242 = vadd.f32 %v10129, %v10241
        %10243 = vmatmul.f32.gmra.mxu0 %v10017
        %v10244 = vpop.f32.mrf.mxu0
        %v10245 = vadd.f32 %v10132, %v10244
        %10246 = vmatmul.f32.gmra.mxu0 %v10018
        %v10247 = vpop.f32.mrf.mxu0
        %v10248 = vadd.f32 %v10135, %v10247
        %10249 = vmatmul.f32.gmra.mxu0 %v10019
        %v10250 = vpop.f32.mrf.mxu0
        %v10251 = vadd.f32 %v10138, %v10250
        %10252 = vmatmul.f32.gmra.mxu0 %v10020
        %v10253 = vpop.f32.mrf.mxu0
        %v10254 = vadd.f32 %v10141, %v10253
        %10255 = vmatmul.f32.gmra.mxu0 %v10021
        %v10256 = vpop.f32.mrf.mxu0
        %v10257 = vadd.f32 %v10144, %v10256
        %10258 = vmatmul.f32.gmra.mxu0 %v10022
        %v10259 = vpop.f32.mrf.mxu0
        %v10260 = vadd.f32 %v10147, %v10259
        %10261 = vmatmul.f32.gmra.mxu0 %v10023
        %v10262 = vpop.f32.mrf.mxu0
        %v10263 = vadd.f32 %v10150, %v10262
        %10264 = vmatmul.f32.gmra.mxu0 %v10024
        %v10265 = vpop.f32.mrf.mxu0
        %v10266 = vadd.f32 %v10153, %v10265
        %10267 = vmatmul.f32.gmra.mxu0 %v10025
        %v10268 = vpop.f32.mrf.mxu0
        %v10269 = vadd.f32 %v10156, %v10268
        %10270 = vmatmul.f32.gmra.mxu0 %v10026
        %v10271 = vpop.f32.mrf.mxu0
        %v10272 = vadd.f32 %v10159, %v10271
        %10273 = vmatmul.f32.gmra.mxu0 %v10027
        %v10274 = vpop.f32.mrf.mxu0
        %v10275 = vadd.f32 %v10162, %v10274
        %10276 = vmatmul.f32.gmra.mxu0 %v10028
        %v10277 = vpop.f32.mrf.mxu0
        %v10278 = vadd.f32 %v10165, %v10277
        %10279 = vmatmul.f32.gmra.mxu0 %v10029
        %v10280 = vpop.f32.mrf.mxu0
        %v10281 = vadd.f32 %v10168, %v10280
        %10282 = vmatmul.f32.gmra.mxu0 %v10030
        %v10283 = vpop.f32.mrf.mxu0
        %v10284 = vadd.f32 %v10171, %v10283
        %10285 = vmatmul.f32.gmra.mxu0 %v10031
        %v10286 = vpop.f32.mrf.mxu0
        %v10287 = vadd.f32 %v10174, %v10286
        %10288 = vmatmul.f32.gmra.mxu0 %v10032
        %v10289 = vpop.f32.mrf.mxu0
        %v10290 = vadd.f32 %v10177, %v10289
        %10291 = vdwg.mxu0
        %s10292 = scalar_lea.vmem [#allocation17], 512
        %v10293 = vld [vmem:[%s10292] sm:$0xff]
        %v10294 = vld [vmem:[%s10292 + $0x8] sm:$0xff]
        %v10295 = vld [vmem:[%s10292 + $0x10] sm:$0xff]
        %v10296 = vld [vmem:[%s10292 + $0x18] sm:$0xff]
        %v10297 = vld [vmem:[%s10292 + $0x20] sm:$0xff]
        %v10298 = vld [vmem:[%s10292 + $0x28] sm:$0xff]
        %v10299 = vld [vmem:[%s10292 + $0x30] sm:$0xff]
        %v10300 = vld [vmem:[%s10292 + $0x38] sm:$0xff]
        %v10301 = vld [vmem:[%s10292 + $0x40] sm:$0xff]
        %v10302 = vld [vmem:[%s10292 + $0x48] sm:$0xff]
        %v10303 = vld [vmem:[%s10292 + $0x50] sm:$0xff]
        %v10304 = vld [vmem:[%s10292 + $0x58] sm:$0xff]
        %v10305 = vld [vmem:[%s10292 + $0x60] sm:$0xff]
        %v10306 = vld [vmem:[%s10292 + $0x68] sm:$0xff]
        %v10307 = vld [vmem:[%s10292 + $0x70] sm:$0xff]
        %v10308 = vld [vmem:[%s10292 + $0x78] sm:$0xff]
        %v10309 = vld [vmem:[%s10292 + $0x80] sm:$0xff]
        %v10310 = vld [vmem:[%s10292 + $0x88] sm:$0xff]
        %v10311 = vld [vmem:[%s10292 + $0x90] sm:$0xff]
        %v10312 = vld [vmem:[%s10292 + $0x98] sm:$0xff]
        %v10313 = vld [vmem:[%s10292 + $0xa0] sm:$0xff]
        %v10314 = vld [vmem:[%s10292 + $0xa8] sm:$0xff]
        %v10315 = vld [vmem:[%s10292 + $0xb0] sm:$0xff]
        %v10316 = vld [vmem:[%s10292 + $0xb8] sm:$0xff]
        %v10317 = vld [vmem:[%s10292 + $0xc0] sm:$0xff]
        %v10318 = vld [vmem:[%s10292 + $0xc8] sm:$0xff]
        %v10319 = vld [vmem:[%s10292 + $0xd0] sm:$0xff]
        %v10320 = vld [vmem:[%s10292 + $0xd8] sm:$0xff]
        %v10321 = vld [vmem:[%s10292 + $0xe0] sm:$0xff]
        %v10322 = vld [vmem:[%s10292 + $0xe8] sm:$0xff]
        %v10323 = vld [vmem:[%s10292 + $0xf0] sm:$0xff]
        %v10324 = vld [vmem:[%s10292 + $0xf8] sm:$0xff]
        %10325 = vmatpush.msra.mxu0 %v9901
        %10326 = vmatpush.msra.mxu0 %v9899
        %10327 = vmatpush.msra.mxu0 %v9896
        %10328 = vmatpush.msra.mxu0 %v9894
        %10329 = vmatpush.msra.mxu0 %v9891
        %10330 = vmatpush.msra.mxu0 %v9889
        %10331 = vmatpush.msra.mxu0 %v9886
        %10332 = vmatpush.msra.mxu0 %v9884
        %10333 = vmatpush.msra.mxu0 %v9881
        %10334 = vmatpush.msra.mxu0 %v9879
        %10335 = vmatpush.msra.mxu0 %v9876
        %10336 = vmatpush.msra.mxu0 %v9874
        %10337 = vmatpush.msra.mxu0 %v9871
        %10338 = vmatpush.msra.mxu0 %v9869
        %10339 = vmatpush.msra.mxu0 %v9866
        %10340 = vmatpush.msra.mxu0 %v9864
        %10341 = vmatmul.f32.gmra.mxu0 %v10293
        %v10342 = vpop.f32.mrf.mxu0
        %v10343 = vadd.f32 0.0, %v10342
        %10344 = vmatmul.f32.gmra.mxu0 %v10294
        %v10345 = vpop.f32.mrf.mxu0
        %v10346 = vadd.f32 0.0, %v10345
        %10347 = vmatmul.f32.gmra.mxu0 %v10295
        %v10348 = vpop.f32.mrf.mxu0
        %v10349 = vadd.f32 0.0, %v10348
        %10350 = vmatmul.f32.gmra.mxu0 %v10296
        %v10351 = vpop.f32.mrf.mxu0
        %v10352 = vadd.f32 0.0, %v10351
        %10353 = vmatmul.f32.gmra.mxu0 %v10297
        %v10354 = vpop.f32.mrf.mxu0
        %v10355 = vadd.f32 0.0, %v10354
        %10356 = vmatmul.f32.gmra.mxu0 %v10298
        %v10357 = vpop.f32.mrf.mxu0
        %v10358 = vadd.f32 0.0, %v10357
        %10359 = vmatmul.f32.gmra.mxu0 %v10299
        %v10360 = vpop.f32.mrf.mxu0
        %v10361 = vadd.f32 0.0, %v10360
        %10362 = vmatmul.f32.gmra.mxu0 %v10300
        %v10363 = vpop.f32.mrf.mxu0
        %v10364 = vadd.f32 0.0, %v10363
        %10365 = vmatmul.f32.gmra.mxu0 %v10301
        %v10366 = vpop.f32.mrf.mxu0
        %v10367 = vadd.f32 0.0, %v10366
        %10368 = vmatmul.f32.gmra.mxu0 %v10302
        %v10369 = vpop.f32.mrf.mxu0
        %v10370 = vadd.f32 0.0, %v10369
        %10371 = vmatmul.f32.gmra.mxu0 %v10303
        %v10372 = vpop.f32.mrf.mxu0
        %v10373 = vadd.f32 0.0, %v10372
        %10374 = vmatmul.f32.gmra.mxu0 %v10304
        %v10375 = vpop.f32.mrf.mxu0
        %v10376 = vadd.f32 0.0, %v10375
        %10377 = vmatmul.f32.gmra.mxu0 %v10305
        %v10378 = vpop.f32.mrf.mxu0
        %v10379 = vadd.f32 0.0, %v10378
        %10380 = vmatmul.f32.gmra.mxu0 %v10306
        %v10381 = vpop.f32.mrf.mxu0
        %v10382 = vadd.f32 0.0, %v10381
        %10383 = vmatmul.f32.gmra.mxu0 %v10307
        %v10384 = vpop.f32.mrf.mxu0
        %v10385 = vadd.f32 0.0, %v10384
        %10386 = vmatmul.f32.gmra.mxu0 %v10308
        %v10387 = vpop.f32.mrf.mxu0
        %v10388 = vadd.f32 0.0, %v10387
        %10389 = vmatmul.f32.gmra.mxu0 %v10309
        %v10390 = vpop.f32.mrf.mxu0
        %v10391 = vadd.f32 0.0, %v10390
        %10392 = vmatmul.f32.gmra.mxu0 %v10310
        %v10393 = vpop.f32.mrf.mxu0
        %v10394 = vadd.f32 0.0, %v10393
        %10395 = vmatmul.f32.gmra.mxu0 %v10311
        %v10396 = vpop.f32.mrf.mxu0
        %v10397 = vadd.f32 0.0, %v10396
        %10398 = vmatmul.f32.gmra.mxu0 %v10312
        %v10399 = vpop.f32.mrf.mxu0
        %v10400 = vadd.f32 0.0, %v10399
        %10401 = vmatmul.f32.gmra.mxu0 %v10313
        %v10402 = vpop.f32.mrf.mxu0
        %v10403 = vadd.f32 0.0, %v10402
        %10404 = vmatmul.f32.gmra.mxu0 %v10314
        %v10405 = vpop.f32.mrf.mxu0
        %v10406 = vadd.f32 0.0, %v10405
        %10407 = vmatmul.f32.gmra.mxu0 %v10315
        %v10408 = vpop.f32.mrf.mxu0
        %v10409 = vadd.f32 0.0, %v10408
        %10410 = vmatmul.f32.gmra.mxu0 %v10316
        %v10411 = vpop.f32.mrf.mxu0
        %v10412 = vadd.f32 0.0, %v10411
        %10413 = vmatmul.f32.gmra.mxu0 %v10317
        %v10414 = vpop.f32.mrf.mxu0
        %v10415 = vadd.f32 0.0, %v10414
        %10416 = vmatmul.f32.gmra.mxu0 %v10318
        %v10417 = vpop.f32.mrf.mxu0
        %v10418 = vadd.f32 0.0, %v10417
        %10419 = vmatmul.f32.gmra.mxu0 %v10319
        %v10420 = vpop.f32.mrf.mxu0
        %v10421 = vadd.f32 0.0, %v10420
        %10422 = vmatmul.f32.gmra.mxu0 %v10320
        %v10423 = vpop.f32.mrf.mxu0
        %v10424 = vadd.f32 0.0, %v10423
        %10425 = vmatmul.f32.gmra.mxu0 %v10321
        %v10426 = vpop.f32.mrf.mxu0
        %v10427 = vadd.f32 0.0, %v10426
        %10428 = vmatmul.f32.gmra.mxu0 %v10322
        %v10429 = vpop.f32.mrf.mxu0
        %v10430 = vadd.f32 0.0, %v10429
        %10431 = vmatmul.f32.gmra.mxu0 %v10323
        %v10432 = vpop.f32.mrf.mxu0
        %v10433 = vadd.f32 0.0, %v10432
        %10434 = vmatmul.f32.gmra.mxu0 %v10324
        %v10435 = vpop.f32.mrf.mxu0
        %v10436 = vadd.f32 0.0, %v10435
        %10437 = vdwg.mxu0
        %v10438 = vadd.f32 %v10197, %v10343
        %v10439 = vadd.f32 %v10200, %v10346
        %v10440 = vadd.f32 %v10203, %v10349
        %v10441 = vadd.f32 %v10206, %v10352
        %v10442 = vadd.f32 %v10209, %v10355
        %v10443 = vadd.f32 %v10212, %v10358
        %v10444 = vadd.f32 %v10215, %v10361
        %v10445 = vadd.f32 %v10218, %v10364
        %v10446 = vadd.f32 %v10221, %v10367
        %v10447 = vadd.f32 %v10224, %v10370
        %v10448 = vadd.f32 %v10227, %v10373
        %v10449 = vadd.f32 %v10230, %v10376
        %v10450 = vadd.f32 %v10233, %v10379
        %v10451 = vadd.f32 %v10236, %v10382
        %v10452 = vadd.f32 %v10239, %v10385
        %v10453 = vadd.f32 %v10242, %v10388
        %v10454 = vadd.f32 %v10245, %v10391
        %v10455 = vadd.f32 %v10248, %v10394
        %v10456 = vadd.f32 %v10251, %v10397
        %v10457 = vadd.f32 %v10254, %v10400
        %v10458 = vadd.f32 %v10257, %v10403
        %v10459 = vadd.f32 %v10260, %v10406
        %v10460 = vadd.f32 %v10263, %v10409
        %v10461 = vadd.f32 %v10266, %v10412
        %v10462 = vadd.f32 %v10269, %v10415
        %v10463 = vadd.f32 %v10272, %v10418
        %v10464 = vadd.f32 %v10275, %v10421
        %v10465 = vadd.f32 %v10278, %v10424
        %v10466 = vadd.f32 %v10281, %v10427
        %v10467 = vadd.f32 %v10284, %v10430
        %v10468 = vadd.f32 %v10287, %v10433
        %v10469 = vadd.f32 %v10290, %v10436
        %s10470 = scalar_lea.vmem [#allocation17], 768
        %v10471 = vld [vmem:[%s10470] sm:$0xff]
        %v10472 = vld [vmem:[%s10470 + $0x8] sm:$0xff]
        %v10473 = vld [vmem:[%s10470 + $0x10] sm:$0xff]
        %v10474 = vld [vmem:[%s10470 + $0x18] sm:$0xff]
        %v10475 = vld [vmem:[%s10470 + $0x20] sm:$0xff]
        %v10476 = vld [vmem:[%s10470 + $0x28] sm:$0xff]
        %v10477 = vld [vmem:[%s10470 + $0x30] sm:$0xff]
        %v10478 = vld [vmem:[%s10470 + $0x38] sm:$0xff]
        %v10479 = vld [vmem:[%s10470 + $0x40] sm:$0xff]
        %v10480 = vld [vmem:[%s10470 + $0x48] sm:$0xff]
        %v10481 = vld [vmem:[%s10470 + $0x50] sm:$0xff]
        %v10482 = vld [vmem:[%s10470 + $0x58] sm:$0xff]
        %v10483 = vld [vmem:[%s10470 + $0x60] sm:$0xff]
        %v10484 = vld [vmem:[%s10470 + $0x68] sm:$0xff]
        %v10485 = vld [vmem:[%s10470 + $0x70] sm:$0xff]
        %v10486 = vld [vmem:[%s10470 + $0x78] sm:$0xff]
        %v10487 = vld [vmem:[%s10470 + $0x80] sm:$0xff]
        %v10488 = vld [vmem:[%s10470 + $0x88] sm:$0xff]
        %v10489 = vld [vmem:[%s10470 + $0x90] sm:$0xff]
        %v10490 = vld [vmem:[%s10470 + $0x98] sm:$0xff]
        %v10491 = vld [vmem:[%s10470 + $0xa0] sm:$0xff]
        %v10492 = vld [vmem:[%s10470 + $0xa8] sm:$0xff]
        %v10493 = vld [vmem:[%s10470 + $0xb0] sm:$0xff]
        %v10494 = vld [vmem:[%s10470 + $0xb8] sm:$0xff]
        %v10495 = vld [vmem:[%s10470 + $0xc0] sm:$0xff]
        %v10496 = vld [vmem:[%s10470 + $0xc8] sm:$0xff]
        %v10497 = vld [vmem:[%s10470 + $0xd0] sm:$0xff]
        %v10498 = vld [vmem:[%s10470 + $0xd8] sm:$0xff]
        %v10499 = vld [vmem:[%s10470 + $0xe0] sm:$0xff]
        %v10500 = vld [vmem:[%s10470 + $0xe8] sm:$0xff]
        %v10501 = vld [vmem:[%s10470 + $0xf0] sm:$0xff]
        %v10502 = vld [vmem:[%s10470 + $0xf8] sm:$0xff]
        %10503 = vmatpush.msra.mxu0 %v9999
        %10504 = vmatpush.msra.mxu0 %v9997
        %10505 = vmatpush.msra.mxu0 %v9994
        %10506 = vmatpush.msra.mxu0 %v9992
        %10507 = vmatpush.msra.mxu0 %v9989
        %10508 = vmatpush.msra.mxu0 %v9987
        %10509 = vmatpush.msra.mxu0 %v9984
        %10510 = vmatpush.msra.mxu0 %v9982
        %10511 = vmatpush.msra.mxu0 %v9979
        %10512 = vmatpush.msra.mxu0 %v9977
        %10513 = vmatpush.msra.mxu0 %v9974
        %10514 = vmatpush.msra.mxu0 %v9972
        %10515 = vmatpush.msra.mxu0 %v9969
        %10516 = vmatpush.msra.mxu0 %v9967
        %10517 = vmatpush.msra.mxu0 %v9964
        %10518 = vmatpush.msra.mxu0 %v9962
        %10519 = vmatmul.f32.gmra.mxu0 %v10471
        %v10520 = vpop.f32.mrf.mxu0
        %v10521 = vadd.f32 0.0, %v10520
        %10522 = vmatmul.f32.gmra.mxu0 %v10472
        %v10523 = vpop.f32.mrf.mxu0
        %v10524 = vadd.f32 0.0, %v10523
        %10525 = vmatmul.f32.gmra.mxu0 %v10473
        %v10526 = vpop.f32.mrf.mxu0
        %v10527 = vadd.f32 0.0, %v10526
        %10528 = vmatmul.f32.gmra.mxu0 %v10474
        %v10529 = vpop.f32.mrf.mxu0
        %v10530 = vadd.f32 0.0, %v10529
        %10531 = vmatmul.f32.gmra.mxu0 %v10475
        %v10532 = vpop.f32.mrf.mxu0
        %v10533 = vadd.f32 0.0, %v10532
        %10534 = vmatmul.f32.gmra.mxu0 %v10476
        %v10535 = vpop.f32.mrf.mxu0
        %v10536 = vadd.f32 0.0, %v10535
        %10537 = vmatmul.f32.gmra.mxu0 %v10477
        %v10538 = vpop.f32.mrf.mxu0
        %v10539 = vadd.f32 0.0, %v10538
        %10540 = vmatmul.f32.gmra.mxu0 %v10478
        %v10541 = vpop.f32.mrf.mxu0
        %v10542 = vadd.f32 0.0, %v10541
        %10543 = vmatmul.f32.gmra.mxu0 %v10479
        %v10544 = vpop.f32.mrf.mxu0
        %v10545 = vadd.f32 0.0, %v10544
        %10546 = vmatmul.f32.gmra.mxu0 %v10480
        %v10547 = vpop.f32.mrf.mxu0
        %v10548 = vadd.f32 0.0, %v10547
        %10549 = vmatmul.f32.gmra.mxu0 %v10481
        %v10550 = vpop.f32.mrf.mxu0
        %v10551 = vadd.f32 0.0, %v10550
        %10552 = vmatmul.f32.gmra.mxu0 %v10482
        %v10553 = vpop.f32.mrf.mxu0
        %v10554 = vadd.f32 0.0, %v10553
        %10555 = vmatmul.f32.gmra.mxu0 %v10483
        %v10556 = vpop.f32.mrf.mxu0
        %v10557 = vadd.f32 0.0, %v10556
        %10558 = vmatmul.f32.gmra.mxu0 %v10484
        %v10559 = vpop.f32.mrf.mxu0
        %v10560 = vadd.f32 0.0, %v10559
        %10561 = vmatmul.f32.gmra.mxu0 %v10485
        %v10562 = vpop.f32.mrf.mxu0
        %v10563 = vadd.f32 0.0, %v10562
        %10564 = vmatmul.f32.gmra.mxu0 %v10486
        %v10565 = vpop.f32.mrf.mxu0
        %v10566 = vadd.f32 0.0, %v10565
        %10567 = vmatmul.f32.gmra.mxu0 %v10487
        %v10568 = vpop.f32.mrf.mxu0
        %v10569 = vadd.f32 0.0, %v10568
        %10570 = vmatmul.f32.gmra.mxu0 %v10488
        %v10571 = vpop.f32.mrf.mxu0
        %v10572 = vadd.f32 0.0, %v10571
        %10573 = vmatmul.f32.gmra.mxu0 %v10489
        %v10574 = vpop.f32.mrf.mxu0
        %v10575 = vadd.f32 0.0, %v10574
        %10576 = vmatmul.f32.gmra.mxu0 %v10490
        %v10577 = vpop.f32.mrf.mxu0
        %v10578 = vadd.f32 0.0, %v10577
        %10579 = vmatmul.f32.gmra.mxu0 %v10491
        %v10580 = vpop.f32.mrf.mxu0
        %v10581 = vadd.f32 0.0, %v10580
        %10582 = vmatmul.f32.gmra.mxu0 %v10492
        %v10583 = vpop.f32.mrf.mxu0
        %v10584 = vadd.f32 0.0, %v10583
        %10585 = vmatmul.f32.gmra.mxu0 %v10493
        %v10586 = vpop.f32.mrf.mxu0
        %v10587 = vadd.f32 0.0, %v10586
        %10588 = vmatmul.f32.gmra.mxu0 %v10494
        %v10589 = vpop.f32.mrf.mxu0
        %v10590 = vadd.f32 0.0, %v10589
        %10591 = vmatmul.f32.gmra.mxu0 %v10495
        %v10592 = vpop.f32.mrf.mxu0
        %v10593 = vadd.f32 0.0, %v10592
        %10594 = vmatmul.f32.gmra.mxu0 %v10496
        %v10595 = vpop.f32.mrf.mxu0
        %v10596 = vadd.f32 0.0, %v10595
        %10597 = vmatmul.f32.gmra.mxu0 %v10497
        %v10598 = vpop.f32.mrf.mxu0
        %v10599 = vadd.f32 0.0, %v10598
        %10600 = vmatmul.f32.gmra.mxu0 %v10498
        %v10601 = vpop.f32.mrf.mxu0
        %v10602 = vadd.f32 0.0, %v10601
        %10603 = vmatmul.f32.gmra.mxu0 %v10499
        %v10604 = vpop.f32.mrf.mxu0
        %v10605 = vadd.f32 0.0, %v10604
        %10606 = vmatmul.f32.gmra.mxu0 %v10500
        %v10607 = vpop.f32.mrf.mxu0
        %v10608 = vadd.f32 0.0, %v10607
        %10609 = vmatmul.f32.gmra.mxu0 %v10501
        %v10610 = vpop.f32.mrf.mxu0
        %v10611 = vadd.f32 0.0, %v10610
        %10612 = vmatmul.f32.gmra.mxu0 %v10502
        %v10613 = vpop.f32.mrf.mxu0
        %v10614 = vadd.f32 0.0, %v10613
        %10615 = vdwg.mxu0
        %v10616 = vadd.f32 %v10438, %v10521
        %v10617 = vadd.f32 %v10439, %v10524
        %v10618 = vadd.f32 %v10440, %v10527
        %v10619 = vadd.f32 %v10441, %v10530
        %v10620 = vadd.f32 %v10442, %v10533
        %v10621 = vadd.f32 %v10443, %v10536
        %v10622 = vadd.f32 %v10444, %v10539
        %v10623 = vadd.f32 %v10445, %v10542
        %v10624 = vadd.f32 %v10446, %v10545
        %v10625 = vadd.f32 %v10447, %v10548
        %v10626 = vadd.f32 %v10448, %v10551
        %v10627 = vadd.f32 %v10449, %v10554
        %v10628 = vadd.f32 %v10450, %v10557
        %v10629 = vadd.f32 %v10451, %v10560
        %v10630 = vadd.f32 %v10452, %v10563
        %v10631 = vadd.f32 %v10453, %v10566
        %v10632 = vadd.f32 %v10454, %v10569
        %v10633 = vadd.f32 %v10455, %v10572
        %v10634 = vadd.f32 %v10456, %v10575
        %v10635 = vadd.f32 %v10457, %v10578
        %v10636 = vadd.f32 %v10458, %v10581
        %v10637 = vadd.f32 %v10459, %v10584
        %v10638 = vadd.f32 %v10460, %v10587
        %v10639 = vadd.f32 %v10461, %v10590
        %v10640 = vadd.f32 %v10462, %v10593
        %v10641 = vadd.f32 %v10463, %v10596
        %v10642 = vadd.f32 %v10464, %v10599
        %v10643 = vadd.f32 %v10465, %v10602
        %v10644 = vadd.f32 %v10466, %v10605
        %v10645 = vadd.f32 %v10467, %v10608
        %v10646 = vadd.f32 %v10468, %v10611
        %v10647 = vadd.f32 %v10469, %v10614
        %v10648 = vld [vmem:[#allocation18] sm:$0x3]
        %v10649 = vperm.slane %v10648, 0
        %v10650 = vmul.f32 %v10616, %v10649
        %v10651 = vmul.f32 %v10617, %v10649
        %v10652 = vmul.f32 %v10618, %v10649
        %v10653 = vmul.f32 %v10619, %v10649
        %v10654 = vmul.f32 %v10620, %v10649
        %v10655 = vmul.f32 %v10621, %v10649
        %v10656 = vmul.f32 %v10622, %v10649
        %v10657 = vmul.f32 %v10623, %v10649
        %v10658 = vmul.f32 %v10624, %v10649
        %v10659 = vmul.f32 %v10625, %v10649
        %v10660 = vmul.f32 %v10626, %v10649
        %v10661 = vmul.f32 %v10627, %v10649
        %v10662 = vmul.f32 %v10628, %v10649
        %v10663 = vmul.f32 %v10629, %v10649
        %v10664 = vmul.f32 %v10630, %v10649
        %v10665 = vmul.f32 %v10631, %v10649
        %v10666 = vmul.f32 %v10632, %v10649
        %v10667 = vmul.f32 %v10633, %v10649
        %v10668 = vmul.f32 %v10634, %v10649
        %v10669 = vmul.f32 %v10635, %v10649
        %v10670 = vmul.f32 %v10636, %v10649
        %v10671 = vmul.f32 %v10637, %v10649
        %v10672 = vmul.f32 %v10638, %v10649
        %v10673 = vmul.f32 %v10639, %v10649
        %v10674 = vmul.f32 %v10640, %v10649
        %v10675 = vmul.f32 %v10641, %v10649
        %v10676 = vmul.f32 %v10642, %v10649
        %v10677 = vmul.f32 %v10643, %v10649
        %v10678 = vmul.f32 %v10644, %v10649
        %v10679 = vmul.f32 %v10645, %v10649
        %v10680 = vmul.f32 %v10646, %v10649
        %v10681 = vmul.f32 %v10647, %v10649
        %v10682 = vperm.slane %v10648, 1
        %v10683 = vadd.f32 %v10650, %v10682
        %v10684 = vadd.f32 %v10651, %v10682
        %v10685 = vadd.f32 %v10652, %v10682
        %v10686 = vadd.f32 %v10653, %v10682
        %v10687 = vadd.f32 %v10654, %v10682
        %v10688 = vadd.f32 %v10655, %v10682
        %v10689 = vadd.f32 %v10656, %v10682
        %v10690 = vadd.f32 %v10657, %v10682
        %v10691 = vadd.f32 %v10658, %v10682
        %v10692 = vadd.f32 %v10659, %v10682
        %v10693 = vadd.f32 %v10660, %v10682
        %v10694 = vadd.f32 %v10661, %v10682
        %v10695 = vadd.f32 %v10662, %v10682
        %v10696 = vadd.f32 %v10663, %v10682
        %v10697 = vadd.f32 %v10664, %v10682
        %v10698 = vadd.f32 %v10665, %v10682
        %v10699 = vadd.f32 %v10666, %v10682
        %v10700 = vadd.f32 %v10667, %v10682
        %v10701 = vadd.f32 %v10668, %v10682
        %v10702 = vadd.f32 %v10669, %v10682
        %v10703 = vadd.f32 %v10670, %v10682
        %v10704 = vadd.f32 %v10671, %v10682
        %v10705 = vadd.f32 %v10672, %v10682
        %v10706 = vadd.f32 %v10673, %v10682
        %v10707 = vadd.f32 %v10674, %v10682
        %v10708 = vadd.f32 %v10675, %v10682
        %v10709 = vadd.f32 %v10676, %v10682
        %v10710 = vadd.f32 %v10677, %v10682
        %v10711 = vadd.f32 %v10678, %v10682
        %v10712 = vadd.f32 %v10679, %v10682
        %v10713 = vadd.f32 %v10680, %v10682
        %v10714 = vadd.f32 %v10681, %v10682
        %v10715 = vsub.f32 0.0, %v10683
        %v10716 = vsub.f32 0.0, %v10684
        %v10717 = vsub.f32 0.0, %v10685
        %v10718 = vsub.f32 0.0, %v10686
        %v10719 = vsub.f32 0.0, %v10687
        %v10720 = vsub.f32 0.0, %v10688
        %v10721 = vsub.f32 0.0, %v10689
        %v10722 = vsub.f32 0.0, %v10690
        %v10723 = vsub.f32 0.0, %v10691
        %v10724 = vsub.f32 0.0, %v10692
        %v10725 = vsub.f32 0.0, %v10693
        %v10726 = vsub.f32 0.0, %v10694
        %v10727 = vsub.f32 0.0, %v10695
        %v10728 = vsub.f32 0.0, %v10696
        %v10729 = vsub.f32 0.0, %v10697
        %v10730 = vsub.f32 0.0, %v10698
        %v10731 = vsub.f32 0.0, %v10699
        %v10732 = vsub.f32 0.0, %v10700
        %v10733 = vsub.f32 0.0, %v10701
        %v10734 = vsub.f32 0.0, %v10702
        %v10735 = vsub.f32 0.0, %v10703
        %v10736 = vsub.f32 0.0, %v10704
        %v10737 = vsub.f32 0.0, %v10705
        %v10738 = vsub.f32 0.0, %v10706
        %v10739 = vsub.f32 0.0, %v10707
        %v10740 = vsub.f32 0.0, %v10708
        %v10741 = vsub.f32 0.0, %v10709
        %v10742 = vsub.f32 0.0, %v10710
        %v10743 = vsub.f32 0.0, %v10711
        %v10744 = vsub.f32 0.0, %v10712
        %v10745 = vsub.f32 0.0, %v10713
        %v10746 = vsub.f32 0.0, %v10714
        %v10747 = vmul.f32 %v10715, 1.442695
        %v10748 = vpow.pop %v10747
        %v10749 = vmul.f32 %v10716, 1.442695
        %v10750 = vpow.pop %v10749
        %v10751 = vmul.f32 %v10717, 1.442695
        %v10752 = vpow.pop %v10751
        %v10753 = vmul.f32 %v10718, 1.442695
        %v10754 = vpow.pop %v10753
        %v10755 = vmul.f32 %v10719, 1.442695
        %v10756 = vpow.pop %v10755
        %v10757 = vmul.f32 %v10720, 1.442695
        %v10758 = vpow.pop %v10757
        %v10759 = vmul.f32 %v10721, 1.442695
        %v10760 = vpow.pop %v10759
        %v10761 = vmul.f32 %v10722, 1.442695
        %v10762 = vpow.pop %v10761
        %v10763 = vmul.f32 %v10723, 1.442695
        %v10764 = vpow.pop %v10763
        %v10765 = vmul.f32 %v10724, 1.442695
        %v10766 = vpow.pop %v10765
        %v10767 = vmul.f32 %v10725, 1.442695
        %v10768 = vpow.pop %v10767
        %v10769 = vmul.f32 %v10726, 1.442695
        %v10770 = vpow.pop %v10769
        %v10771 = vmul.f32 %v10727, 1.442695
        %v10772 = vpow.pop %v10771
        %v10773 = vmul.f32 %v10728, 1.442695
        %v10774 = vpow.pop %v10773
        %v10775 = vmul.f32 %v10729, 1.442695
        %v10776 = vpow.pop %v10775
        %v10777 = vmul.f32 %v10730, 1.442695
        %v10778 = vpow.pop %v10777
        %v10779 = vmul.f32 %v10731, 1.442695
        %v10780 = vpow.pop %v10779
        %v10781 = vmul.f32 %v10732, 1.442695
        %v10782 = vpow.pop %v10781
        %v10783 = vmul.f32 %v10733, 1.442695
        %v10784 = vpow.pop %v10783
        %v10785 = vmul.f32 %v10734, 1.442695
        %v10786 = vpow.pop %v10785
        %v10787 = vmul.f32 %v10735, 1.442695
        %v10788 = vpow.pop %v10787
        %v10789 = vmul.f32 %v10736, 1.442695
        %v10790 = vpow.pop %v10789
        %v10791 = vmul.f32 %v10737, 1.442695
        %v10792 = vpow.pop %v10791
        %v10793 = vmul.f32 %v10738, 1.442695
        %v10794 = vpow.pop %v10793
        %v10795 = vmul.f32 %v10739, 1.442695
        %v10796 = vpow.pop %v10795
        %v10797 = vmul.f32 %v10740, 1.442695
        %v10798 = vpow.pop %v10797
        %v10799 = vmul.f32 %v10741, 1.442695
        %v10800 = vpow.pop %v10799
        %v10801 = vmul.f32 %v10742, 1.442695
        %v10802 = vpow.pop %v10801
        %v10803 = vmul.f32 %v10743, 1.442695
        %v10804 = vpow.pop %v10803
        %v10805 = vmul.f32 %v10744, 1.442695
        %v10806 = vpow.pop %v10805
        %v10807 = vmul.f32 %v10745, 1.442695
        %v10808 = vpow.pop %v10807
        %v10809 = vmul.f32 %v10746, 1.442695
        %v10810 = vpow.pop %v10809
        %v10811 = vadd.f32 %v10748, 1.0
        %v10812 = vadd.f32 %v10750, 1.0
        %v10813 = vadd.f32 %v10752, 1.0
        %v10814 = vadd.f32 %v10754, 1.0
        %v10815 = vadd.f32 %v10756, 1.0
        %v10816 = vadd.f32 %v10758, 1.0
        %v10817 = vadd.f32 %v10760, 1.0
        %v10818 = vadd.f32 %v10762, 1.0
        %v10819 = vadd.f32 %v10764, 1.0
        %v10820 = vadd.f32 %v10766, 1.0
        %v10821 = vadd.f32 %v10768, 1.0
        %v10822 = vadd.f32 %v10770, 1.0
        %v10823 = vadd.f32 %v10772, 1.0
        %v10824 = vadd.f32 %v10774, 1.0
        %v10825 = vadd.f32 %v10776, 1.0
        %v10826 = vadd.f32 %v10778, 1.0
        %v10827 = vadd.f32 %v10780, 1.0
        %v10828 = vadd.f32 %v10782, 1.0
        %v10829 = vadd.f32 %v10784, 1.0
        %v10830 = vadd.f32 %v10786, 1.0
        %v10831 = vadd.f32 %v10788, 1.0
        %v10832 = vadd.f32 %v10790, 1.0
        %v10833 = vadd.f32 %v10792, 1.0
        %v10834 = vadd.f32 %v10794, 1.0
        %v10835 = vadd.f32 %v10796, 1.0
        %v10836 = vadd.f32 %v10798, 1.0
        %v10837 = vadd.f32 %v10800, 1.0
        %v10838 = vadd.f32 %v10802, 1.0
        %v10839 = vadd.f32 %v10804, 1.0
        %v10840 = vadd.f32 %v10806, 1.0
        %v10841 = vadd.f32 %v10808, 1.0
        %v10842 = vadd.f32 %v10810, 1.0
        %v10843 = vrcp.pop %v10811
        %v10844 = vrcp.pop %v10812
        %v10845 = vrcp.pop %v10813
        %v10846 = vrcp.pop %v10814
        %v10847 = vrcp.pop %v10815
        %v10848 = vrcp.pop %v10816
        %v10849 = vrcp.pop %v10817
        %v10850 = vrcp.pop %v10818
        %v10851 = vrcp.pop %v10819
        %v10852 = vrcp.pop %v10820
        %v10853 = vrcp.pop %v10821
        %v10854 = vrcp.pop %v10822
        %v10855 = vrcp.pop %v10823
        %v10856 = vrcp.pop %v10824
        %v10857 = vrcp.pop %v10825
        %v10858 = vrcp.pop %v10826
        %v10859 = vrcp.pop %v10827
        %v10860 = vrcp.pop %v10828
        %v10861 = vrcp.pop %v10829
        %v10862 = vrcp.pop %v10830
        %v10863 = vrcp.pop %v10831
        %v10864 = vrcp.pop %v10832
        %v10865 = vrcp.pop %v10833
        %v10866 = vrcp.pop %v10834
        %v10867 = vrcp.pop %v10835
        %v10868 = vrcp.pop %v10836
        %v10869 = vrcp.pop %v10837
        %v10870 = vrcp.pop %v10838
        %v10871 = vrcp.pop %v10839
        %v10872 = vrcp.pop %v10840
        %v10873 = vrcp.pop %v10841
        %v10874 = vrcp.pop %v10842
        %v10875 = vmul.f32 %v10843, 255.0
        %v10876 = vmul.f32 %v10844, 255.0
        %v10877 = vmul.f32 %v10845, 255.0
        %v10878 = vmul.f32 %v10846, 255.0
        %v10879 = vmul.f32 %v10847, 255.0
        %v10880 = vmul.f32 %v10848, 255.0
        %v10881 = vmul.f32 %v10849, 255.0
        %v10882 = vmul.f32 %v10850, 255.0
        %v10883 = vmul.f32 %v10851, 255.0
        %v10884 = vmul.f32 %v10852, 255.0
        %v10885 = vmul.f32 %v10853, 255.0
        %v10886 = vmul.f32 %v10854, 255.0
        %v10887 = vmul.f32 %v10855, 255.0
        %v10888 = vmul.f32 %v10856, 255.0
        %v10889 = vmul.f32 %v10857, 255.0
        %v10890 = vmul.f32 %v10858, 255.0
        %v10891 = vmul.f32 %v10859, 255.0
        %v10892 = vmul.f32 %v10860, 255.0
        %v10893 = vmul.f32 %v10861, 255.0
        %v10894 = vmul.f32 %v10862, 255.0
        %v10895 = vmul.f32 %v10863, 255.0
        %v10896 = vmul.f32 %v10864, 255.0
        %v10897 = vmul.f32 %v10865, 255.0
        %v10898 = vmul.f32 %v10866, 255.0
        %v10899 = vmul.f32 %v10867, 255.0
        %v10900 = vmul.f32 %v10868, 255.0
        %v10901 = vmul.f32 %v10869, 255.0
        %v10902 = vmul.f32 %v10870, 255.0
        %v10903 = vmul.f32 %v10871, 255.0
        %v10904 = vmul.f32 %v10872, 255.0
        %v10905 = vmul.f32 %v10873, 255.0
        %v10906 = vmul.f32 %v10874, 255.0
        %10907 = vst [vmem:[%s721] sm:$0xff] %v10875
        %10908 = vst [vmem:[%s721 + $0x8] sm:$0xff] %v10876
        %10909 = vst [vmem:[%s721 + $0x10] sm:$0xff] %v10877
        %10910 = vst [vmem:[%s721 + $0x18] sm:$0xff] %v10878
        %10911 = vst [vmem:[%s721 + $0x20] sm:$0xff] %v10879
        %10912 = vst [vmem:[%s721 + $0x28] sm:$0xff] %v10880
        %10913 = vst [vmem:[%s721 + $0x30] sm:$0xff] %v10881
        %10914 = vst [vmem:[%s721 + $0x38] sm:$0xff] %v10882
        %10915 = vst [vmem:[%s721 + $0x40] sm:$0xff] %v10883
        %10916 = vst [vmem:[%s721 + $0x48] sm:$0xff] %v10884
        %10917 = vst [vmem:[%s721 + $0x50] sm:$0xff] %v10885
        %10918 = vst [vmem:[%s721 + $0x58] sm:$0xff] %v10886
        %10919 = vst [vmem:[%s721 + $0x60] sm:$0xff] %v10887
        %10920 = vst [vmem:[%s721 + $0x68] sm:$0xff] %v10888
        %10921 = vst [vmem:[%s721 + $0x70] sm:$0xff] %v10889
        %10922 = vst [vmem:[%s721 + $0x78] sm:$0xff] %v10890
        %10923 = vst [vmem:[%s721 + $0x80] sm:$0xff] %v10891
        %10924 = vst [vmem:[%s721 + $0x88] sm:$0xff] %v10892
        %10925 = vst [vmem:[%s721 + $0x90] sm:$0xff] %v10893
        %10926 = vst [vmem:[%s721 + $0x98] sm:$0xff] %v10894
        %10927 = vst [vmem:[%s721 + $0xa0] sm:$0xff] %v10895
        %10928 = vst [vmem:[%s721 + $0xa8] sm:$0xff] %v10896
        %10929 = vst [vmem:[%s721 + $0xb0] sm:$0xff] %v10897
        %10930 = vst [vmem:[%s721 + $0xb8] sm:$0xff] %v10898
        %10931 = vst [vmem:[%s721 + $0xc0] sm:$0xff] %v10899
        %10932 = vst [vmem:[%s721 + $0xc8] sm:$0xff] %v10900
        %10933 = vst [vmem:[%s721 + $0xd0] sm:$0xff] %v10901
        %10934 = vst [vmem:[%s721 + $0xd8] sm:$0xff] %v10902
        %10935 = vst [vmem:[%s721 + $0xe0] sm:$0xff] %v10903
        %10936 = vst [vmem:[%s721 + $0xe8] sm:$0xff] %v10904
        %10937 = vst [vmem:[%s721 + $0xf0] sm:$0xff] %v10905
        %10938 = vst [vmem:[%s721 + $0xf8] sm:$0xff] %v10906
        %s10939 = sand.u32 %s430, 1
        %s10940 = scalar_lea.sflag [#allocation4], %s10939
        %s10941 = sand.u32 %s430, 1
        %s10942 = smul.addr %s10941, 256
        %s10943 = scalar_lea.vmem [#allocation20], %s10942
        // Predicated region
        $region133: #{tpu_custom_call.1} parent=91 // pred_check
          %p10944 = pneg %p440
        $region134: #{tpu_custom_call.1} parent=91 // pred_check_branch
          %10946 = sbr.rel (%p10944) target = $region136
        $region135: #{tpu_custom_call.1} parent=91 // pred_region
          %s10947 = smul.u32 32, %s39
          %10949 = vsyncadd %s10940, 0
          %s10950 = smul.addr %s10947, 8
          %s10951 = scalar_lea.hbm %s18, %s10950
          %s10952 = sshll.u32 %s10943, 4
          %s10953 = int_to_ptr.vmem [resolvable:$true] %s10952
          %s10954 = sshll.u32 %s10951, 4
          %s10955 = int_to_ptr.hbm [resolvable:$true] %s10954
          %10960 = dma.vmem_to_hbm [thread:$0]  %s10953, 4096, %s10955, %s10940, 128, 128, 8
        $region136: #{tpu_custom_call.1} parent=91 // pred_fallthru
          _
      $region92: #{tpu_custom_call.1} parent=5 // pred_fallthru
        _
      %p10961 = scmp.le.s32.totalorder 2, %s34
      // Predicated region
      $region137: #{tpu_custom_call.1} parent=5 // pred_check
        %p10962 = pneg %p10961
      $region138: #{tpu_custom_call.1} parent=5 // pred_check_branch
        %10964 = sbr.rel (%p10962) target = $region140
      $region139: #{tpu_custom_call.1} parent=5 // pred_region
        %s10965 = ssub.s32 %s34, 2
        // Predicated region
        $region141: #{tpu_custom_call.1} parent=139 // pred_check
          %p10966 = pneg %p446
        $region142: #{tpu_custom_call.1} parent=139 // pred_check_branch
          %10968 = sbr.rel (%p10966) target = $region144
        $region143: #{tpu_custom_call.1} parent=139 // pred_region
          %s10969 = sand.u32 %s431, 1
          %s10970 = scalar_lea.sflag [#allocation4], %s10969
          %s10971 = sand.u32 %s431, 1
          %s10972 = smul.addr %s10971, 256
          %s10973 = scalar_lea.vmem [#allocation20], %s10972
          %10975 = dma.done %s10970, 4096
        $region144: #{tpu_custom_call.1} parent=139 // pred_fallthru
          _
      $region140: #{tpu_custom_call.1} parent=5 // pred_fallthru
        _
    $region6: #{tpu_custom_call.1} parent=1 // loop_footer
      %s38 = sadd.s32 1, %s34
    $region7: #{tpu_custom_call.1} parent=1 // loop_footer_branch
      %33 = sbr.rel target = $region3
    $region8: #{tpu_custom_call.1} parent=1 // loop_exit
      _
    %10976 = vsyncpa [#allocation3], 1
    %s10977 = scalar_lea.sflag [#allocation3], 1
    %10978 = vsyncpa %s10977, 1
    %10979 = vsyncpa [#allocation10], 1
    %10980 = vsyncpa [#allocation13], 1
    %10981 = vsyncpa [#allocation16], 1
    %10982 = vsyncpa [#allocation19], 1
    %10983 = vsyncpa [#allocation4], 1
    %s10984 = scalar_lea.sflag [#allocation4], 1
    %10985 = vsyncpa %s10984, 1
    %10986 = vsyncpa [#allocation5], 1
    %s10987 = scalar_lea.sflag [#allocation5], 1
    %10988 = vsyncpa %s10987, 1
    %10989 = vsyncpa [#allocation7], 1

</llo_original>
